<compile_context>
chip_gen: v5e
topology: v5e:2x2
jax: 0.10.0
libtpu: 0.0.40
codegen_flags: <defaults>
</compile_context>

<pallas_src>
import functools

import jax
import jax.numpy as jnp
from jax.experimental import pallas as pl
from jax.experimental.pallas import tpu as pltpu

EPS = 1e-5      # BatchNorm eps (PyTorch default)
CP = 128        # physical (lane-padded) OUTPUT channel width
VMEM_LIMIT = 32 * 1024 * 1024


def _round_up(x, m):
    return (x + m - 1) // m * m


def _choose_m(m, tm_max=512):
    """Pick (padded M, M tile).

    Both are multiples of 16 (bf16 packed sublanes).  Whenever M is large
    enough we keep >= 2 parallel M tiles so the 'parallel' grid axis can be
    sharded across both TensorCores on v7x.
    """
    m_pad = _round_up(m, 16)
    if m_pad <= 16:
        return m_pad, m_pad
    target = min(tm_max, m_pad // 2)
    tm = max(16, (target // 16) * 16)
    m_pad = _round_up(m_pad, tm)
    return m_pad, tm


# ----------------------------------------------------------------------------
# Pallas kernels
# ----------------------------------------------------------------------------

def _fused_mm_kernel(*refs, relu, has_residual):
    """Single full-K bf16 matmul (f32 result) + BN scale/shift [+res] [+ReLU]."""
    if has_residual:
        a_ref, b_ref, scale_ref, shift_ref, res_ref, o_ref = refs
    else:
        a_ref, b_ref, scale_ref, shift_ref, o_ref = refs
        res_ref = None

    y = jnp.dot(a_ref[...], b_ref[...], preferred_element_type=jnp.float32)
    y = y * scale_ref[...] + shift_ref[...]
    if has_residual:
        y = y + res_ref[...].astype(jnp.float32)
    if relu:
        y = jnp.maximum(y, 0.0)
    o_ref[...] = y.astype(o_ref.dtype)


def fused_conv_matmul(a, b, scale, shift, *, relu, residual=None,
                      out_dtype=jnp.bfloat16):
    """(M, K) @ (K, Co) with fused BN/residual/ReLU epilogue.

    a, b are fed to the MXU in bf16 (f32 accumulation).  Tiled over M only
    ("parallel"); K is padded to the next multiple of 128 and kept whole, so
    the weight block is VMEM-resident across all M tiles.
    """
    M, K = a.shape
    _, Co = b.shape
    co_pad = _round_up(Co, 128)
    k_pad = _round_up(K, 128)          # pad only the final K, not per-tap Ci
    m_pad, tm = _choose_m(M)

    a_p = jnp.pad(a.astype(jnp.bfloat16), ((0, m_pad - M), (0, k_pad - K)))
    b_p = jnp.pad(b.astype(jnp.bfloat16), ((0, k_pad - K), (0, co_pad - Co)))
    scale_p = jnp.pad(scale.astype(jnp.float32), ((0, 0), (0, co_pad - Co)))
    shift_p = jnp.pad(shift.astype(jnp.float32), ((0, 0), (0, co_pad - Co)))

    in_specs = [
        pl.BlockSpec((tm, k_pad), lambda i: (i, 0)),
        pl.BlockSpec((k_pad, co_pad), lambda i: (0, 0)),   # resident weights
        pl.BlockSpec((1, co_pad), lambda i: (0, 0)),
        pl.BlockSpec((1, co_pad), lambda i: (0, 0)),
    ]
    args = [a_p, b_p, scale_p, shift_p]

    has_residual = residual is not None
    if has_residual:
        res_p = jnp.pad(residual.astype(jnp.bfloat16),
                        ((0, m_pad - M), (0, co_pad - Co)))
        in_specs.append(pl.BlockSpec((tm, co_pad), lambda i: (i, 0)))
        args.append(res_p)

    kern = functools.partial(_fused_mm_kernel, relu=relu,
                             has_residual=has_residual)
    out = pl.pallas_call(
        kern,
        out_shape=jax.ShapeDtypeStruct((m_pad, co_pad), out_dtype),
        grid=(m_pad // tm,),
        in_specs=in_specs,
        out_specs=pl.BlockSpec((tm, co_pad), lambda i: (i, 0)),
        compiler_params=pltpu.CompilerParams(
            dimension_semantics=("parallel",),
            vmem_limit_bytes=VMEM_LIMIT),
    )(*args)
    return out[:M, :Co]


def _max_taps_kernel(*refs):
    """Elementwise max over N tap slabs (pure VPU, lane-dense)."""
    o_ref = refs[-1]
    taps = refs[:-1]
    m = taps[0][...]
    for t in taps[1:]:
        m = jnp.maximum(m, t[...])
    o_ref[...] = m


def pallas_max_taps(taps):
    """taps: list of (M, C) slabs -> elementwise max, tiled over M."""
    M, C = taps[0].shape
    m_pad, tm = _choose_m(M)
    taps_p = [jnp.pad(t, ((0, m_pad - M), (0, 0))) for t in taps]
    out = pl.pallas_call(
        _max_taps_kernel,
        out_shape=jax.ShapeDtypeStruct((m_pad, C), taps[0].dtype),
        grid=(m_pad // tm,),
        in_specs=[pl.BlockSpec((tm, C), lambda i: (i, 0))] * len(taps),
        out_specs=pl.BlockSpec((tm, C), lambda i: (i, 0)),
        compiler_params=pltpu.CompilerParams(
            dimension_semantics=("parallel",),
            vmem_limit_bytes=VMEM_LIMIT),
    )(*taps_p)
    return out[:M]


def _avgpool_kernel(x_ref, o_ref):
    o_ref[...] = jnp.mean(x_ref[...].astype(jnp.float32), axis=1)


def pallas_global_avgpool(x3d):
    """Adaptive avg pool to (1,1): (N, H*W, C) -> (N, C) in f32."""
    N, HW, C = x3d.shape
    return pl.pallas_call(
        _avgpool_kernel,
        out_shape=jax.ShapeDtypeStruct((N, C), jnp.float32),
        grid=(1,),
        in_specs=[pl.BlockSpec((N, HW, C), lambda i: (0, 0, 0))],
        out_specs=pl.BlockSpec((N, C), lambda i: (0, 0)),
        compiler_params=pltpu.CompilerParams(
            dimension_semantics=("arbitrary",),
            vmem_limit_bytes=VMEM_LIMIT),
    )(x3d)


# ----------------------------------------------------------------------------
# Plain-JAX glue: im2col, layer composition, param init
# ----------------------------------------------------------------------------

def _extract_patches(x, kh, kw, stride, padding):
    """x: (N, H, W, C) -> im2col matrix (N*OH*OW, kh*kw*C), plus OH, OW."""
    N, H, W, C = x.shape
    xp = jnp.pad(x, ((0, 0), (padding, padding), (padding, padding), (0, 0)))
    OH = (H + 2 * padding - kh) // stride + 1
    OW = (W + 2 * padding - kw) // stride + 1
    cols = []
    for i in range(kh):
        for j in range(kw):
            cols.append(xp[:, i:i + stride * OH:stride,
                           j:j + stride * OW:stride, :])
    patches = jnp.stack(cols, axis=3)                 # (N, OH, OW, kh*kw, C)
    return patches.reshape(N * OH * OW, kh * kw * C), OH, OW


def conv_bn_act(x, w, scale, shift, *, stride, padding, relu, residual=None):
    """Conv2d (no bias) + eval BatchNorm + optional residual add + optional ReLU,
    all fused into a single Pallas matmul epilogue.

    w: (KH, KW, Ci_real, CP) -- only the real input channels of x are used,
    so the im2col K dimension stays compact (kh*kw*Ci_real, padded to 128).
    """
    N, H, W, _ = x.shape
    KH, KW, Ci, Co = w.shape
    x_real = x[..., :Ci]                              # drop padded lanes for K
    a, OH, OW = _extract_patches(x_real, KH, KW, stride, padding)
    res2d = (residual.reshape(N * OH * OW, residual.shape[-1])
             if residual is not None else None)
    y = fused_conv_matmul(a, w.reshape(KH * KW * Ci, Co), scale, shift,
                          relu=relu, residual=res2d)
    return y.reshape(N, OH, OW, Co)


def maxpool3x3s2(x):
    N, H, W, C = x.shape
    pad = 1
    xp = jnp.pad(x, ((0, 0), (pad, pad), (pad, pad), (0, 0)),
                 constant_values=-jnp.inf)
    OH = (H + 2 * pad - 3) // 2 + 1
    OW = (W + 2 * pad - 3) // 2 + 1
    taps = []
    for i in range(3):
        for j in range(3):
            taps.append(xp[:, i:i + 2 * OH:2, j:j + 2 * OW:2, :]
                        .reshape(N * OH * OW, C))
    y = pallas_max_taps(taps)
    return y.reshape(N, OH, OW, C)


def basic_block(x, blk):
    s = blk["stride"]
    out1 = conv_bn_act(x, blk["conv1"], *blk["bn1"],
                       stride=s, padding=1, relu=True)
    if "down_conv" in blk:
        identity = conv_bn_act(x, blk["down_conv"], *blk["down_bn"],
                               stride=s, padding=0, relu=False)
    else:
        identity = x
    # conv2 + bn2 + residual add + ReLU fully fused in one kernel.
    return conv_bn_act(out1, blk["conv2"], *blk["bn2"],
                       stride=1, padding=1, relu=True, residual=identity)


def encoder_cnn_forward(params, images_nchw):
    """EncoderCNN.forward: image feature vectors (fc is Identity)."""
    x = jnp.transpose(images_nchw.astype(jnp.float32), (0, 2, 3, 1))  # NCHW->NHWC
    x = conv_bn_act(x, params["conv1"], *params["bn1"],
                    stride=2, padding=3, relu=True)
    x = maxpool3x3s2(x)
    for blocks in params["layers"]:
        for blk in blocks:
            x = basic_block(x, blk)
    N, H, W, C = x.shape
    feats = pallas_global_avgpool(x.reshape(N, H * W, C))   # (N, CP) f32
    return feats[:, :params["output_size"]]                  # model.fc = Identity()


# ----------------------------------------------------------------------------
# Deterministic synthetic parameters
#   * input channels kept at their real width (compact im2col K)
#   * output channels lane-padded to CP=128 with exact-zero columns
# ----------------------------------------------------------------------------

def _conv_init(key, kh, kw, ic_real, oc_real):
    fan_in = kh * kw * ic_real
    w_real = (jax.random.normal(key, (kh, kw, ic_real, oc_real), jnp.float32)
              * (2.0 / fan_in) ** 0.5)
    w = jnp.zeros((kh, kw, ic_real, CP), jnp.float32)
    return w.at[..., :oc_real].set(w_real)


def _bn_init(key, c_real):
    k1, k2, k3, k4 = jax.random.split(key, 4)
    gamma = 1.0 + 0.1 * jax.random.normal(k1, (c_real,), jnp.float32)
    beta = 0.1 * jax.random.normal(k2, (c_real,), jnp.float32)
    mean = 0.1 * jax.random.normal(k3, (c_real,), jnp.float32)
    var = jax.random.uniform(k4, (c_real,), jnp.float32, minval=0.5, maxval=1.5)
    scale_r = gamma / jnp.sqrt(var + EPS)
    shift_r = beta - mean * scale_r
    scale = jnp.zeros((1, CP), jnp.float32).at[0, :c_real].set(scale_r)
    shift = jnp.zeros((1, CP), jnp.float32).at[0, :c_real].set(shift_r)
    return scale, shift


def make_encoder_params(key, in_ch=3, widths=(8, 16, 32, 64)):
    keys = iter(jax.random.split(key, 128))
    params = {
        "conv1": _conv_init(next(keys), 7, 7, in_ch, widths[0]),
        "bn1": _bn_init(next(keys), widths[0]),
        "layers": [],
    }
    in_c = widths[0]
    for li, w in enumerate(widths):
        first_stride = 1 if li == 0 else 2
        blocks = []
        for bi in range(2):
            s = first_stride if bi == 0 else 1
            blk = {
                "stride": s,
                "conv1": _conv_init(next(keys), 3, 3, in_c, w),
                "bn1": _bn_init(next(keys), w),
                "conv2": _conv_init(next(keys), 3, 3, w, w),
                "bn2": _bn_init(next(keys), w),
            }
            if s != 1 or in_c != w:
                blk["down_conv"] = _conv_init(next(keys), 1, 1, in_c, w)
                blk["down_bn"] = _bn_init(next(keys), w)
            blocks.append(blk)
            in_c = w
        params["layers"].append(blocks)
    params["output_size"] = widths[-1]
    return params


if __name__ == "__main__":
    key = jax.random.PRNGKey(0)
    pkey, xkey = jax.random.split(key)
    params = make_encoder_params(pkey, in_ch=3, widths=(8, 16, 32, 64))

    # PyTorch convention: NCHW float images.
    images = jax.random.normal(xkey, (2, 3, 32, 32), jnp.float32)

    forward = jax.jit(functools.partial(encoder_cnn_forward, params))
    feats = forward(images)
    feats = jax.block_until_ready(feats)

    assert feats.shape == (2, params["output_size"]), feats.shape
    assert bool(jnp.all(jnp.isfinite(feats)))
    print("KERNEL_OK")
</pallas_src>

<mosaic_0001>
module attributes {stable_mosaic.version = 11 : i64} {
  func.func @_fused_mm_kernel(%arg0: i32, %arg1: memref<256x256xbf16, #tpu.memory_space<vmem>>, %arg2: memref<256x128xbf16, #tpu.memory_space<vmem>>, %arg3: memref<1x128xf32, #tpu.memory_space<vmem>>, %arg4: memref<1x128xf32, #tpu.memory_space<vmem>>, %arg5: memref<256x128xbf16, #tpu.memory_space<vmem>>) attributes {dimension_semantics = [#tpu.dimension_semantics<parallel>], iteration_bounds = array<i64: 2>, scalar_prefetch = 0 : i64, scratch_operands = 0 : i64, tpu.core_type = #tpu.core_type<tc>, window_params = [{transform_indices = @transform_0, window_bounds = array<i64: 256, 256>}, {pipeline_mode = #tpu.pipeline_mode<synchronous>, transform_indices = @transform_1, window_bounds = array<i64: 256, 128>}, {pipeline_mode = #tpu.pipeline_mode<synchronous>, transform_indices = @transform_2, window_bounds = array<i64: 1, 128>}, {pipeline_mode = #tpu.pipeline_mode<synchronous>, transform_indices = @transform_3, window_bounds = array<i64: 1, 128>}, {transform_indices = @transform_4, window_bounds = array<i64: 256, 128>}]} {
    %c0 = arith.constant 0 : index
    %c0_0 = arith.constant 0 : index
    %0 = vector.load %arg1[%c0, %c0_0] : memref<256x256xbf16, #tpu.memory_space<vmem>>, vector<256x256xbf16>
    %c0_1 = arith.constant 0 : index
    %c0_2 = arith.constant 0 : index
    %1 = vector.load %arg2[%c0_1, %c0_2] : memref<256x128xbf16, #tpu.memory_space<vmem>>, vector<256x128xbf16>
    %cst = arith.constant dense<0.000000e+00> : vector<256x128xf32>
    %2 = tpu.matmul %0, %1, %cst {dimension_numbers = #tpu.dot_dimension_numbers<[1], [0], [0], [1], [0, 0, 1, 1], [], []>} : vector<256x256xbf16>, vector<256x128xbf16>, vector<256x128xf32> -> vector<256x128xf32>
    %c0_3 = arith.constant 0 : index
    %c0_4 = arith.constant 0 : index
    %3 = vector.load %arg3[%c0_3, %c0_4] : memref<1x128xf32, #tpu.memory_space<vmem>>, vector<1x128xf32>
    %4 = vector.broadcast %3 : vector<1x128xf32> to vector<256x128xf32>
    %5 = arith.mulf %2, %4 : vector<256x128xf32>
    %c0_5 = arith.constant 0 : index
    %c0_6 = arith.constant 0 : index
    %6 = vector.load %arg4[%c0_5, %c0_6] : memref<1x128xf32, #tpu.memory_space<vmem>>, vector<1x128xf32>
    %7 = vector.broadcast %6 : vector<1x128xf32> to vector<256x128xf32>
    %8 = arith.addf %5, %7 : vector<256x128xf32>
    %cst_7 = arith.constant 0.000000e+00 : f32
    %9 = vector.broadcast %cst_7 : f32 to vector<256x128xf32>
    %10 = arith.maximumf %8, %9 : vector<256x128xf32>
    %11 = arith.truncf %10 : vector<256x128xf32> to vector<256x128xbf16>
    %c0_8 = arith.constant 0 : index
    %c0_9 = arith.constant 0 : index
    %12 = vector.load %arg5[%c0_8, %c0_9] : memref<256x128xbf16, #tpu.memory_space<vmem>>, vector<256x128xbf16>
    tpu.vector_store %arg5[%c0_8, %c0_9], %11 {strides = array<i32>} : memref<256x128xbf16, #tpu.memory_space<vmem>>, vector<256x128xbf16>,
    return
  }
  func.func @transform_0(%arg0: i32) -> (i32, i32) {
    %c0_i32 = arith.constant 0 : i32
    %c0_i32_0 = arith.constant 0 : i32
    return %arg0, %c0_i32 : i32, i32
  }
  func.func @transform_1(%arg0: i32) -> (i32, i32) {
    %c0_i32 = arith.constant 0 : i32
    %c0_i32_0 = arith.constant 0 : i32
    %c0_i32_1 = arith.constant 0 : i32
    return %c0_i32, %c0_i32_0 : i32, i32
  }
  func.func @transform_2(%arg0: i32) -> (i32, i32) {
    %c0_i32 = arith.constant 0 : i32
    %c0_i32_0 = arith.constant 0 : i32
    %c0_i32_1 = arith.constant 0 : i32
    return %c0_i32, %c0_i32_0 : i32, i32
  }
  func.func @transform_3(%arg0: i32) -> (i32, i32) {
    %c0_i32 = arith.constant 0 : i32
    %c0_i32_0 = arith.constant 0 : i32
    %c0_i32_1 = arith.constant 0 : i32
    return %c0_i32, %c0_i32_0 : i32, i32
  }
  func.func @transform_4(%arg0: i32) -> (i32, i32) {
    %c0_i32 = arith.constant 0 : i32
    %c0_i32_0 = arith.constant 0 : i32
    return %arg0, %c0_i32 : i32, i32
  }
}

module attributes {stable_mosaic.version = 11 : i64} {
  func.func @_max_taps_kernel(%arg0: i32, %arg1: memref<64x128xbf16, #tpu.memory_space<vmem>>, %arg2: memref<64x128xbf16, #tpu.memory_space<vmem>>, %arg3: memref<64x128xbf16, #tpu.memory_space<vmem>>, %arg4: memref<64x128xbf16, #tpu.memory_space<vmem>>, %arg5: memref<64x128xbf16, #tpu.memory_space<vmem>>, %arg6: memref<64x128xbf16, #tpu.memory_space<vmem>>, %arg7: memref<64x128xbf16, #tpu.memory_space<vmem>>, %arg8: memref<64x128xbf16, #tpu.memory_space<vmem>>, %arg9: memref<64x128xbf16, #tpu.memory_space<vmem>>, %arg10: memref<64x128xbf16, #tpu.memory_space<vmem>>) attributes {dimension_semantics = [#tpu.dimension_semantics<parallel>], iteration_bounds = array<i64: 2>, scalar_prefetch = 0 : i64, scratch_operands = 0 : i64, tpu.core_type = #tpu.core_type<tc>, window_params = [{transform_indices = @transform_0, window_bounds = array<i64: 64, 128>}, {transform_indices = @transform_1, window_bounds = array<i64: 64, 128>}, {transform_indices = @transform_2, window_bounds = array<i64: 64, 128>}, {transform_indices = @transform_3, window_bounds = array<i64: 64, 128>}, {transform_indices = @transform_4, window_bounds = array<i64: 64, 128>}, {transform_indices = @transform_5, window_bounds = array<i64: 64, 128>}, {transform_indices = @transform_6, window_bounds = array<i64: 64, 128>}, {transform_indices = @transform_7, window_bounds = array<i64: 64, 128>}, {transform_indices = @transform_8, window_bounds = array<i64: 64, 128>}, {transform_indices = @transform_9, window_bounds = array<i64: 64, 128>}]} {
    %c0 = arith.constant 0 : index
    %c0_0 = arith.constant 0 : index
    %0 = vector.load %arg1[%c0, %c0_0] : memref<64x128xbf16, #tpu.memory_space<vmem>>, vector<64x128xbf16>
    %c0_1 = arith.constant 0 : index
    %c0_2 = arith.constant 0 : index
    %1 = vector.load %arg2[%c0_1, %c0_2] : memref<64x128xbf16, #tpu.memory_space<vmem>>, vector<64x128xbf16>
    %2 = arith.maximumf %0, %1 : vector<64x128xbf16>
    %c0_3 = arith.constant 0 : index
    %c0_4 = arith.constant 0 : index
    %3 = vector.load %arg3[%c0_3, %c0_4] : memref<64x128xbf16, #tpu.memory_space<vmem>>, vector<64x128xbf16>
    %4 = arith.maximumf %2, %3 : vector<64x128xbf16>
    %c0_5 = arith.constant 0 : index
    %c0_6 = arith.constant 0 : index
    %5 = vector.load %arg4[%c0_5, %c0_6] : memref<64x128xbf16, #tpu.memory_space<vmem>>, vector<64x128xbf16>
    %6 = arith.maximumf %4, %5 : vector<64x128xbf16>
    %c0_7 = arith.constant 0 : index
    %c0_8 = arith.constant 0 : index
    %7 = vector.load %arg5[%c0_7, %c0_8] : memref<64x128xbf16, #tpu.memory_space<vmem>>, vector<64x128xbf16>
    %8 = arith.maximumf %6, %7 : vector<64x128xbf16>
    %c0_9 = arith.constant 0 : index
    %c0_10 = arith.constant 0 : index
    %9 = vector.load %arg6[%c0_9, %c0_10] : memref<64x128xbf16, #tpu.memory_space<vmem>>, vector<64x128xbf16>
    %10 = arith.maximumf %8, %9 : vector<64x128xbf16>
    %c0_11 = arith.constant 0 : index
    %c0_12 = arith.constant 0 : index
    %11 = vector.load %arg7[%c0_11, %c0_12] : memref<64x128xbf16, #tpu.memory_space<vmem>>, vector<64x128xbf16>
    %12 = arith.maximumf %10, %11 : vector<64x128xbf16>
    %c0_13 = arith.constant 0 : index
    %c0_14 = arith.constant 0 : index
    %13 = vector.load %arg8[%c0_13, %c0_14] : memref<64x128xbf16, #tpu.memory_space<vmem>>, vector<64x128xbf16>
    %14 = arith.maximumf %12, %13 : vector<64x128xbf16>
    %c0_15 = arith.constant 0 : index
    %c0_16 = arith.constant 0 : index
    %15 = vector.load %arg9[%c0_15, %c0_16] : memref<64x128xbf16, #tpu.memory_space<vmem>>, vector<64x128xbf16>
    %16 = arith.maximumf %14, %15 : vector<64x128xbf16>
    %c0_17 = arith.constant 0 : index
    %c0_18 = arith.constant 0 : index
    %17 = vector.load %arg10[%c0_17, %c0_18] : memref<64x128xbf16, #tpu.memory_space<vmem>>, vector<64x128xbf16>
    tpu.vector_store %arg10[%c0_17, %c0_18], %16 {strides = array<i32>} : memref<64x128xbf16, #tpu.memory_space<vmem>>, vector<64x128xbf16>,
    return
  }
  func.func @transform_0(%arg0: i32) -> (i32, i32) {
    %c0_i32 = arith.constant 0 : i32
    %c0_i32_0 = arith.constant 0 : i32
    return %arg0, %c0_i32 : i32, i32
  }
  func.func @transform_1(%arg0: i32) -> (i32, i32) {
    %c0_i32 = arith.constant 0 : i32
    %c0_i32_0 = arith.constant 0 : i32
    return %arg0, %c0_i32 : i32, i32
  }
  func.func @transform_2(%arg0: i32) -> (i32, i32) {
    %c0_i32 = arith.constant 0 : i32
    %c0_i32_0 = arith.constant 0 : i32
    return %arg0, %c0_i32 : i32, i32
  }
  func.func @transform_3(%arg0: i32) -> (i32, i32) {
    %c0_i32 = arith.constant 0 : i32
    %c0_i32_0 = arith.constant 0 : i32
    return %arg0, %c0_i32 : i32, i32
  }
  func.func @transform_4(%arg0: i32) -> (i32, i32) {
    %c0_i32 = arith.constant 0 : i32
    %c0_i32_0 = arith.constant 0 : i32
    return %arg0, %c0_i32 : i32, i32
  }
  func.func @transform_5(%arg0: i32) -> (i32, i32) {
    %c0_i32 = arith.constant 0 : i32
    %c0_i32_0 = arith.constant 0 : i32
    return %arg0, %c0_i32 : i32, i32
  }
  func.func @transform_6(%arg0: i32) -> (i32, i32) {
    %c0_i32 = arith.constant 0 : i32
    %c0_i32_0 = arith.constant 0 : i32
    return %arg0, %c0_i32 : i32, i32
  }
  func.func @transform_7(%arg0: i32) -> (i32, i32) {
    %c0_i32 = arith.constant 0 : i32
    %c0_i32_0 = arith.constant 0 : i32
    return %arg0, %c0_i32 : i32, i32
  }
  func.func @transform_8(%arg0: i32) -> (i32, i32) {
    %c0_i32 = arith.constant 0 : i32
    %c0_i32_0 = arith.constant 0 : i32
    return %arg0, %c0_i32 : i32, i32
  }
  func.func @transform_9(%arg0: i32) -> (i32, i32) {
    %c0_i32 = arith.constant 0 : i32
    %c0_i32_0 = arith.constant 0 : i32
    return %arg0, %c0_i32 : i32, i32
  }
}

module attributes {stable_mosaic.version = 11 : i64} {
  func.func @_fused_mm_kernel(%arg0: i32, %arg1: memref<64x128xbf16, #tpu.memory_space<vmem>>, %arg2: memref<128x128xbf16, #tpu.memory_space<vmem>>, %arg3: memref<1x128xf32, #tpu.memory_space<vmem>>, %arg4: memref<1x128xf32, #tpu.memory_space<vmem>>, %arg5: memref<64x128xbf16, #tpu.memory_space<vmem>>) attributes {dimension_semantics = [#tpu.dimension_semantics<parallel>], iteration_bounds = array<i64: 2>, scalar_prefetch = 0 : i64, scratch_operands = 0 : i64, tpu.core_type = #tpu.core_type<tc>, window_params = [{transform_indices = @transform_0, window_bounds = array<i64: 64, 128>}, {pipeline_mode = #tpu.pipeline_mode<synchronous>, transform_indices = @transform_1, window_bounds = array<i64: 128, 128>}, {pipeline_mode = #tpu.pipeline_mode<synchronous>, transform_indices = @transform_2, window_bounds = array<i64: 1, 128>}, {pipeline_mode = #tpu.pipeline_mode<synchronous>, transform_indices = @transform_3, window_bounds = array<i64: 1, 128>}, {transform_indices = @transform_4, window_bounds = array<i64: 64, 128>}]} {
    %c0 = arith.constant 0 : index
    %c0_0 = arith.constant 0 : index
    %0 = vector.load %arg1[%c0, %c0_0] : memref<64x128xbf16, #tpu.memory_space<vmem>>, vector<64x128xbf16>
    %c0_1 = arith.constant 0 : index
    %c0_2 = arith.constant 0 : index
    %1 = vector.load %arg2[%c0_1, %c0_2] : memref<128x128xbf16, #tpu.memory_space<vmem>>, vector<128x128xbf16>
    %cst = arith.constant dense<0.000000e+00> : vector<64x128xf32>
    %2 = tpu.matmul %0, %1, %cst {dimension_numbers = #tpu.dot_dimension_numbers<[1], [0], [0], [1], [0, 0, 1, 1], [], []>} : vector<64x128xbf16>, vector<128x128xbf16>, vector<64x128xf32> -> vector<64x128xf32>
    %c0_3 = arith.constant 0 : index
    %c0_4 = arith.constant 0 : index
    %3 = vector.load %arg3[%c0_3, %c0_4] : memref<1x128xf32, #tpu.memory_space<vmem>>, vector<1x128xf32>
    %4 = vector.broadcast %3 : vector<1x128xf32> to vector<64x128xf32>
    %5 = arith.mulf %2, %4 : vector<64x128xf32>
    %c0_5 = arith.constant 0 : index
    %c0_6 = arith.constant 0 : index
    %6 = vector.load %arg4[%c0_5, %c0_6] : memref<1x128xf32, #tpu.memory_space<vmem>>, vector<1x128xf32>
    %7 = vector.broadcast %6 : vector<1x128xf32> to vector<64x128xf32>
    %8 = arith.addf %5, %7 : vector<64x128xf32>
    %cst_7 = arith.constant 0.000000e+00 : f32
    %9 = vector.broadcast %cst_7 : f32 to vector<64x128xf32>
    %10 = arith.maximumf %8, %9 : vector<64x128xf32>
    %11 = arith.truncf %10 : vector<64x128xf32> to vector<64x128xbf16>
    %c0_8 = arith.constant 0 : index
    %c0_9 = arith.constant 0 : index
    %12 = vector.load %arg5[%c0_8, %c0_9] : memref<64x128xbf16, #tpu.memory_space<vmem>>, vector<64x128xbf16>
    tpu.vector_store %arg5[%c0_8, %c0_9], %11 {strides = array<i32>} : memref<64x128xbf16, #tpu.memory_space<vmem>>, vector<64x128xbf16>,
    return
  }
  func.func @transform_0(%arg0: i32) -> (i32, i32) {
    %c0_i32 = arith.constant 0 : i32
    %c0_i32_0 = arith.constant 0 : i32
    return %arg0, %c0_i32 : i32, i32
  }
  func.func @transform_1(%arg0: i32) -> (i32, i32) {
    %c0_i32 = arith.constant 0 : i32
    %c0_i32_0 = arith.constant 0 : i32
    %c0_i32_1 = arith.constant 0 : i32
    return %c0_i32, %c0_i32_0 : i32, i32
  }
  func.func @transform_2(%arg0: i32) -> (i32, i32) {
    %c0_i32 = arith.constant 0 : i32
    %c0_i32_0 = arith.constant 0 : i32
    %c0_i32_1 = arith.constant 0 : i32
    return %c0_i32, %c0_i32_0 : i32, i32
  }
  func.func @transform_3(%arg0: i32) -> (i32, i32) {
    %c0_i32 = arith.constant 0 : i32
    %c0_i32_0 = arith.constant 0 : i32
    %c0_i32_1 = arith.constant 0 : i32
    return %c0_i32, %c0_i32_0 : i32, i32
  }
  func.func @transform_4(%arg0: i32) -> (i32, i32) {
    %c0_i32 = arith.constant 0 : i32
    %c0_i32_0 = arith.constant 0 : i32
    return %arg0, %c0_i32 : i32, i32
  }
}

module attributes {stable_mosaic.version = 11 : i64} {
  func.func @_fused_mm_kernel(%arg0: i32, %arg1: memref<64x128xbf16, #tpu.memory_space<vmem>>, %arg2: memref<128x128xbf16, #tpu.memory_space<vmem>>, %arg3: memref<1x128xf32, #tpu.memory_space<vmem>>, %arg4: memref<1x128xf32, #tpu.memory_space<vmem>>, %arg5: memref<64x128xbf16, #tpu.memory_space<vmem>>, %arg6: memref<64x128xbf16, #tpu.memory_space<vmem>>) attributes {dimension_semantics = [#tpu.dimension_semantics<parallel>], iteration_bounds = array<i64: 2>, scalar_prefetch = 0 : i64, scratch_operands = 0 : i64, tpu.core_type = #tpu.core_type<tc>, window_params = [{transform_indices = @transform_0, window_bounds = array<i64: 64, 128>}, {pipeline_mode = #tpu.pipeline_mode<synchronous>, transform_indices = @transform_1, window_bounds = array<i64: 128, 128>}, {pipeline_mode = #tpu.pipeline_mode<synchronous>, transform_indices = @transform_2, window_bounds = array<i64: 1, 128>}, {pipeline_mode = #tpu.pipeline_mode<synchronous>, transform_indices = @transform_3, window_bounds = array<i64: 1, 128>}, {transform_indices = @transform_4, window_bounds = array<i64: 64, 128>}, {transform_indices = @transform_5, window_bounds = array<i64: 64, 128>}]} {
    %c0 = arith.constant 0 : index
    %c0_0 = arith.constant 0 : index
    %0 = vector.load %arg1[%c0, %c0_0] : memref<64x128xbf16, #tpu.memory_space<vmem>>, vector<64x128xbf16>
    %c0_1 = arith.constant 0 : index
    %c0_2 = arith.constant 0 : index
    %1 = vector.load %arg2[%c0_1, %c0_2] : memref<128x128xbf16, #tpu.memory_space<vmem>>, vector<128x128xbf16>
    %cst = arith.constant dense<0.000000e+00> : vector<64x128xf32>
    %2 = tpu.matmul %0, %1, %cst {dimension_numbers = #tpu.dot_dimension_numbers<[1], [0], [0], [1], [0, 0, 1, 1], [], []>} : vector<64x128xbf16>, vector<128x128xbf16>, vector<64x128xf32> -> vector<64x128xf32>
    %c0_3 = arith.constant 0 : index
    %c0_4 = arith.constant 0 : index
    %3 = vector.load %arg3[%c0_3, %c0_4] : memref<1x128xf32, #tpu.memory_space<vmem>>, vector<1x128xf32>
    %4 = vector.broadcast %3 : vector<1x128xf32> to vector<64x128xf32>
    %5 = arith.mulf %2, %4 : vector<64x128xf32>
    %c0_5 = arith.constant 0 : index
    %c0_6 = arith.constant 0 : index
    %6 = vector.load %arg4[%c0_5, %c0_6] : memref<1x128xf32, #tpu.memory_space<vmem>>, vector<1x128xf32>
    %7 = vector.broadcast %6 : vector<1x128xf32> to vector<64x128xf32>
    %8 = arith.addf %5, %7 : vector<64x128xf32>
    %c0_7 = arith.constant 0 : index
    %c0_8 = arith.constant 0 : index
    %9 = vector.load %arg5[%c0_7, %c0_8] : memref<64x128xbf16, #tpu.memory_space<vmem>>, vector<64x128xbf16>
    %10 = arith.extf %9 : vector<64x128xbf16> to vector<64x128xf32>
    %11 = arith.addf %8, %10 : vector<64x128xf32>
    %cst_9 = arith.constant 0.000000e+00 : f32
    %12 = vector.broadcast %cst_9 : f32 to vector<64x128xf32>
    %13 = arith.maximumf %11, %12 : vector<64x128xf32>
    %14 = arith.truncf %13 : vector<64x128xf32> to vector<64x128xbf16>
    %c0_10 = arith.constant 0 : index
    %c0_11 = arith.constant 0 : index
    %15 = vector.load %arg6[%c0_10, %c0_11] : memref<64x128xbf16, #tpu.memory_space<vmem>>, vector<64x128xbf16>
    tpu.vector_store %arg6[%c0_10, %c0_11], %14 {strides = array<i32>} : memref<64x128xbf16, #tpu.memory_space<vmem>>, vector<64x128xbf16>,
    return
  }
  func.func @transform_0(%arg0: i32) -> (i32, i32) {
    %c0_i32 = arith.constant 0 : i32
    %c0_i32_0 = arith.constant 0 : i32
    return %arg0, %c0_i32 : i32, i32
  }
  func.func @transform_1(%arg0: i32) -> (i32, i32) {
    %c0_i32 = arith.constant 0 : i32
    %c0_i32_0 = arith.constant 0 : i32
    %c0_i32_1 = arith.constant 0 : i32
    return %c0_i32, %c0_i32_0 : i32, i32
  }
  func.func @transform_2(%arg0: i32) -> (i32, i32) {
    %c0_i32 = arith.constant 0 : i32
    %c0_i32_0 = arith.constant 0 : i32
    %c0_i32_1 = arith.constant 0 : i32
    return %c0_i32, %c0_i32_0 : i32, i32
  }
  func.func @transform_3(%arg0: i32) -> (i32, i32) {
    %c0_i32 = arith.constant 0 : i32
    %c0_i32_0 = arith.constant 0 : i32
    %c0_i32_1 = arith.constant 0 : i32
    return %c0_i32, %c0_i32_0 : i32, i32
  }
  func.func @transform_4(%arg0: i32) -> (i32, i32) {
    %c0_i32 = arith.constant 0 : i32
    %c0_i32_0 = arith.constant 0 : i32
    return %arg0, %c0_i32 : i32, i32
  }
  func.func @transform_5(%arg0: i32) -> (i32, i32) {
    %c0_i32 = arith.constant 0 : i32
    %c0_i32_0 = arith.constant 0 : i32
    return %arg0, %c0_i32 : i32, i32
  }
}

module attributes {stable_mosaic.version = 11 : i64} {
  func.func @_fused_mm_kernel(%arg0: i32, %arg1: memref<16x128xbf16, #tpu.memory_space<vmem>>, %arg2: memref<128x128xbf16, #tpu.memory_space<vmem>>, %arg3: memref<1x128xf32, #tpu.memory_space<vmem>>, %arg4: memref<1x128xf32, #tpu.memory_space<vmem>>, %arg5: memref<16x128xbf16, #tpu.memory_space<vmem>>) attributes {dimension_semantics = [#tpu.dimension_semantics<parallel>], iteration_bounds = array<i64: 2>, scalar_prefetch = 0 : i64, scratch_operands = 0 : i64, tpu.core_type = #tpu.core_type<tc>, window_params = [{transform_indices = @transform_0, window_bounds = array<i64: 16, 128>}, {pipeline_mode = #tpu.pipeline_mode<synchronous>, transform_indices = @transform_1, window_bounds = array<i64: 128, 128>}, {pipeline_mode = #tpu.pipeline_mode<synchronous>, transform_indices = @transform_2, window_bounds = array<i64: 1, 128>}, {pipeline_mode = #tpu.pipeline_mode<synchronous>, transform_indices = @transform_3, window_bounds = array<i64: 1, 128>}, {transform_indices = @transform_4, window_bounds = array<i64: 16, 128>}]} {
    %c0 = arith.constant 0 : index
    %c0_0 = arith.constant 0 : index
    %0 = vector.load %arg1[%c0, %c0_0] : memref<16x128xbf16, #tpu.memory_space<vmem>>, vector<16x128xbf16>
    %c0_1 = arith.constant 0 : index
    %c0_2 = arith.constant 0 : index
    %1 = vector.load %arg2[%c0_1, %c0_2] : memref<128x128xbf16, #tpu.memory_space<vmem>>, vector<128x128xbf16>
    %cst = arith.constant dense<0.000000e+00> : vector<16x128xf32>
    %2 = tpu.matmul %0, %1, %cst {dimension_numbers = #tpu.dot_dimension_numbers<[1], [0], [0], [1], [0, 0, 1, 1], [], []>} : vector<16x128xbf16>, vector<128x128xbf16>, vector<16x128xf32> -> vector<16x128xf32>
    %c0_3 = arith.constant 0 : index
    %c0_4 = arith.constant 0 : index
    %3 = vector.load %arg3[%c0_3, %c0_4] : memref<1x128xf32, #tpu.memory_space<vmem>>, vector<1x128xf32>
    %4 = vector.broadcast %3 : vector<1x128xf32> to vector<16x128xf32>
    %5 = arith.mulf %2, %4 : vector<16x128xf32>
    %c0_5 = arith.constant 0 : index
    %c0_6 = arith.constant 0 : index
    %6 = vector.load %arg4[%c0_5, %c0_6] : memref<1x128xf32, #tpu.memory_space<vmem>>, vector<1x128xf32>
    %7 = vector.broadcast %6 : vector<1x128xf32> to vector<16x128xf32>
    %8 = arith.addf %5, %7 : vector<16x128xf32>
    %cst_7 = arith.constant 0.000000e+00 : f32
    %9 = vector.broadcast %cst_7 : f32 to vector<16x128xf32>
    %10 = arith.maximumf %8, %9 : vector<16x128xf32>
    %11 = arith.truncf %10 : vector<16x128xf32> to vector<16x128xbf16>
    %c0_8 = arith.constant 0 : index
    %c0_9 = arith.constant 0 : index
    %12 = vector.load %arg5[%c0_8, %c0_9] : memref<16x128xbf16, #tpu.memory_space<vmem>>, vector<16x128xbf16>
    tpu.vector_store %arg5[%c0_8, %c0_9], %11 {strides = array<i32>} : memref<16x128xbf16, #tpu.memory_space<vmem>>, vector<16x128xbf16>,
    return
  }
  func.func @transform_0(%arg0: i32) -> (i32, i32) {
    %c0_i32 = arith.constant 0 : i32
    %c0_i32_0 = arith.constant 0 : i32
    return %arg0, %c0_i32 : i32, i32
  }
  func.func @transform_1(%arg0: i32) -> (i32, i32) {
    %c0_i32 = arith.constant 0 : i32
    %c0_i32_0 = arith.constant 0 : i32
    %c0_i32_1 = arith.constant 0 : i32
    return %c0_i32, %c0_i32_0 : i32, i32
  }
  func.func @transform_2(%arg0: i32) -> (i32, i32) {
    %c0_i32 = arith.constant 0 : i32
    %c0_i32_0 = arith.constant 0 : i32
    %c0_i32_1 = arith.constant 0 : i32
    return %c0_i32, %c0_i32_0 : i32, i32
  }
  func.func @transform_3(%arg0: i32) -> (i32, i32) {
    %c0_i32 = arith.constant 0 : i32
    %c0_i32_0 = arith.constant 0 : i32
    %c0_i32_1 = arith.constant 0 : i32
    return %c0_i32, %c0_i32_0 : i32, i32
  }
  func.func @transform_4(%arg0: i32) -> (i32, i32) {
    %c0_i32 = arith.constant 0 : i32
    %c0_i32_0 = arith.constant 0 : i32
    return %arg0, %c0_i32 : i32, i32
  }
}

module attributes {stable_mosaic.version = 11 : i64} {
  func.func @_fused_mm_kernel(%arg0: i32, %arg1: memref<16x256xbf16, #tpu.memory_space<vmem>>, %arg2: memref<256x128xbf16, #tpu.memory_space<vmem>>, %arg3: memref<1x128xf32, #tpu.memory_space<vmem>>, %arg4: memref<1x128xf32, #tpu.memory_space<vmem>>, %arg5: memref<16x128xbf16, #tpu.memory_space<vmem>>, %arg6: memref<16x128xbf16, #tpu.memory_space<vmem>>) attributes {dimension_semantics = [#tpu.dimension_semantics<parallel>], iteration_bounds = array<i64: 2>, scalar_prefetch = 0 : i64, scratch_operands = 0 : i64, tpu.core_type = #tpu.core_type<tc>, window_params = [{transform_indices = @transform_0, window_bounds = array<i64: 16, 256>}, {pipeline_mode = #tpu.pipeline_mode<synchronous>, transform_indices = @transform_1, window_bounds = array<i64: 256, 128>}, {pipeline_mode = #tpu.pipeline_mode<synchronous>, transform_indices = @transform_2, window_bounds = array<i64: 1, 128>}, {pipeline_mode = #tpu.pipeline_mode<synchronous>, transform_indices = @transform_3, window_bounds = array<i64: 1, 128>}, {transform_indices = @transform_4, window_bounds = array<i64: 16, 128>}, {transform_indices = @transform_5, window_bounds = array<i64: 16, 128>}]} {
    %c0 = arith.constant 0 : index
    %c0_0 = arith.constant 0 : index
    %0 = vector.load %arg1[%c0, %c0_0] : memref<16x256xbf16, #tpu.memory_space<vmem>>, vector<16x256xbf16>
    %c0_1 = arith.constant 0 : index
    %c0_2 = arith.constant 0 : index
    %1 = vector.load %arg2[%c0_1, %c0_2] : memref<256x128xbf16, #tpu.memory_space<vmem>>, vector<256x128xbf16>
    %cst = arith.constant dense<0.000000e+00> : vector<16x128xf32>
    %2 = tpu.matmul %0, %1, %cst {dimension_numbers = #tpu.dot_dimension_numbers<[1], [0], [0], [1], [0, 0, 1, 1], [], []>} : vector<16x256xbf16>, vector<256x128xbf16>, vector<16x128xf32> -> vector<16x128xf32>
    %c0_3 = arith.constant 0 : index
    %c0_4 = arith.constant 0 : index
    %3 = vector.load %arg3[%c0_3, %c0_4] : memref<1x128xf32, #tpu.memory_space<vmem>>, vector<1x128xf32>
    %4 = vector.broadcast %3 : vector<1x128xf32> to vector<16x128xf32>
    %5 = arith.mulf %2, %4 : vector<16x128xf32>
    %c0_5 = arith.constant 0 : index
    %c0_6 = arith.constant 0 : index
    %6 = vector.load %arg4[%c0_5, %c0_6] : memref<1x128xf32, #tpu.memory_space<vmem>>, vector<1x128xf32>
    %7 = vector.broadcast %6 : vector<1x128xf32> to vector<16x128xf32>
    %8 = arith.addf %5, %7 : vector<16x128xf32>
    %c0_7 = arith.constant 0 : index
    %c0_8 = arith.constant 0 : index
    %9 = vector.load %arg5[%c0_7, %c0_8] : memref<16x128xbf16, #tpu.memory_space<vmem>>, vector<16x128xbf16>
    %10 = arith.extf %9 : vector<16x128xbf16> to vector<16x128xf32>
    %11 = arith.addf %8, %10 : vector<16x128xf32>
    %cst_9 = arith.constant 0.000000e+00 : f32
    %12 = vector.broadcast %cst_9 : f32 to vector<16x128xf32>
    %13 = arith.maximumf %11, %12 : vector<16x128xf32>
    %14 = arith.truncf %13 : vector<16x128xf32> to vector<16x128xbf16>
    %c0_10 = arith.constant 0 : index
    %c0_11 = arith.constant 0 : index
    %15 = vector.load %arg6[%c0_10, %c0_11] : memref<16x128xbf16, #tpu.memory_space<vmem>>, vector<16x128xbf16>
    tpu.vector_store %arg6[%c0_10, %c0_11], %14 {strides = array<i32>} : memref<16x128xbf16, #tpu.memory_space<vmem>>, vector<16x128xbf16>,
    return
  }
  func.func @transform_0(%arg0: i32) -> (i32, i32) {
    %c0_i32 = arith.constant 0 : i32
    %c0_i32_0 = arith.constant 0 : i32
    return %arg0, %c0_i32 : i32, i32
  }
  func.func @transform_1(%arg0: i32) -> (i32, i32) {
    %c0_i32 = arith.constant 0 : i32
    %c0_i32_0 = arith.constant 0 : i32
    %c0_i32_1 = arith.constant 0 : i32
    return %c0_i32, %c0_i32_0 : i32, i32
  }
  func.func @transform_2(%arg0: i32) -> (i32, i32) {
    %c0_i32 = arith.constant 0 : i32
    %c0_i32_0 = arith.constant 0 : i32
    %c0_i32_1 = arith.constant 0 : i32
    return %c0_i32, %c0_i32_0 : i32, i32
  }
  func.func @transform_3(%arg0: i32) -> (i32, i32) {
    %c0_i32 = arith.constant 0 : i32
    %c0_i32_0 = arith.constant 0 : i32
    %c0_i32_1 = arith.constant 0 : i32
    return %c0_i32, %c0_i32_0 : i32, i32
  }
  func.func @transform_4(%arg0: i32) -> (i32, i32) {
    %c0_i32 = arith.constant 0 : i32
    %c0_i32_0 = arith.constant 0 : i32
    return %arg0, %c0_i32 : i32, i32
  }
  func.func @transform_5(%arg0: i32) -> (i32, i32) {
    %c0_i32 = arith.constant 0 : i32
    %c0_i32_0 = arith.constant 0 : i32
    return %arg0, %c0_i32 : i32, i32
  }
}

module attributes {stable_mosaic.version = 11 : i64} {
  func.func @_fused_mm_kernel(%arg0: i32, %arg1: memref<16x128xbf16, #tpu.memory_space<vmem>>, %arg2: memref<128x128xbf16, #tpu.memory_space<vmem>>, %arg3: memref<1x128xf32, #tpu.memory_space<vmem>>, %arg4: memref<1x128xf32, #tpu.memory_space<vmem>>, %arg5: memref<16x128xbf16, #tpu.memory_space<vmem>>) attributes {dimension_semantics = [#tpu.dimension_semantics<parallel>], iteration_bounds = array<i64: 2>, scalar_prefetch = 0 : i64, scratch_operands = 0 : i64, tpu.core_type = #tpu.core_type<tc>, window_params = [{transform_indices = @transform_0, window_bounds = array<i64: 16, 128>}, {pipeline_mode = #tpu.pipeline_mode<synchronous>, transform_indices = @transform_1, window_bounds = array<i64: 128, 128>}, {pipeline_mode = #tpu.pipeline_mode<synchronous>, transform_indices = @transform_2, window_bounds = array<i64: 1, 128>}, {pipeline_mode = #tpu.pipeline_mode<synchronous>, transform_indices = @transform_3, window_bounds = array<i64: 1, 128>}, {transform_indices = @transform_4, window_bounds = array<i64: 16, 128>}]} {
    %c0 = arith.constant 0 : index
    %c0_0 = arith.constant 0 : index
    %0 = vector.load %arg1[%c0, %c0_0] : memref<16x128xbf16, #tpu.memory_space<vmem>>, vector<16x128xbf16>
    %c0_1 = arith.constant 0 : index
    %c0_2 = arith.constant 0 : index
    %1 = vector.load %arg2[%c0_1, %c0_2] : memref<128x128xbf16, #tpu.memory_space<vmem>>, vector<128x128xbf16>
    %cst = arith.constant dense<0.000000e+00> : vector<16x128xf32>
    %2 = tpu.matmul %0, %1, %cst {dimension_numbers = #tpu.dot_dimension_numbers<[1], [0], [0], [1], [0, 0, 1, 1], [], []>} : vector<16x128xbf16>, vector<128x128xbf16>, vector<16x128xf32> -> vector<16x128xf32>
    %c0_3 = arith.constant 0 : index
    %c0_4 = arith.constant 0 : index
    %3 = vector.load %arg3[%c0_3, %c0_4] : memref<1x128xf32, #tpu.memory_space<vmem>>, vector<1x128xf32>
    %4 = vector.broadcast %3 : vector<1x128xf32> to vector<16x128xf32>
    %5 = arith.mulf %2, %4 : vector<16x128xf32>
    %c0_5 = arith.constant 0 : index
    %c0_6 = arith.constant 0 : index
    %6 = vector.load %arg4[%c0_5, %c0_6] : memref<1x128xf32, #tpu.memory_space<vmem>>, vector<1x128xf32>
    %7 = vector.broadcast %6 : vector<1x128xf32> to vector<16x128xf32>
    %8 = arith.addf %5, %7 : vector<16x128xf32>
    %9 = arith.truncf %8 : vector<16x128xf32> to vector<16x128xbf16>
    %c0_7 = arith.constant 0 : index
    %c0_8 = arith.constant 0 : index
    %10 = vector.load %arg5[%c0_7, %c0_8] : memref<16x128xbf16, #tpu.memory_space<vmem>>, vector<16x128xbf16>
    tpu.vector_store %arg5[%c0_7, %c0_8], %9 {strides = array<i32>} : memref<16x128xbf16, #tpu.memory_space<vmem>>, vector<16x128xbf16>,
    return
  }
  func.func @transform_0(%arg0: i32) -> (i32, i32) {
    %c0_i32 = arith.constant 0 : i32
    %c0_i32_0 = arith.constant 0 : i32
    return %arg0, %c0_i32 : i32, i32
  }
  func.func @transform_1(%arg0: i32) -> (i32, i32) {
    %c0_i32 = arith.constant 0 : i32
    %c0_i32_0 = arith.constant 0 : i32
    %c0_i32_1 = arith.constant 0 : i32
    return %c0_i32, %c0_i32_0 : i32, i32
  }
  func.func @transform_2(%arg0: i32) -> (i32, i32) {
    %c0_i32 = arith.constant 0 : i32
    %c0_i32_0 = arith.constant 0 : i32
    %c0_i32_1 = arith.constant 0 : i32
    return %c0_i32, %c0_i32_0 : i32, i32
  }
  func.func @transform_3(%arg0: i32) -> (i32, i32) {
    %c0_i32 = arith.constant 0 : i32
    %c0_i32_0 = arith.constant 0 : i32
    %c0_i32_1 = arith.constant 0 : i32
    return %c0_i32, %c0_i32_0 : i32, i32
  }
  func.func @transform_4(%arg0: i32) -> (i32, i32) {
    %c0_i32 = arith.constant 0 : i32
    %c0_i32_0 = arith.constant 0 : i32
    return %arg0, %c0_i32 : i32, i32
  }
}

module attributes {stable_mosaic.version = 11 : i64} {
  func.func @_fused_mm_kernel(%arg0: i32, %arg1: memref<16x256xbf16, #tpu.memory_space<vmem>>, %arg2: memref<256x128xbf16, #tpu.memory_space<vmem>>, %arg3: memref<1x128xf32, #tpu.memory_space<vmem>>, %arg4: memref<1x128xf32, #tpu.memory_space<vmem>>, %arg5: memref<16x128xbf16, #tpu.memory_space<vmem>>) attributes {dimension_semantics = [#tpu.dimension_semantics<parallel>], iteration_bounds = array<i64: 2>, scalar_prefetch = 0 : i64, scratch_operands = 0 : i64, tpu.core_type = #tpu.core_type<tc>, window_params = [{transform_indices = @transform_0, window_bounds = array<i64: 16, 256>}, {pipeline_mode = #tpu.pipeline_mode<synchronous>, transform_indices = @transform_1, window_bounds = array<i64: 256, 128>}, {pipeline_mode = #tpu.pipeline_mode<synchronous>, transform_indices = @transform_2, window_bounds = array<i64: 1, 128>}, {pipeline_mode = #tpu.pipeline_mode<synchronous>, transform_indices = @transform_3, window_bounds = array<i64: 1, 128>}, {transform_indices = @transform_4, window_bounds = array<i64: 16, 128>}]} {
    %c0 = arith.constant 0 : index
    %c0_0 = arith.constant 0 : index
    %0 = vector.load %arg1[%c0, %c0_0] : memref<16x256xbf16, #tpu.memory_space<vmem>>, vector<16x256xbf16>
    %c0_1 = arith.constant 0 : index
    %c0_2 = arith.constant 0 : index
    %1 = vector.load %arg2[%c0_1, %c0_2] : memref<256x128xbf16, #tpu.memory_space<vmem>>, vector<256x128xbf16>
    %cst = arith.constant dense<0.000000e+00> : vector<16x128xf32>
    %2 = tpu.matmul %0, %1, %cst {dimension_numbers = #tpu.dot_dimension_numbers<[1], [0], [0], [1], [0, 0, 1, 1], [], []>} : vector<16x256xbf16>, vector<256x128xbf16>, vector<16x128xf32> -> vector<16x128xf32>
    %c0_3 = arith.constant 0 : index
    %c0_4 = arith.constant 0 : index
    %3 = vector.load %arg3[%c0_3, %c0_4] : memref<1x128xf32, #tpu.memory_space<vmem>>, vector<1x128xf32>
    %4 = vector.broadcast %3 : vector<1x128xf32> to vector<16x128xf32>
    %5 = arith.mulf %2, %4 : vector<16x128xf32>
    %c0_5 = arith.constant 0 : index
    %c0_6 = arith.constant 0 : index
    %6 = vector.load %arg4[%c0_5, %c0_6] : memref<1x128xf32, #tpu.memory_space<vmem>>, vector<1x128xf32>
    %7 = vector.broadcast %6 : vector<1x128xf32> to vector<16x128xf32>
    %8 = arith.addf %5, %7 : vector<16x128xf32>
    %cst_7 = arith.constant 0.000000e+00 : f32
    %9 = vector.broadcast %cst_7 : f32 to vector<16x128xf32>
    %10 = arith.maximumf %8, %9 : vector<16x128xf32>
    %11 = arith.truncf %10 : vector<16x128xf32> to vector<16x128xbf16>
    %c0_8 = arith.constant 0 : index
    %c0_9 = arith.constant 0 : index
    %12 = vector.load %arg5[%c0_8, %c0_9] : memref<16x128xbf16, #tpu.memory_space<vmem>>, vector<16x128xbf16>
    tpu.vector_store %arg5[%c0_8, %c0_9], %11 {strides = array<i32>} : memref<16x128xbf16, #tpu.memory_space<vmem>>, vector<16x128xbf16>,
    return
  }
  func.func @transform_0(%arg0: i32) -> (i32, i32) {
    %c0_i32 = arith.constant 0 : i32
    %c0_i32_0 = arith.constant 0 : i32
    return %arg0, %c0_i32 : i32, i32
  }
  func.func @transform_1(%arg0: i32) -> (i32, i32) {
    %c0_i32 = arith.constant 0 : i32
    %c0_i32_0 = arith.constant 0 : i32
    %c0_i32_1 = arith.constant 0 : i32
    return %c0_i32, %c0_i32_0 : i32, i32
  }
  func.func @transform_2(%arg0: i32) -> (i32, i32) {
    %c0_i32 = arith.constant 0 : i32
    %c0_i32_0 = arith.constant 0 : i32
    %c0_i32_1 = arith.constant 0 : i32
    return %c0_i32, %c0_i32_0 : i32, i32
  }
  func.func @transform_3(%arg0: i32) -> (i32, i32) {
    %c0_i32 = arith.constant 0 : i32
    %c0_i32_0 = arith.constant 0 : i32
    %c0_i32_1 = arith.constant 0 : i32
    return %c0_i32, %c0_i32_0 : i32, i32
  }
  func.func @transform_4(%arg0: i32) -> (i32, i32) {
    %c0_i32 = arith.constant 0 : i32
    %c0_i32_0 = arith.constant 0 : i32
    return %arg0, %c0_i32 : i32, i32
  }
}

module attributes {stable_mosaic.version = 11 : i64} {
  func.func @_fused_mm_kernel(%arg0: i32, %arg1: memref<16x256xbf16, #tpu.memory_space<vmem>>, %arg2: memref<256x128xbf16, #tpu.memory_space<vmem>>, %arg3: memref<1x128xf32, #tpu.memory_space<vmem>>, %arg4: memref<1x128xf32, #tpu.memory_space<vmem>>, %arg5: memref<16x128xbf16, #tpu.memory_space<vmem>>, %arg6: memref<16x128xbf16, #tpu.memory_space<vmem>>) attributes {dimension_semantics = [#tpu.dimension_semantics<parallel>], iteration_bounds = array<i64: 2>, scalar_prefetch = 0 : i64, scratch_operands = 0 : i64, tpu.core_type = #tpu.core_type<tc>, window_params = [{transform_indices = @transform_0, window_bounds = array<i64: 16, 256>}, {pipeline_mode = #tpu.pipeline_mode<synchronous>, transform_indices = @transform_1, window_bounds = array<i64: 256, 128>}, {pipeline_mode = #tpu.pipeline_mode<synchronous>, transform_indices = @transform_2, window_bounds = array<i64: 1, 128>}, {pipeline_mode = #tpu.pipeline_mode<synchronous>, transform_indices = @transform_3, window_bounds = array<i64: 1, 128>}, {transform_indices = @transform_4, window_bounds = array<i64: 16, 128>}, {transform_indices = @transform_5, window_bounds = array<i64: 16, 128>}]} {
    %c0 = arith.constant 0 : index
    %c0_0 = arith.constant 0 : index
    %0 = vector.load %arg1[%c0, %c0_0] : memref<16x256xbf16, #tpu.memory_space<vmem>>, vector<16x256xbf16>
    %c0_1 = arith.constant 0 : index
    %c0_2 = arith.constant 0 : index
    %1 = vector.load %arg2[%c0_1, %c0_2] : memref<256x128xbf16, #tpu.memory_space<vmem>>, vector<256x128xbf16>
    %cst = arith.constant dense<0.000000e+00> : vector<16x128xf32>
    %2 = tpu.matmul %0, %1, %cst {dimension_numbers = #tpu.dot_dimension_numbers<[1], [0], [0], [1], [0, 0, 1, 1], [], []>} : vector<16x256xbf16>, vector<256x128xbf16>, vector<16x128xf32> -> vector<16x128xf32>
    %c0_3 = arith.constant 0 : index
    %c0_4 = arith.constant 0 : index
    %3 = vector.load %arg3[%c0_3, %c0_4] : memref<1x128xf32, #tpu.memory_space<vmem>>, vector<1x128xf32>
    %4 = vector.broadcast %3 : vector<1x128xf32> to vector<16x128xf32>
    %5 = arith.mulf %2, %4 : vector<16x128xf32>
    %c0_5 = arith.constant 0 : index
    %c0_6 = arith.constant 0 : index
    %6 = vector.load %arg4[%c0_5, %c0_6] : memref<1x128xf32, #tpu.memory_space<vmem>>, vector<1x128xf32>
    %7 = vector.broadcast %6 : vector<1x128xf32> to vector<16x128xf32>
    %8 = arith.addf %5, %7 : vector<16x128xf32>
    %c0_7 = arith.constant 0 : index
    %c0_8 = arith.constant 0 : index
    %9 = vector.load %arg5[%c0_7, %c0_8] : memref<16x128xbf16, #tpu.memory_space<vmem>>, vector<16x128xbf16>
    %10 = arith.extf %9 : vector<16x128xbf16> to vector<16x128xf32>
    %11 = arith.addf %8, %10 : vector<16x128xf32>
    %cst_9 = arith.constant 0.000000e+00 : f32
    %12 = vector.broadcast %cst_9 : f32 to vector<16x128xf32>
    %13 = arith.maximumf %11, %12 : vector<16x128xf32>
    %14 = arith.truncf %13 : vector<16x128xf32> to vector<16x128xbf16>
    %c0_10 = arith.constant 0 : index
    %c0_11 = arith.constant 0 : index
    %15 = vector.load %arg6[%c0_10, %c0_11] : memref<16x128xbf16, #tpu.memory_space<vmem>>, vector<16x128xbf16>
    tpu.vector_store %arg6[%c0_10, %c0_11], %14 {strides = array<i32>} : memref<16x128xbf16, #tpu.memory_space<vmem>>, vector<16x128xbf16>,
    return
  }
  func.func @transform_0(%arg0: i32) -> (i32, i32) {
    %c0_i32 = arith.constant 0 : i32
    %c0_i32_0 = arith.constant 0 : i32
    return %arg0, %c0_i32 : i32, i32
  }
  func.func @transform_1(%arg0: i32) -> (i32, i32) {
    %c0_i32 = arith.constant 0 : i32
    %c0_i32_0 = arith.constant 0 : i32
    %c0_i32_1 = arith.constant 0 : i32
    return %c0_i32, %c0_i32_0 : i32, i32
  }
  func.func @transform_2(%arg0: i32) -> (i32, i32) {
    %c0_i32 = arith.constant 0 : i32
    %c0_i32_0 = arith.constant 0 : i32
    %c0_i32_1 = arith.constant 0 : i32
    return %c0_i32, %c0_i32_0 : i32, i32
  }
  func.func @transform_3(%arg0: i32) -> (i32, i32) {
    %c0_i32 = arith.constant 0 : i32
    %c0_i32_0 = arith.constant 0 : i32
    %c0_i32_1 = arith.constant 0 : i32
    return %c0_i32, %c0_i32_0 : i32, i32
  }
  func.func @transform_4(%arg0: i32) -> (i32, i32) {
    %c0_i32 = arith.constant 0 : i32
    %c0_i32_0 = arith.constant 0 : i32
    return %arg0, %c0_i32 : i32, i32
  }
  func.func @transform_5(%arg0: i32) -> (i32, i32) {
    %c0_i32 = arith.constant 0 : i32
    %c0_i32_0 = arith.constant 0 : i32
    return %arg0, %c0_i32 : i32, i32
  }
}

module attributes {stable_mosaic.version = 11 : i64} {
  func.func @_fused_mm_kernel(%arg0: i32, %arg1: memref<16x256xbf16, #tpu.memory_space<vmem>>, %arg2: memref<256x128xbf16, #tpu.memory_space<vmem>>, %arg3: memref<1x128xf32, #tpu.memory_space<vmem>>, %arg4: memref<1x128xf32, #tpu.memory_space<vmem>>, %arg5: memref<16x128xbf16, #tpu.memory_space<vmem>>) attributes {dimension_semantics = [#tpu.dimension_semantics<parallel>], iteration_bounds = array<i64: 1>, scalar_prefetch = 0 : i64, scratch_operands = 0 : i64, tpu.core_type = #tpu.core_type<tc>, window_params = [{transform_indices = @transform_0, window_bounds = array<i64: 16, 256>}, {pipeline_mode = #tpu.pipeline_mode<synchronous>, transform_indices = @transform_1, window_bounds = array<i64: 256, 128>}, {pipeline_mode = #tpu.pipeline_mode<synchronous>, transform_indices = @transform_2, window_bounds = array<i64: 1, 128>}, {pipeline_mode = #tpu.pipeline_mode<synchronous>, transform_indices = @transform_3, window_bounds = array<i64: 1, 128>}, {transform_indices = @transform_4, window_bounds = array<i64: 16, 128>}]} {
    %c0 = arith.constant 0 : index
    %c0_0 = arith.constant 0 : index
    %0 = vector.load %arg1[%c0, %c0_0] : memref<16x256xbf16, #tpu.memory_space<vmem>>, vector<16x256xbf16>
    %c0_1 = arith.constant 0 : index
    %c0_2 = arith.constant 0 : index
    %1 = vector.load %arg2[%c0_1, %c0_2] : memref<256x128xbf16, #tpu.memory_space<vmem>>, vector<256x128xbf16>
    %cst = arith.constant dense<0.000000e+00> : vector<16x128xf32>
    %2 = tpu.matmul %0, %1, %cst {dimension_numbers = #tpu.dot_dimension_numbers<[1], [0], [0], [1], [0, 0, 1, 1], [], []>} : vector<16x256xbf16>, vector<256x128xbf16>, vector<16x128xf32> -> vector<16x128xf32>
    %c0_3 = arith.constant 0 : index
    %c0_4 = arith.constant 0 : index
    %3 = vector.load %arg3[%c0_3, %c0_4] : memref<1x128xf32, #tpu.memory_space<vmem>>, vector<1x128xf32>
    %4 = vector.broadcast %3 : vector<1x128xf32> to vector<16x128xf32>
    %5 = arith.mulf %2, %4 : vector<16x128xf32>
    %c0_5 = arith.constant 0 : index
    %c0_6 = arith.constant 0 : index
    %6 = vector.load %arg4[%c0_5, %c0_6] : memref<1x128xf32, #tpu.memory_space<vmem>>, vector<1x128xf32>
    %7 = vector.broadcast %6 : vector<1x128xf32> to vector<16x128xf32>
    %8 = arith.addf %5, %7 : vector<16x128xf32>
    %cst_7 = arith.constant 0.000000e+00 : f32
    %9 = vector.broadcast %cst_7 : f32 to vector<16x128xf32>
    %10 = arith.maximumf %8, %9 : vector<16x128xf32>
    %11 = arith.truncf %10 : vector<16x128xf32> to vector<16x128xbf16>
    %c0_8 = arith.constant 0 : index
    %c0_9 = arith.constant 0 : index
    %12 = vector.load %arg5[%c0_8, %c0_9] : memref<16x128xbf16, #tpu.memory_space<vmem>>, vector<16x128xbf16>
    tpu.vector_store %arg5[%c0_8, %c0_9], %11 {strides = array<i32>} : memref<16x128xbf16, #tpu.memory_space<vmem>>, vector<16x128xbf16>,
    return
  }
  func.func @transform_0(%arg0: i32) -> (i32, i32) {
    %c0_i32 = arith.constant 0 : i32
    %c0_i32_0 = arith.constant 0 : i32
    return %arg0, %c0_i32 : i32, i32
  }
  func.func @transform_1(%arg0: i32) -> (i32, i32) {
    %c0_i32 = arith.constant 0 : i32
    %c0_i32_0 = arith.constant 0 : i32
    %c0_i32_1 = arith.constant 0 : i32
    return %c0_i32, %c0_i32_0 : i32, i32
  }
  func.func @transform_2(%arg0: i32) -> (i32, i32) {
    %c0_i32 = arith.constant 0 : i32
    %c0_i32_0 = arith.constant 0 : i32
    %c0_i32_1 = arith.constant 0 : i32
    return %c0_i32, %c0_i32_0 : i32, i32
  }
  func.func @transform_3(%arg0: i32) -> (i32, i32) {
    %c0_i32 = arith.constant 0 : i32
    %c0_i32_0 = arith.constant 0 : i32
    %c0_i32_1 = arith.constant 0 : i32
    return %c0_i32, %c0_i32_0 : i32, i32
  }
  func.func @transform_4(%arg0: i32) -> (i32, i32) {
    %c0_i32 = arith.constant 0 : i32
    %c0_i32_0 = arith.constant 0 : i32
    return %arg0, %c0_i32 : i32, i32
  }
}

module attributes {stable_mosaic.version = 11 : i64} {
  func.func @_fused_mm_kernel(%arg0: i32, %arg1: memref<16x384xbf16, #tpu.memory_space<vmem>>, %arg2: memref<384x128xbf16, #tpu.memory_space<vmem>>, %arg3: memref<1x128xf32, #tpu.memory_space<vmem>>, %arg4: memref<1x128xf32, #tpu.memory_space<vmem>>, %arg5: memref<16x128xbf16, #tpu.memory_space<vmem>>, %arg6: memref<16x128xbf16, #tpu.memory_space<vmem>>) attributes {dimension_semantics = [#tpu.dimension_semantics<parallel>], iteration_bounds = array<i64: 1>, scalar_prefetch = 0 : i64, scratch_operands = 0 : i64, tpu.core_type = #tpu.core_type<tc>, window_params = [{transform_indices = @transform_0, window_bounds = array<i64: 16, 384>}, {pipeline_mode = #tpu.pipeline_mode<synchronous>, transform_indices = @transform_1, window_bounds = array<i64: 384, 128>}, {pipeline_mode = #tpu.pipeline_mode<synchronous>, transform_indices = @transform_2, window_bounds = array<i64: 1, 128>}, {pipeline_mode = #tpu.pipeline_mode<synchronous>, transform_indices = @transform_3, window_bounds = array<i64: 1, 128>}, {transform_indices = @transform_4, window_bounds = array<i64: 16, 128>}, {transform_indices = @transform_5, window_bounds = array<i64: 16, 128>}]} {
    %c0 = arith.constant 0 : index
    %c0_0 = arith.constant 0 : index
    %0 = vector.load %arg1[%c0, %c0_0] : memref<16x384xbf16, #tpu.memory_space<vmem>>, vector<16x384xbf16>
    %c0_1 = arith.constant 0 : index
    %c0_2 = arith.constant 0 : index
    %1 = vector.load %arg2[%c0_1, %c0_2] : memref<384x128xbf16, #tpu.memory_space<vmem>>, vector<384x128xbf16>
    %cst = arith.constant dense<0.000000e+00> : vector<16x128xf32>
    %2 = tpu.matmul %0, %1, %cst {dimension_numbers = #tpu.dot_dimension_numbers<[1], [0], [0], [1], [0, 0, 1, 1], [], []>} : vector<16x384xbf16>, vector<384x128xbf16>, vector<16x128xf32> -> vector<16x128xf32>
    %c0_3 = arith.constant 0 : index
    %c0_4 = arith.constant 0 : index
    %3 = vector.load %arg3[%c0_3, %c0_4] : memref<1x128xf32, #tpu.memory_space<vmem>>, vector<1x128xf32>
    %4 = vector.broadcast %3 : vector<1x128xf32> to vector<16x128xf32>
    %5 = arith.mulf %2, %4 : vector<16x128xf32>
    %c0_5 = arith.constant 0 : index
    %c0_6 = arith.constant 0 : index
    %6 = vector.load %arg4[%c0_5, %c0_6] : memref<1x128xf32, #tpu.memory_space<vmem>>, vector<1x128xf32>
    %7 = vector.broadcast %6 : vector<1x128xf32> to vector<16x128xf32>
    %8 = arith.addf %5, %7 : vector<16x128xf32>
    %c0_7 = arith.constant 0 : index
    %c0_8 = arith.constant 0 : index
    %9 = vector.load %arg5[%c0_7, %c0_8] : memref<16x128xbf16, #tpu.memory_space<vmem>>, vector<16x128xbf16>
    %10 = arith.extf %9 : vector<16x128xbf16> to vector<16x128xf32>
    %11 = arith.addf %8, %10 : vector<16x128xf32>
    %cst_9 = arith.constant 0.000000e+00 : f32
    %12 = vector.broadcast %cst_9 : f32 to vector<16x128xf32>
    %13 = arith.maximumf %11, %12 : vector<16x128xf32>
    %14 = arith.truncf %13 : vector<16x128xf32> to vector<16x128xbf16>
    %c0_10 = arith.constant 0 : index
    %c0_11 = arith.constant 0 : index
    %15 = vector.load %arg6[%c0_10, %c0_11] : memref<16x128xbf16, #tpu.memory_space<vmem>>, vector<16x128xbf16>
    tpu.vector_store %arg6[%c0_10, %c0_11], %14 {strides = array<i32>} : memref<16x128xbf16, #tpu.memory_space<vmem>>, vector<16x128xbf16>,
    return
  }
  func.func @transform_0(%arg0: i32) -> (i32, i32) {
    %c0_i32 = arith.constant 0 : i32
    %c0_i32_0 = arith.constant 0 : i32
    return %arg0, %c0_i32 : i32, i32
  }
  func.func @transform_1(%arg0: i32) -> (i32, i32) {
    %c0_i32 = arith.constant 0 : i32
    %c0_i32_0 = arith.constant 0 : i32
    %c0_i32_1 = arith.constant 0 : i32
    return %c0_i32, %c0_i32_0 : i32, i32
  }
  func.func @transform_2(%arg0: i32) -> (i32, i32) {
    %c0_i32 = arith.constant 0 : i32
    %c0_i32_0 = arith.constant 0 : i32
    %c0_i32_1 = arith.constant 0 : i32
    return %c0_i32, %c0_i32_0 : i32, i32
  }
  func.func @transform_3(%arg0: i32) -> (i32, i32) {
    %c0_i32 = arith.constant 0 : i32
    %c0_i32_0 = arith.constant 0 : i32
    %c0_i32_1 = arith.constant 0 : i32
    return %c0_i32, %c0_i32_0 : i32, i32
  }
  func.func @transform_4(%arg0: i32) -> (i32, i32) {
    %c0_i32 = arith.constant 0 : i32
    %c0_i32_0 = arith.constant 0 : i32
    return %arg0, %c0_i32 : i32, i32
  }
  func.func @transform_5(%arg0: i32) -> (i32, i32) {
    %c0_i32 = arith.constant 0 : i32
    %c0_i32_0 = arith.constant 0 : i32
    return %arg0, %c0_i32 : i32, i32
  }
}

module attributes {stable_mosaic.version = 11 : i64} {
  func.func @_fused_mm_kernel(%arg0: i32, %arg1: memref<16x128xbf16, #tpu.memory_space<vmem>>, %arg2: memref<128x128xbf16, #tpu.memory_space<vmem>>, %arg3: memref<1x128xf32, #tpu.memory_space<vmem>>, %arg4: memref<1x128xf32, #tpu.memory_space<vmem>>, %arg5: memref<16x128xbf16, #tpu.memory_space<vmem>>) attributes {dimension_semantics = [#tpu.dimension_semantics<parallel>], iteration_bounds = array<i64: 1>, scalar_prefetch = 0 : i64, scratch_operands = 0 : i64, tpu.core_type = #tpu.core_type<tc>, window_params = [{transform_indices = @transform_0, window_bounds = array<i64: 16, 128>}, {pipeline_mode = #tpu.pipeline_mode<synchronous>, transform_indices = @transform_1, window_bounds = array<i64: 128, 128>}, {pipeline_mode = #tpu.pipeline_mode<synchronous>, transform_indices = @transform_2, window_bounds = array<i64: 1, 128>}, {pipeline_mode = #tpu.pipeline_mode<synchronous>, transform_indices = @transform_3, window_bounds = array<i64: 1, 128>}, {transform_indices = @transform_4, window_bounds = array<i64: 16, 128>}]} {
    %c0 = arith.constant 0 : index
    %c0_0 = arith.constant 0 : index
    %0 = vector.load %arg1[%c0, %c0_0] : memref<16x128xbf16, #tpu.memory_space<vmem>>, vector<16x128xbf16>
    %c0_1 = arith.constant 0 : index
    %c0_2 = arith.constant 0 : index
    %1 = vector.load %arg2[%c0_1, %c0_2] : memref<128x128xbf16, #tpu.memory_space<vmem>>, vector<128x128xbf16>
    %cst = arith.constant dense<0.000000e+00> : vector<16x128xf32>
    %2 = tpu.matmul %0, %1, %cst {dimension_numbers = #tpu.dot_dimension_numbers<[1], [0], [0], [1], [0, 0, 1, 1], [], []>} : vector<16x128xbf16>, vector<128x128xbf16>, vector<16x128xf32> -> vector<16x128xf32>
    %c0_3 = arith.constant 0 : index
    %c0_4 = arith.constant 0 : index
    %3 = vector.load %arg3[%c0_3, %c0_4] : memref<1x128xf32, #tpu.memory_space<vmem>>, vector<1x128xf32>
    %4 = vector.broadcast %3 : vector<1x128xf32> to vector<16x128xf32>
    %5 = arith.mulf %2, %4 : vector<16x128xf32>
    %c0_5 = arith.constant 0 : index
    %c0_6 = arith.constant 0 : index
    %6 = vector.load %arg4[%c0_5, %c0_6] : memref<1x128xf32, #tpu.memory_space<vmem>>, vector<1x128xf32>
    %7 = vector.broadcast %6 : vector<1x128xf32> to vector<16x128xf32>
    %8 = arith.addf %5, %7 : vector<16x128xf32>
    %9 = arith.truncf %8 : vector<16x128xf32> to vector<16x128xbf16>
    %c0_7 = arith.constant 0 : index
    %c0_8 = arith.constant 0 : index
    %10 = vector.load %arg5[%c0_7, %c0_8] : memref<16x128xbf16, #tpu.memory_space<vmem>>, vector<16x128xbf16>
    tpu.vector_store %arg5[%c0_7, %c0_8], %9 {strides = array<i32>} : memref<16x128xbf16, #tpu.memory_space<vmem>>, vector<16x128xbf16>,
    return
  }
  func.func @transform_0(%arg0: i32) -> (i32, i32) {
    %c0_i32 = arith.constant 0 : i32
    %c0_i32_0 = arith.constant 0 : i32
    return %arg0, %c0_i32 : i32, i32
  }
  func.func @transform_1(%arg0: i32) -> (i32, i32) {
    %c0_i32 = arith.constant 0 : i32
    %c0_i32_0 = arith.constant 0 : i32
    %c0_i32_1 = arith.constant 0 : i32
    return %c0_i32, %c0_i32_0 : i32, i32
  }
  func.func @transform_2(%arg0: i32) -> (i32, i32) {
    %c0_i32 = arith.constant 0 : i32
    %c0_i32_0 = arith.constant 0 : i32
    %c0_i32_1 = arith.constant 0 : i32
    return %c0_i32, %c0_i32_0 : i32, i32
  }
  func.func @transform_3(%arg0: i32) -> (i32, i32) {
    %c0_i32 = arith.constant 0 : i32
    %c0_i32_0 = arith.constant 0 : i32
    %c0_i32_1 = arith.constant 0 : i32
    return %c0_i32, %c0_i32_0 : i32, i32
  }
  func.func @transform_4(%arg0: i32) -> (i32, i32) {
    %c0_i32 = arith.constant 0 : i32
    %c0_i32_0 = arith.constant 0 : i32
    return %arg0, %c0_i32 : i32, i32
  }
}

module attributes {stable_mosaic.version = 11 : i64} {
  func.func @_fused_mm_kernel(%arg0: i32, %arg1: memref<16x384xbf16, #tpu.memory_space<vmem>>, %arg2: memref<384x128xbf16, #tpu.memory_space<vmem>>, %arg3: memref<1x128xf32, #tpu.memory_space<vmem>>, %arg4: memref<1x128xf32, #tpu.memory_space<vmem>>, %arg5: memref<16x128xbf16, #tpu.memory_space<vmem>>) attributes {dimension_semantics = [#tpu.dimension_semantics<parallel>], iteration_bounds = array<i64: 1>, scalar_prefetch = 0 : i64, scratch_operands = 0 : i64, tpu.core_type = #tpu.core_type<tc>, window_params = [{transform_indices = @transform_0, window_bounds = array<i64: 16, 384>}, {pipeline_mode = #tpu.pipeline_mode<synchronous>, transform_indices = @transform_1, window_bounds = array<i64: 384, 128>}, {pipeline_mode = #tpu.pipeline_mode<synchronous>, transform_indices = @transform_2, window_bounds = array<i64: 1, 128>}, {pipeline_mode = #tpu.pipeline_mode<synchronous>, transform_indices = @transform_3, window_bounds = array<i64: 1, 128>}, {transform_indices = @transform_4, window_bounds = array<i64: 16, 128>}]} {
    %c0 = arith.constant 0 : index
    %c0_0 = arith.constant 0 : index
    %0 = vector.load %arg1[%c0, %c0_0] : memref<16x384xbf16, #tpu.memory_space<vmem>>, vector<16x384xbf16>
    %c0_1 = arith.constant 0 : index
    %c0_2 = arith.constant 0 : index
    %1 = vector.load %arg2[%c0_1, %c0_2] : memref<384x128xbf16, #tpu.memory_space<vmem>>, vector<384x128xbf16>
    %cst = arith.constant dense<0.000000e+00> : vector<16x128xf32>
    %2 = tpu.matmul %0, %1, %cst {dimension_numbers = #tpu.dot_dimension_numbers<[1], [0], [0], [1], [0, 0, 1, 1], [], []>} : vector<16x384xbf16>, vector<384x128xbf16>, vector<16x128xf32> -> vector<16x128xf32>
    %c0_3 = arith.constant 0 : index
    %c0_4 = arith.constant 0 : index
    %3 = vector.load %arg3[%c0_3, %c0_4] : memref<1x128xf32, #tpu.memory_space<vmem>>, vector<1x128xf32>
    %4 = vector.broadcast %3 : vector<1x128xf32> to vector<16x128xf32>
    %5 = arith.mulf %2, %4 : vector<16x128xf32>
    %c0_5 = arith.constant 0 : index
    %c0_6 = arith.constant 0 : index
    %6 = vector.load %arg4[%c0_5, %c0_6] : memref<1x128xf32, #tpu.memory_space<vmem>>, vector<1x128xf32>
    %7 = vector.broadcast %6 : vector<1x128xf32> to vector<16x128xf32>
    %8 = arith.addf %5, %7 : vector<16x128xf32>
    %cst_7 = arith.constant 0.000000e+00 : f32
    %9 = vector.broadcast %cst_7 : f32 to vector<16x128xf32>
    %10 = arith.maximumf %8, %9 : vector<16x128xf32>
    %11 = arith.truncf %10 : vector<16x128xf32> to vector<16x128xbf16>
    %c0_8 = arith.constant 0 : index
    %c0_9 = arith.constant 0 : index
    %12 = vector.load %arg5[%c0_8, %c0_9] : memref<16x128xbf16, #tpu.memory_space<vmem>>, vector<16x128xbf16>
    tpu.vector_store %arg5[%c0_8, %c0_9], %11 {strides = array<i32>} : memref<16x128xbf16, #tpu.memory_space<vmem>>, vector<16x128xbf16>,
    return
  }
  func.func @transform_0(%arg0: i32) -> (i32, i32) {
    %c0_i32 = arith.constant 0 : i32
    %c0_i32_0 = arith.constant 0 : i32
    return %arg0, %c0_i32 : i32, i32
  }
  func.func @transform_1(%arg0: i32) -> (i32, i32) {
    %c0_i32 = arith.constant 0 : i32
    %c0_i32_0 = arith.constant 0 : i32
    %c0_i32_1 = arith.constant 0 : i32
    return %c0_i32, %c0_i32_0 : i32, i32
  }
  func.func @transform_2(%arg0: i32) -> (i32, i32) {
    %c0_i32 = arith.constant 0 : i32
    %c0_i32_0 = arith.constant 0 : i32
    %c0_i32_1 = arith.constant 0 : i32
    return %c0_i32, %c0_i32_0 : i32, i32
  }
  func.func @transform_3(%arg0: i32) -> (i32, i32) {
    %c0_i32 = arith.constant 0 : i32
    %c0_i32_0 = arith.constant 0 : i32
    %c0_i32_1 = arith.constant 0 : i32
    return %c0_i32, %c0_i32_0 : i32, i32
  }
  func.func @transform_4(%arg0: i32) -> (i32, i32) {
    %c0_i32 = arith.constant 0 : i32
    %c0_i32_0 = arith.constant 0 : i32
    return %arg0, %c0_i32 : i32, i32
  }
}

module attributes {stable_mosaic.version = 11 : i64} {
  func.func @_fused_mm_kernel(%arg0: i32, %arg1: memref<16x640xbf16, #tpu.memory_space<vmem>>, %arg2: memref<640x128xbf16, #tpu.memory_space<vmem>>, %arg3: memref<1x128xf32, #tpu.memory_space<vmem>>, %arg4: memref<1x128xf32, #tpu.memory_space<vmem>>, %arg5: memref<16x128xbf16, #tpu.memory_space<vmem>>, %arg6: memref<16x128xbf16, #tpu.memory_space<vmem>>) attributes {dimension_semantics = [#tpu.dimension_semantics<parallel>], iteration_bounds = array<i64: 1>, scalar_prefetch = 0 : i64, scratch_operands = 0 : i64, tpu.core_type = #tpu.core_type<tc>, window_params = [{transform_indices = @transform_0, window_bounds = array<i64: 16, 640>}, {pipeline_mode = #tpu.pipeline_mode<synchronous>, transform_indices = @transform_1, window_bounds = array<i64: 640, 128>}, {pipeline_mode = #tpu.pipeline_mode<synchronous>, transform_indices = @transform_2, window_bounds = array<i64: 1, 128>}, {pipeline_mode = #tpu.pipeline_mode<synchronous>, transform_indices = @transform_3, window_bounds = array<i64: 1, 128>}, {transform_indices = @transform_4, window_bounds = array<i64: 16, 128>}, {transform_indices = @transform_5, window_bounds = array<i64: 16, 128>}]} {
    %c0 = arith.constant 0 : index
    %c0_0 = arith.constant 0 : index
    %0 = vector.load %arg1[%c0, %c0_0] : memref<16x640xbf16, #tpu.memory_space<vmem>>, vector<16x640xbf16>
    %c0_1 = arith.constant 0 : index
    %c0_2 = arith.constant 0 : index
    %1 = vector.load %arg2[%c0_1, %c0_2] : memref<640x128xbf16, #tpu.memory_space<vmem>>, vector<640x128xbf16>
    %cst = arith.constant dense<0.000000e+00> : vector<16x128xf32>
    %2 = tpu.matmul %0, %1, %cst {dimension_numbers = #tpu.dot_dimension_numbers<[1], [0], [0], [1], [0, 0, 1, 1], [], []>} : vector<16x640xbf16>, vector<640x128xbf16>, vector<16x128xf32> -> vector<16x128xf32>
    %c0_3 = arith.constant 0 : index
    %c0_4 = arith.constant 0 : index
    %3 = vector.load %arg3[%c0_3, %c0_4] : memref<1x128xf32, #tpu.memory_space<vmem>>, vector<1x128xf32>
    %4 = vector.broadcast %3 : vector<1x128xf32> to vector<16x128xf32>
    %5 = arith.mulf %2, %4 : vector<16x128xf32>
    %c0_5 = arith.constant 0 : index
    %c0_6 = arith.constant 0 : index
    %6 = vector.load %arg4[%c0_5, %c0_6] : memref<1x128xf32, #tpu.memory_space<vmem>>, vector<1x128xf32>
    %7 = vector.broadcast %6 : vector<1x128xf32> to vector<16x128xf32>
    %8 = arith.addf %5, %7 : vector<16x128xf32>
    %c0_7 = arith.constant 0 : index
    %c0_8 = arith.constant 0 : index
    %9 = vector.load %arg5[%c0_7, %c0_8] : memref<16x128xbf16, #tpu.memory_space<vmem>>, vector<16x128xbf16>
    %10 = arith.extf %9 : vector<16x128xbf16> to vector<16x128xf32>
    %11 = arith.addf %8, %10 : vector<16x128xf32>
    %cst_9 = arith.constant 0.000000e+00 : f32
    %12 = vector.broadcast %cst_9 : f32 to vector<16x128xf32>
    %13 = arith.maximumf %11, %12 : vector<16x128xf32>
    %14 = arith.truncf %13 : vector<16x128xf32> to vector<16x128xbf16>
    %c0_10 = arith.constant 0 : index
    %c0_11 = arith.constant 0 : index
    %15 = vector.load %arg6[%c0_10, %c0_11] : memref<16x128xbf16, #tpu.memory_space<vmem>>, vector<16x128xbf16>
    tpu.vector_store %arg6[%c0_10, %c0_11], %14 {strides = array<i32>} : memref<16x128xbf16, #tpu.memory_space<vmem>>, vector<16x128xbf16>,
    return
  }
  func.func @transform_0(%arg0: i32) -> (i32, i32) {
    %c0_i32 = arith.constant 0 : i32
    %c0_i32_0 = arith.constant 0 : i32
    return %arg0, %c0_i32 : i32, i32
  }
  func.func @transform_1(%arg0: i32) -> (i32, i32) {
    %c0_i32 = arith.constant 0 : i32
    %c0_i32_0 = arith.constant 0 : i32
    %c0_i32_1 = arith.constant 0 : i32
    return %c0_i32, %c0_i32_0 : i32, i32
  }
  func.func @transform_2(%arg0: i32) -> (i32, i32) {
    %c0_i32 = arith.constant 0 : i32
    %c0_i32_0 = arith.constant 0 : i32
    %c0_i32_1 = arith.constant 0 : i32
    return %c0_i32, %c0_i32_0 : i32, i32
  }
  func.func @transform_3(%arg0: i32) -> (i32, i32) {
    %c0_i32 = arith.constant 0 : i32
    %c0_i32_0 = arith.constant 0 : i32
    %c0_i32_1 = arith.constant 0 : i32
    return %c0_i32, %c0_i32_0 : i32, i32
  }
  func.func @transform_4(%arg0: i32) -> (i32, i32) {
    %c0_i32 = arith.constant 0 : i32
    %c0_i32_0 = arith.constant 0 : i32
    return %arg0, %c0_i32 : i32, i32
  }
  func.func @transform_5(%arg0: i32) -> (i32, i32) {
    %c0_i32 = arith.constant 0 : i32
    %c0_i32_0 = arith.constant 0 : i32
    return %arg0, %c0_i32 : i32, i32
  }
}

module attributes {stable_mosaic.version = 11 : i64} {
  func.func @_fused_mm_kernel(%arg0: i32, %arg1: memref<16x640xbf16, #tpu.memory_space<vmem>>, %arg2: memref<640x128xbf16, #tpu.memory_space<vmem>>, %arg3: memref<1x128xf32, #tpu.memory_space<vmem>>, %arg4: memref<1x128xf32, #tpu.memory_space<vmem>>, %arg5: memref<16x128xbf16, #tpu.memory_space<vmem>>) attributes {dimension_semantics = [#tpu.dimension_semantics<parallel>], iteration_bounds = array<i64: 1>, scalar_prefetch = 0 : i64, scratch_operands = 0 : i64, tpu.core_type = #tpu.core_type<tc>, window_params = [{transform_indices = @transform_0, window_bounds = array<i64: 16, 640>}, {pipeline_mode = #tpu.pipeline_mode<synchronous>, transform_indices = @transform_1, window_bounds = array<i64: 640, 128>}, {pipeline_mode = #tpu.pipeline_mode<synchronous>, transform_indices = @transform_2, window_bounds = array<i64: 1, 128>}, {pipeline_mode = #tpu.pipeline_mode<synchronous>, transform_indices = @transform_3, window_bounds = array<i64: 1, 128>}, {transform_indices = @transform_4, window_bounds = array<i64: 16, 128>}]} {
    %c0 = arith.constant 0 : index
    %c0_0 = arith.constant 0 : index
    %0 = vector.load %arg1[%c0, %c0_0] : memref<16x640xbf16, #tpu.memory_space<vmem>>, vector<16x640xbf16>
    %c0_1 = arith.constant 0 : index
    %c0_2 = arith.constant 0 : index
    %1 = vector.load %arg2[%c0_1, %c0_2] : memref<640x128xbf16, #tpu.memory_space<vmem>>, vector<640x128xbf16>
    %cst = arith.constant dense<0.000000e+00> : vector<16x128xf32>
    %2 = tpu.matmul %0, %1, %cst {dimension_numbers = #tpu.dot_dimension_numbers<[1], [0], [0], [1], [0, 0, 1, 1], [], []>} : vector<16x640xbf16>, vector<640x128xbf16>, vector<16x128xf32> -> vector<16x128xf32>
    %c0_3 = arith.constant 0 : index
    %c0_4 = arith.constant 0 : index
    %3 = vector.load %arg3[%c0_3, %c0_4] : memref<1x128xf32, #tpu.memory_space<vmem>>, vector<1x128xf32>
    %4 = vector.broadcast %3 : vector<1x128xf32> to vector<16x128xf32>
    %5 = arith.mulf %2, %4 : vector<16x128xf32>
    %c0_5 = arith.constant 0 : index
    %c0_6 = arith.constant 0 : index
    %6 = vector.load %arg4[%c0_5, %c0_6] : memref<1x128xf32, #tpu.memory_space<vmem>>, vector<1x128xf32>
    %7 = vector.broadcast %6 : vector<1x128xf32> to vector<16x128xf32>
    %8 = arith.addf %5, %7 : vector<16x128xf32>
    %cst_7 = arith.constant 0.000000e+00 : f32
    %9 = vector.broadcast %cst_7 : f32 to vector<16x128xf32>
    %10 = arith.maximumf %8, %9 : vector<16x128xf32>
    %11 = arith.truncf %10 : vector<16x128xf32> to vector<16x128xbf16>
    %c0_8 = arith.constant 0 : index
    %c0_9 = arith.constant 0 : index
    %12 = vector.load %arg5[%c0_8, %c0_9] : memref<16x128xbf16, #tpu.memory_space<vmem>>, vector<16x128xbf16>
    tpu.vector_store %arg5[%c0_8, %c0_9], %11 {strides = array<i32>} : memref<16x128xbf16, #tpu.memory_space<vmem>>, vector<16x128xbf16>,
    return
  }
  func.func @transform_0(%arg0: i32) -> (i32, i32) {
    %c0_i32 = arith.constant 0 : i32
    %c0_i32_0 = arith.constant 0 : i32
    return %arg0, %c0_i32 : i32, i32
  }
  func.func @transform_1(%arg0: i32) -> (i32, i32) {
    %c0_i32 = arith.constant 0 : i32
    %c0_i32_0 = arith.constant 0 : i32
    %c0_i32_1 = arith.constant 0 : i32
    return %c0_i32, %c0_i32_0 : i32, i32
  }
  func.func @transform_2(%arg0: i32) -> (i32, i32) {
    %c0_i32 = arith.constant 0 : i32
    %c0_i32_0 = arith.constant 0 : i32
    %c0_i32_1 = arith.constant 0 : i32
    return %c0_i32, %c0_i32_0 : i32, i32
  }
  func.func @transform_3(%arg0: i32) -> (i32, i32) {
    %c0_i32 = arith.constant 0 : i32
    %c0_i32_0 = arith.constant 0 : i32
    %c0_i32_1 = arith.constant 0 : i32
    return %c0_i32, %c0_i32_0 : i32, i32
  }
  func.func @transform_4(%arg0: i32) -> (i32, i32) {
    %c0_i32 = arith.constant 0 : i32
    %c0_i32_0 = arith.constant 0 : i32
    return %arg0, %c0_i32 : i32, i32
  }
}

module attributes {stable_mosaic.version = 11 : i64} {
  func.func @_avgpool_kernel(%arg0: i32, %arg1: memref<2x1x128xbf16, #tpu.memory_space<vmem>>, %arg2: memref<2x128xf32, #tpu.memory_space<vmem>>) attributes {dimension_semantics = [#tpu.dimension_semantics<arbitrary>], iteration_bounds = array<i64: 1>, scalar_prefetch = 0 : i64, scratch_operands = 0 : i64, tpu.core_type = #tpu.core_type<tc>, window_params = [{pipeline_mode = #tpu.pipeline_mode<synchronous>, transform_indices = @transform_0, window_bounds = array<i64: 2, 1, 128>}, {pipeline_mode = #tpu.pipeline_mode<synchronous>, transform_indices = @transform_1, window_bounds = array<i64: 2, 128>}]} {
    %c0 = arith.constant 0 : index
    %c0_0 = arith.constant 0 : index
    %c0_1 = arith.constant 0 : index
    %0 = vector.load %arg1[%c0, %c0_0, %c0_1] : memref<2x1x128xbf16, #tpu.memory_space<vmem>>, vector<2x1x128xbf16>
    %1 = arith.extf %0 : vector<2x1x128xbf16> to vector<2x1x128xf32>
    %cst = arith.constant dense<0.000000e+00> : vector<2x128xf32>
    %2 = vector.multi_reduction <add>, %1, %cst [1] : vector<2x1x128xf32> to vector<2x128xf32>
    %cst_2 = arith.constant 1.000000e+00 : f32
    %3 = vector.broadcast %cst_2 : f32 to vector<2x128xf32>
    %4 = arith.divf %2, %3 : vector<2x128xf32>
    %c0_3 = arith.constant 0 : index
    %c0_4 = arith.constant 0 : index
    %5 = vector.load %arg2[%c0_3, %c0_4] : memref<2x128xf32, #tpu.memory_space<vmem>>, vector<2x128xf32>
    tpu.vector_store %arg2[%c0_3, %c0_4], %4 {strides = array<i32>} : memref<2x128xf32, #tpu.memory_space<vmem>>, vector<2x128xf32>,
    return
  }
  func.func @transform_0(%arg0: i32) -> (i32, i32, i32) {
    %c0_i32 = arith.constant 0 : i32
    %c0_i32_0 = arith.constant 0 : i32
    %c0_i32_1 = arith.constant 0 : i32
    %c0_i32_2 = arith.constant 0 : i32
    return %c0_i32, %c0_i32_0, %c0_i32_1 : i32, i32, i32
  }
  func.func @transform_1(%arg0: i32) -> (i32, i32) {
    %c0_i32 = arith.constant 0 : i32
    %c0_i32_0 = arith.constant 0 : i32
    %c0_i32_1 = arith.constant 0 : i32
    return %c0_i32, %c0_i32_0 : i32, i32
  }
}

</mosaic_0001>

<llo_original>
// kernel: encoder_cnn_forward.22
$region0: #{encoder_cnn_forward.22}
  #allocation0 [shape = 'u32[]', space=smem, size = 0x4, offset = 0x4, fixed_abs, tag = 'smem constant byte address 0x4 - core index']
  #allocation1 [shape = 'u32[72,128]{1,0:T(1,128)}', space=vmem, size = 0x9000, scoped, tag = 'internal scratch']
  %s0 = inlined_call_operand.vmem [shape: bf16[512,256], index: 0, kind: input, shape index: {}]
  %s1 = inlined_call_operand.vmem [shape: bf16[256,128], index: 1, kind: input, shape index: {}]
  %s2 = inlined_call_operand.vmem [shape: f32[1,128], index: 2, kind: input, shape index: {}]
  %s3 = inlined_call_operand.vmem [shape: f32[1,128], index: 3, kind: input, shape index: {}]
  %s4 = inlined_call_operand.vmem [shape: bf16[512,128], index: 4, kind: output, shape index: {}]
  %s5 = sld [smem:[#allocation0]]
  $region49: #{encoder_cnn_forward.22} parent=0
    _
  %s7 = ssub.s32 1, %s5
  %s8 = scalar_select 0, %s7, %s5
  loop: start=0, step=1, limit=4
  $region2: #{encoder_cnn_forward.22} parent=0 // loop_pre_header
    _
  $region3: #{encoder_cnn_forward.22} parent=0 // loop_header
    %s10 = sphi 0, %s14
    %p11 = scmp.ge.s32.totalorder %s10, 4
    %s20 = sphi 0, %s22
    %s23 = sphi 0, %s20
    %s24 = sphi 0, %s23
    %s40 = sphi 0, %s24
    %s44 = sphi 0, %s44
    %s46 = sphi 0, %s44
    %s47 = sphi 0, %s46
    %s61 = sphi 0, %s47
    %s65 = sphi 0, %s65
    %s67 = sphi 0, %s65
    %s68 = sphi 0, %s67
    %s82 = sphi 0, %s68
    %s86 = sphi 0, %s86
    %s88 = sphi 0, %s86
    %s89 = sphi 0, %s88
    %s103 = sphi 0, %s89
    %s109 = sphi 0, %s111
    %s112 = sphi 0, %s109
    %s113 = sphi 0, %s112
    %s129 = sphi 0, %s113
  $region4: #{encoder_cnn_forward.22} parent=0 // loop_header_branch
    %13 = sbr.rel (%p11) target = $region8
  $region5: #{encoder_cnn_forward.22} parent=0 // loop_body
    %s15 = ssub.s32 %s10, 1
    %s16 = ssub.s32 %s10, 2
    %s17 = sadd.s32 %s10, 1
    %s18 = ssub.s32 %s10, %s17
    %p19 = scmp.eq.s32.totalorder %s18, 0
    %s21 = sadd.s32 %s20, 1
    %s22 = scalar_select %p19, %s20, %s21
    %p25 = pneg %p19
    %p26 = scmp.eq.s32.totalorder %s10, 1
    %p27 = por %p25, %p26
    %p28 = scmp.ne.s32.totalorder %s20, %s23
    %p29 = scmp.eq.s32.totalorder %s10, 0
    %p30 = por %p28, %p29
    %p31 = scmp.ne.s32.totalorder %s20, %s23
    %p32 = scmp.eq.s32.totalorder %s15, 1
    %p33 = por %p31, %p32
    %p34 = scmp.ne.s32.totalorder %s23, %s24
    %p35 = scmp.eq.s32.totalorder %s15, 0
    %p36 = por %p34, %p35
    %p37 = scmp.ne.s32.totalorder %s23, %s24
    %p38 = scmp.eq.s32.totalorder %s16, 1
    %p39 = por %p37, %p38
    %p41 = scmp.ne.s32.totalorder %s24, %s40
    %p42 = scmp.eq.s32.totalorder %s16, 0
    %p43 = por %p41, %p42
    %s45 = sadd.s32 %s44, 1
    %p48 = scmp.eq.s32.totalorder %s10, 1
    %p49 = scmp.ne.s32.totalorder %s44, %s46
    %p50 = scmp.eq.s32.totalorder %s10, 0
    %p51 = por %p49, %p50
    %p52 = scmp.ne.s32.totalorder %s44, %s46
    %p53 = scmp.eq.s32.totalorder %s15, 1
    %p54 = por %p52, %p53
    %p55 = scmp.ne.s32.totalorder %s46, %s47
    %p56 = scmp.eq.s32.totalorder %s15, 0
    %p57 = por %p55, %p56
    %p58 = scmp.ne.s32.totalorder %s46, %s47
    %p59 = scmp.eq.s32.totalorder %s16, 1
    %p60 = por %p58, %p59
    %p62 = scmp.ne.s32.totalorder %s47, %s61
    %p63 = scmp.eq.s32.totalorder %s16, 0
    %p64 = por %p62, %p63
    %s66 = sadd.s32 %s65, 1
    %p69 = scmp.eq.s32.totalorder %s10, 1
    %p70 = scmp.ne.s32.totalorder %s65, %s67
    %p71 = scmp.eq.s32.totalorder %s10, 0
    %p72 = por %p70, %p71
    %p73 = scmp.ne.s32.totalorder %s65, %s67
    %p74 = scmp.eq.s32.totalorder %s15, 1
    %p75 = por %p73, %p74
    %p76 = scmp.ne.s32.totalorder %s67, %s68
    %p77 = scmp.eq.s32.totalorder %s15, 0
    %p78 = por %p76, %p77
    %p79 = scmp.ne.s32.totalorder %s67, %s68
    %p80 = scmp.eq.s32.totalorder %s16, 1
    %p81 = por %p79, %p80
    %p83 = scmp.ne.s32.totalorder %s68, %s82
    %p84 = scmp.eq.s32.totalorder %s16, 0
    %p85 = por %p83, %p84
    %s87 = sadd.s32 %s86, 1
    %p90 = scmp.eq.s32.totalorder %s10, 1
    %p91 = scmp.ne.s32.totalorder %s86, %s88
    %p92 = scmp.eq.s32.totalorder %s10, 0
    %p93 = por %p91, %p92
    %p94 = scmp.ne.s32.totalorder %s86, %s88
    %p95 = scmp.eq.s32.totalorder %s15, 1
    %p96 = por %p94, %p95
    %p97 = scmp.ne.s32.totalorder %s88, %s89
    %p98 = scmp.eq.s32.totalorder %s15, 0
    %p99 = por %p97, %p98
    %p100 = scmp.ne.s32.totalorder %s88, %s89
    %p101 = scmp.eq.s32.totalorder %s16, 1
    %p102 = por %p100, %p101
    %p104 = scmp.ne.s32.totalorder %s89, %s103
    %p105 = scmp.eq.s32.totalorder %s16, 0
    %p106 = por %p104, %p105
    %s107 = ssub.s32 %s10, %s17
    %p108 = scmp.eq.s32.totalorder %s107, 0
    %s110 = sadd.s32 %s109, 1
    %s111 = scalar_select %p108, %s109, %s110
    %p114 = pneg %p108
    %p115 = scmp.eq.s32.totalorder %s10, 1
    %p116 = por %p114, %p115
    %p117 = scmp.ne.s32.totalorder %s109, %s112
    %p118 = scmp.eq.s32.totalorder %s10, 0
    %p119 = por %p117, %p118
    %p120 = scmp.ne.s32.totalorder %s109, %s112
    %p121 = scmp.eq.s32.totalorder %s15, 1
    %p122 = por %p120, %p121
    %p123 = scmp.ne.s32.totalorder %s112, %s113
    %p124 = scmp.eq.s32.totalorder %s15, 0
    %p125 = por %p123, %p124
    %p126 = scmp.ne.s32.totalorder %s112, %s113
    %p127 = scmp.eq.s32.totalorder %s16, 1
    %p128 = por %p126, %p127
    %p130 = scmp.ne.s32.totalorder %s113, %s129
    %p131 = scmp.eq.s32.totalorder %s16, 0
    %p132 = por %p130, %p131
    %p133 = scmp.le.s32.totalorder 1, %s10
    %p134 = scmp.lt.s32.totalorder %s10, 3
    %p135 = pnand %p133, %p134
    %p136 = pneg %p135
    // Predicated region
    $region9: #{encoder_cnn_forward.22} parent=5 // pred_check
      _
    $region10: #{encoder_cnn_forward.22} parent=5 // pred_check_branch
      %138 = sbr.rel (%p135) target = $region12
    $region11: #{encoder_cnn_forward.22} parent=5 // pred_region
      %s139 = ssub.s32 %s10, 1
      // Predicated region
      $region13: #{encoder_cnn_forward.22} parent=11 // pred_check
        %p140 = pneg %p57
      $region14: #{encoder_cnn_forward.22} parent=11 // pred_check_branch
        %142 = sbr.rel (%p140) target = $region16
      $region15: #{encoder_cnn_forward.22} parent=11 // pred_region
        _
      $region16: #{encoder_cnn_forward.22} parent=11 // pred_fallthru
        _
      // Predicated region
      $region17: #{encoder_cnn_forward.22} parent=11 // pred_check
        %p143 = pneg %p78
      $region18: #{encoder_cnn_forward.22} parent=11 // pred_check_branch
        %145 = sbr.rel (%p143) target = $region20
      $region19: #{encoder_cnn_forward.22} parent=11 // pred_region
        _
      $region20: #{encoder_cnn_forward.22} parent=11 // pred_fallthru
        _
      // Predicated region
      $region21: #{encoder_cnn_forward.22} parent=11 // pred_check
        %p146 = pneg %p99
      $region22: #{encoder_cnn_forward.22} parent=11 // pred_check_branch
        %148 = sbr.rel (%p146) target = $region24
      $region23: #{encoder_cnn_forward.22} parent=11 // pred_region
        _
      $region24: #{encoder_cnn_forward.22} parent=11 // pred_fallthru
        _
    $region12: #{encoder_cnn_forward.22} parent=5 // pred_fallthru
      _
    %p149 = scmp.lt.s32.totalorder %s10, 2
    // Predicated region
    $region25: #{encoder_cnn_forward.22} parent=5 // pred_check
      %p150 = pneg %p149
    $region26: #{encoder_cnn_forward.22} parent=5 // pred_check_branch
      %152 = sbr.rel (%p150) target = $region28
    $region27: #{encoder_cnn_forward.22} parent=5 // pred_region
      // Predicated region
      $region29: #{encoder_cnn_forward.22} parent=27 // pred_check
        %p153 = pneg %p30
      $region30: #{encoder_cnn_forward.22} parent=27 // pred_check_branch
        %155 = sbr.rel (%p153) target = $region32
      $region31: #{encoder_cnn_forward.22} parent=27 // pred_region
        %s156 = smul.u32 32, %s10
        %p157 = scmp.lt.s32.totalorder %s156, 63
        %s158 = scalar_select %p157, %s156, 63
        %s159 = smul.addr %s158, 2
        %s160 = smul.addr %s159, 4
        %s161 = scalar_lea.vmem %s0, %s160
        %s162 = smul.u32 32, %s10
      $region32: #{encoder_cnn_forward.22} parent=27 // pred_fallthru
        _
    $region28: #{encoder_cnn_forward.22} parent=5 // pred_fallthru
      _
    %p163 = scmp.le.s32.totalorder 1, %s10
    %p164 = scmp.lt.s32.totalorder %s10, 3
    %p165 = pnand %p163, %p164
    %p166 = pneg %p165
    // Predicated region
    $region33: #{encoder_cnn_forward.22} parent=5 // pred_check
      _
    $region34: #{encoder_cnn_forward.22} parent=5 // pred_check_branch
      %168 = sbr.rel (%p165) target = $region36
    $region35: #{encoder_cnn_forward.22} parent=5 // pred_region
      %s169 = ssub.s32 %s10, 1
      %s170 = smul.u32 32, %s15
      %p171 = scmp.lt.s32.totalorder %s170, 63
      %s172 = scalar_select %p171, %s170, 63
      %s173 = smul.addr %s172, 2
      %s174 = smul.addr %s173, 4
      %s175 = scalar_lea.vmem %s0, %s174
      %p176 = pneg %p36
      %p177 = pneg %p33
      %p178 = pneg %p57
      %p179 = pneg %p54
      %p180 = pneg %p78
      %p181 = pneg %p75
      %p182 = pneg %p99
      %p183 = pneg %p96
      %p184 = pneg %p125
      %p185 = pneg %p122
      %s186 = smul.u32 32, %s15
      %p187 = scmp.lt.s32.totalorder %s186, 63
      %s188 = scalar_select %p187, %s186, 63
      %s189 = smul.addr %s188, 4
      %s190 = scalar_lea.vmem %s4, %s189
      %s191 = smul.u32 32, %s15
      %p192 = scmp.lt.s32.totalorder %s191, 63
      %s193 = scalar_select %p192, %s191, 63
      %s194 = smul.addr %s193, 2
      %s195 = smul.addr %s194, 4
      %s196 = scalar_lea.vmem %s0, %s195
      %s197 = smul.u32 32, %s15
      %s198 = smul.u32 32, %s15
      %p199 = scmp.lt.s32.totalorder %s198, 63
      %s200 = scalar_select %p199, %s198, 63
      %s201 = smul.addr %s200, 4
      %s202 = scalar_lea.vmem %s4, %s201
      %s203 = smul.u32 32, %s15
      %v204 = vld [vmem:[%s196] sm:$0xff]
      %v205 = vld [vmem:[%s196 + $0x8] sm:$0xff]
      %v206 = vld [vmem:[%s196 + $0x10] sm:$0xff]
      %v207 = vld [vmem:[%s196 + $0x18] sm:$0xff]
      %v208 = vld [vmem:[%s196 + $0x20] sm:$0xff]
      %v209 = vld [vmem:[%s196 + $0x28] sm:$0xff]
      %v210 = vld [vmem:[%s196 + $0x30] sm:$0xff]
      %v211 = vld [vmem:[%s196 + $0x38] sm:$0xff]
      %v212 = vld [vmem:[%s196 + $0x40] sm:$0xff]
      %v213 = vld [vmem:[%s196 + $0x48] sm:$0xff]
      %v214 = vld [vmem:[%s196 + $0x50] sm:$0xff]
      %v215 = vld [vmem:[%s196 + $0x58] sm:$0xff]
      %v216 = vld [vmem:[%s196 + $0x60] sm:$0xff]
      %v217 = vld [vmem:[%s196 + $0x68] sm:$0xff]
      %v218 = vld [vmem:[%s196 + $0x70] sm:$0xff]
      %v219 = vld [vmem:[%s196 + $0x78] sm:$0xff]
      %v220 = vld [vmem:[%s196 + $0x80] sm:$0xff]
      %v221 = vld [vmem:[%s196 + $0x88] sm:$0xff]
      %v222 = vld [vmem:[%s196 + $0x90] sm:$0xff]
      %v223 = vld [vmem:[%s196 + $0x98] sm:$0xff]
      %v224 = vld [vmem:[%s196 + $0xa0] sm:$0xff]
      %v225 = vld [vmem:[%s196 + $0xa8] sm:$0xff]
      %v226 = vld [vmem:[%s196 + $0xb0] sm:$0xff]
      %v227 = vld [vmem:[%s196 + $0xb8] sm:$0xff]
      %v228 = vld [vmem:[%s196 + $0xc0] sm:$0xff]
      %v229 = vld [vmem:[%s196 + $0xc8] sm:$0xff]
      %v230 = vld [vmem:[%s196 + $0xd0] sm:$0xff]
      %v231 = vld [vmem:[%s196 + $0xd8] sm:$0xff]
      %v232 = vld [vmem:[%s196 + $0xe0] sm:$0xff]
      %v233 = vld [vmem:[%s196 + $0xe8] sm:$0xff]
      %v234 = vld [vmem:[%s196 + $0xf0] sm:$0xff]
      %v235 = vld [vmem:[%s196 + $0xf8] sm:$0xff]
      %v236 = vld [vmem:[%s1] sm:$0xf]
      %v237 = vld [vmem:[%s1 + $0x4] sm:$0xf]
      %v238 = vld [vmem:[%s1 + $0x8] sm:$0xf]
      %v239 = vld [vmem:[%s1 + $0xc] sm:$0xf]
      %v240 = vld [vmem:[%s1 + $0x10] sm:$0xf]
      %v241 = vld [vmem:[%s1 + $0x14] sm:$0xf]
      %v242 = vld [vmem:[%s1 + $0x18] sm:$0xf]
      %v243 = vld [vmem:[%s1 + $0x1c] sm:$0xf]
      %v244 = vld [vmem:[%s1 + $0x20] sm:$0xf]
      %v245 = vld [vmem:[%s1 + $0x24] sm:$0xf]
      %v246 = vld [vmem:[%s1 + $0x28] sm:$0xf]
      %v247 = vld [vmem:[%s1 + $0x2c] sm:$0xf]
      %v248 = vld [vmem:[%s1 + $0x30] sm:$0xf]
      %v249 = vld [vmem:[%s1 + $0x34] sm:$0xf]
      %v250 = vld [vmem:[%s1 + $0x38] sm:$0xf]
      %v251 = vld [vmem:[%s1 + $0x3c] sm:$0xf]
      %v252 = vld [vmem:[%s1 + $0x40] sm:$0xf]
      %v253 = vld [vmem:[%s1 + $0x44] sm:$0xf]
      %v254 = vld [vmem:[%s1 + $0x48] sm:$0xf]
      %v255 = vld [vmem:[%s1 + $0x4c] sm:$0xf]
      %v256 = vld [vmem:[%s1 + $0x50] sm:$0xf]
      %v257 = vld [vmem:[%s1 + $0x54] sm:$0xf]
      %v258 = vld [vmem:[%s1 + $0x58] sm:$0xf]
      %v259 = vld [vmem:[%s1 + $0x5c] sm:$0xf]
      %v260 = vld [vmem:[%s1 + $0x60] sm:$0xf]
      %v261 = vld [vmem:[%s1 + $0x64] sm:$0xf]
      %v262 = vld [vmem:[%s1 + $0x68] sm:$0xf]
      %v263 = vld [vmem:[%s1 + $0x6c] sm:$0xf]
      %v264 = vld [vmem:[%s1 + $0x70] sm:$0xf]
      %v265 = vld [vmem:[%s1 + $0x74] sm:$0xf]
      %v266 = vld [vmem:[%s1 + $0x78] sm:$0xf]
      %v267 = vld [vmem:[%s1 + $0x7c] sm:$0xf]
      %v300 = vunpack.c.l.b16 %v204
      %v301 = vunpack.c.h.b16 %v204
      %v302 = vunpack.c.l.b16 %v205
      %v303 = vunpack.c.h.b16 %v205
      %v304 = vunpack.c.l.b16 %v206
      %v305 = vunpack.c.h.b16 %v206
      %v306 = vunpack.c.l.b16 %v207
      %v307 = vunpack.c.h.b16 %v207
      %v308 = vunpack.c.l.b16 %v208
      %v309 = vunpack.c.h.b16 %v208
      %v310 = vunpack.c.l.b16 %v209
      %v311 = vunpack.c.h.b16 %v209
      %v312 = vunpack.c.l.b16 %v210
      %v313 = vunpack.c.h.b16 %v210
      %v314 = vunpack.c.l.b16 %v211
      %v315 = vunpack.c.h.b16 %v211
      %v316 = vunpack.c.l.b16 %v212
      %v317 = vunpack.c.h.b16 %v212
      %v318 = vunpack.c.l.b16 %v213
      %v319 = vunpack.c.h.b16 %v213
      %v320 = vunpack.c.l.b16 %v214
      %v321 = vunpack.c.h.b16 %v214
      %v322 = vunpack.c.l.b16 %v215
      %v323 = vunpack.c.h.b16 %v215
      %v324 = vunpack.c.l.b16 %v216
      %v325 = vunpack.c.h.b16 %v216
      %v326 = vunpack.c.l.b16 %v217
      %v327 = vunpack.c.h.b16 %v217
      %v328 = vunpack.c.l.b16 %v218
      %v329 = vunpack.c.h.b16 %v218
      %v330 = vunpack.c.l.b16 %v219
      %v331 = vunpack.c.h.b16 %v219
      %v332 = vunpack.c.l.b16 %v220
      %v333 = vunpack.c.h.b16 %v220
      %v334 = vunpack.c.l.b16 %v221
      %v335 = vunpack.c.h.b16 %v221
      %v336 = vunpack.c.l.b16 %v222
      %v337 = vunpack.c.h.b16 %v222
      %v338 = vunpack.c.l.b16 %v223
      %v339 = vunpack.c.h.b16 %v223
      %v340 = vunpack.c.l.b16 %v224
      %v341 = vunpack.c.h.b16 %v224
      %v342 = vunpack.c.l.b16 %v225
      %v343 = vunpack.c.h.b16 %v225
      %v344 = vunpack.c.l.b16 %v226
      %v345 = vunpack.c.h.b16 %v226
      %v346 = vunpack.c.l.b16 %v227
      %v347 = vunpack.c.h.b16 %v227
      %v348 = vunpack.c.l.b16 %v228
      %v349 = vunpack.c.h.b16 %v228
      %v350 = vunpack.c.l.b16 %v229
      %v351 = vunpack.c.h.b16 %v229
      %v352 = vunpack.c.l.b16 %v230
      %v353 = vunpack.c.h.b16 %v230
      %v354 = vunpack.c.l.b16 %v231
      %v355 = vunpack.c.h.b16 %v231
      %v356 = vunpack.c.l.b16 %v232
      %v357 = vunpack.c.h.b16 %v232
      %v358 = vunpack.c.l.b16 %v233
      %v359 = vunpack.c.h.b16 %v233
      %v360 = vunpack.c.l.b16 %v234
      %v361 = vunpack.c.h.b16 %v234
      %v362 = vunpack.c.l.b16 %v235
      %v363 = vunpack.c.h.b16 %v235
      %v364 = vpack.c.b16 %v302, %v300
      %v365 = vpack.c.b16 %v303, %v301
      %v366 = vpack.c.b16 %v306, %v304
      %v367 = vpack.c.b16 %v307, %v305
      %v368 = vpack.c.b16 %v310, %v308
      %v369 = vpack.c.b16 %v311, %v309
      %v370 = vpack.c.b16 %v314, %v312
      %v371 = vpack.c.b16 %v315, %v313
      %v372 = vpack.c.b16 %v318, %v316
      %v373 = vpack.c.b16 %v319, %v317
      %v374 = vpack.c.b16 %v322, %v320
      %v375 = vpack.c.b16 %v323, %v321
      %v376 = vpack.c.b16 %v326, %v324
      %v377 = vpack.c.b16 %v327, %v325
      %v378 = vpack.c.b16 %v330, %v328
      %v379 = vpack.c.b16 %v331, %v329
      %v380 = vpack.c.b16 %v334, %v332
      %v381 = vpack.c.b16 %v335, %v333
      %v382 = vpack.c.b16 %v338, %v336
      %v383 = vpack.c.b16 %v339, %v337
      %v384 = vpack.c.b16 %v342, %v340
      %v385 = vpack.c.b16 %v343, %v341
      %v386 = vpack.c.b16 %v346, %v344
      %v387 = vpack.c.b16 %v347, %v345
      %v388 = vpack.c.b16 %v350, %v348
      %v389 = vpack.c.b16 %v351, %v349
      %v390 = vpack.c.b16 %v354, %v352
      %v391 = vpack.c.b16 %v355, %v353
      %v392 = vpack.c.b16 %v358, %v356
      %v393 = vpack.c.b16 %v359, %v357
      %v394 = vpack.c.b16 %v362, %v360
      %v395 = vpack.c.b16 %v363, %v361
      %v460 = vunpack.c.l.b16 %v236
      %v461 = vunpack.c.l.b16 %v237
      %v462 = vunpack.c.l.b16 %v238
      %v463 = vunpack.c.l.b16 %v239
      %v464 = vunpack.c.l.b16 %v240
      %v465 = vunpack.c.l.b16 %v241
      %v466 = vunpack.c.l.b16 %v242
      %v467 = vunpack.c.l.b16 %v243
      %v468 = vunpack.c.l.b16 %v244
      %v469 = vunpack.c.l.b16 %v245
      %v470 = vunpack.c.l.b16 %v246
      %v471 = vunpack.c.l.b16 %v247
      %v472 = vunpack.c.l.b16 %v248
      %v473 = vunpack.c.l.b16 %v249
      %v474 = vunpack.c.l.b16 %v250
      %v475 = vunpack.c.l.b16 %v251
      %v476 = vunpack.c.l.b16 %v252
      %v477 = vunpack.c.l.b16 %v253
      %v478 = vunpack.c.l.b16 %v254
      %v479 = vunpack.c.l.b16 %v255
      %v480 = vunpack.c.l.b16 %v256
      %v481 = vunpack.c.l.b16 %v257
      %v482 = vunpack.c.l.b16 %v258
      %v483 = vunpack.c.l.b16 %v259
      %v484 = vunpack.c.l.b16 %v260
      %v485 = vunpack.c.l.b16 %v261
      %v486 = vunpack.c.l.b16 %v262
      %v487 = vunpack.c.l.b16 %v263
      %v488 = vunpack.c.l.b16 %v264
      %v489 = vunpack.c.l.b16 %v265
      %v490 = vunpack.c.l.b16 %v266
      %v491 = vunpack.c.l.b16 %v267
      %v492 = vpack.c.b16 %v461, %v460
      %v493 = vpack.c.b16 %v463, %v462
      %v494 = vpack.c.b16 %v465, %v464
      %v495 = vpack.c.b16 %v467, %v466
      %v496 = vpack.c.b16 %v469, %v468
      %v497 = vpack.c.b16 %v471, %v470
      %v498 = vpack.c.b16 %v473, %v472
      %v499 = vpack.c.b16 %v475, %v474
      %v500 = vpack.c.b16 %v477, %v476
      %v501 = vpack.c.b16 %v479, %v478
      %v502 = vpack.c.b16 %v481, %v480
      %v503 = vpack.c.b16 %v483, %v482
      %v504 = vpack.c.b16 %v485, %v484
      %v505 = vpack.c.b16 %v487, %v486
      %v506 = vpack.c.b16 %v489, %v488
      %v507 = vpack.c.b16 %v491, %v490
      %524 = vmatpush.bf16.msra.mxu0 %v499
      %525 = vmatpush.bf16.msra.mxu0 %v498
      %526 = vmatpush.bf16.msra.mxu0 %v497
      %527 = vmatpush.bf16.msra.mxu0 %v496
      %528 = vmatpush.bf16.msra.mxu0 %v495
      %529 = vmatpush.bf16.msra.mxu0 %v494
      %530 = vmatpush.bf16.msra.mxu0 %v493
      %531 = vmatpush.bf16.msra.mxu0 %v492
      %532 = vmatmul.bf16.gmra.mxu0 %v364
      %v533 = vpop.f32.mrf.mxu0
      %v534 = vadd.f32 0.0, %v533
      %v535 = vpop.f32.mrf.mxu0
      %v536 = vadd.f32 0.0, %v535
      %537 = vmatmul.bf16.gmra.mxu0 %v366
      %v538 = vpop.f32.mrf.mxu0
      %v539 = vadd.f32 0.0, %v538
      %v540 = vpop.f32.mrf.mxu0
      %v541 = vadd.f32 0.0, %v540
      %542 = vmatmul.bf16.gmra.mxu0 %v368
      %v543 = vpop.f32.mrf.mxu0
      %v544 = vadd.f32 0.0, %v543
      %v545 = vpop.f32.mrf.mxu0
      %v546 = vadd.f32 0.0, %v545
      %547 = vmatmul.bf16.gmra.mxu0 %v370
      %v548 = vpop.f32.mrf.mxu0
      %v549 = vadd.f32 0.0, %v548
      %v550 = vpop.f32.mrf.mxu0
      %v551 = vadd.f32 0.0, %v550
      %552 = vmatmul.bf16.gmra.mxu0 %v372
      %v553 = vpop.f32.mrf.mxu0
      %v554 = vadd.f32 0.0, %v553
      %v555 = vpop.f32.mrf.mxu0
      %v556 = vadd.f32 0.0, %v555
      %557 = vmatmul.bf16.gmra.mxu0 %v374
      %v558 = vpop.f32.mrf.mxu0
      %v559 = vadd.f32 0.0, %v558
      %v560 = vpop.f32.mrf.mxu0
      %v561 = vadd.f32 0.0, %v560
      %562 = vmatmul.bf16.gmra.mxu0 %v376
      %v563 = vpop.f32.mrf.mxu0
      %v564 = vadd.f32 0.0, %v563
      %v565 = vpop.f32.mrf.mxu0
      %v566 = vadd.f32 0.0, %v565
      %567 = vmatmul.bf16.gmra.mxu0 %v378
      %v568 = vpop.f32.mrf.mxu0
      %v569 = vadd.f32 0.0, %v568
      %v570 = vpop.f32.mrf.mxu0
      %v571 = vadd.f32 0.0, %v570
      %572 = vmatmul.bf16.gmra.mxu0 %v380
      %v573 = vpop.f32.mrf.mxu0
      %v574 = vadd.f32 0.0, %v573
      %v575 = vpop.f32.mrf.mxu0
      %v576 = vadd.f32 0.0, %v575
      %577 = vmatmul.bf16.gmra.mxu0 %v382
      %v578 = vpop.f32.mrf.mxu0
      %v579 = vadd.f32 0.0, %v578
      %v580 = vpop.f32.mrf.mxu0
      %v581 = vadd.f32 0.0, %v580
      %582 = vmatmul.bf16.gmra.mxu0 %v384
      %v583 = vpop.f32.mrf.mxu0
      %v584 = vadd.f32 0.0, %v583
      %v585 = vpop.f32.mrf.mxu0
      %v586 = vadd.f32 0.0, %v585
      %587 = vmatmul.bf16.gmra.mxu0 %v386
      %v588 = vpop.f32.mrf.mxu0
      %v589 = vadd.f32 0.0, %v588
      %v590 = vpop.f32.mrf.mxu0
      %v591 = vadd.f32 0.0, %v590
      %592 = vmatmul.bf16.gmra.mxu0 %v388
      %v593 = vpop.f32.mrf.mxu0
      %v594 = vadd.f32 0.0, %v593
      %v595 = vpop.f32.mrf.mxu0
      %v596 = vadd.f32 0.0, %v595
      %597 = vmatmul.bf16.gmra.mxu0 %v390
      %v598 = vpop.f32.mrf.mxu0
      %v599 = vadd.f32 0.0, %v598
      %v600 = vpop.f32.mrf.mxu0
      %v601 = vadd.f32 0.0, %v600
      %602 = vmatmul.bf16.gmra.mxu0 %v392
      %v603 = vpop.f32.mrf.mxu0
      %v604 = vadd.f32 0.0, %v603
      %v605 = vpop.f32.mrf.mxu0
      %v606 = vadd.f32 0.0, %v605
      %607 = vmatmul.bf16.gmra.mxu0 %v394
      %v608 = vpop.f32.mrf.mxu0
      %v609 = vadd.f32 0.0, %v608
      %v610 = vpop.f32.mrf.mxu0
      %v611 = vadd.f32 0.0, %v610
      %612 = vdwg.mxu0
      %613 = vmatpush.bf16.msra.mxu0 %v507
      %614 = vmatpush.bf16.msra.mxu0 %v506
      %615 = vmatpush.bf16.msra.mxu0 %v505
      %616 = vmatpush.bf16.msra.mxu0 %v504
      %617 = vmatpush.bf16.msra.mxu0 %v503
      %618 = vmatpush.bf16.msra.mxu0 %v502
      %619 = vmatpush.bf16.msra.mxu0 %v501
      %620 = vmatpush.bf16.msra.mxu0 %v500
      %621 = vmatmul.bf16.gmra.mxu0 %v365
      %v622 = vpop.f32.mrf.mxu0
      %v623 = vadd.f32 %v534, %v622
      %v624 = vpop.f32.mrf.mxu0
      %v625 = vadd.f32 %v536, %v624
      %626 = vmatmul.bf16.gmra.mxu0 %v367
      %v627 = vpop.f32.mrf.mxu0
      %v628 = vadd.f32 %v539, %v627
      %v629 = vpop.f32.mrf.mxu0
      %v630 = vadd.f32 %v541, %v629
      %631 = vmatmul.bf16.gmra.mxu0 %v369
      %v632 = vpop.f32.mrf.mxu0
      %v633 = vadd.f32 %v544, %v632
      %v634 = vpop.f32.mrf.mxu0
      %v635 = vadd.f32 %v546, %v634
      %636 = vmatmul.bf16.gmra.mxu0 %v371
      %v637 = vpop.f32.mrf.mxu0
      %v638 = vadd.f32 %v549, %v637
      %v639 = vpop.f32.mrf.mxu0
      %v640 = vadd.f32 %v551, %v639
      %641 = vmatmul.bf16.gmra.mxu0 %v373
      %v642 = vpop.f32.mrf.mxu0
      %v643 = vadd.f32 %v554, %v642
      %v644 = vpop.f32.mrf.mxu0
      %v645 = vadd.f32 %v556, %v644
      %646 = vmatmul.bf16.gmra.mxu0 %v375
      %v647 = vpop.f32.mrf.mxu0
      %v648 = vadd.f32 %v559, %v647
      %v649 = vpop.f32.mrf.mxu0
      %v650 = vadd.f32 %v561, %v649
      %651 = vmatmul.bf16.gmra.mxu0 %v377
      %v652 = vpop.f32.mrf.mxu0
      %v653 = vadd.f32 %v564, %v652
      %v654 = vpop.f32.mrf.mxu0
      %v655 = vadd.f32 %v566, %v654
      %656 = vmatmul.bf16.gmra.mxu0 %v379
      %v657 = vpop.f32.mrf.mxu0
      %v658 = vadd.f32 %v569, %v657
      %v659 = vpop.f32.mrf.mxu0
      %v660 = vadd.f32 %v571, %v659
      %661 = vmatmul.bf16.gmra.mxu0 %v381
      %v662 = vpop.f32.mrf.mxu0
      %v663 = vadd.f32 %v574, %v662
      %v664 = vpop.f32.mrf.mxu0
      %v665 = vadd.f32 %v576, %v664
      %666 = vmatmul.bf16.gmra.mxu0 %v383
      %v667 = vpop.f32.mrf.mxu0
      %v668 = vadd.f32 %v579, %v667
      %v669 = vpop.f32.mrf.mxu0
      %v670 = vadd.f32 %v581, %v669
      %671 = vmatmul.bf16.gmra.mxu0 %v385
      %v672 = vpop.f32.mrf.mxu0
      %v673 = vadd.f32 %v584, %v672
      %v674 = vpop.f32.mrf.mxu0
      %v675 = vadd.f32 %v586, %v674
      %676 = vmatmul.bf16.gmra.mxu0 %v387
      %v677 = vpop.f32.mrf.mxu0
      %v678 = vadd.f32 %v589, %v677
      %v679 = vpop.f32.mrf.mxu0
      %v680 = vadd.f32 %v591, %v679
      %681 = vmatmul.bf16.gmra.mxu0 %v389
      %v682 = vpop.f32.mrf.mxu0
      %v683 = vadd.f32 %v594, %v682
      %v684 = vpop.f32.mrf.mxu0
      %v685 = vadd.f32 %v596, %v684
      %686 = vmatmul.bf16.gmra.mxu0 %v391
      %v687 = vpop.f32.mrf.mxu0
      %v688 = vadd.f32 %v599, %v687
      %v689 = vpop.f32.mrf.mxu0
      %v690 = vadd.f32 %v601, %v689
      %691 = vmatmul.bf16.gmra.mxu0 %v393
      %v692 = vpop.f32.mrf.mxu0
      %v693 = vadd.f32 %v604, %v692
      %v694 = vpop.f32.mrf.mxu0
      %v695 = vadd.f32 %v606, %v694
      %696 = vmatmul.bf16.gmra.mxu0 %v395
      %v697 = vpop.f32.mrf.mxu0
      %v698 = vadd.f32 %v609, %v697
      %v699 = vpop.f32.mrf.mxu0
      %v700 = vadd.f32 %v611, %v699
      %701 = vdwg.mxu0
      %v702 = vld [vmem:[%s2] sm:$0x1]
      %v704 = vperm.slane %v702, 0
      %v706 = vmul.f32 %v623, %v704
      %v707 = vmul.f32 %v625, %v704
      %v708 = vmul.f32 %v628, %v704
      %v709 = vmul.f32 %v630, %v704
      %v710 = vmul.f32 %v633, %v704
      %v711 = vmul.f32 %v635, %v704
      %v712 = vmul.f32 %v638, %v704
      %v713 = vmul.f32 %v640, %v704
      %v714 = vmul.f32 %v643, %v704
      %v715 = vmul.f32 %v645, %v704
      %v716 = vmul.f32 %v648, %v704
      %v717 = vmul.f32 %v650, %v704
      %v718 = vmul.f32 %v653, %v704
      %v719 = vmul.f32 %v655, %v704
      %v720 = vmul.f32 %v658, %v704
      %v721 = vmul.f32 %v660, %v704
      %v722 = vmul.f32 %v663, %v704
      %v723 = vmul.f32 %v665, %v704
      %v724 = vmul.f32 %v668, %v704
      %v725 = vmul.f32 %v670, %v704
      %v726 = vmul.f32 %v673, %v704
      %v727 = vmul.f32 %v675, %v704
      %v728 = vmul.f32 %v678, %v704
      %v729 = vmul.f32 %v680, %v704
      %v730 = vmul.f32 %v683, %v704
      %v731 = vmul.f32 %v685, %v704
      %v732 = vmul.f32 %v688, %v704
      %v733 = vmul.f32 %v690, %v704
      %v734 = vmul.f32 %v693, %v704
      %v735 = vmul.f32 %v695, %v704
      %v736 = vmul.f32 %v698, %v704
      %v737 = vmul.f32 %v700, %v704
      %v738 = vld [vmem:[%s3] sm:$0x1]
      %v740 = vperm.slane %v738, 0
      %v742 = vadd.f32 %v706, %v740
      %v743 = vadd.f32 %v707, %v740
      %v744 = vadd.f32 %v708, %v740
      %v745 = vadd.f32 %v709, %v740
      %v746 = vadd.f32 %v710, %v740
      %v747 = vadd.f32 %v711, %v740
      %v748 = vadd.f32 %v712, %v740
      %v749 = vadd.f32 %v713, %v740
      %v750 = vadd.f32 %v714, %v740
      %v751 = vadd.f32 %v715, %v740
      %v752 = vadd.f32 %v716, %v740
      %v753 = vadd.f32 %v717, %v740
      %v754 = vadd.f32 %v718, %v740
      %v755 = vadd.f32 %v719, %v740
      %v756 = vadd.f32 %v720, %v740
      %v757 = vadd.f32 %v721, %v740
      %v758 = vadd.f32 %v722, %v740
      %v759 = vadd.f32 %v723, %v740
      %v760 = vadd.f32 %v724, %v740
      %v761 = vadd.f32 %v725, %v740
      %v762 = vadd.f32 %v726, %v740
      %v763 = vadd.f32 %v727, %v740
      %v764 = vadd.f32 %v728, %v740
      %v765 = vadd.f32 %v729, %v740
      %v766 = vadd.f32 %v730, %v740
      %v767 = vadd.f32 %v731, %v740
      %v768 = vadd.f32 %v732, %v740
      %v769 = vadd.f32 %v733, %v740
      %v770 = vadd.f32 %v734, %v740
      %v771 = vadd.f32 %v735, %v740
      %v772 = vadd.f32 %v736, %v740
      %v773 = vadd.f32 %v737, %v740
      %v774 = vmax.f32 %v742, 0.0
      %v775 = vmax.f32 %v743, 0.0
      %v776 = vmax.f32 %v744, 0.0
      %v777 = vmax.f32 %v745, 0.0
      %v778 = vmax.f32 %v746, 0.0
      %v779 = vmax.f32 %v747, 0.0
      %v780 = vmax.f32 %v748, 0.0
      %v781 = vmax.f32 %v749, 0.0
      %v782 = vmax.f32 %v750, 0.0
      %v783 = vmax.f32 %v751, 0.0
      %v784 = vmax.f32 %v752, 0.0
      %v785 = vmax.f32 %v753, 0.0
      %v786 = vmax.f32 %v754, 0.0
      %v787 = vmax.f32 %v755, 0.0
      %v788 = vmax.f32 %v756, 0.0
      %v789 = vmax.f32 %v757, 0.0
      %v790 = vmax.f32 %v758, 0.0
      %v791 = vmax.f32 %v759, 0.0
      %v792 = vmax.f32 %v760, 0.0
      %v793 = vmax.f32 %v761, 0.0
      %v794 = vmax.f32 %v762, 0.0
      %v795 = vmax.f32 %v763, 0.0
      %v796 = vmax.f32 %v764, 0.0
      %v797 = vmax.f32 %v765, 0.0
      %v798 = vmax.f32 %v766, 0.0
      %v799 = vmax.f32 %v767, 0.0
      %v800 = vmax.f32 %v768, 0.0
      %v801 = vmax.f32 %v769, 0.0
      %v802 = vmax.f32 %v770, 0.0
      %v803 = vmax.f32 %v771, 0.0
      %v804 = vmax.f32 %v772, 0.0
      %v805 = vmax.f32 %v773, 0.0
      %v806 = vpack.c.bf16 %v774, %v774
      %v807 = vpack.c.bf16 %v775, %v775
      %v808 = vpack.c.bf16 %v776, %v776
      %v809 = vpack.c.bf16 %v777, %v777
      %v810 = vpack.c.bf16 %v778, %v778
      %v811 = vpack.c.bf16 %v779, %v779
      %v812 = vpack.c.bf16 %v780, %v780
      %v813 = vpack.c.bf16 %v781, %v781
      %v814 = vpack.c.bf16 %v782, %v782
      %v815 = vpack.c.bf16 %v783, %v783
      %v816 = vpack.c.bf16 %v784, %v784
      %v817 = vpack.c.bf16 %v785, %v785
      %v818 = vpack.c.bf16 %v786, %v786
      %v819 = vpack.c.bf16 %v787, %v787
      %v820 = vpack.c.bf16 %v788, %v788
      %v821 = vpack.c.bf16 %v789, %v789
      %v822 = vpack.c.bf16 %v790, %v790
      %v823 = vpack.c.bf16 %v791, %v791
      %v824 = vpack.c.bf16 %v792, %v792
      %v825 = vpack.c.bf16 %v793, %v793
      %v826 = vpack.c.bf16 %v794, %v794
      %v827 = vpack.c.bf16 %v795, %v795
      %v828 = vpack.c.bf16 %v796, %v796
      %v829 = vpack.c.bf16 %v797, %v797
      %v830 = vpack.c.bf16 %v798, %v798
      %v831 = vpack.c.bf16 %v799, %v799
      %v832 = vpack.c.bf16 %v800, %v800
      %v833 = vpack.c.bf16 %v801, %v801
      %v834 = vpack.c.bf16 %v802, %v802
      %v835 = vpack.c.bf16 %v803, %v803
      %v836 = vpack.c.bf16 %v804, %v804
      %v837 = vpack.c.bf16 %v805, %v805
      %838 = vst [vmem:[%s202] sm:$0xf] %v806
      %839 = vst [vmem:[%s202 + $0x4] sm:$0xf] %v807
      %840 = vst [vmem:[%s202 + $0x8] sm:$0xf] %v808
      %841 = vst [vmem:[%s202 + $0xc] sm:$0xf] %v809
      %842 = vst [vmem:[%s202 + $0x10] sm:$0xf] %v810
      %843 = vst [vmem:[%s202 + $0x14] sm:$0xf] %v811
      %844 = vst [vmem:[%s202 + $0x18] sm:$0xf] %v812
      %845 = vst [vmem:[%s202 + $0x1c] sm:$0xf] %v813
      %846 = vst [vmem:[%s202 + $0x20] sm:$0xf] %v814
      %847 = vst [vmem:[%s202 + $0x24] sm:$0xf] %v815
      %848 = vst [vmem:[%s202 + $0x28] sm:$0xf] %v816
      %849 = vst [vmem:[%s202 + $0x2c] sm:$0xf] %v817
      %850 = vst [vmem:[%s202 + $0x30] sm:$0xf] %v818
      %851 = vst [vmem:[%s202 + $0x34] sm:$0xf] %v819
      %852 = vst [vmem:[%s202 + $0x38] sm:$0xf] %v820
      %853 = vst [vmem:[%s202 + $0x3c] sm:$0xf] %v821
      %854 = vst [vmem:[%s202 + $0x40] sm:$0xf] %v822
      %855 = vst [vmem:[%s202 + $0x44] sm:$0xf] %v823
      %856 = vst [vmem:[%s202 + $0x48] sm:$0xf] %v824
      %857 = vst [vmem:[%s202 + $0x4c] sm:$0xf] %v825
      %858 = vst [vmem:[%s202 + $0x50] sm:$0xf] %v826
      %859 = vst [vmem:[%s202 + $0x54] sm:$0xf] %v827
      %860 = vst [vmem:[%s202 + $0x58] sm:$0xf] %v828
      %861 = vst [vmem:[%s202 + $0x5c] sm:$0xf] %v829
      %862 = vst [vmem:[%s202 + $0x60] sm:$0xf] %v830
      %863 = vst [vmem:[%s202 + $0x64] sm:$0xf] %v831
      %864 = vst [vmem:[%s202 + $0x68] sm:$0xf] %v832
      %865 = vst [vmem:[%s202 + $0x6c] sm:$0xf] %v833
      %866 = vst [vmem:[%s202 + $0x70] sm:$0xf] %v834
      %867 = vst [vmem:[%s202 + $0x74] sm:$0xf] %v835
      %868 = vst [vmem:[%s202 + $0x78] sm:$0xf] %v836
      %869 = vst [vmem:[%s202 + $0x7c] sm:$0xf] %v837
      %s870 = smul.u32 32, %s15
      %p871 = scmp.lt.s32.totalorder %s870, 63
      %s872 = scalar_select %p871, %s870, 63
      %s873 = smul.addr %s872, 4
      %s874 = scalar_lea.vmem %s4, %s873
      // Predicated region
      $region37: #{encoder_cnn_forward.22} parent=35 // pred_check
        %p875 = pneg %p122
      $region38: #{encoder_cnn_forward.22} parent=35 // pred_check_branch
        %877 = sbr.rel (%p875) target = $region40
      $region39: #{encoder_cnn_forward.22} parent=35 // pred_region
        %s878 = smul.u32 32, %s15
      $region40: #{encoder_cnn_forward.22} parent=35 // pred_fallthru
        _
    $region36: #{encoder_cnn_forward.22} parent=5 // pred_fallthru
      _
    %p879 = scmp.le.s32.totalorder 2, %s10
    // Predicated region
    $region41: #{encoder_cnn_forward.22} parent=5 // pred_check
      %p880 = pneg %p879
    $region42: #{encoder_cnn_forward.22} parent=5 // pred_check_branch
      %882 = sbr.rel (%p880) target = $region44
    $region43: #{encoder_cnn_forward.22} parent=5 // pred_region
      %s883 = ssub.s32 %s10, 2
      // Predicated region
      $region45: #{encoder_cnn_forward.22} parent=43 // pred_check
        %p884 = pneg %p128
      $region46: #{encoder_cnn_forward.22} parent=43 // pred_check_branch
        %886 = sbr.rel (%p884) target = $region48
      $region47: #{encoder_cnn_forward.22} parent=43 // pred_region
        %s887 = smul.u32 32, %s16
        %p888 = scmp.lt.s32.totalorder %s887, 63
        %s889 = scalar_select %p888, %s887, 63
        %s890 = smul.addr %s889, 4
        %s891 = scalar_lea.vmem %s4, %s890
      $region48: #{encoder_cnn_forward.22} parent=43 // pred_fallthru
        _
    $region44: #{encoder_cnn_forward.22} parent=5 // pred_fallthru
      _
  $region6: #{encoder_cnn_forward.22} parent=0 // loop_footer
    %s14 = sadd.s32 1, %s10
  $region7: #{encoder_cnn_forward.22} parent=0 // loop_footer_branch
    %9 = sbr.rel target = $region3
  $region8: #{encoder_cnn_forward.22} parent=0 // loop_exit
    _

// kernel: encoder_cnn_forward.23
$region0: #{encoder_cnn_forward.23}
  #allocation0 [shape = 'u32[]', space=smem, size = 0x4, offset = 0x4, fixed_abs, tag = 'smem constant byte address 0x4 - core index']
  #allocation1 [shape = 'u32[72,128]{1,0:T(1,128)}', space=vmem, size = 0x9000, scoped, tag = 'internal scratch']
  %s0 = inlined_call_operand.vmem [shape: bf16[128,128], index: 0, kind: input, shape index: {}]
  %s1 = inlined_call_operand.vmem [shape: bf16[128,128], index: 1, kind: input, shape index: {}]
  %s2 = inlined_call_operand.vmem [shape: bf16[128,128], index: 2, kind: input, shape index: {}]
  %s3 = inlined_call_operand.vmem [shape: bf16[128,128], index: 3, kind: input, shape index: {}]
  %s4 = inlined_call_operand.vmem [shape: bf16[128,128], index: 4, kind: input, shape index: {}]
  %s5 = inlined_call_operand.vmem [shape: bf16[128,128], index: 5, kind: input, shape index: {}]
  %s6 = inlined_call_operand.vmem [shape: bf16[128,128], index: 6, kind: input, shape index: {}]
  %s7 = inlined_call_operand.vmem [shape: bf16[128,128], index: 7, kind: input, shape index: {}]
  %s8 = inlined_call_operand.vmem [shape: bf16[128,128], index: 8, kind: input, shape index: {}]
  %s9 = inlined_call_operand.vmem [shape: bf16[128,128], index: 9, kind: output, shape index: {}]
  %s10 = sld [smem:[#allocation0]]
  $region69: #{encoder_cnn_forward.23} parent=0
    _
  %s12 = ssub.s32 1, %s10
  %s13 = scalar_select 0, %s12, %s10
  loop: start=0, step=1, limit=4
  $region2: #{encoder_cnn_forward.23} parent=0 // loop_pre_header
    _
  $region3: #{encoder_cnn_forward.23} parent=0 // loop_header
    %s15 = sphi 0, %s19
    %p16 = scmp.ge.s32.totalorder %s15, 4
    %s25 = sphi 0, %s27
    %s28 = sphi 0, %s25
    %s29 = sphi 0, %s28
    %s45 = sphi 0, %s29
    %s51 = sphi 0, %s53
    %s54 = sphi 0, %s51
    %s55 = sphi 0, %s54
    %s71 = sphi 0, %s55
    %s77 = sphi 0, %s79
    %s80 = sphi 0, %s77
    %s81 = sphi 0, %s80
    %s97 = sphi 0, %s81
    %s103 = sphi 0, %s105
    %s106 = sphi 0, %s103
    %s107 = sphi 0, %s106
    %s123 = sphi 0, %s107
    %s129 = sphi 0, %s131
    %s132 = sphi 0, %s129
    %s133 = sphi 0, %s132
    %s149 = sphi 0, %s133
    %s155 = sphi 0, %s157
    %s158 = sphi 0, %s155
    %s159 = sphi 0, %s158
    %s175 = sphi 0, %s159
    %s181 = sphi 0, %s183
    %s184 = sphi 0, %s181
    %s185 = sphi 0, %s184
    %s201 = sphi 0, %s185
    %s207 = sphi 0, %s209
    %s210 = sphi 0, %s207
    %s211 = sphi 0, %s210
    %s227 = sphi 0, %s211
    %s233 = sphi 0, %s235
    %s236 = sphi 0, %s233
    %s237 = sphi 0, %s236
    %s253 = sphi 0, %s237
    %s259 = sphi 0, %s261
    %s262 = sphi 0, %s259
    %s263 = sphi 0, %s262
    %s279 = sphi 0, %s263
  $region4: #{encoder_cnn_forward.23} parent=0 // loop_header_branch
    %18 = sbr.rel (%p16) target = $region8
  $region5: #{encoder_cnn_forward.23} parent=0 // loop_body
    %s20 = ssub.s32 %s15, 1
    %s21 = ssub.s32 %s15, 2
    %s22 = sadd.s32 %s15, 1
    %s23 = ssub.s32 %s15, %s22
    %p24 = scmp.eq.s32.totalorder %s23, 0
    %s26 = sadd.s32 %s25, 1
    %s27 = scalar_select %p24, %s25, %s26
    %p30 = pneg %p24
    %p31 = scmp.eq.s32.totalorder %s15, 1
    %p32 = por %p30, %p31
    %p33 = scmp.ne.s32.totalorder %s25, %s28
    %p34 = scmp.eq.s32.totalorder %s15, 0
    %p35 = por %p33, %p34
    %p36 = scmp.ne.s32.totalorder %s25, %s28
    %p37 = scmp.eq.s32.totalorder %s20, 1
    %p38 = por %p36, %p37
    %p39 = scmp.ne.s32.totalorder %s28, %s29
    %p40 = scmp.eq.s32.totalorder %s20, 0
    %p41 = por %p39, %p40
    %p42 = scmp.ne.s32.totalorder %s28, %s29
    %p43 = scmp.eq.s32.totalorder %s21, 1
    %p44 = por %p42, %p43
    %p46 = scmp.ne.s32.totalorder %s29, %s45
    %p47 = scmp.eq.s32.totalorder %s21, 0
    %p48 = por %p46, %p47
    %s49 = ssub.s32 %s15, %s22
    %p50 = scmp.eq.s32.totalorder %s49, 0
    %s52 = sadd.s32 %s51, 1
    %s53 = scalar_select %p50, %s51, %s52
    %p56 = pneg %p50
    %p57 = scmp.eq.s32.totalorder %s15, 1
    %p58 = por %p56, %p57
    %p59 = scmp.ne.s32.totalorder %s51, %s54
    %p60 = scmp.eq.s32.totalorder %s15, 0
    %p61 = por %p59, %p60
    %p62 = scmp.ne.s32.totalorder %s51, %s54
    %p63 = scmp.eq.s32.totalorder %s20, 1
    %p64 = por %p62, %p63
    %p65 = scmp.ne.s32.totalorder %s54, %s55
    %p66 = scmp.eq.s32.totalorder %s20, 0
    %p67 = por %p65, %p66
    %p68 = scmp.ne.s32.totalorder %s54, %s55
    %p69 = scmp.eq.s32.totalorder %s21, 1
    %p70 = por %p68, %p69
    %p72 = scmp.ne.s32.totalorder %s55, %s71
    %p73 = scmp.eq.s32.totalorder %s21, 0
    %p74 = por %p72, %p73
    %s75 = ssub.s32 %s15, %s22
    %p76 = scmp.eq.s32.totalorder %s75, 0
    %s78 = sadd.s32 %s77, 1
    %s79 = scalar_select %p76, %s77, %s78
    %p82 = pneg %p76
    %p83 = scmp.eq.s32.totalorder %s15, 1
    %p84 = por %p82, %p83
    %p85 = scmp.ne.s32.totalorder %s77, %s80
    %p86 = scmp.eq.s32.totalorder %s15, 0
    %p87 = por %p85, %p86
    %p88 = scmp.ne.s32.totalorder %s77, %s80
    %p89 = scmp.eq.s32.totalorder %s20, 1
    %p90 = por %p88, %p89
    %p91 = scmp.ne.s32.totalorder %s80, %s81
    %p92 = scmp.eq.s32.totalorder %s20, 0
    %p93 = por %p91, %p92
    %p94 = scmp.ne.s32.totalorder %s80, %s81
    %p95 = scmp.eq.s32.totalorder %s21, 1
    %p96 = por %p94, %p95
    %p98 = scmp.ne.s32.totalorder %s81, %s97
    %p99 = scmp.eq.s32.totalorder %s21, 0
    %p100 = por %p98, %p99
    %s101 = ssub.s32 %s15, %s22
    %p102 = scmp.eq.s32.totalorder %s101, 0
    %s104 = sadd.s32 %s103, 1
    %s105 = scalar_select %p102, %s103, %s104
    %p108 = pneg %p102
    %p109 = scmp.eq.s32.totalorder %s15, 1
    %p110 = por %p108, %p109
    %p111 = scmp.ne.s32.totalorder %s103, %s106
    %p112 = scmp.eq.s32.totalorder %s15, 0
    %p113 = por %p111, %p112
    %p114 = scmp.ne.s32.totalorder %s103, %s106
    %p115 = scmp.eq.s32.totalorder %s20, 1
    %p116 = por %p114, %p115
    %p117 = scmp.ne.s32.totalorder %s106, %s107
    %p118 = scmp.eq.s32.totalorder %s20, 0
    %p119 = por %p117, %p118
    %p120 = scmp.ne.s32.totalorder %s106, %s107
    %p121 = scmp.eq.s32.totalorder %s21, 1
    %p122 = por %p120, %p121
    %p124 = scmp.ne.s32.totalorder %s107, %s123
    %p125 = scmp.eq.s32.totalorder %s21, 0
    %p126 = por %p124, %p125
    %s127 = ssub.s32 %s15, %s22
    %p128 = scmp.eq.s32.totalorder %s127, 0
    %s130 = sadd.s32 %s129, 1
    %s131 = scalar_select %p128, %s129, %s130
    %p134 = pneg %p128
    %p135 = scmp.eq.s32.totalorder %s15, 1
    %p136 = por %p134, %p135
    %p137 = scmp.ne.s32.totalorder %s129, %s132
    %p138 = scmp.eq.s32.totalorder %s15, 0
    %p139 = por %p137, %p138
    %p140 = scmp.ne.s32.totalorder %s129, %s132
    %p141 = scmp.eq.s32.totalorder %s20, 1
    %p142 = por %p140, %p141
    %p143 = scmp.ne.s32.totalorder %s132, %s133
    %p144 = scmp.eq.s32.totalorder %s20, 0
    %p145 = por %p143, %p144
    %p146 = scmp.ne.s32.totalorder %s132, %s133
    %p147 = scmp.eq.s32.totalorder %s21, 1
    %p148 = por %p146, %p147
    %p150 = scmp.ne.s32.totalorder %s133, %s149
    %p151 = scmp.eq.s32.totalorder %s21, 0
    %p152 = por %p150, %p151
    %s153 = ssub.s32 %s15, %s22
    %p154 = scmp.eq.s32.totalorder %s153, 0
    %s156 = sadd.s32 %s155, 1
    %s157 = scalar_select %p154, %s155, %s156
    %p160 = pneg %p154
    %p161 = scmp.eq.s32.totalorder %s15, 1
    %p162 = por %p160, %p161
    %p163 = scmp.ne.s32.totalorder %s155, %s158
    %p164 = scmp.eq.s32.totalorder %s15, 0
    %p165 = por %p163, %p164
    %p166 = scmp.ne.s32.totalorder %s155, %s158
    %p167 = scmp.eq.s32.totalorder %s20, 1
    %p168 = por %p166, %p167
    %p169 = scmp.ne.s32.totalorder %s158, %s159
    %p170 = scmp.eq.s32.totalorder %s20, 0
    %p171 = por %p169, %p170
    %p172 = scmp.ne.s32.totalorder %s158, %s159
    %p173 = scmp.eq.s32.totalorder %s21, 1
    %p174 = por %p172, %p173
    %p176 = scmp.ne.s32.totalorder %s159, %s175
    %p177 = scmp.eq.s32.totalorder %s21, 0
    %p178 = por %p176, %p177
    %s179 = ssub.s32 %s15, %s22
    %p180 = scmp.eq.s32.totalorder %s179, 0
    %s182 = sadd.s32 %s181, 1
    %s183 = scalar_select %p180, %s181, %s182
    %p186 = pneg %p180
    %p187 = scmp.eq.s32.totalorder %s15, 1
    %p188 = por %p186, %p187
    %p189 = scmp.ne.s32.totalorder %s181, %s184
    %p190 = scmp.eq.s32.totalorder %s15, 0
    %p191 = por %p189, %p190
    %p192 = scmp.ne.s32.totalorder %s181, %s184
    %p193 = scmp.eq.s32.totalorder %s20, 1
    %p194 = por %p192, %p193
    %p195 = scmp.ne.s32.totalorder %s184, %s185
    %p196 = scmp.eq.s32.totalorder %s20, 0
    %p197 = por %p195, %p196
    %p198 = scmp.ne.s32.totalorder %s184, %s185
    %p199 = scmp.eq.s32.totalorder %s21, 1
    %p200 = por %p198, %p199
    %p202 = scmp.ne.s32.totalorder %s185, %s201
    %p203 = scmp.eq.s32.totalorder %s21, 0
    %p204 = por %p202, %p203
    %s205 = ssub.s32 %s15, %s22
    %p206 = scmp.eq.s32.totalorder %s205, 0
    %s208 = sadd.s32 %s207, 1
    %s209 = scalar_select %p206, %s207, %s208
    %p212 = pneg %p206
    %p213 = scmp.eq.s32.totalorder %s15, 1
    %p214 = por %p212, %p213
    %p215 = scmp.ne.s32.totalorder %s207, %s210
    %p216 = scmp.eq.s32.totalorder %s15, 0
    %p217 = por %p215, %p216
    %p218 = scmp.ne.s32.totalorder %s207, %s210
    %p219 = scmp.eq.s32.totalorder %s20, 1
    %p220 = por %p218, %p219
    %p221 = scmp.ne.s32.totalorder %s210, %s211
    %p222 = scmp.eq.s32.totalorder %s20, 0
    %p223 = por %p221, %p222
    %p224 = scmp.ne.s32.totalorder %s210, %s211
    %p225 = scmp.eq.s32.totalorder %s21, 1
    %p226 = por %p224, %p225
    %p228 = scmp.ne.s32.totalorder %s211, %s227
    %p229 = scmp.eq.s32.totalorder %s21, 0
    %p230 = por %p228, %p229
    %s231 = ssub.s32 %s15, %s22
    %p232 = scmp.eq.s32.totalorder %s231, 0
    %s234 = sadd.s32 %s233, 1
    %s235 = scalar_select %p232, %s233, %s234
    %p238 = pneg %p232
    %p239 = scmp.eq.s32.totalorder %s15, 1
    %p240 = por %p238, %p239
    %p241 = scmp.ne.s32.totalorder %s233, %s236
    %p242 = scmp.eq.s32.totalorder %s15, 0
    %p243 = por %p241, %p242
    %p244 = scmp.ne.s32.totalorder %s233, %s236
    %p245 = scmp.eq.s32.totalorder %s20, 1
    %p246 = por %p244, %p245
    %p247 = scmp.ne.s32.totalorder %s236, %s237
    %p248 = scmp.eq.s32.totalorder %s20, 0
    %p249 = por %p247, %p248
    %p250 = scmp.ne.s32.totalorder %s236, %s237
    %p251 = scmp.eq.s32.totalorder %s21, 1
    %p252 = por %p250, %p251
    %p254 = scmp.ne.s32.totalorder %s237, %s253
    %p255 = scmp.eq.s32.totalorder %s21, 0
    %p256 = por %p254, %p255
    %s257 = ssub.s32 %s15, %s22
    %p258 = scmp.eq.s32.totalorder %s257, 0
    %s260 = sadd.s32 %s259, 1
    %s261 = scalar_select %p258, %s259, %s260
    %p264 = pneg %p258
    %p265 = scmp.eq.s32.totalorder %s15, 1
    %p266 = por %p264, %p265
    %p267 = scmp.ne.s32.totalorder %s259, %s262
    %p268 = scmp.eq.s32.totalorder %s15, 0
    %p269 = por %p267, %p268
    %p270 = scmp.ne.s32.totalorder %s259, %s262
    %p271 = scmp.eq.s32.totalorder %s20, 1
    %p272 = por %p270, %p271
    %p273 = scmp.ne.s32.totalorder %s262, %s263
    %p274 = scmp.eq.s32.totalorder %s20, 0
    %p275 = por %p273, %p274
    %p276 = scmp.ne.s32.totalorder %s262, %s263
    %p277 = scmp.eq.s32.totalorder %s21, 1
    %p278 = por %p276, %p277
    %p280 = scmp.ne.s32.totalorder %s263, %s279
    %p281 = scmp.eq.s32.totalorder %s21, 0
    %p282 = por %p280, %p281
    %p283 = scmp.le.s32.totalorder 1, %s15
    %p284 = scmp.lt.s32.totalorder %s15, 3
    %p285 = pnand %p283, %p284
    %p286 = pneg %p285
    // Predicated region
    $region9: #{encoder_cnn_forward.23} parent=5 // pred_check
      _
    $region10: #{encoder_cnn_forward.23} parent=5 // pred_check_branch
      %288 = sbr.rel (%p285) target = $region12
    $region11: #{encoder_cnn_forward.23} parent=5 // pred_region
      %s289 = ssub.s32 %s15, 1
    $region12: #{encoder_cnn_forward.23} parent=5 // pred_fallthru
      _
    %p290 = scmp.lt.s32.totalorder %s15, 2
    // Predicated region
    $region13: #{encoder_cnn_forward.23} parent=5 // pred_check
      %p291 = pneg %p290
    $region14: #{encoder_cnn_forward.23} parent=5 // pred_check_branch
      %293 = sbr.rel (%p291) target = $region16
    $region15: #{encoder_cnn_forward.23} parent=5 // pred_region
      // Predicated region
      $region17: #{encoder_cnn_forward.23} parent=15 // pred_check
        %p294 = pneg %p35
      $region18: #{encoder_cnn_forward.23} parent=15 // pred_check_branch
        %296 = sbr.rel (%p294) target = $region20
      $region19: #{encoder_cnn_forward.23} parent=15 // pred_region
        %s297 = smul.u32 8, %s15
        %p298 = scmp.lt.s32.totalorder %s297, 15
        %s299 = scalar_select %p298, %s297, 15
        %s300 = smul.addr %s299, 4
        %s301 = scalar_lea.vmem %s0, %s300
        %s302 = smul.u32 8, %s15
      $region20: #{encoder_cnn_forward.23} parent=15 // pred_fallthru
        _
      // Predicated region
      $region21: #{encoder_cnn_forward.23} parent=15 // pred_check
        %p303 = pneg %p61
      $region22: #{encoder_cnn_forward.23} parent=15 // pred_check_branch
        %305 = sbr.rel (%p303) target = $region24
      $region23: #{encoder_cnn_forward.23} parent=15 // pred_region
        %s306 = smul.u32 8, %s15
        %p307 = scmp.lt.s32.totalorder %s306, 15
        %s308 = scalar_select %p307, %s306, 15
        %s309 = smul.addr %s308, 4
        %s310 = scalar_lea.vmem %s1, %s309
        %s311 = smul.u32 8, %s15
      $region24: #{encoder_cnn_forward.23} parent=15 // pred_fallthru
        _
      // Predicated region
      $region25: #{encoder_cnn_forward.23} parent=15 // pred_check
        %p312 = pneg %p87
      $region26: #{encoder_cnn_forward.23} parent=15 // pred_check_branch
        %314 = sbr.rel (%p312) target = $region28
      $region27: #{encoder_cnn_forward.23} parent=15 // pred_region
        %s315 = smul.u32 8, %s15
        %p316 = scmp.lt.s32.totalorder %s315, 15
        %s317 = scalar_select %p316, %s315, 15
        %s318 = smul.addr %s317, 4
        %s319 = scalar_lea.vmem %s2, %s318
        %s320 = smul.u32 8, %s15
      $region28: #{encoder_cnn_forward.23} parent=15 // pred_fallthru
        _
      // Predicated region
      $region29: #{encoder_cnn_forward.23} parent=15 // pred_check
        %p321 = pneg %p113
      $region30: #{encoder_cnn_forward.23} parent=15 // pred_check_branch
        %323 = sbr.rel (%p321) target = $region32
      $region31: #{encoder_cnn_forward.23} parent=15 // pred_region
        %s324 = smul.u32 8, %s15
        %p325 = scmp.lt.s32.totalorder %s324, 15
        %s326 = scalar_select %p325, %s324, 15
        %s327 = smul.addr %s326, 4
        %s328 = scalar_lea.vmem %s3, %s327
        %s329 = smul.u32 8, %s15
      $region32: #{encoder_cnn_forward.23} parent=15 // pred_fallthru
        _
      // Predicated region
      $region33: #{encoder_cnn_forward.23} parent=15 // pred_check
        %p330 = pneg %p139
      $region34: #{encoder_cnn_forward.23} parent=15 // pred_check_branch
        %332 = sbr.rel (%p330) target = $region36
      $region35: #{encoder_cnn_forward.23} parent=15 // pred_region
        %s333 = smul.u32 8, %s15
        %p334 = scmp.lt.s32.totalorder %s333, 15
        %s335 = scalar_select %p334, %s333, 15
        %s336 = smul.addr %s335, 4
        %s337 = scalar_lea.vmem %s4, %s336
        %s338 = smul.u32 8, %s15
      $region36: #{encoder_cnn_forward.23} parent=15 // pred_fallthru
        _
      // Predicated region
      $region37: #{encoder_cnn_forward.23} parent=15 // pred_check
        %p339 = pneg %p165
      $region38: #{encoder_cnn_forward.23} parent=15 // pred_check_branch
        %341 = sbr.rel (%p339) target = $region40
      $region39: #{encoder_cnn_forward.23} parent=15 // pred_region
        %s342 = smul.u32 8, %s15
        %p343 = scmp.lt.s32.totalorder %s342, 15
        %s344 = scalar_select %p343, %s342, 15
        %s345 = smul.addr %s344, 4
        %s346 = scalar_lea.vmem %s5, %s345
        %s347 = smul.u32 8, %s15
      $region40: #{encoder_cnn_forward.23} parent=15 // pred_fallthru
        _
      // Predicated region
      $region41: #{encoder_cnn_forward.23} parent=15 // pred_check
        %p348 = pneg %p191
      $region42: #{encoder_cnn_forward.23} parent=15 // pred_check_branch
        %350 = sbr.rel (%p348) target = $region44
      $region43: #{encoder_cnn_forward.23} parent=15 // pred_region
        %s351 = smul.u32 8, %s15
        %p352 = scmp.lt.s32.totalorder %s351, 15
        %s353 = scalar_select %p352, %s351, 15
        %s354 = smul.addr %s353, 4
        %s355 = scalar_lea.vmem %s6, %s354
        %s356 = smul.u32 8, %s15
      $region44: #{encoder_cnn_forward.23} parent=15 // pred_fallthru
        _
      // Predicated region
      $region45: #{encoder_cnn_forward.23} parent=15 // pred_check
        %p357 = pneg %p217
      $region46: #{encoder_cnn_forward.23} parent=15 // pred_check_branch
        %359 = sbr.rel (%p357) target = $region48
      $region47: #{encoder_cnn_forward.23} parent=15 // pred_region
        %s360 = smul.u32 8, %s15
        %p361 = scmp.lt.s32.totalorder %s360, 15
        %s362 = scalar_select %p361, %s360, 15
        %s363 = smul.addr %s362, 4
        %s364 = scalar_lea.vmem %s7, %s363
        %s365 = smul.u32 8, %s15
      $region48: #{encoder_cnn_forward.23} parent=15 // pred_fallthru
        _
      // Predicated region
      $region49: #{encoder_cnn_forward.23} parent=15 // pred_check
        %p366 = pneg %p243
      $region50: #{encoder_cnn_forward.23} parent=15 // pred_check_branch
        %368 = sbr.rel (%p366) target = $region52
      $region51: #{encoder_cnn_forward.23} parent=15 // pred_region
        %s369 = smul.u32 8, %s15
        %p370 = scmp.lt.s32.totalorder %s369, 15
        %s371 = scalar_select %p370, %s369, 15
        %s372 = smul.addr %s371, 4
        %s373 = scalar_lea.vmem %s8, %s372
        %s374 = smul.u32 8, %s15
      $region52: #{encoder_cnn_forward.23} parent=15 // pred_fallthru
        _
    $region16: #{encoder_cnn_forward.23} parent=5 // pred_fallthru
      _
    %p375 = scmp.le.s32.totalorder 1, %s15
    %p376 = scmp.lt.s32.totalorder %s15, 3
    %p377 = pnand %p375, %p376
    %p378 = pneg %p377
    // Predicated region
    $region53: #{encoder_cnn_forward.23} parent=5 // pred_check
      _
    $region54: #{encoder_cnn_forward.23} parent=5 // pred_check_branch
      %380 = sbr.rel (%p377) target = $region56
    $region55: #{encoder_cnn_forward.23} parent=5 // pred_region
      %s381 = ssub.s32 %s15, 1
      %s382 = smul.u32 8, %s20
      %p383 = scmp.lt.s32.totalorder %s382, 15
      %s384 = scalar_select %p383, %s382, 15
      %s385 = smul.addr %s384, 4
      %s386 = scalar_lea.vmem %s0, %s385
      %p387 = pneg %p41
      %p388 = pneg %p38
      %s389 = smul.u32 8, %s20
      %p390 = scmp.lt.s32.totalorder %s389, 15
      %s391 = scalar_select %p390, %s389, 15
      %s392 = smul.addr %s391, 4
      %s393 = scalar_lea.vmem %s1, %s392
      %p394 = pneg %p67
      %p395 = pneg %p64
      %s396 = smul.u32 8, %s20
      %p397 = scmp.lt.s32.totalorder %s396, 15
      %s398 = scalar_select %p397, %s396, 15
      %s399 = smul.addr %s398, 4
      %s400 = scalar_lea.vmem %s2, %s399
      %p401 = pneg %p93
      %p402 = pneg %p90
      %s403 = smul.u32 8, %s20
      %p404 = scmp.lt.s32.totalorder %s403, 15
      %s405 = scalar_select %p404, %s403, 15
      %s406 = smul.addr %s405, 4
      %s407 = scalar_lea.vmem %s3, %s406
      %p408 = pneg %p119
      %p409 = pneg %p116
      %s410 = smul.u32 8, %s20
      %p411 = scmp.lt.s32.totalorder %s410, 15
      %s412 = scalar_select %p411, %s410, 15
      %s413 = smul.addr %s412, 4
      %s414 = scalar_lea.vmem %s4, %s413
      %p415 = pneg %p145
      %p416 = pneg %p142
      %s417 = smul.u32 8, %s20
      %p418 = scmp.lt.s32.totalorder %s417, 15
      %s419 = scalar_select %p418, %s417, 15
      %s420 = smul.addr %s419, 4
      %s421 = scalar_lea.vmem %s5, %s420
      %p422 = pneg %p171
      %p423 = pneg %p168
      %s424 = smul.u32 8, %s20
      %p425 = scmp.lt.s32.totalorder %s424, 15
      %s426 = scalar_select %p425, %s424, 15
      %s427 = smul.addr %s426, 4
      %s428 = scalar_lea.vmem %s6, %s427
      %p429 = pneg %p197
      %p430 = pneg %p194
      %s431 = smul.u32 8, %s20
      %p432 = scmp.lt.s32.totalorder %s431, 15
      %s433 = scalar_select %p432, %s431, 15
      %s434 = smul.addr %s433, 4
      %s435 = scalar_lea.vmem %s7, %s434
      %p436 = pneg %p223
      %p437 = pneg %p220
      %s438 = smul.u32 8, %s20
      %p439 = scmp.lt.s32.totalorder %s438, 15
      %s440 = scalar_select %p439, %s438, 15
      %s441 = smul.addr %s440, 4
      %s442 = scalar_lea.vmem %s8, %s441
      %p443 = pneg %p249
      %p444 = pneg %p246
      %p445 = pneg %p275
      %p446 = pneg %p272
      %s447 = smul.u32 8, %s20
      %p448 = scmp.lt.s32.totalorder %s447, 15
      %s449 = scalar_select %p448, %s447, 15
      %s450 = smul.addr %s449, 4
      %s451 = scalar_lea.vmem %s9, %s450
      %s452 = smul.u32 8, %s20
      %p453 = scmp.lt.s32.totalorder %s452, 15
      %s454 = scalar_select %p453, %s452, 15
      %s455 = smul.addr %s454, 4
      %s456 = scalar_lea.vmem %s0, %s455
      %s457 = smul.u32 8, %s20
      %s458 = smul.u32 8, %s20
      %p459 = scmp.lt.s32.totalorder %s458, 15
      %s460 = scalar_select %p459, %s458, 15
      %s461 = smul.addr %s460, 4
      %s462 = scalar_lea.vmem %s1, %s461
      %s463 = smul.u32 8, %s20
      %s464 = smul.u32 8, %s20
      %p465 = scmp.lt.s32.totalorder %s464, 15
      %s466 = scalar_select %p465, %s464, 15
      %s467 = smul.addr %s466, 4
      %s468 = scalar_lea.vmem %s2, %s467
      %s469 = smul.u32 8, %s20
      %s470 = smul.u32 8, %s20
      %p471 = scmp.lt.s32.totalorder %s470, 15
      %s472 = scalar_select %p471, %s470, 15
      %s473 = smul.addr %s472, 4
      %s474 = scalar_lea.vmem %s3, %s473
      %s475 = smul.u32 8, %s20
      %s476 = smul.u32 8, %s20
      %p477 = scmp.lt.s32.totalorder %s476, 15
      %s478 = scalar_select %p477, %s476, 15
      %s479 = smul.addr %s478, 4
      %s480 = scalar_lea.vmem %s4, %s479
      %s481 = smul.u32 8, %s20
      %s482 = smul.u32 8, %s20
      %p483 = scmp.lt.s32.totalorder %s482, 15
      %s484 = scalar_select %p483, %s482, 15
      %s485 = smul.addr %s484, 4
      %s486 = scalar_lea.vmem %s5, %s485
      %s487 = smul.u32 8, %s20
      %s488 = smul.u32 8, %s20
      %p489 = scmp.lt.s32.totalorder %s488, 15
      %s490 = scalar_select %p489, %s488, 15
      %s491 = smul.addr %s490, 4
      %s492 = scalar_lea.vmem %s6, %s491
      %s493 = smul.u32 8, %s20
      %s494 = smul.u32 8, %s20
      %p495 = scmp.lt.s32.totalorder %s494, 15
      %s496 = scalar_select %p495, %s494, 15
      %s497 = smul.addr %s496, 4
      %s498 = scalar_lea.vmem %s7, %s497
      %s499 = smul.u32 8, %s20
      %s500 = smul.u32 8, %s20
      %p501 = scmp.lt.s32.totalorder %s500, 15
      %s502 = scalar_select %p501, %s500, 15
      %s503 = smul.addr %s502, 4
      %s504 = scalar_lea.vmem %s8, %s503
      %s505 = smul.u32 8, %s20
      %s506 = smul.u32 8, %s20
      %p507 = scmp.lt.s32.totalorder %s506, 15
      %s508 = scalar_select %p507, %s506, 15
      %s509 = smul.addr %s508, 4
      %s510 = scalar_lea.vmem %s9, %s509
      %s511 = smul.u32 8, %s20
      %v512 = vld [vmem:[%s456] sm:$0xf]
      %v513 = vld [vmem:[%s456 + $0x4] sm:$0xf]
      %v514 = vld [vmem:[%s456 + $0x8] sm:$0xf]
      %v515 = vld [vmem:[%s456 + $0xc] sm:$0xf]
      %v516 = vld [vmem:[%s456 + $0x10] sm:$0xf]
      %v517 = vld [vmem:[%s456 + $0x14] sm:$0xf]
      %v518 = vld [vmem:[%s456 + $0x18] sm:$0xf]
      %v519 = vld [vmem:[%s456 + $0x1c] sm:$0xf]
      %v520 = vld [vmem:[%s462] sm:$0xf]
      %v521 = vld [vmem:[%s462 + $0x4] sm:$0xf]
      %v522 = vld [vmem:[%s462 + $0x8] sm:$0xf]
      %v523 = vld [vmem:[%s462 + $0xc] sm:$0xf]
      %v524 = vld [vmem:[%s462 + $0x10] sm:$0xf]
      %v525 = vld [vmem:[%s462 + $0x14] sm:$0xf]
      %v526 = vld [vmem:[%s462 + $0x18] sm:$0xf]
      %v527 = vld [vmem:[%s462 + $0x1c] sm:$0xf]
      %v528 = vunpack.c.l.bf16 %v512
      %v529 = vunpack.c.l.bf16 %v513
      %v530 = vunpack.c.l.bf16 %v514
      %v531 = vunpack.c.l.bf16 %v515
      %v532 = vunpack.c.l.bf16 %v516
      %v533 = vunpack.c.l.bf16 %v517
      %v534 = vunpack.c.l.bf16 %v518
      %v535 = vunpack.c.l.bf16 %v519
      %v536 = vunpack.c.l.bf16 %v520
      %v537 = vunpack.c.l.bf16 %v521
      %v538 = vunpack.c.l.bf16 %v522
      %v539 = vunpack.c.l.bf16 %v523
      %v540 = vunpack.c.l.bf16 %v524
      %v541 = vunpack.c.l.bf16 %v525
      %v542 = vunpack.c.l.bf16 %v526
      %v543 = vunpack.c.l.bf16 %v527
      %v544 = vmax.f32 %v528, %v536
      %v545 = vmax.f32 %v529, %v537
      %v546 = vmax.f32 %v530, %v538
      %v547 = vmax.f32 %v531, %v539
      %v548 = vmax.f32 %v532, %v540
      %v549 = vmax.f32 %v533, %v541
      %v550 = vmax.f32 %v534, %v542
      %v551 = vmax.f32 %v535, %v543
      %v552 = vpack.c.bf16 %v544, %v544
      %v553 = vpack.c.bf16 %v545, %v545
      %v554 = vpack.c.bf16 %v546, %v546
      %v555 = vpack.c.bf16 %v547, %v547
      %v556 = vpack.c.bf16 %v548, %v548
      %v557 = vpack.c.bf16 %v549, %v549
      %v558 = vpack.c.bf16 %v550, %v550
      %v559 = vpack.c.bf16 %v551, %v551
      %v560 = vld [vmem:[%s468] sm:$0xf]
      %v561 = vld [vmem:[%s468 + $0x4] sm:$0xf]
      %v562 = vld [vmem:[%s468 + $0x8] sm:$0xf]
      %v563 = vld [vmem:[%s468 + $0xc] sm:$0xf]
      %v564 = vld [vmem:[%s468 + $0x10] sm:$0xf]
      %v565 = vld [vmem:[%s468 + $0x14] sm:$0xf]
      %v566 = vld [vmem:[%s468 + $0x18] sm:$0xf]
      %v567 = vld [vmem:[%s468 + $0x1c] sm:$0xf]
      %v568 = vunpack.c.l.bf16 %v552
      %v569 = vunpack.c.l.bf16 %v553
      %v570 = vunpack.c.l.bf16 %v554
      %v571 = vunpack.c.l.bf16 %v555
      %v572 = vunpack.c.l.bf16 %v556
      %v573 = vunpack.c.l.bf16 %v557
      %v574 = vunpack.c.l.bf16 %v558
      %v575 = vunpack.c.l.bf16 %v559
      %v576 = vunpack.c.l.bf16 %v560
      %v577 = vunpack.c.l.bf16 %v561
      %v578 = vunpack.c.l.bf16 %v562
      %v579 = vunpack.c.l.bf16 %v563
      %v580 = vunpack.c.l.bf16 %v564
      %v581 = vunpack.c.l.bf16 %v565
      %v582 = vunpack.c.l.bf16 %v566
      %v583 = vunpack.c.l.bf16 %v567
      %v584 = vmax.f32 %v568, %v576
      %v585 = vmax.f32 %v569, %v577
      %v586 = vmax.f32 %v570, %v578
      %v587 = vmax.f32 %v571, %v579
      %v588 = vmax.f32 %v572, %v580
      %v589 = vmax.f32 %v573, %v581
      %v590 = vmax.f32 %v574, %v582
      %v591 = vmax.f32 %v575, %v583
      %v592 = vpack.c.bf16 %v584, %v584
      %v593 = vpack.c.bf16 %v585, %v585
      %v594 = vpack.c.bf16 %v586, %v586
      %v595 = vpack.c.bf16 %v587, %v587
      %v596 = vpack.c.bf16 %v588, %v588
      %v597 = vpack.c.bf16 %v589, %v589
      %v598 = vpack.c.bf16 %v590, %v590
      %v599 = vpack.c.bf16 %v591, %v591
      %v600 = vld [vmem:[%s474] sm:$0xf]
      %v601 = vld [vmem:[%s474 + $0x4] sm:$0xf]
      %v602 = vld [vmem:[%s474 + $0x8] sm:$0xf]
      %v603 = vld [vmem:[%s474 + $0xc] sm:$0xf]
      %v604 = vld [vmem:[%s474 + $0x10] sm:$0xf]
      %v605 = vld [vmem:[%s474 + $0x14] sm:$0xf]
      %v606 = vld [vmem:[%s474 + $0x18] sm:$0xf]
      %v607 = vld [vmem:[%s474 + $0x1c] sm:$0xf]
      %v608 = vunpack.c.l.bf16 %v592
      %v609 = vunpack.c.l.bf16 %v593
      %v610 = vunpack.c.l.bf16 %v594
      %v611 = vunpack.c.l.bf16 %v595
      %v612 = vunpack.c.l.bf16 %v596
      %v613 = vunpack.c.l.bf16 %v597
      %v614 = vunpack.c.l.bf16 %v598
      %v615 = vunpack.c.l.bf16 %v599
      %v616 = vunpack.c.l.bf16 %v600
      %v617 = vunpack.c.l.bf16 %v601
      %v618 = vunpack.c.l.bf16 %v602
      %v619 = vunpack.c.l.bf16 %v603
      %v620 = vunpack.c.l.bf16 %v604
      %v621 = vunpack.c.l.bf16 %v605
      %v622 = vunpack.c.l.bf16 %v606
      %v623 = vunpack.c.l.bf16 %v607
      %v624 = vmax.f32 %v608, %v616
      %v625 = vmax.f32 %v609, %v617
      %v626 = vmax.f32 %v610, %v618
      %v627 = vmax.f32 %v611, %v619
      %v628 = vmax.f32 %v612, %v620
      %v629 = vmax.f32 %v613, %v621
      %v630 = vmax.f32 %v614, %v622
      %v631 = vmax.f32 %v615, %v623
      %v632 = vpack.c.bf16 %v624, %v624
      %v633 = vpack.c.bf16 %v625, %v625
      %v634 = vpack.c.bf16 %v626, %v626
      %v635 = vpack.c.bf16 %v627, %v627
      %v636 = vpack.c.bf16 %v628, %v628
      %v637 = vpack.c.bf16 %v629, %v629
      %v638 = vpack.c.bf16 %v630, %v630
      %v639 = vpack.c.bf16 %v631, %v631
      %v640 = vld [vmem:[%s480] sm:$0xf]
      %v641 = vld [vmem:[%s480 + $0x4] sm:$0xf]
      %v642 = vld [vmem:[%s480 + $0x8] sm:$0xf]
      %v643 = vld [vmem:[%s480 + $0xc] sm:$0xf]
      %v644 = vld [vmem:[%s480 + $0x10] sm:$0xf]
      %v645 = vld [vmem:[%s480 + $0x14] sm:$0xf]
      %v646 = vld [vmem:[%s480 + $0x18] sm:$0xf]
      %v647 = vld [vmem:[%s480 + $0x1c] sm:$0xf]
      %v648 = vunpack.c.l.bf16 %v632
      %v649 = vunpack.c.l.bf16 %v633
      %v650 = vunpack.c.l.bf16 %v634
      %v651 = vunpack.c.l.bf16 %v635
      %v652 = vunpack.c.l.bf16 %v636
      %v653 = vunpack.c.l.bf16 %v637
      %v654 = vunpack.c.l.bf16 %v638
      %v655 = vunpack.c.l.bf16 %v639
      %v656 = vunpack.c.l.bf16 %v640
      %v657 = vunpack.c.l.bf16 %v641
      %v658 = vunpack.c.l.bf16 %v642
      %v659 = vunpack.c.l.bf16 %v643
      %v660 = vunpack.c.l.bf16 %v644
      %v661 = vunpack.c.l.bf16 %v645
      %v662 = vunpack.c.l.bf16 %v646
      %v663 = vunpack.c.l.bf16 %v647
      %v664 = vmax.f32 %v648, %v656
      %v665 = vmax.f32 %v649, %v657
      %v666 = vmax.f32 %v650, %v658
      %v667 = vmax.f32 %v651, %v659
      %v668 = vmax.f32 %v652, %v660
      %v669 = vmax.f32 %v653, %v661
      %v670 = vmax.f32 %v654, %v662
      %v671 = vmax.f32 %v655, %v663
      %v672 = vpack.c.bf16 %v664, %v664
      %v673 = vpack.c.bf16 %v665, %v665
      %v674 = vpack.c.bf16 %v666, %v666
      %v675 = vpack.c.bf16 %v667, %v667
      %v676 = vpack.c.bf16 %v668, %v668
      %v677 = vpack.c.bf16 %v669, %v669
      %v678 = vpack.c.bf16 %v670, %v670
      %v679 = vpack.c.bf16 %v671, %v671
      %v680 = vld [vmem:[%s486] sm:$0xf]
      %v681 = vld [vmem:[%s486 + $0x4] sm:$0xf]
      %v682 = vld [vmem:[%s486 + $0x8] sm:$0xf]
      %v683 = vld [vmem:[%s486 + $0xc] sm:$0xf]
      %v684 = vld [vmem:[%s486 + $0x10] sm:$0xf]
      %v685 = vld [vmem:[%s486 + $0x14] sm:$0xf]
      %v686 = vld [vmem:[%s486 + $0x18] sm:$0xf]
      %v687 = vld [vmem:[%s486 + $0x1c] sm:$0xf]
      %v688 = vunpack.c.l.bf16 %v672
      %v689 = vunpack.c.l.bf16 %v673
      %v690 = vunpack.c.l.bf16 %v674
      %v691 = vunpack.c.l.bf16 %v675
      %v692 = vunpack.c.l.bf16 %v676
      %v693 = vunpack.c.l.bf16 %v677
      %v694 = vunpack.c.l.bf16 %v678
      %v695 = vunpack.c.l.bf16 %v679
      %v696 = vunpack.c.l.bf16 %v680
      %v697 = vunpack.c.l.bf16 %v681
      %v698 = vunpack.c.l.bf16 %v682
      %v699 = vunpack.c.l.bf16 %v683
      %v700 = vunpack.c.l.bf16 %v684
      %v701 = vunpack.c.l.bf16 %v685
      %v702 = vunpack.c.l.bf16 %v686
      %v703 = vunpack.c.l.bf16 %v687
      %v704 = vmax.f32 %v688, %v696
      %v705 = vmax.f32 %v689, %v697
      %v706 = vmax.f32 %v690, %v698
      %v707 = vmax.f32 %v691, %v699
      %v708 = vmax.f32 %v692, %v700
      %v709 = vmax.f32 %v693, %v701
      %v710 = vmax.f32 %v694, %v702
      %v711 = vmax.f32 %v695, %v703
      %v712 = vpack.c.bf16 %v704, %v704
      %v713 = vpack.c.bf16 %v705, %v705
      %v714 = vpack.c.bf16 %v706, %v706
      %v715 = vpack.c.bf16 %v707, %v707
      %v716 = vpack.c.bf16 %v708, %v708
      %v717 = vpack.c.bf16 %v709, %v709
      %v718 = vpack.c.bf16 %v710, %v710
      %v719 = vpack.c.bf16 %v711, %v711
      %v720 = vld [vmem:[%s492] sm:$0xf]
      %v721 = vld [vmem:[%s492 + $0x4] sm:$0xf]
      %v722 = vld [vmem:[%s492 + $0x8] sm:$0xf]
      %v723 = vld [vmem:[%s492 + $0xc] sm:$0xf]
      %v724 = vld [vmem:[%s492 + $0x10] sm:$0xf]
      %v725 = vld [vmem:[%s492 + $0x14] sm:$0xf]
      %v726 = vld [vmem:[%s492 + $0x18] sm:$0xf]
      %v727 = vld [vmem:[%s492 + $0x1c] sm:$0xf]
      %v728 = vunpack.c.l.bf16 %v712
      %v729 = vunpack.c.l.bf16 %v713
      %v730 = vunpack.c.l.bf16 %v714
      %v731 = vunpack.c.l.bf16 %v715
      %v732 = vunpack.c.l.bf16 %v716
      %v733 = vunpack.c.l.bf16 %v717
      %v734 = vunpack.c.l.bf16 %v718
      %v735 = vunpack.c.l.bf16 %v719
      %v736 = vunpack.c.l.bf16 %v720
      %v737 = vunpack.c.l.bf16 %v721
      %v738 = vunpack.c.l.bf16 %v722
      %v739 = vunpack.c.l.bf16 %v723
      %v740 = vunpack.c.l.bf16 %v724
      %v741 = vunpack.c.l.bf16 %v725
      %v742 = vunpack.c.l.bf16 %v726
      %v743 = vunpack.c.l.bf16 %v727
      %v744 = vmax.f32 %v728, %v736
      %v745 = vmax.f32 %v729, %v737
      %v746 = vmax.f32 %v730, %v738
      %v747 = vmax.f32 %v731, %v739
      %v748 = vmax.f32 %v732, %v740
      %v749 = vmax.f32 %v733, %v741
      %v750 = vmax.f32 %v734, %v742
      %v751 = vmax.f32 %v735, %v743
      %v752 = vpack.c.bf16 %v744, %v744
      %v753 = vpack.c.bf16 %v745, %v745
      %v754 = vpack.c.bf16 %v746, %v746
      %v755 = vpack.c.bf16 %v747, %v747
      %v756 = vpack.c.bf16 %v748, %v748
      %v757 = vpack.c.bf16 %v749, %v749
      %v758 = vpack.c.bf16 %v750, %v750
      %v759 = vpack.c.bf16 %v751, %v751
      %v760 = vld [vmem:[%s498] sm:$0xf]
      %v761 = vld [vmem:[%s498 + $0x4] sm:$0xf]
      %v762 = vld [vmem:[%s498 + $0x8] sm:$0xf]
      %v763 = vld [vmem:[%s498 + $0xc] sm:$0xf]
      %v764 = vld [vmem:[%s498 + $0x10] sm:$0xf]
      %v765 = vld [vmem:[%s498 + $0x14] sm:$0xf]
      %v766 = vld [vmem:[%s498 + $0x18] sm:$0xf]
      %v767 = vld [vmem:[%s498 + $0x1c] sm:$0xf]
      %v768 = vunpack.c.l.bf16 %v752
      %v769 = vunpack.c.l.bf16 %v753
      %v770 = vunpack.c.l.bf16 %v754
      %v771 = vunpack.c.l.bf16 %v755
      %v772 = vunpack.c.l.bf16 %v756
      %v773 = vunpack.c.l.bf16 %v757
      %v774 = vunpack.c.l.bf16 %v758
      %v775 = vunpack.c.l.bf16 %v759
      %v776 = vunpack.c.l.bf16 %v760
      %v777 = vunpack.c.l.bf16 %v761
      %v778 = vunpack.c.l.bf16 %v762
      %v779 = vunpack.c.l.bf16 %v763
      %v780 = vunpack.c.l.bf16 %v764
      %v781 = vunpack.c.l.bf16 %v765
      %v782 = vunpack.c.l.bf16 %v766
      %v783 = vunpack.c.l.bf16 %v767
      %v784 = vmax.f32 %v768, %v776
      %v785 = vmax.f32 %v769, %v777
      %v786 = vmax.f32 %v770, %v778
      %v787 = vmax.f32 %v771, %v779
      %v788 = vmax.f32 %v772, %v780
      %v789 = vmax.f32 %v773, %v781
      %v790 = vmax.f32 %v774, %v782
      %v791 = vmax.f32 %v775, %v783
      %v792 = vpack.c.bf16 %v784, %v784
      %v793 = vpack.c.bf16 %v785, %v785
      %v794 = vpack.c.bf16 %v786, %v786
      %v795 = vpack.c.bf16 %v787, %v787
      %v796 = vpack.c.bf16 %v788, %v788
      %v797 = vpack.c.bf16 %v789, %v789
      %v798 = vpack.c.bf16 %v790, %v790
      %v799 = vpack.c.bf16 %v791, %v791
      %v800 = vld [vmem:[%s504] sm:$0xf]
      %v801 = vld [vmem:[%s504 + $0x4] sm:$0xf]
      %v802 = vld [vmem:[%s504 + $0x8] sm:$0xf]
      %v803 = vld [vmem:[%s504 + $0xc] sm:$0xf]
      %v804 = vld [vmem:[%s504 + $0x10] sm:$0xf]
      %v805 = vld [vmem:[%s504 + $0x14] sm:$0xf]
      %v806 = vld [vmem:[%s504 + $0x18] sm:$0xf]
      %v807 = vld [vmem:[%s504 + $0x1c] sm:$0xf]
      %v808 = vunpack.c.l.bf16 %v792
      %v809 = vunpack.c.l.bf16 %v793
      %v810 = vunpack.c.l.bf16 %v794
      %v811 = vunpack.c.l.bf16 %v795
      %v812 = vunpack.c.l.bf16 %v796
      %v813 = vunpack.c.l.bf16 %v797
      %v814 = vunpack.c.l.bf16 %v798
      %v815 = vunpack.c.l.bf16 %v799
      %v816 = vunpack.c.l.bf16 %v800
      %v817 = vunpack.c.l.bf16 %v801
      %v818 = vunpack.c.l.bf16 %v802
      %v819 = vunpack.c.l.bf16 %v803
      %v820 = vunpack.c.l.bf16 %v804
      %v821 = vunpack.c.l.bf16 %v805
      %v822 = vunpack.c.l.bf16 %v806
      %v823 = vunpack.c.l.bf16 %v807
      %v824 = vmax.f32 %v808, %v816
      %v825 = vmax.f32 %v809, %v817
      %v826 = vmax.f32 %v810, %v818
      %v827 = vmax.f32 %v811, %v819
      %v828 = vmax.f32 %v812, %v820
      %v829 = vmax.f32 %v813, %v821
      %v830 = vmax.f32 %v814, %v822
      %v831 = vmax.f32 %v815, %v823
      %v832 = vpack.c.bf16 %v824, %v824
      %v833 = vpack.c.bf16 %v825, %v825
      %v834 = vpack.c.bf16 %v826, %v826
      %v835 = vpack.c.bf16 %v827, %v827
      %v836 = vpack.c.bf16 %v828, %v828
      %v837 = vpack.c.bf16 %v829, %v829
      %v838 = vpack.c.bf16 %v830, %v830
      %v839 = vpack.c.bf16 %v831, %v831
      %840 = vst [vmem:[%s510] sm:$0xf] %v832
      %841 = vst [vmem:[%s510 + $0x4] sm:$0xf] %v833
      %842 = vst [vmem:[%s510 + $0x8] sm:$0xf] %v834
      %843 = vst [vmem:[%s510 + $0xc] sm:$0xf] %v835
      %844 = vst [vmem:[%s510 + $0x10] sm:$0xf] %v836
      %845 = vst [vmem:[%s510 + $0x14] sm:$0xf] %v837
      %846 = vst [vmem:[%s510 + $0x18] sm:$0xf] %v838
      %847 = vst [vmem:[%s510 + $0x1c] sm:$0xf] %v839
      %s848 = smul.u32 8, %s20
      %p849 = scmp.lt.s32.totalorder %s848, 15
      %s850 = scalar_select %p849, %s848, 15
      %s851 = smul.addr %s850, 4
      %s852 = scalar_lea.vmem %s9, %s851
      // Predicated region
      $region57: #{encoder_cnn_forward.23} parent=55 // pred_check
        %p853 = pneg %p272
      $region58: #{encoder_cnn_forward.23} parent=55 // pred_check_branch
        %855 = sbr.rel (%p853) target = $region60
      $region59: #{encoder_cnn_forward.23} parent=55 // pred_region
        %s856 = smul.u32 8, %s20
      $region60: #{encoder_cnn_forward.23} parent=55 // pred_fallthru
        _
    $region56: #{encoder_cnn_forward.23} parent=5 // pred_fallthru
      _
    %p857 = scmp.le.s32.totalorder 2, %s15
    // Predicated region
    $region61: #{encoder_cnn_forward.23} parent=5 // pred_check
      %p858 = pneg %p857
    $region62: #{encoder_cnn_forward.23} parent=5 // pred_check_branch
      %860 = sbr.rel (%p858) target = $region64
    $region63: #{encoder_cnn_forward.23} parent=5 // pred_region
      %s861 = ssub.s32 %s15, 2
      // Predicated region
      $region65: #{encoder_cnn_forward.23} parent=63 // pred_check
        %p862 = pneg %p278
      $region66: #{encoder_cnn_forward.23} parent=63 // pred_check_branch
        %864 = sbr.rel (%p862) target = $region68
      $region67: #{encoder_cnn_forward.23} parent=63 // pred_region
        %s865 = smul.u32 8, %s21
        %p866 = scmp.lt.s32.totalorder %s865, 15
        %s867 = scalar_select %p866, %s865, 15
        %s868 = smul.addr %s867, 4
        %s869 = scalar_lea.vmem %s9, %s868
      $region68: #{encoder_cnn_forward.23} parent=63 // pred_fallthru
        _
    $region64: #{encoder_cnn_forward.23} parent=5 // pred_fallthru
      _
  $region6: #{encoder_cnn_forward.23} parent=0 // loop_footer
    %s19 = sadd.s32 1, %s15
  $region7: #{encoder_cnn_forward.23} parent=0 // loop_footer_branch
    %14 = sbr.rel target = $region3
  $region8: #{encoder_cnn_forward.23} parent=0 // loop_exit
    _

// kernel: encoder_cnn_forward.24
$region0: #{encoder_cnn_forward.24}
  #allocation0 [shape = 'u32[]', space=smem, size = 0x4, offset = 0x4, fixed_abs, tag = 'smem constant byte address 0x4 - core index']
  #allocation1 [shape = 'u32[72,128]{1,0:T(1,128)}', space=vmem, size = 0x9000, scoped, tag = 'internal scratch']
  %s0 = inlined_call_operand.vmem [shape: bf16[128,128], index: 0, kind: input, shape index: {}]
  %s1 = inlined_call_operand.vmem [shape: bf16[128,128], index: 1, kind: input, shape index: {}]
  %s2 = inlined_call_operand.vmem [shape: f32[1,128], index: 2, kind: input, shape index: {}]
  %s3 = inlined_call_operand.vmem [shape: f32[1,128], index: 3, kind: input, shape index: {}]
  %s4 = inlined_call_operand.vmem [shape: bf16[128,128], index: 4, kind: output, shape index: {}]
  %s5 = sld [smem:[#allocation0]]
  $region49: #{encoder_cnn_forward.24} parent=0
    _
  %s7 = ssub.s32 1, %s5
  %s8 = scalar_select 0, %s7, %s5
  loop: start=0, step=1, limit=4
  $region2: #{encoder_cnn_forward.24} parent=0 // loop_pre_header
    _
  $region3: #{encoder_cnn_forward.24} parent=0 // loop_header
    %s10 = sphi 0, %s14
    %p11 = scmp.ge.s32.totalorder %s10, 4
    %s20 = sphi 0, %s22
    %s23 = sphi 0, %s20
    %s24 = sphi 0, %s23
    %s40 = sphi 0, %s24
    %s44 = sphi 0, %s44
    %s46 = sphi 0, %s44
    %s47 = sphi 0, %s46
    %s61 = sphi 0, %s47
    %s65 = sphi 0, %s65
    %s67 = sphi 0, %s65
    %s68 = sphi 0, %s67
    %s82 = sphi 0, %s68
    %s86 = sphi 0, %s86
    %s88 = sphi 0, %s86
    %s89 = sphi 0, %s88
    %s103 = sphi 0, %s89
    %s109 = sphi 0, %s111
    %s112 = sphi 0, %s109
    %s113 = sphi 0, %s112
    %s129 = sphi 0, %s113
  $region4: #{encoder_cnn_forward.24} parent=0 // loop_header_branch
    %13 = sbr.rel (%p11) target = $region8
  $region5: #{encoder_cnn_forward.24} parent=0 // loop_body
    %s15 = ssub.s32 %s10, 1
    %s16 = ssub.s32 %s10, 2
    %s17 = sadd.s32 %s10, 1
    %s18 = ssub.s32 %s10, %s17
    %p19 = scmp.eq.s32.totalorder %s18, 0
    %s21 = sadd.s32 %s20, 1
    %s22 = scalar_select %p19, %s20, %s21
    %p25 = pneg %p19
    %p26 = scmp.eq.s32.totalorder %s10, 1
    %p27 = por %p25, %p26
    %p28 = scmp.ne.s32.totalorder %s20, %s23
    %p29 = scmp.eq.s32.totalorder %s10, 0
    %p30 = por %p28, %p29
    %p31 = scmp.ne.s32.totalorder %s20, %s23
    %p32 = scmp.eq.s32.totalorder %s15, 1
    %p33 = por %p31, %p32
    %p34 = scmp.ne.s32.totalorder %s23, %s24
    %p35 = scmp.eq.s32.totalorder %s15, 0
    %p36 = por %p34, %p35
    %p37 = scmp.ne.s32.totalorder %s23, %s24
    %p38 = scmp.eq.s32.totalorder %s16, 1
    %p39 = por %p37, %p38
    %p41 = scmp.ne.s32.totalorder %s24, %s40
    %p42 = scmp.eq.s32.totalorder %s16, 0
    %p43 = por %p41, %p42
    %s45 = sadd.s32 %s44, 1
    %p48 = scmp.eq.s32.totalorder %s10, 1
    %p49 = scmp.ne.s32.totalorder %s44, %s46
    %p50 = scmp.eq.s32.totalorder %s10, 0
    %p51 = por %p49, %p50
    %p52 = scmp.ne.s32.totalorder %s44, %s46
    %p53 = scmp.eq.s32.totalorder %s15, 1
    %p54 = por %p52, %p53
    %p55 = scmp.ne.s32.totalorder %s46, %s47
    %p56 = scmp.eq.s32.totalorder %s15, 0
    %p57 = por %p55, %p56
    %p58 = scmp.ne.s32.totalorder %s46, %s47
    %p59 = scmp.eq.s32.totalorder %s16, 1
    %p60 = por %p58, %p59
    %p62 = scmp.ne.s32.totalorder %s47, %s61
    %p63 = scmp.eq.s32.totalorder %s16, 0
    %p64 = por %p62, %p63
    %s66 = sadd.s32 %s65, 1
    %p69 = scmp.eq.s32.totalorder %s10, 1
    %p70 = scmp.ne.s32.totalorder %s65, %s67
    %p71 = scmp.eq.s32.totalorder %s10, 0
    %p72 = por %p70, %p71
    %p73 = scmp.ne.s32.totalorder %s65, %s67
    %p74 = scmp.eq.s32.totalorder %s15, 1
    %p75 = por %p73, %p74
    %p76 = scmp.ne.s32.totalorder %s67, %s68
    %p77 = scmp.eq.s32.totalorder %s15, 0
    %p78 = por %p76, %p77
    %p79 = scmp.ne.s32.totalorder %s67, %s68
    %p80 = scmp.eq.s32.totalorder %s16, 1
    %p81 = por %p79, %p80
    %p83 = scmp.ne.s32.totalorder %s68, %s82
    %p84 = scmp.eq.s32.totalorder %s16, 0
    %p85 = por %p83, %p84
    %s87 = sadd.s32 %s86, 1
    %p90 = scmp.eq.s32.totalorder %s10, 1
    %p91 = scmp.ne.s32.totalorder %s86, %s88
    %p92 = scmp.eq.s32.totalorder %s10, 0
    %p93 = por %p91, %p92
    %p94 = scmp.ne.s32.totalorder %s86, %s88
    %p95 = scmp.eq.s32.totalorder %s15, 1
    %p96 = por %p94, %p95
    %p97 = scmp.ne.s32.totalorder %s88, %s89
    %p98 = scmp.eq.s32.totalorder %s15, 0
    %p99 = por %p97, %p98
    %p100 = scmp.ne.s32.totalorder %s88, %s89
    %p101 = scmp.eq.s32.totalorder %s16, 1
    %p102 = por %p100, %p101
    %p104 = scmp.ne.s32.totalorder %s89, %s103
    %p105 = scmp.eq.s32.totalorder %s16, 0
    %p106 = por %p104, %p105
    %s107 = ssub.s32 %s10, %s17
    %p108 = scmp.eq.s32.totalorder %s107, 0
    %s110 = sadd.s32 %s109, 1
    %s111 = scalar_select %p108, %s109, %s110
    %p114 = pneg %p108
    %p115 = scmp.eq.s32.totalorder %s10, 1
    %p116 = por %p114, %p115
    %p117 = scmp.ne.s32.totalorder %s109, %s112
    %p118 = scmp.eq.s32.totalorder %s10, 0
    %p119 = por %p117, %p118
    %p120 = scmp.ne.s32.totalorder %s109, %s112
    %p121 = scmp.eq.s32.totalorder %s15, 1
    %p122 = por %p120, %p121
    %p123 = scmp.ne.s32.totalorder %s112, %s113
    %p124 = scmp.eq.s32.totalorder %s15, 0
    %p125 = por %p123, %p124
    %p126 = scmp.ne.s32.totalorder %s112, %s113
    %p127 = scmp.eq.s32.totalorder %s16, 1
    %p128 = por %p126, %p127
    %p130 = scmp.ne.s32.totalorder %s113, %s129
    %p131 = scmp.eq.s32.totalorder %s16, 0
    %p132 = por %p130, %p131
    %p133 = scmp.le.s32.totalorder 1, %s10
    %p134 = scmp.lt.s32.totalorder %s10, 3
    %p135 = pnand %p133, %p134
    %p136 = pneg %p135
    // Predicated region
    $region9: #{encoder_cnn_forward.24} parent=5 // pred_check
      _
    $region10: #{encoder_cnn_forward.24} parent=5 // pred_check_branch
      %138 = sbr.rel (%p135) target = $region12
    $region11: #{encoder_cnn_forward.24} parent=5 // pred_region
      %s139 = ssub.s32 %s10, 1
      // Predicated region
      $region13: #{encoder_cnn_forward.24} parent=11 // pred_check
        %p140 = pneg %p57
      $region14: #{encoder_cnn_forward.24} parent=11 // pred_check_branch
        %142 = sbr.rel (%p140) target = $region16
      $region15: #{encoder_cnn_forward.24} parent=11 // pred_region
        _
      $region16: #{encoder_cnn_forward.24} parent=11 // pred_fallthru
        _
      // Predicated region
      $region17: #{encoder_cnn_forward.24} parent=11 // pred_check
        %p143 = pneg %p78
      $region18: #{encoder_cnn_forward.24} parent=11 // pred_check_branch
        %145 = sbr.rel (%p143) target = $region20
      $region19: #{encoder_cnn_forward.24} parent=11 // pred_region
        _
      $region20: #{encoder_cnn_forward.24} parent=11 // pred_fallthru
        _
      // Predicated region
      $region21: #{encoder_cnn_forward.24} parent=11 // pred_check
        %p146 = pneg %p99
      $region22: #{encoder_cnn_forward.24} parent=11 // pred_check_branch
        %148 = sbr.rel (%p146) target = $region24
      $region23: #{encoder_cnn_forward.24} parent=11 // pred_region
        _
      $region24: #{encoder_cnn_forward.24} parent=11 // pred_fallthru
        _
    $region12: #{encoder_cnn_forward.24} parent=5 // pred_fallthru
      _
    %p149 = scmp.lt.s32.totalorder %s10, 2
    // Predicated region
    $region25: #{encoder_cnn_forward.24} parent=5 // pred_check
      %p150 = pneg %p149
    $region26: #{encoder_cnn_forward.24} parent=5 // pred_check_branch
      %152 = sbr.rel (%p150) target = $region28
    $region27: #{encoder_cnn_forward.24} parent=5 // pred_region
      // Predicated region
      $region29: #{encoder_cnn_forward.24} parent=27 // pred_check
        %p153 = pneg %p30
      $region30: #{encoder_cnn_forward.24} parent=27 // pred_check_branch
        %155 = sbr.rel (%p153) target = $region32
      $region31: #{encoder_cnn_forward.24} parent=27 // pred_region
        %s156 = smul.u32 8, %s10
        %p157 = scmp.lt.s32.totalorder %s156, 15
        %s158 = scalar_select %p157, %s156, 15
        %s159 = smul.addr %s158, 4
        %s160 = scalar_lea.vmem %s0, %s159
        %s161 = smul.u32 8, %s10
      $region32: #{encoder_cnn_forward.24} parent=27 // pred_fallthru
        _
    $region28: #{encoder_cnn_forward.24} parent=5 // pred_fallthru
      _
    %p162 = scmp.le.s32.totalorder 1, %s10
    %p163 = scmp.lt.s32.totalorder %s10, 3
    %p164 = pnand %p162, %p163
    %p165 = pneg %p164
    // Predicated region
    $region33: #{encoder_cnn_forward.24} parent=5 // pred_check
      _
    $region34: #{encoder_cnn_forward.24} parent=5 // pred_check_branch
      %167 = sbr.rel (%p164) target = $region36
    $region35: #{encoder_cnn_forward.24} parent=5 // pred_region
      %s168 = ssub.s32 %s10, 1
      %s169 = smul.u32 8, %s15
      %p170 = scmp.lt.s32.totalorder %s169, 15
      %s171 = scalar_select %p170, %s169, 15
      %s172 = smul.addr %s171, 4
      %s173 = scalar_lea.vmem %s0, %s172
      %p174 = pneg %p36
      %p175 = pneg %p33
      %p176 = pneg %p57
      %p177 = pneg %p54
      %p178 = pneg %p78
      %p179 = pneg %p75
      %p180 = pneg %p99
      %p181 = pneg %p96
      %p182 = pneg %p125
      %p183 = pneg %p122
      %s184 = smul.u32 8, %s15
      %p185 = scmp.lt.s32.totalorder %s184, 15
      %s186 = scalar_select %p185, %s184, 15
      %s187 = smul.addr %s186, 4
      %s188 = scalar_lea.vmem %s4, %s187
      %s189 = smul.u32 8, %s15
      %p190 = scmp.lt.s32.totalorder %s189, 15
      %s191 = scalar_select %p190, %s189, 15
      %s192 = smul.addr %s191, 4
      %s193 = scalar_lea.vmem %s0, %s192
      %s194 = smul.u32 8, %s15
      %s195 = smul.u32 8, %s15
      %p196 = scmp.lt.s32.totalorder %s195, 15
      %s197 = scalar_select %p196, %s195, 15
      %s198 = smul.addr %s197, 4
      %s199 = scalar_lea.vmem %s4, %s198
      %s200 = smul.u32 8, %s15
      %v201 = vld [vmem:[%s193] sm:$0xf]
      %v202 = vld [vmem:[%s193 + $0x4] sm:$0xf]
      %v203 = vld [vmem:[%s193 + $0x8] sm:$0xf]
      %v204 = vld [vmem:[%s193 + $0xc] sm:$0xf]
      %v205 = vld [vmem:[%s193 + $0x10] sm:$0xf]
      %v206 = vld [vmem:[%s193 + $0x14] sm:$0xf]
      %v207 = vld [vmem:[%s193 + $0x18] sm:$0xf]
      %v208 = vld [vmem:[%s193 + $0x1c] sm:$0xf]
      %v209 = vld [vmem:[%s1] sm:$0xf]
      %v210 = vld [vmem:[%s1 + $0x4] sm:$0xf]
      %v211 = vld [vmem:[%s1 + $0x8] sm:$0xf]
      %v212 = vld [vmem:[%s1 + $0xc] sm:$0xf]
      %v213 = vld [vmem:[%s1 + $0x10] sm:$0xf]
      %v214 = vld [vmem:[%s1 + $0x14] sm:$0xf]
      %v215 = vld [vmem:[%s1 + $0x18] sm:$0xf]
      %v216 = vld [vmem:[%s1 + $0x1c] sm:$0xf]
      %v217 = vld [vmem:[%s1 + $0x20] sm:$0xf]
      %v218 = vld [vmem:[%s1 + $0x24] sm:$0xf]
      %v219 = vld [vmem:[%s1 + $0x28] sm:$0xf]
      %v220 = vld [vmem:[%s1 + $0x2c] sm:$0xf]
      %v221 = vld [vmem:[%s1 + $0x30] sm:$0xf]
      %v222 = vld [vmem:[%s1 + $0x34] sm:$0xf]
      %v223 = vld [vmem:[%s1 + $0x38] sm:$0xf]
      %v224 = vld [vmem:[%s1 + $0x3c] sm:$0xf]
      %v233 = vunpack.c.l.b16 %v201
      %v234 = vunpack.c.l.b16 %v202
      %v235 = vunpack.c.l.b16 %v203
      %v236 = vunpack.c.l.b16 %v204
      %v237 = vunpack.c.l.b16 %v205
      %v238 = vunpack.c.l.b16 %v206
      %v239 = vunpack.c.l.b16 %v207
      %v240 = vunpack.c.l.b16 %v208
      %v241 = vpack.c.b16 %v234, %v233
      %v242 = vpack.c.b16 %v236, %v235
      %v243 = vpack.c.b16 %v238, %v237
      %v244 = vpack.c.b16 %v240, %v239
      %v265 = vunpack.c.l.b16 %v209
      %v266 = vunpack.c.l.b16 %v210
      %v267 = vunpack.c.l.b16 %v211
      %v268 = vunpack.c.l.b16 %v212
      %v269 = vunpack.c.l.b16 %v213
      %v270 = vunpack.c.l.b16 %v214
      %v271 = vunpack.c.l.b16 %v215
      %v272 = vunpack.c.l.b16 %v216
      %v273 = vunpack.c.l.b16 %v217
      %v274 = vunpack.c.l.b16 %v218
      %v275 = vunpack.c.l.b16 %v219
      %v276 = vunpack.c.l.b16 %v220
      %v277 = vunpack.c.l.b16 %v221
      %v278 = vunpack.c.l.b16 %v222
      %v279 = vunpack.c.l.b16 %v223
      %v280 = vunpack.c.l.b16 %v224
      %v281 = vpack.c.b16 %v266, %v265
      %v282 = vpack.c.b16 %v268, %v267
      %v283 = vpack.c.b16 %v270, %v269
      %v284 = vpack.c.b16 %v272, %v271
      %v285 = vpack.c.b16 %v274, %v273
      %v286 = vpack.c.b16 %v276, %v275
      %v287 = vpack.c.b16 %v278, %v277
      %v288 = vpack.c.b16 %v280, %v279
      %297 = vmatpush.bf16.msra.mxu0 %v288
      %298 = vmatpush.bf16.msra.mxu0 %v287
      %299 = vmatpush.bf16.msra.mxu0 %v286
      %300 = vmatpush.bf16.msra.mxu0 %v285
      %301 = vmatpush.bf16.msra.mxu0 %v284
      %302 = vmatpush.bf16.msra.mxu0 %v283
      %303 = vmatpush.bf16.msra.mxu0 %v282
      %304 = vmatpush.bf16.msra.mxu0 %v281
      %305 = vmatmul.bf16.gmra.mxu0 %v241
      %v306 = vpop.f32.mrf.mxu0
      %v307 = vadd.f32 0.0, %v306
      %v308 = vpop.f32.mrf.mxu0
      %v309 = vadd.f32 0.0, %v308
      %310 = vmatmul.bf16.gmra.mxu0 %v242
      %v311 = vpop.f32.mrf.mxu0
      %v312 = vadd.f32 0.0, %v311
      %v313 = vpop.f32.mrf.mxu0
      %v314 = vadd.f32 0.0, %v313
      %315 = vmatmul.bf16.gmra.mxu0 %v243
      %v316 = vpop.f32.mrf.mxu0
      %v317 = vadd.f32 0.0, %v316
      %v318 = vpop.f32.mrf.mxu0
      %v319 = vadd.f32 0.0, %v318
      %320 = vmatmul.bf16.gmra.mxu0 %v244
      %v321 = vpop.f32.mrf.mxu0
      %v322 = vadd.f32 0.0, %v321
      %v323 = vpop.f32.mrf.mxu0
      %v324 = vadd.f32 0.0, %v323
      %325 = vdwg.mxu0
      %v326 = vld [vmem:[%s2] sm:$0x1]
      %v328 = vperm.slane %v326, 0
      %v330 = vmul.f32 %v307, %v328
      %v331 = vmul.f32 %v309, %v328
      %v332 = vmul.f32 %v312, %v328
      %v333 = vmul.f32 %v314, %v328
      %v334 = vmul.f32 %v317, %v328
      %v335 = vmul.f32 %v319, %v328
      %v336 = vmul.f32 %v322, %v328
      %v337 = vmul.f32 %v324, %v328
      %v338 = vld [vmem:[%s3] sm:$0x1]
      %v340 = vperm.slane %v338, 0
      %v342 = vadd.f32 %v330, %v340
      %v343 = vadd.f32 %v331, %v340
      %v344 = vadd.f32 %v332, %v340
      %v345 = vadd.f32 %v333, %v340
      %v346 = vadd.f32 %v334, %v340
      %v347 = vadd.f32 %v335, %v340
      %v348 = vadd.f32 %v336, %v340
      %v349 = vadd.f32 %v337, %v340
      %v350 = vmax.f32 %v342, 0.0
      %v351 = vmax.f32 %v343, 0.0
      %v352 = vmax.f32 %v344, 0.0
      %v353 = vmax.f32 %v345, 0.0
      %v354 = vmax.f32 %v346, 0.0
      %v355 = vmax.f32 %v347, 0.0
      %v356 = vmax.f32 %v348, 0.0
      %v357 = vmax.f32 %v349, 0.0
      %v358 = vpack.c.bf16 %v350, %v350
      %v359 = vpack.c.bf16 %v351, %v351
      %v360 = vpack.c.bf16 %v352, %v352
      %v361 = vpack.c.bf16 %v353, %v353
      %v362 = vpack.c.bf16 %v354, %v354
      %v363 = vpack.c.bf16 %v355, %v355
      %v364 = vpack.c.bf16 %v356, %v356
      %v365 = vpack.c.bf16 %v357, %v357
      %366 = vst [vmem:[%s199] sm:$0xf] %v358
      %367 = vst [vmem:[%s199 + $0x4] sm:$0xf] %v359
      %368 = vst [vmem:[%s199 + $0x8] sm:$0xf] %v360
      %369 = vst [vmem:[%s199 + $0xc] sm:$0xf] %v361
      %370 = vst [vmem:[%s199 + $0x10] sm:$0xf] %v362
      %371 = vst [vmem:[%s199 + $0x14] sm:$0xf] %v363
      %372 = vst [vmem:[%s199 + $0x18] sm:$0xf] %v364
      %373 = vst [vmem:[%s199 + $0x1c] sm:$0xf] %v365
      %s374 = smul.u32 8, %s15
      %p375 = scmp.lt.s32.totalorder %s374, 15
      %s376 = scalar_select %p375, %s374, 15
      %s377 = smul.addr %s376, 4
      %s378 = scalar_lea.vmem %s4, %s377
      // Predicated region
      $region37: #{encoder_cnn_forward.24} parent=35 // pred_check
        %p379 = pneg %p122
      $region38: #{encoder_cnn_forward.24} parent=35 // pred_check_branch
        %381 = sbr.rel (%p379) target = $region40
      $region39: #{encoder_cnn_forward.24} parent=35 // pred_region
        %s382 = smul.u32 8, %s15
      $region40: #{encoder_cnn_forward.24} parent=35 // pred_fallthru
        _
    $region36: #{encoder_cnn_forward.24} parent=5 // pred_fallthru
      _
    %p383 = scmp.le.s32.totalorder 2, %s10
    // Predicated region
    $region41: #{encoder_cnn_forward.24} parent=5 // pred_check
      %p384 = pneg %p383
    $region42: #{encoder_cnn_forward.24} parent=5 // pred_check_branch
      %386 = sbr.rel (%p384) target = $region44
    $region43: #{encoder_cnn_forward.24} parent=5 // pred_region
      %s387 = ssub.s32 %s10, 2
      // Predicated region
      $region45: #{encoder_cnn_forward.24} parent=43 // pred_check
        %p388 = pneg %p128
      $region46: #{encoder_cnn_forward.24} parent=43 // pred_check_branch
        %390 = sbr.rel (%p388) target = $region48
      $region47: #{encoder_cnn_forward.24} parent=43 // pred_region
        %s391 = smul.u32 8, %s16
        %p392 = scmp.lt.s32.totalorder %s391, 15
        %s393 = scalar_select %p392, %s391, 15
        %s394 = smul.addr %s393, 4
        %s395 = scalar_lea.vmem %s4, %s394
      $region48: #{encoder_cnn_forward.24} parent=43 // pred_fallthru
        _
    $region44: #{encoder_cnn_forward.24} parent=5 // pred_fallthru
      _
  $region6: #{encoder_cnn_forward.24} parent=0 // loop_footer
    %s14 = sadd.s32 1, %s10
  $region7: #{encoder_cnn_forward.24} parent=0 // loop_footer_branch
    %9 = sbr.rel target = $region3
  $region8: #{encoder_cnn_forward.24} parent=0 // loop_exit
    _

// kernel: encoder_cnn_forward.25
$region0: #{encoder_cnn_forward.25}
  #allocation0 [shape = 'u32[]', space=smem, size = 0x4, offset = 0x4, fixed_abs, tag = 'smem constant byte address 0x4 - core index']
  #allocation1 [shape = 'u32[72,128]{1,0:T(1,128)}', space=vmem, size = 0x9000, scoped, tag = 'internal scratch']
  %s0 = inlined_call_operand.vmem [shape: bf16[128,128], index: 0, kind: input, shape index: {}]
  %s1 = inlined_call_operand.vmem [shape: bf16[128,128], index: 1, kind: input, shape index: {}]
  %s2 = inlined_call_operand.vmem [shape: f32[1,128], index: 2, kind: input, shape index: {}]
  %s3 = inlined_call_operand.vmem [shape: f32[1,128], index: 3, kind: input, shape index: {}]
  %s4 = inlined_call_operand.vmem [shape: bf16[128,128], index: 4, kind: input, shape index: {}]
  %s5 = inlined_call_operand.vmem [shape: bf16[128,128], index: 5, kind: output, shape index: {}]
  %s6 = sld [smem:[#allocation0]]
  $region53: #{encoder_cnn_forward.25} parent=0
    _
  %s8 = ssub.s32 1, %s6
  %s9 = scalar_select 0, %s8, %s6
  loop: start=0, step=1, limit=4
  $region2: #{encoder_cnn_forward.25} parent=0 // loop_pre_header
    _
  $region3: #{encoder_cnn_forward.25} parent=0 // loop_header
    %s11 = sphi 0, %s15
    %p12 = scmp.ge.s32.totalorder %s11, 4
    %s21 = sphi 0, %s23
    %s24 = sphi 0, %s21
    %s25 = sphi 0, %s24
    %s41 = sphi 0, %s25
    %s45 = sphi 0, %s45
    %s47 = sphi 0, %s45
    %s48 = sphi 0, %s47
    %s62 = sphi 0, %s48
    %s66 = sphi 0, %s66
    %s68 = sphi 0, %s66
    %s69 = sphi 0, %s68
    %s83 = sphi 0, %s69
    %s87 = sphi 0, %s87
    %s89 = sphi 0, %s87
    %s90 = sphi 0, %s89
    %s104 = sphi 0, %s90
    %s110 = sphi 0, %s112
    %s113 = sphi 0, %s110
    %s114 = sphi 0, %s113
    %s130 = sphi 0, %s114
    %s136 = sphi 0, %s138
    %s139 = sphi 0, %s136
    %s140 = sphi 0, %s139
    %s156 = sphi 0, %s140
  $region4: #{encoder_cnn_forward.25} parent=0 // loop_header_branch
    %14 = sbr.rel (%p12) target = $region8
  $region5: #{encoder_cnn_forward.25} parent=0 // loop_body
    %s16 = ssub.s32 %s11, 1
    %s17 = ssub.s32 %s11, 2
    %s18 = sadd.s32 %s11, 1
    %s19 = ssub.s32 %s11, %s18
    %p20 = scmp.eq.s32.totalorder %s19, 0
    %s22 = sadd.s32 %s21, 1
    %s23 = scalar_select %p20, %s21, %s22
    %p26 = pneg %p20
    %p27 = scmp.eq.s32.totalorder %s11, 1
    %p28 = por %p26, %p27
    %p29 = scmp.ne.s32.totalorder %s21, %s24
    %p30 = scmp.eq.s32.totalorder %s11, 0
    %p31 = por %p29, %p30
    %p32 = scmp.ne.s32.totalorder %s21, %s24
    %p33 = scmp.eq.s32.totalorder %s16, 1
    %p34 = por %p32, %p33
    %p35 = scmp.ne.s32.totalorder %s24, %s25
    %p36 = scmp.eq.s32.totalorder %s16, 0
    %p37 = por %p35, %p36
    %p38 = scmp.ne.s32.totalorder %s24, %s25
    %p39 = scmp.eq.s32.totalorder %s17, 1
    %p40 = por %p38, %p39
    %p42 = scmp.ne.s32.totalorder %s25, %s41
    %p43 = scmp.eq.s32.totalorder %s17, 0
    %p44 = por %p42, %p43
    %s46 = sadd.s32 %s45, 1
    %p49 = scmp.eq.s32.totalorder %s11, 1
    %p50 = scmp.ne.s32.totalorder %s45, %s47
    %p51 = scmp.eq.s32.totalorder %s11, 0
    %p52 = por %p50, %p51
    %p53 = scmp.ne.s32.totalorder %s45, %s47
    %p54 = scmp.eq.s32.totalorder %s16, 1
    %p55 = por %p53, %p54
    %p56 = scmp.ne.s32.totalorder %s47, %s48
    %p57 = scmp.eq.s32.totalorder %s16, 0
    %p58 = por %p56, %p57
    %p59 = scmp.ne.s32.totalorder %s47, %s48
    %p60 = scmp.eq.s32.totalorder %s17, 1
    %p61 = por %p59, %p60
    %p63 = scmp.ne.s32.totalorder %s48, %s62
    %p64 = scmp.eq.s32.totalorder %s17, 0
    %p65 = por %p63, %p64
    %s67 = sadd.s32 %s66, 1
    %p70 = scmp.eq.s32.totalorder %s11, 1
    %p71 = scmp.ne.s32.totalorder %s66, %s68
    %p72 = scmp.eq.s32.totalorder %s11, 0
    %p73 = por %p71, %p72
    %p74 = scmp.ne.s32.totalorder %s66, %s68
    %p75 = scmp.eq.s32.totalorder %s16, 1
    %p76 = por %p74, %p75
    %p77 = scmp.ne.s32.totalorder %s68, %s69
    %p78 = scmp.eq.s32.totalorder %s16, 0
    %p79 = por %p77, %p78
    %p80 = scmp.ne.s32.totalorder %s68, %s69
    %p81 = scmp.eq.s32.totalorder %s17, 1
    %p82 = por %p80, %p81
    %p84 = scmp.ne.s32.totalorder %s69, %s83
    %p85 = scmp.eq.s32.totalorder %s17, 0
    %p86 = por %p84, %p85
    %s88 = sadd.s32 %s87, 1
    %p91 = scmp.eq.s32.totalorder %s11, 1
    %p92 = scmp.ne.s32.totalorder %s87, %s89
    %p93 = scmp.eq.s32.totalorder %s11, 0
    %p94 = por %p92, %p93
    %p95 = scmp.ne.s32.totalorder %s87, %s89
    %p96 = scmp.eq.s32.totalorder %s16, 1
    %p97 = por %p95, %p96
    %p98 = scmp.ne.s32.totalorder %s89, %s90
    %p99 = scmp.eq.s32.totalorder %s16, 0
    %p100 = por %p98, %p99
    %p101 = scmp.ne.s32.totalorder %s89, %s90
    %p102 = scmp.eq.s32.totalorder %s17, 1
    %p103 = por %p101, %p102
    %p105 = scmp.ne.s32.totalorder %s90, %s104
    %p106 = scmp.eq.s32.totalorder %s17, 0
    %p107 = por %p105, %p106
    %s108 = ssub.s32 %s11, %s18
    %p109 = scmp.eq.s32.totalorder %s108, 0
    %s111 = sadd.s32 %s110, 1
    %s112 = scalar_select %p109, %s110, %s111
    %p115 = pneg %p109
    %p116 = scmp.eq.s32.totalorder %s11, 1
    %p117 = por %p115, %p116
    %p118 = scmp.ne.s32.totalorder %s110, %s113
    %p119 = scmp.eq.s32.totalorder %s11, 0
    %p120 = por %p118, %p119
    %p121 = scmp.ne.s32.totalorder %s110, %s113
    %p122 = scmp.eq.s32.totalorder %s16, 1
    %p123 = por %p121, %p122
    %p124 = scmp.ne.s32.totalorder %s113, %s114
    %p125 = scmp.eq.s32.totalorder %s16, 0
    %p126 = por %p124, %p125
    %p127 = scmp.ne.s32.totalorder %s113, %s114
    %p128 = scmp.eq.s32.totalorder %s17, 1
    %p129 = por %p127, %p128
    %p131 = scmp.ne.s32.totalorder %s114, %s130
    %p132 = scmp.eq.s32.totalorder %s17, 0
    %p133 = por %p131, %p132
    %s134 = ssub.s32 %s11, %s18
    %p135 = scmp.eq.s32.totalorder %s134, 0
    %s137 = sadd.s32 %s136, 1
    %s138 = scalar_select %p135, %s136, %s137
    %p141 = pneg %p135
    %p142 = scmp.eq.s32.totalorder %s11, 1
    %p143 = por %p141, %p142
    %p144 = scmp.ne.s32.totalorder %s136, %s139
    %p145 = scmp.eq.s32.totalorder %s11, 0
    %p146 = por %p144, %p145
    %p147 = scmp.ne.s32.totalorder %s136, %s139
    %p148 = scmp.eq.s32.totalorder %s16, 1
    %p149 = por %p147, %p148
    %p150 = scmp.ne.s32.totalorder %s139, %s140
    %p151 = scmp.eq.s32.totalorder %s16, 0
    %p152 = por %p150, %p151
    %p153 = scmp.ne.s32.totalorder %s139, %s140
    %p154 = scmp.eq.s32.totalorder %s17, 1
    %p155 = por %p153, %p154
    %p157 = scmp.ne.s32.totalorder %s140, %s156
    %p158 = scmp.eq.s32.totalorder %s17, 0
    %p159 = por %p157, %p158
    %p160 = scmp.le.s32.totalorder 1, %s11
    %p161 = scmp.lt.s32.totalorder %s11, 3
    %p162 = pnand %p160, %p161
    %p163 = pneg %p162
    // Predicated region
    $region9: #{encoder_cnn_forward.25} parent=5 // pred_check
      _
    $region10: #{encoder_cnn_forward.25} parent=5 // pred_check_branch
      %165 = sbr.rel (%p162) target = $region12
    $region11: #{encoder_cnn_forward.25} parent=5 // pred_region
      %s166 = ssub.s32 %s11, 1
      // Predicated region
      $region13: #{encoder_cnn_forward.25} parent=11 // pred_check
        %p167 = pneg %p58
      $region14: #{encoder_cnn_forward.25} parent=11 // pred_check_branch
        %169 = sbr.rel (%p167) target = $region16
      $region15: #{encoder_cnn_forward.25} parent=11 // pred_region
        _
      $region16: #{encoder_cnn_forward.25} parent=11 // pred_fallthru
        _
      // Predicated region
      $region17: #{encoder_cnn_forward.25} parent=11 // pred_check
        %p170 = pneg %p79
      $region18: #{encoder_cnn_forward.25} parent=11 // pred_check_branch
        %172 = sbr.rel (%p170) target = $region20
      $region19: #{encoder_cnn_forward.25} parent=11 // pred_region
        _
      $region20: #{encoder_cnn_forward.25} parent=11 // pred_fallthru
        _
      // Predicated region
      $region21: #{encoder_cnn_forward.25} parent=11 // pred_check
        %p173 = pneg %p100
      $region22: #{encoder_cnn_forward.25} parent=11 // pred_check_branch
        %175 = sbr.rel (%p173) target = $region24
      $region23: #{encoder_cnn_forward.25} parent=11 // pred_region
        _
      $region24: #{encoder_cnn_forward.25} parent=11 // pred_fallthru
        _
    $region12: #{encoder_cnn_forward.25} parent=5 // pred_fallthru
      _
    %p176 = scmp.lt.s32.totalorder %s11, 2
    // Predicated region
    $region25: #{encoder_cnn_forward.25} parent=5 // pred_check
      %p177 = pneg %p176
    $region26: #{encoder_cnn_forward.25} parent=5 // pred_check_branch
      %179 = sbr.rel (%p177) target = $region28
    $region27: #{encoder_cnn_forward.25} parent=5 // pred_region
      // Predicated region
      $region29: #{encoder_cnn_forward.25} parent=27 // pred_check
        %p180 = pneg %p31
      $region30: #{encoder_cnn_forward.25} parent=27 // pred_check_branch
        %182 = sbr.rel (%p180) target = $region32
      $region31: #{encoder_cnn_forward.25} parent=27 // pred_region
        %s183 = smul.u32 8, %s11
        %p184 = scmp.lt.s32.totalorder %s183, 15
        %s185 = scalar_select %p184, %s183, 15
        %s186 = smul.addr %s185, 4
        %s187 = scalar_lea.vmem %s0, %s186
        %s188 = smul.u32 8, %s11
      $region32: #{encoder_cnn_forward.25} parent=27 // pred_fallthru
        _
      // Predicated region
      $region33: #{encoder_cnn_forward.25} parent=27 // pred_check
        %p189 = pneg %p120
      $region34: #{encoder_cnn_forward.25} parent=27 // pred_check_branch
        %191 = sbr.rel (%p189) target = $region36
      $region35: #{encoder_cnn_forward.25} parent=27 // pred_region
        %s192 = smul.u32 8, %s11
        %p193 = scmp.lt.s32.totalorder %s192, 15
        %s194 = scalar_select %p193, %s192, 15
        %s195 = smul.addr %s194, 4
        %s196 = scalar_lea.vmem %s4, %s195
        %s197 = smul.u32 8, %s11
      $region36: #{encoder_cnn_forward.25} parent=27 // pred_fallthru
        _
    $region28: #{encoder_cnn_forward.25} parent=5 // pred_fallthru
      _
    %p198 = scmp.le.s32.totalorder 1, %s11
    %p199 = scmp.lt.s32.totalorder %s11, 3
    %p200 = pnand %p198, %p199
    %p201 = pneg %p200
    // Predicated region
    $region37: #{encoder_cnn_forward.25} parent=5 // pred_check
      _
    $region38: #{encoder_cnn_forward.25} parent=5 // pred_check_branch
      %203 = sbr.rel (%p200) target = $region40
    $region39: #{encoder_cnn_forward.25} parent=5 // pred_region
      %s204 = ssub.s32 %s11, 1
      %s205 = smul.u32 8, %s16
      %p206 = scmp.lt.s32.totalorder %s205, 15
      %s207 = scalar_select %p206, %s205, 15
      %s208 = smul.addr %s207, 4
      %s209 = scalar_lea.vmem %s0, %s208
      %p210 = pneg %p37
      %p211 = pneg %p34
      %p212 = pneg %p58
      %p213 = pneg %p55
      %p214 = pneg %p79
      %p215 = pneg %p76
      %p216 = pneg %p100
      %p217 = pneg %p97
      %s218 = smul.u32 8, %s16
      %p219 = scmp.lt.s32.totalorder %s218, 15
      %s220 = scalar_select %p219, %s218, 15
      %s221 = smul.addr %s220, 4
      %s222 = scalar_lea.vmem %s4, %s221
      %p223 = pneg %p126
      %p224 = pneg %p123
      %p225 = pneg %p152
      %p226 = pneg %p149
      %s227 = smul.u32 8, %s16
      %p228 = scmp.lt.s32.totalorder %s227, 15
      %s229 = scalar_select %p228, %s227, 15
      %s230 = smul.addr %s229, 4
      %s231 = scalar_lea.vmem %s5, %s230
      %s232 = smul.u32 8, %s16
      %p233 = scmp.lt.s32.totalorder %s232, 15
      %s234 = scalar_select %p233, %s232, 15
      %s235 = smul.addr %s234, 4
      %s236 = scalar_lea.vmem %s0, %s235
      %s237 = smul.u32 8, %s16
      %s238 = smul.u32 8, %s16
      %p239 = scmp.lt.s32.totalorder %s238, 15
      %s240 = scalar_select %p239, %s238, 15
      %s241 = smul.addr %s240, 4
      %s242 = scalar_lea.vmem %s4, %s241
      %s243 = smul.u32 8, %s16
      %s244 = smul.u32 8, %s16
      %p245 = scmp.lt.s32.totalorder %s244, 15
      %s246 = scalar_select %p245, %s244, 15
      %s247 = smul.addr %s246, 4
      %s248 = scalar_lea.vmem %s5, %s247
      %s249 = smul.u32 8, %s16
      %v250 = vld [vmem:[%s236] sm:$0xf]
      %v251 = vld [vmem:[%s236 + $0x4] sm:$0xf]
      %v252 = vld [vmem:[%s236 + $0x8] sm:$0xf]
      %v253 = vld [vmem:[%s236 + $0xc] sm:$0xf]
      %v254 = vld [vmem:[%s236 + $0x10] sm:$0xf]
      %v255 = vld [vmem:[%s236 + $0x14] sm:$0xf]
      %v256 = vld [vmem:[%s236 + $0x18] sm:$0xf]
      %v257 = vld [vmem:[%s236 + $0x1c] sm:$0xf]
      %v258 = vld [vmem:[%s1] sm:$0xf]
      %v259 = vld [vmem:[%s1 + $0x4] sm:$0xf]
      %v260 = vld [vmem:[%s1 + $0x8] sm:$0xf]
      %v261 = vld [vmem:[%s1 + $0xc] sm:$0xf]
      %v262 = vld [vmem:[%s1 + $0x10] sm:$0xf]
      %v263 = vld [vmem:[%s1 + $0x14] sm:$0xf]
      %v264 = vld [vmem:[%s1 + $0x18] sm:$0xf]
      %v265 = vld [vmem:[%s1 + $0x1c] sm:$0xf]
      %v266 = vld [vmem:[%s1 + $0x20] sm:$0xf]
      %v267 = vld [vmem:[%s1 + $0x24] sm:$0xf]
      %v268 = vld [vmem:[%s1 + $0x28] sm:$0xf]
      %v269 = vld [vmem:[%s1 + $0x2c] sm:$0xf]
      %v270 = vld [vmem:[%s1 + $0x30] sm:$0xf]
      %v271 = vld [vmem:[%s1 + $0x34] sm:$0xf]
      %v272 = vld [vmem:[%s1 + $0x38] sm:$0xf]
      %v273 = vld [vmem:[%s1 + $0x3c] sm:$0xf]
      %v282 = vunpack.c.l.b16 %v250
      %v283 = vunpack.c.l.b16 %v251
      %v284 = vunpack.c.l.b16 %v252
      %v285 = vunpack.c.l.b16 %v253
      %v286 = vunpack.c.l.b16 %v254
      %v287 = vunpack.c.l.b16 %v255
      %v288 = vunpack.c.l.b16 %v256
      %v289 = vunpack.c.l.b16 %v257
      %v290 = vpack.c.b16 %v283, %v282
      %v291 = vpack.c.b16 %v285, %v284
      %v292 = vpack.c.b16 %v287, %v286
      %v293 = vpack.c.b16 %v289, %v288
      %v314 = vunpack.c.l.b16 %v258
      %v315 = vunpack.c.l.b16 %v259
      %v316 = vunpack.c.l.b16 %v260
      %v317 = vunpack.c.l.b16 %v261
      %v318 = vunpack.c.l.b16 %v262
      %v319 = vunpack.c.l.b16 %v263
      %v320 = vunpack.c.l.b16 %v264
      %v321 = vunpack.c.l.b16 %v265
      %v322 = vunpack.c.l.b16 %v266
      %v323 = vunpack.c.l.b16 %v267
      %v324 = vunpack.c.l.b16 %v268
      %v325 = vunpack.c.l.b16 %v269
      %v326 = vunpack.c.l.b16 %v270
      %v327 = vunpack.c.l.b16 %v271
      %v328 = vunpack.c.l.b16 %v272
      %v329 = vunpack.c.l.b16 %v273
      %v330 = vpack.c.b16 %v315, %v314
      %v331 = vpack.c.b16 %v317, %v316
      %v332 = vpack.c.b16 %v319, %v318
      %v333 = vpack.c.b16 %v321, %v320
      %v334 = vpack.c.b16 %v323, %v322
      %v335 = vpack.c.b16 %v325, %v324
      %v336 = vpack.c.b16 %v327, %v326
      %v337 = vpack.c.b16 %v329, %v328
      %346 = vmatpush.bf16.msra.mxu0 %v337
      %347 = vmatpush.bf16.msra.mxu0 %v336
      %348 = vmatpush.bf16.msra.mxu0 %v335
      %349 = vmatpush.bf16.msra.mxu0 %v334
      %350 = vmatpush.bf16.msra.mxu0 %v333
      %351 = vmatpush.bf16.msra.mxu0 %v332
      %352 = vmatpush.bf16.msra.mxu0 %v331
      %353 = vmatpush.bf16.msra.mxu0 %v330
      %354 = vmatmul.bf16.gmra.mxu0 %v290
      %v355 = vpop.f32.mrf.mxu0
      %v356 = vadd.f32 0.0, %v355
      %v357 = vpop.f32.mrf.mxu0
      %v358 = vadd.f32 0.0, %v357
      %359 = vmatmul.bf16.gmra.mxu0 %v291
      %v360 = vpop.f32.mrf.mxu0
      %v361 = vadd.f32 0.0, %v360
      %v362 = vpop.f32.mrf.mxu0
      %v363 = vadd.f32 0.0, %v362
      %364 = vmatmul.bf16.gmra.mxu0 %v292
      %v365 = vpop.f32.mrf.mxu0
      %v366 = vadd.f32 0.0, %v365
      %v367 = vpop.f32.mrf.mxu0
      %v368 = vadd.f32 0.0, %v367
      %369 = vmatmul.bf16.gmra.mxu0 %v293
      %v370 = vpop.f32.mrf.mxu0
      %v371 = vadd.f32 0.0, %v370
      %v372 = vpop.f32.mrf.mxu0
      %v373 = vadd.f32 0.0, %v372
      %374 = vdwg.mxu0
      %v375 = vld [vmem:[%s2] sm:$0x1]
      %v377 = vperm.slane %v375, 0
      %v379 = vmul.f32 %v356, %v377
      %v380 = vmul.f32 %v358, %v377
      %v381 = vmul.f32 %v361, %v377
      %v382 = vmul.f32 %v363, %v377
      %v383 = vmul.f32 %v366, %v377
      %v384 = vmul.f32 %v368, %v377
      %v385 = vmul.f32 %v371, %v377
      %v386 = vmul.f32 %v373, %v377
      %v387 = vld [vmem:[%s3] sm:$0x1]
      %v389 = vperm.slane %v387, 0
      %v391 = vadd.f32 %v379, %v389
      %v392 = vadd.f32 %v380, %v389
      %v393 = vadd.f32 %v381, %v389
      %v394 = vadd.f32 %v382, %v389
      %v395 = vadd.f32 %v383, %v389
      %v396 = vadd.f32 %v384, %v389
      %v397 = vadd.f32 %v385, %v389
      %v398 = vadd.f32 %v386, %v389
      %v399 = vld [vmem:[%s242] sm:$0xf]
      %v400 = vld [vmem:[%s242 + $0x4] sm:$0xf]
      %v401 = vld [vmem:[%s242 + $0x8] sm:$0xf]
      %v402 = vld [vmem:[%s242 + $0xc] sm:$0xf]
      %v403 = vld [vmem:[%s242 + $0x10] sm:$0xf]
      %v404 = vld [vmem:[%s242 + $0x14] sm:$0xf]
      %v405 = vld [vmem:[%s242 + $0x18] sm:$0xf]
      %v406 = vld [vmem:[%s242 + $0x1c] sm:$0xf]
      %v407 = vunpack.c.l.bf16 %v399
      %v408 = vunpack.c.l.bf16 %v400
      %v409 = vunpack.c.l.bf16 %v401
      %v410 = vunpack.c.l.bf16 %v402
      %v411 = vunpack.c.l.bf16 %v403
      %v412 = vunpack.c.l.bf16 %v404
      %v413 = vunpack.c.l.bf16 %v405
      %v414 = vunpack.c.l.bf16 %v406
      %v415 = vadd.f32 %v391, %v407
      %v416 = vadd.f32 %v392, %v408
      %v417 = vadd.f32 %v393, %v409
      %v418 = vadd.f32 %v394, %v410
      %v419 = vadd.f32 %v395, %v411
      %v420 = vadd.f32 %v396, %v412
      %v421 = vadd.f32 %v397, %v413
      %v422 = vadd.f32 %v398, %v414
      %v423 = vmax.f32 %v415, 0.0
      %v424 = vmax.f32 %v416, 0.0
      %v425 = vmax.f32 %v417, 0.0
      %v426 = vmax.f32 %v418, 0.0
      %v427 = vmax.f32 %v419, 0.0
      %v428 = vmax.f32 %v420, 0.0
      %v429 = vmax.f32 %v421, 0.0
      %v430 = vmax.f32 %v422, 0.0
      %v431 = vpack.c.bf16 %v423, %v423
      %v432 = vpack.c.bf16 %v424, %v424
      %v433 = vpack.c.bf16 %v425, %v425
      %v434 = vpack.c.bf16 %v426, %v426
      %v435 = vpack.c.bf16 %v427, %v427
      %v436 = vpack.c.bf16 %v428, %v428
      %v437 = vpack.c.bf16 %v429, %v429
      %v438 = vpack.c.bf16 %v430, %v430
      %439 = vst [vmem:[%s248] sm:$0xf] %v431
      %440 = vst [vmem:[%s248 + $0x4] sm:$0xf] %v432
      %441 = vst [vmem:[%s248 + $0x8] sm:$0xf] %v433
      %442 = vst [vmem:[%s248 + $0xc] sm:$0xf] %v434
      %443 = vst [vmem:[%s248 + $0x10] sm:$0xf] %v435
      %444 = vst [vmem:[%s248 + $0x14] sm:$0xf] %v436
      %445 = vst [vmem:[%s248 + $0x18] sm:$0xf] %v437
      %446 = vst [vmem:[%s248 + $0x1c] sm:$0xf] %v438
      %s447 = smul.u32 8, %s16
      %p448 = scmp.lt.s32.totalorder %s447, 15
      %s449 = scalar_select %p448, %s447, 15
      %s450 = smul.addr %s449, 4
      %s451 = scalar_lea.vmem %s5, %s450
      // Predicated region
      $region41: #{encoder_cnn_forward.25} parent=39 // pred_check
        %p452 = pneg %p149
      $region42: #{encoder_cnn_forward.25} parent=39 // pred_check_branch
        %454 = sbr.rel (%p452) target = $region44
      $region43: #{encoder_cnn_forward.25} parent=39 // pred_region
        %s455 = smul.u32 8, %s16
      $region44: #{encoder_cnn_forward.25} parent=39 // pred_fallthru
        _
    $region40: #{encoder_cnn_forward.25} parent=5 // pred_fallthru
      _
    %p456 = scmp.le.s32.totalorder 2, %s11
    // Predicated region
    $region45: #{encoder_cnn_forward.25} parent=5 // pred_check
      %p457 = pneg %p456
    $region46: #{encoder_cnn_forward.25} parent=5 // pred_check_branch
      %459 = sbr.rel (%p457) target = $region48
    $region47: #{encoder_cnn_forward.25} parent=5 // pred_region
      %s460 = ssub.s32 %s11, 2
      // Predicated region
      $region49: #{encoder_cnn_forward.25} parent=47 // pred_check
        %p461 = pneg %p155
      $region50: #{encoder_cnn_forward.25} parent=47 // pred_check_branch
        %463 = sbr.rel (%p461) target = $region52
      $region51: #{encoder_cnn_forward.25} parent=47 // pred_region
        %s464 = smul.u32 8, %s17
        %p465 = scmp.lt.s32.totalorder %s464, 15
        %s466 = scalar_select %p465, %s464, 15
        %s467 = smul.addr %s466, 4
        %s468 = scalar_lea.vmem %s5, %s467
      $region52: #{encoder_cnn_forward.25} parent=47 // pred_fallthru
        _
    $region48: #{encoder_cnn_forward.25} parent=5 // pred_fallthru
      _
  $region6: #{encoder_cnn_forward.25} parent=0 // loop_footer
    %s15 = sadd.s32 1, %s11
  $region7: #{encoder_cnn_forward.25} parent=0 // loop_footer_branch
    %10 = sbr.rel target = $region3
  $region8: #{encoder_cnn_forward.25} parent=0 // loop_exit
    _

// kernel: encoder_cnn_forward.28
$region0: #{encoder_cnn_forward.28}
  #allocation0 [shape = 'u32[]', space=smem, size = 0x4, offset = 0x4, fixed_abs, tag = 'smem constant byte address 0x4 - core index']
  #allocation1 [shape = 'u32[72,128]{1,0:T(1,128)}', space=vmem, size = 0x9000, scoped, tag = 'internal scratch']
  %s0 = inlined_call_operand.vmem [shape: bf16[32,128], index: 0, kind: input, shape index: {}]
  %s1 = inlined_call_operand.vmem [shape: bf16[128,128], index: 1, kind: input, shape index: {}]
  %s2 = inlined_call_operand.vmem [shape: f32[1,128], index: 2, kind: input, shape index: {}]
  %s3 = inlined_call_operand.vmem [shape: f32[1,128], index: 3, kind: input, shape index: {}]
  %s4 = inlined_call_operand.vmem [shape: bf16[32,128], index: 4, kind: output, shape index: {}]
  %s5 = sld [smem:[#allocation0]]
  $region49: #{encoder_cnn_forward.28} parent=0
    _
  %s7 = ssub.s32 1, %s5
  %s8 = scalar_select 0, %s7, %s5
  loop: start=0, step=1, limit=4
  $region2: #{encoder_cnn_forward.28} parent=0 // loop_pre_header
    _
  $region3: #{encoder_cnn_forward.28} parent=0 // loop_header
    %s10 = sphi 0, %s14
    %p11 = scmp.ge.s32.totalorder %s10, 4
    %s20 = sphi 0, %s22
    %s23 = sphi 0, %s20
    %s24 = sphi 0, %s23
    %s40 = sphi 0, %s24
    %s44 = sphi 0, %s44
    %s46 = sphi 0, %s44
    %s47 = sphi 0, %s46
    %s61 = sphi 0, %s47
    %s65 = sphi 0, %s65
    %s67 = sphi 0, %s65
    %s68 = sphi 0, %s67
    %s82 = sphi 0, %s68
    %s86 = sphi 0, %s86
    %s88 = sphi 0, %s86
    %s89 = sphi 0, %s88
    %s103 = sphi 0, %s89
    %s109 = sphi 0, %s111
    %s112 = sphi 0, %s109
    %s113 = sphi 0, %s112
    %s129 = sphi 0, %s113
  $region4: #{encoder_cnn_forward.28} parent=0 // loop_header_branch
    %13 = sbr.rel (%p11) target = $region8
  $region5: #{encoder_cnn_forward.28} parent=0 // loop_body
    %s15 = ssub.s32 %s10, 1
    %s16 = ssub.s32 %s10, 2
    %s17 = sadd.s32 %s10, 1
    %s18 = ssub.s32 %s10, %s17
    %p19 = scmp.eq.s32.totalorder %s18, 0
    %s21 = sadd.s32 %s20, 1
    %s22 = scalar_select %p19, %s20, %s21
    %p25 = pneg %p19
    %p26 = scmp.eq.s32.totalorder %s10, 1
    %p27 = por %p25, %p26
    %p28 = scmp.ne.s32.totalorder %s20, %s23
    %p29 = scmp.eq.s32.totalorder %s10, 0
    %p30 = por %p28, %p29
    %p31 = scmp.ne.s32.totalorder %s20, %s23
    %p32 = scmp.eq.s32.totalorder %s15, 1
    %p33 = por %p31, %p32
    %p34 = scmp.ne.s32.totalorder %s23, %s24
    %p35 = scmp.eq.s32.totalorder %s15, 0
    %p36 = por %p34, %p35
    %p37 = scmp.ne.s32.totalorder %s23, %s24
    %p38 = scmp.eq.s32.totalorder %s16, 1
    %p39 = por %p37, %p38
    %p41 = scmp.ne.s32.totalorder %s24, %s40
    %p42 = scmp.eq.s32.totalorder %s16, 0
    %p43 = por %p41, %p42
    %s45 = sadd.s32 %s44, 1
    %p48 = scmp.eq.s32.totalorder %s10, 1
    %p49 = scmp.ne.s32.totalorder %s44, %s46
    %p50 = scmp.eq.s32.totalorder %s10, 0
    %p51 = por %p49, %p50
    %p52 = scmp.ne.s32.totalorder %s44, %s46
    %p53 = scmp.eq.s32.totalorder %s15, 1
    %p54 = por %p52, %p53
    %p55 = scmp.ne.s32.totalorder %s46, %s47
    %p56 = scmp.eq.s32.totalorder %s15, 0
    %p57 = por %p55, %p56
    %p58 = scmp.ne.s32.totalorder %s46, %s47
    %p59 = scmp.eq.s32.totalorder %s16, 1
    %p60 = por %p58, %p59
    %p62 = scmp.ne.s32.totalorder %s47, %s61
    %p63 = scmp.eq.s32.totalorder %s16, 0
    %p64 = por %p62, %p63
    %s66 = sadd.s32 %s65, 1
    %p69 = scmp.eq.s32.totalorder %s10, 1
    %p70 = scmp.ne.s32.totalorder %s65, %s67
    %p71 = scmp.eq.s32.totalorder %s10, 0
    %p72 = por %p70, %p71
    %p73 = scmp.ne.s32.totalorder %s65, %s67
    %p74 = scmp.eq.s32.totalorder %s15, 1
    %p75 = por %p73, %p74
    %p76 = scmp.ne.s32.totalorder %s67, %s68
    %p77 = scmp.eq.s32.totalorder %s15, 0
    %p78 = por %p76, %p77
    %p79 = scmp.ne.s32.totalorder %s67, %s68
    %p80 = scmp.eq.s32.totalorder %s16, 1
    %p81 = por %p79, %p80
    %p83 = scmp.ne.s32.totalorder %s68, %s82
    %p84 = scmp.eq.s32.totalorder %s16, 0
    %p85 = por %p83, %p84
    %s87 = sadd.s32 %s86, 1
    %p90 = scmp.eq.s32.totalorder %s10, 1
    %p91 = scmp.ne.s32.totalorder %s86, %s88
    %p92 = scmp.eq.s32.totalorder %s10, 0
    %p93 = por %p91, %p92
    %p94 = scmp.ne.s32.totalorder %s86, %s88
    %p95 = scmp.eq.s32.totalorder %s15, 1
    %p96 = por %p94, %p95
    %p97 = scmp.ne.s32.totalorder %s88, %s89
    %p98 = scmp.eq.s32.totalorder %s15, 0
    %p99 = por %p97, %p98
    %p100 = scmp.ne.s32.totalorder %s88, %s89
    %p101 = scmp.eq.s32.totalorder %s16, 1
    %p102 = por %p100, %p101
    %p104 = scmp.ne.s32.totalorder %s89, %s103
    %p105 = scmp.eq.s32.totalorder %s16, 0
    %p106 = por %p104, %p105
    %s107 = ssub.s32 %s10, %s17
    %p108 = scmp.eq.s32.totalorder %s107, 0
    %s110 = sadd.s32 %s109, 1
    %s111 = scalar_select %p108, %s109, %s110
    %p114 = pneg %p108
    %p115 = scmp.eq.s32.totalorder %s10, 1
    %p116 = por %p114, %p115
    %p117 = scmp.ne.s32.totalorder %s109, %s112
    %p118 = scmp.eq.s32.totalorder %s10, 0
    %p119 = por %p117, %p118
    %p120 = scmp.ne.s32.totalorder %s109, %s112
    %p121 = scmp.eq.s32.totalorder %s15, 1
    %p122 = por %p120, %p121
    %p123 = scmp.ne.s32.totalorder %s112, %s113
    %p124 = scmp.eq.s32.totalorder %s15, 0
    %p125 = por %p123, %p124
    %p126 = scmp.ne.s32.totalorder %s112, %s113
    %p127 = scmp.eq.s32.totalorder %s16, 1
    %p128 = por %p126, %p127
    %p130 = scmp.ne.s32.totalorder %s113, %s129
    %p131 = scmp.eq.s32.totalorder %s16, 0
    %p132 = por %p130, %p131
    %p133 = scmp.le.s32.totalorder 1, %s10
    %p134 = scmp.lt.s32.totalorder %s10, 3
    %p135 = pnand %p133, %p134
    %p136 = pneg %p135
    // Predicated region
    $region9: #{encoder_cnn_forward.28} parent=5 // pred_check
      _
    $region10: #{encoder_cnn_forward.28} parent=5 // pred_check_branch
      %138 = sbr.rel (%p135) target = $region12
    $region11: #{encoder_cnn_forward.28} parent=5 // pred_region
      %s139 = ssub.s32 %s10, 1
      // Predicated region
      $region13: #{encoder_cnn_forward.28} parent=11 // pred_check
        %p140 = pneg %p57
      $region14: #{encoder_cnn_forward.28} parent=11 // pred_check_branch
        %142 = sbr.rel (%p140) target = $region16
      $region15: #{encoder_cnn_forward.28} parent=11 // pred_region
        _
      $region16: #{encoder_cnn_forward.28} parent=11 // pred_fallthru
        _
      // Predicated region
      $region17: #{encoder_cnn_forward.28} parent=11 // pred_check
        %p143 = pneg %p78
      $region18: #{encoder_cnn_forward.28} parent=11 // pred_check_branch
        %145 = sbr.rel (%p143) target = $region20
      $region19: #{encoder_cnn_forward.28} parent=11 // pred_region
        _
      $region20: #{encoder_cnn_forward.28} parent=11 // pred_fallthru
        _
      // Predicated region
      $region21: #{encoder_cnn_forward.28} parent=11 // pred_check
        %p146 = pneg %p99
      $region22: #{encoder_cnn_forward.28} parent=11 // pred_check_branch
        %148 = sbr.rel (%p146) target = $region24
      $region23: #{encoder_cnn_forward.28} parent=11 // pred_region
        _
      $region24: #{encoder_cnn_forward.28} parent=11 // pred_fallthru
        _
    $region12: #{encoder_cnn_forward.28} parent=5 // pred_fallthru
      _
    %p149 = scmp.lt.s32.totalorder %s10, 2
    // Predicated region
    $region25: #{encoder_cnn_forward.28} parent=5 // pred_check
      %p150 = pneg %p149
    $region26: #{encoder_cnn_forward.28} parent=5 // pred_check_branch
      %152 = sbr.rel (%p150) target = $region28
    $region27: #{encoder_cnn_forward.28} parent=5 // pred_region
      // Predicated region
      $region29: #{encoder_cnn_forward.28} parent=27 // pred_check
        %p153 = pneg %p30
      $region30: #{encoder_cnn_forward.28} parent=27 // pred_check_branch
        %155 = sbr.rel (%p153) target = $region32
      $region31: #{encoder_cnn_forward.28} parent=27 // pred_region
        %s156 = smul.u32 2, %s10
        %p157 = scmp.lt.s32.totalorder %s156, 3
        %s158 = scalar_select %p157, %s156, 3
        %s159 = smul.addr %s158, 4
        %s160 = scalar_lea.vmem %s0, %s159
        %s161 = smul.u32 2, %s10
      $region32: #{encoder_cnn_forward.28} parent=27 // pred_fallthru
        _
    $region28: #{encoder_cnn_forward.28} parent=5 // pred_fallthru
      _
    %p162 = scmp.le.s32.totalorder 1, %s10
    %p163 = scmp.lt.s32.totalorder %s10, 3
    %p164 = pnand %p162, %p163
    %p165 = pneg %p164
    // Predicated region
    $region33: #{encoder_cnn_forward.28} parent=5 // pred_check
      _
    $region34: #{encoder_cnn_forward.28} parent=5 // pred_check_branch
      %167 = sbr.rel (%p164) target = $region36
    $region35: #{encoder_cnn_forward.28} parent=5 // pred_region
      %s168 = ssub.s32 %s10, 1
      %s169 = smul.u32 2, %s15
      %p170 = scmp.lt.s32.totalorder %s169, 3
      %s171 = scalar_select %p170, %s169, 3
      %s172 = smul.addr %s171, 4
      %s173 = scalar_lea.vmem %s0, %s172
      %p174 = pneg %p36
      %p175 = pneg %p33
      %p176 = pneg %p57
      %p177 = pneg %p54
      %p178 = pneg %p78
      %p179 = pneg %p75
      %p180 = pneg %p99
      %p181 = pneg %p96
      %p182 = pneg %p125
      %p183 = pneg %p122
      %s184 = smul.u32 2, %s15
      %p185 = scmp.lt.s32.totalorder %s184, 3
      %s186 = scalar_select %p185, %s184, 3
      %s187 = smul.addr %s186, 4
      %s188 = scalar_lea.vmem %s4, %s187
      %s189 = smul.u32 2, %s15
      %p190 = scmp.lt.s32.totalorder %s189, 3
      %s191 = scalar_select %p190, %s189, 3
      %s192 = smul.addr %s191, 4
      %s193 = scalar_lea.vmem %s0, %s192
      %s194 = smul.u32 2, %s15
      %s195 = smul.u32 2, %s15
      %p196 = scmp.lt.s32.totalorder %s195, 3
      %s197 = scalar_select %p196, %s195, 3
      %s198 = smul.addr %s197, 4
      %s199 = scalar_lea.vmem %s4, %s198
      %s200 = smul.u32 2, %s15
      %v201 = vld [vmem:[%s193] sm:$0xf]
      %v202 = vld [vmem:[%s193 + $0x4] sm:$0xf]
      %v203 = vld [vmem:[%s1] sm:$0xf]
      %v204 = vld [vmem:[%s1 + $0x4] sm:$0xf]
      %v205 = vld [vmem:[%s1 + $0x8] sm:$0xf]
      %v206 = vld [vmem:[%s1 + $0xc] sm:$0xf]
      %v207 = vld [vmem:[%s1 + $0x10] sm:$0xf]
      %v208 = vld [vmem:[%s1 + $0x14] sm:$0xf]
      %v209 = vld [vmem:[%s1 + $0x18] sm:$0xf]
      %v210 = vld [vmem:[%s1 + $0x1c] sm:$0xf]
      %v211 = vld [vmem:[%s1 + $0x20] sm:$0xf]
      %v212 = vld [vmem:[%s1 + $0x24] sm:$0xf]
      %v213 = vld [vmem:[%s1 + $0x28] sm:$0xf]
      %v214 = vld [vmem:[%s1 + $0x2c] sm:$0xf]
      %v215 = vld [vmem:[%s1 + $0x30] sm:$0xf]
      %v216 = vld [vmem:[%s1 + $0x34] sm:$0xf]
      %v217 = vld [vmem:[%s1 + $0x38] sm:$0xf]
      %v218 = vld [vmem:[%s1 + $0x3c] sm:$0xf]
      %v221 = vunpack.c.l.b16 %v201
      %v222 = vunpack.c.l.b16 %v202
      %v223 = vpack.c.b16 %v222, %v221
      %v241 = vunpack.c.l.b16 %v203
      %v242 = vunpack.c.l.b16 %v204
      %v243 = vunpack.c.l.b16 %v205
      %v244 = vunpack.c.l.b16 %v206
      %v245 = vunpack.c.l.b16 %v207
      %v246 = vunpack.c.l.b16 %v208
      %v247 = vunpack.c.l.b16 %v209
      %v248 = vunpack.c.l.b16 %v210
      %v249 = vunpack.c.l.b16 %v211
      %v250 = vunpack.c.l.b16 %v212
      %v251 = vunpack.c.l.b16 %v213
      %v252 = vunpack.c.l.b16 %v214
      %v253 = vunpack.c.l.b16 %v215
      %v254 = vunpack.c.l.b16 %v216
      %v255 = vunpack.c.l.b16 %v217
      %v256 = vunpack.c.l.b16 %v218
      %v257 = vpack.c.b16 %v242, %v241
      %v258 = vpack.c.b16 %v244, %v243
      %v259 = vpack.c.b16 %v246, %v245
      %v260 = vpack.c.b16 %v248, %v247
      %v261 = vpack.c.b16 %v250, %v249
      %v262 = vpack.c.b16 %v252, %v251
      %v263 = vpack.c.b16 %v254, %v253
      %v264 = vpack.c.b16 %v256, %v255
      %273 = vmatpush.bf16.msra.mxu0 %v264
      %274 = vmatpush.bf16.msra.mxu0 %v263
      %275 = vmatpush.bf16.msra.mxu0 %v262
      %276 = vmatpush.bf16.msra.mxu0 %v261
      %277 = vmatpush.bf16.msra.mxu0 %v260
      %278 = vmatpush.bf16.msra.mxu0 %v259
      %279 = vmatpush.bf16.msra.mxu0 %v258
      %280 = vmatpush.bf16.msra.mxu0 %v257
      %281 = vmatmul.bf16.gmra.mxu0 %v223
      %v282 = vpop.f32.mrf.mxu0
      %v283 = vadd.f32 0.0, %v282
      %v284 = vpop.f32.mrf.mxu0
      %v285 = vadd.f32 0.0, %v284
      %286 = vdwg.mxu0
      %v287 = vld [vmem:[%s2] sm:$0x1]
      %v289 = vperm.slane %v287, 0
      %v291 = vmul.f32 %v283, %v289
      %v292 = vmul.f32 %v285, %v289
      %v293 = vld [vmem:[%s3] sm:$0x1]
      %v295 = vperm.slane %v293, 0
      %v297 = vadd.f32 %v291, %v295
      %v298 = vadd.f32 %v292, %v295
      %v299 = vmax.f32 %v297, 0.0
      %v300 = vmax.f32 %v298, 0.0
      %v301 = vpack.c.bf16 %v299, %v299
      %v302 = vpack.c.bf16 %v300, %v300
      %303 = vst [vmem:[%s199] sm:$0xf] %v301
      %304 = vst [vmem:[%s199 + $0x4] sm:$0xf] %v302
      %s305 = smul.u32 2, %s15
      %p306 = scmp.lt.s32.totalorder %s305, 3
      %s307 = scalar_select %p306, %s305, 3
      %s308 = smul.addr %s307, 4
      %s309 = scalar_lea.vmem %s4, %s308
      // Predicated region
      $region37: #{encoder_cnn_forward.28} parent=35 // pred_check
        %p310 = pneg %p122
      $region38: #{encoder_cnn_forward.28} parent=35 // pred_check_branch
        %312 = sbr.rel (%p310) target = $region40
      $region39: #{encoder_cnn_forward.28} parent=35 // pred_region
        %s313 = smul.u32 2, %s15
      $region40: #{encoder_cnn_forward.28} parent=35 // pred_fallthru
        _
    $region36: #{encoder_cnn_forward.28} parent=5 // pred_fallthru
      _
    %p314 = scmp.le.s32.totalorder 2, %s10
    // Predicated region
    $region41: #{encoder_cnn_forward.28} parent=5 // pred_check
      %p315 = pneg %p314
    $region42: #{encoder_cnn_forward.28} parent=5 // pred_check_branch
      %317 = sbr.rel (%p315) target = $region44
    $region43: #{encoder_cnn_forward.28} parent=5 // pred_region
      %s318 = ssub.s32 %s10, 2
      // Predicated region
      $region45: #{encoder_cnn_forward.28} parent=43 // pred_check
        %p319 = pneg %p128
      $region46: #{encoder_cnn_forward.28} parent=43 // pred_check_branch
        %321 = sbr.rel (%p319) target = $region48
      $region47: #{encoder_cnn_forward.28} parent=43 // pred_region
        %s322 = smul.u32 2, %s16
        %p323 = scmp.lt.s32.totalorder %s322, 3
        %s324 = scalar_select %p323, %s322, 3
        %s325 = smul.addr %s324, 4
        %s326 = scalar_lea.vmem %s4, %s325
      $region48: #{encoder_cnn_forward.28} parent=43 // pred_fallthru
        _
    $region44: #{encoder_cnn_forward.28} parent=5 // pred_fallthru
      _
  $region6: #{encoder_cnn_forward.28} parent=0 // loop_footer
    %s14 = sadd.s32 1, %s10
  $region7: #{encoder_cnn_forward.28} parent=0 // loop_footer_branch
    %9 = sbr.rel target = $region3
  $region8: #{encoder_cnn_forward.28} parent=0 // loop_exit
    _

// kernel: encoder_cnn_forward.30
$region0: #{encoder_cnn_forward.30}
  #allocation0 [shape = 'u32[]', space=smem, size = 0x4, offset = 0x4, fixed_abs, tag = 'smem constant byte address 0x4 - core index']
  #allocation1 [shape = 'u32[72,128]{1,0:T(1,128)}', space=vmem, size = 0x9000, scoped, tag = 'internal scratch']
  %s0 = inlined_call_operand.vmem [shape: bf16[32,256], index: 0, kind: input, shape index: {}]
  %s1 = inlined_call_operand.vmem [shape: bf16[256,128], index: 1, kind: input, shape index: {}]
  %s2 = inlined_call_operand.hbm [shape: f32[1,128], index: 2, kind: input, shape index: {}]
  %s3 = inlined_call_operand.hbm [shape: f32[1,128], index: 3, kind: input, shape index: {}]
  %s4 = inlined_call_operand.vmem [shape: bf16[32,128], index: 4, kind: input, shape index: {}]
  %s5 = inlined_call_operand.vmem [shape: bf16[32,128], index: 5, kind: output, shape index: {}]
  %s6 = sld [smem:[#allocation0]]
  $region61: #{encoder_cnn_forward.30} parent=0
    _
  %s8 = ssub.s32 1, %s6
  %s9 = scalar_select 0, %s8, %s6
  $region1: #{encoder_cnn_forward.30} parent=0
    #allocation2 [shape = 'u8[512]{0}', space=vmem, size = 0x400, scoped, tag = 'input window, operand 2, single buffered']
    #allocation3 [shape = 's32[2]{0}', space=sflag, size = 0x8, scoped, tag = 'scoped memory for encoder_cnn_forward.30']
    #allocation4 [shape = 'u8[512]{0}', space=vmem, size = 0x400, scoped, tag = 'input window, operand 3, single buffered']
    #allocation5 [shape = 's32[1]{0}', space=sflag, size = 0x4, scoped, tag = 'scoped memory for encoder_cnn_forward.30']
    %10 = vsyncpa [#allocation3], 0
    %11 = vsyncpa [#allocation5], 0
    loop: start=0, step=1, limit=4
    $region2: #{encoder_cnn_forward.30} parent=1 // loop_pre_header
      _
    $region3: #{encoder_cnn_forward.30} parent=1 // loop_header
      %s13 = sphi 0, %s17
      %p14 = scmp.ge.s32.totalorder %s13, 4
      %s23 = sphi 0, %s25
      %s26 = sphi 0, %s23
      %s27 = sphi 0, %s26
      %s43 = sphi 0, %s27
      %s47 = sphi 0, %s47
      %s49 = sphi 0, %s47
      %s50 = sphi 0, %s49
      %s64 = sphi 0, %s50
      %s68 = sphi 0, %s68
      %s70 = sphi 0, %s68
      %s71 = sphi 0, %s70
      %s85 = sphi 0, %s71
      %s89 = sphi 0, %s89
      %s91 = sphi 0, %s89
      %s92 = sphi 0, %s91
      %s106 = sphi 0, %s92
      %s112 = sphi 0, %s114
      %s115 = sphi 0, %s112
      %s116 = sphi 0, %s115
      %s132 = sphi 0, %s116
      %s138 = sphi 0, %s140
      %s141 = sphi 0, %s138
      %s142 = sphi 0, %s141
      %s158 = sphi 0, %s142
    $region4: #{encoder_cnn_forward.30} parent=1 // loop_header_branch
      %16 = sbr.rel (%p14) target = $region8
    $region5: #{encoder_cnn_forward.30} parent=1 // loop_body
      %s18 = ssub.s32 %s13, 1
      %s19 = ssub.s32 %s13, 2
      %s20 = sadd.s32 %s13, 1
      %s21 = ssub.s32 %s13, %s20
      %p22 = scmp.eq.s32.totalorder %s21, 0
      %s24 = sadd.s32 %s23, 1
      %s25 = scalar_select %p22, %s23, %s24
      %p28 = pneg %p22
      %p29 = scmp.eq.s32.totalorder %s13, 1
      %p30 = por %p28, %p29
      %p31 = scmp.ne.s32.totalorder %s23, %s26
      %p32 = scmp.eq.s32.totalorder %s13, 0
      %p33 = por %p31, %p32
      %p34 = scmp.ne.s32.totalorder %s23, %s26
      %p35 = scmp.eq.s32.totalorder %s18, 1
      %p36 = por %p34, %p35
      %p37 = scmp.ne.s32.totalorder %s26, %s27
      %p38 = scmp.eq.s32.totalorder %s18, 0
      %p39 = por %p37, %p38
      %p40 = scmp.ne.s32.totalorder %s26, %s27
      %p41 = scmp.eq.s32.totalorder %s19, 1
      %p42 = por %p40, %p41
      %p44 = scmp.ne.s32.totalorder %s27, %s43
      %p45 = scmp.eq.s32.totalorder %s19, 0
      %p46 = por %p44, %p45
      %s48 = sadd.s32 %s47, 1
      %p51 = scmp.eq.s32.totalorder %s13, 1
      %p52 = scmp.ne.s32.totalorder %s47, %s49
      %p53 = scmp.eq.s32.totalorder %s13, 0
      %p54 = por %p52, %p53
      %p55 = scmp.ne.s32.totalorder %s47, %s49
      %p56 = scmp.eq.s32.totalorder %s18, 1
      %p57 = por %p55, %p56
      %p58 = scmp.ne.s32.totalorder %s49, %s50
      %p59 = scmp.eq.s32.totalorder %s18, 0
      %p60 = por %p58, %p59
      %p61 = scmp.ne.s32.totalorder %s49, %s50
      %p62 = scmp.eq.s32.totalorder %s19, 1
      %p63 = por %p61, %p62
      %p65 = scmp.ne.s32.totalorder %s50, %s64
      %p66 = scmp.eq.s32.totalorder %s19, 0
      %p67 = por %p65, %p66
      %s69 = sadd.s32 %s68, 1
      %p72 = scmp.eq.s32.totalorder %s13, 1
      %p73 = scmp.ne.s32.totalorder %s68, %s70
      %p74 = scmp.eq.s32.totalorder %s13, 0
      %p75 = por %p73, %p74
      %p76 = scmp.ne.s32.totalorder %s68, %s70
      %p77 = scmp.eq.s32.totalorder %s18, 1
      %p78 = por %p76, %p77
      %p79 = scmp.ne.s32.totalorder %s70, %s71
      %p80 = scmp.eq.s32.totalorder %s18, 0
      %p81 = por %p79, %p80
      %p82 = scmp.ne.s32.totalorder %s70, %s71
      %p83 = scmp.eq.s32.totalorder %s19, 1
      %p84 = por %p82, %p83
      %p86 = scmp.ne.s32.totalorder %s71, %s85
      %p87 = scmp.eq.s32.totalorder %s19, 0
      %p88 = por %p86, %p87
      %s90 = sadd.s32 %s89, 1
      %p93 = scmp.eq.s32.totalorder %s13, 1
      %p94 = scmp.ne.s32.totalorder %s89, %s91
      %p95 = scmp.eq.s32.totalorder %s13, 0
      %p96 = por %p94, %p95
      %p97 = scmp.ne.s32.totalorder %s89, %s91
      %p98 = scmp.eq.s32.totalorder %s18, 1
      %p99 = por %p97, %p98
      %p100 = scmp.ne.s32.totalorder %s91, %s92
      %p101 = scmp.eq.s32.totalorder %s18, 0
      %p102 = por %p100, %p101
      %p103 = scmp.ne.s32.totalorder %s91, %s92
      %p104 = scmp.eq.s32.totalorder %s19, 1
      %p105 = por %p103, %p104
      %p107 = scmp.ne.s32.totalorder %s92, %s106
      %p108 = scmp.eq.s32.totalorder %s19, 0
      %p109 = por %p107, %p108
      %s110 = ssub.s32 %s13, %s20
      %p111 = scmp.eq.s32.totalorder %s110, 0
      %s113 = sadd.s32 %s112, 1
      %s114 = scalar_select %p111, %s112, %s113
      %p117 = pneg %p111
      %p118 = scmp.eq.s32.totalorder %s13, 1
      %p119 = por %p117, %p118
      %p120 = scmp.ne.s32.totalorder %s112, %s115
      %p121 = scmp.eq.s32.totalorder %s13, 0
      %p122 = por %p120, %p121
      %p123 = scmp.ne.s32.totalorder %s112, %s115
      %p124 = scmp.eq.s32.totalorder %s18, 1
      %p125 = por %p123, %p124
      %p126 = scmp.ne.s32.totalorder %s115, %s116
      %p127 = scmp.eq.s32.totalorder %s18, 0
      %p128 = por %p126, %p127
      %p129 = scmp.ne.s32.totalorder %s115, %s116
      %p130 = scmp.eq.s32.totalorder %s19, 1
      %p131 = por %p129, %p130
      %p133 = scmp.ne.s32.totalorder %s116, %s132
      %p134 = scmp.eq.s32.totalorder %s19, 0
      %p135 = por %p133, %p134
      %s136 = ssub.s32 %s13, %s20
      %p137 = scmp.eq.s32.totalorder %s136, 0
      %s139 = sadd.s32 %s138, 1
      %s140 = scalar_select %p137, %s138, %s139
      %p143 = pneg %p137
      %p144 = scmp.eq.s32.totalorder %s13, 1
      %p145 = por %p143, %p144
      %p146 = scmp.ne.s32.totalorder %s138, %s141
      %p147 = scmp.eq.s32.totalorder %s13, 0
      %p148 = por %p146, %p147
      %p149 = scmp.ne.s32.totalorder %s138, %s141
      %p150 = scmp.eq.s32.totalorder %s18, 1
      %p151 = por %p149, %p150
      %p152 = scmp.ne.s32.totalorder %s141, %s142
      %p153 = scmp.eq.s32.totalorder %s18, 0
      %p154 = por %p152, %p153
      %p155 = scmp.ne.s32.totalorder %s141, %s142
      %p156 = scmp.eq.s32.totalorder %s19, 1
      %p157 = por %p155, %p156
      %p159 = scmp.ne.s32.totalorder %s142, %s158
      %p160 = scmp.eq.s32.totalorder %s19, 0
      %p161 = por %p159, %p160
      %p162 = scmp.le.s32.totalorder 1, %s13
      %p163 = scmp.lt.s32.totalorder %s13, 3
      %p164 = pnand %p162, %p163
      %p165 = pneg %p164
      // Predicated region
      $region9: #{encoder_cnn_forward.30} parent=5 // pred_check
        _
      $region10: #{encoder_cnn_forward.30} parent=5 // pred_check_branch
        %167 = sbr.rel (%p164) target = $region12
      $region11: #{encoder_cnn_forward.30} parent=5 // pred_region
        %s168 = ssub.s32 %s13, 1
        // Predicated region
        $region13: #{encoder_cnn_forward.30} parent=11 // pred_check
          %p169 = pneg %p60
        $region14: #{encoder_cnn_forward.30} parent=11 // pred_check_branch
          %171 = sbr.rel (%p169) target = $region16
        $region15: #{encoder_cnn_forward.30} parent=11 // pred_region
          _
        $region16: #{encoder_cnn_forward.30} parent=11 // pred_fallthru
          _
        // Predicated region
        $region17: #{encoder_cnn_forward.30} parent=11 // pred_check
          %p172 = pneg %p81
        $region18: #{encoder_cnn_forward.30} parent=11 // pred_check_branch
          %174 = sbr.rel (%p172) target = $region20
        $region19: #{encoder_cnn_forward.30} parent=11 // pred_region
          %176 = vsyncadd [#allocation3], 0
          %s178 = sshll.u32 %s2, 4
          %s179 = int_to_ptr.hbm [resolvable:$true] %s178
          %s180 = sshll.u32 [#allocation2], 4
          %s181 = int_to_ptr.vmem [resolvable:$true] %s180
          %183 = dma.hbm_to_vmem [thread:$0]  %s179, 16, %s181, [#allocation3]
        $region20: #{encoder_cnn_forward.30} parent=11 // pred_fallthru
          _
        // Predicated region
        $region21: #{encoder_cnn_forward.30} parent=11 // pred_check
          %p184 = pneg %p102
        $region22: #{encoder_cnn_forward.30} parent=11 // pred_check_branch
          %186 = sbr.rel (%p184) target = $region24
        $region23: #{encoder_cnn_forward.30} parent=11 // pred_region
          %188 = vsyncadd [#allocation5], 0
          %s190 = sshll.u32 %s3, 4
          %s191 = int_to_ptr.hbm [resolvable:$true] %s190
          %s192 = sshll.u32 [#allocation4], 4
          %s193 = int_to_ptr.vmem [resolvable:$true] %s192
          %195 = dma.hbm_to_vmem [thread:$0]  %s191, 16, %s193, [#allocation5]
        $region24: #{encoder_cnn_forward.30} parent=11 // pred_fallthru
          _
      $region12: #{encoder_cnn_forward.30} parent=5 // pred_fallthru
        _
      %p196 = scmp.lt.s32.totalorder %s13, 2
      // Predicated region
      $region25: #{encoder_cnn_forward.30} parent=5 // pred_check
        %p197 = pneg %p196
      $region26: #{encoder_cnn_forward.30} parent=5 // pred_check_branch
        %199 = sbr.rel (%p197) target = $region28
      $region27: #{encoder_cnn_forward.30} parent=5 // pred_region
        // Predicated region
        $region29: #{encoder_cnn_forward.30} parent=27 // pred_check
          %p200 = pneg %p33
        $region30: #{encoder_cnn_forward.30} parent=27 // pred_check_branch
          %202 = sbr.rel (%p200) target = $region32
        $region31: #{encoder_cnn_forward.30} parent=27 // pred_region
          %s203 = smul.u32 2, %s13
          %p204 = scmp.lt.s32.totalorder %s203, 3
          %s205 = scalar_select %p204, %s203, 3
          %s206 = smul.addr %s205, 2
          %s207 = smul.addr %s206, 4
          %s208 = scalar_lea.vmem %s0, %s207
          %s209 = smul.u32 2, %s13
        $region32: #{encoder_cnn_forward.30} parent=27 // pred_fallthru
          _
        // Predicated region
        $region33: #{encoder_cnn_forward.30} parent=27 // pred_check
          %p210 = pneg %p122
        $region34: #{encoder_cnn_forward.30} parent=27 // pred_check_branch
          %212 = sbr.rel (%p210) target = $region36
        $region35: #{encoder_cnn_forward.30} parent=27 // pred_region
          %s213 = smul.u32 2, %s13
          %p214 = scmp.lt.s32.totalorder %s213, 3
          %s215 = scalar_select %p214, %s213, 3
          %s216 = smul.addr %s215, 4
          %s217 = scalar_lea.vmem %s4, %s216
          %s218 = smul.u32 2, %s13
        $region36: #{encoder_cnn_forward.30} parent=27 // pred_fallthru
          _
      $region28: #{encoder_cnn_forward.30} parent=5 // pred_fallthru
        _
      %p219 = scmp.le.s32.totalorder 1, %s13
      %p220 = scmp.lt.s32.totalorder %s13, 3
      %p221 = pnand %p219, %p220
      %p222 = pneg %p221
      // Predicated region
      $region37: #{encoder_cnn_forward.30} parent=5 // pred_check
        _
      $region38: #{encoder_cnn_forward.30} parent=5 // pred_check_branch
        %224 = sbr.rel (%p221) target = $region40
      $region39: #{encoder_cnn_forward.30} parent=5 // pred_region
        %s225 = ssub.s32 %s13, 1
        // Predicated region
        $region41: #{encoder_cnn_forward.30} parent=39 // pred_check
          %p226 = pneg %p81
        $region42: #{encoder_cnn_forward.30} parent=39 // pred_check_branch
          %228 = sbr.rel (%p226) target = $region44
        $region43: #{encoder_cnn_forward.30} parent=39 // pred_region
          %230 = dma.done [#allocation3], 16
        $region44: #{encoder_cnn_forward.30} parent=39 // pred_fallthru
          _
        // Predicated region
        $region45: #{encoder_cnn_forward.30} parent=39 // pred_check
          %p231 = pneg %p102
        $region46: #{encoder_cnn_forward.30} parent=39 // pred_check_branch
          %233 = sbr.rel (%p231) target = $region48
        $region47: #{encoder_cnn_forward.30} parent=39 // pred_region
          %235 = dma.done [#allocation5], 16
        $region48: #{encoder_cnn_forward.30} parent=39 // pred_fallthru
          _
        %s236 = smul.u32 2, %s18
        %p237 = scmp.lt.s32.totalorder %s236, 3
        %s238 = scalar_select %p237, %s236, 3
        %s239 = smul.addr %s238, 2
        %s240 = smul.addr %s239, 4
        %s241 = scalar_lea.vmem %s0, %s240
        %p242 = pneg %p39
        %p243 = pneg %p36
        %p244 = pneg %p60
        %p245 = pneg %p57
        %p246 = pneg %p81
        %p247 = pneg %p78
        %p248 = pneg %p102
        %p249 = pneg %p99
        %s250 = smul.u32 2, %s18
        %p251 = scmp.lt.s32.totalorder %s250, 3
        %s252 = scalar_select %p251, %s250, 3
        %s253 = smul.addr %s252, 4
        %s254 = scalar_lea.vmem %s4, %s253
        %p255 = pneg %p128
        %p256 = pneg %p125
        %p257 = pneg %p154
        %p258 = pneg %p151
        %s259 = smul.u32 2, %s18
        %p260 = scmp.lt.s32.totalorder %s259, 3
        %s261 = scalar_select %p260, %s259, 3
        %s262 = smul.addr %s261, 4
        %s263 = scalar_lea.vmem %s5, %s262
        %s264 = smul.u32 2, %s18
        %p265 = scmp.lt.s32.totalorder %s264, 3
        %s266 = scalar_select %p265, %s264, 3
        %s267 = smul.addr %s266, 2
        %s268 = smul.addr %s267, 4
        %s269 = scalar_lea.vmem %s0, %s268
        %s270 = smul.u32 2, %s18
        %s271 = smul.u32 2, %s18
        %p272 = scmp.lt.s32.totalorder %s271, 3
        %s273 = scalar_select %p272, %s271, 3
        %s274 = smul.addr %s273, 4
        %s275 = scalar_lea.vmem %s4, %s274
        %s276 = smul.u32 2, %s18
        %s277 = smul.u32 2, %s18
        %p278 = scmp.lt.s32.totalorder %s277, 3
        %s279 = scalar_select %p278, %s277, 3
        %s280 = smul.addr %s279, 4
        %s281 = scalar_lea.vmem %s5, %s280
        %s282 = smul.u32 2, %s18
        %v283 = vld [vmem:[%s269] sm:$0xff]
        %v284 = vld [vmem:[%s269 + $0x8] sm:$0xff]
        %v285 = vld [vmem:[%s1] sm:$0xf]
        %v286 = vld [vmem:[%s1 + $0x4] sm:$0xf]
        %v287 = vld [vmem:[%s1 + $0x8] sm:$0xf]
        %v288 = vld [vmem:[%s1 + $0xc] sm:$0xf]
        %v289 = vld [vmem:[%s1 + $0x10] sm:$0xf]
        %v290 = vld [vmem:[%s1 + $0x14] sm:$0xf]
        %v291 = vld [vmem:[%s1 + $0x18] sm:$0xf]
        %v292 = vld [vmem:[%s1 + $0x1c] sm:$0xf]
        %v293 = vld [vmem:[%s1 + $0x20] sm:$0xf]
        %v294 = vld [vmem:[%s1 + $0x24] sm:$0xf]
        %v295 = vld [vmem:[%s1 + $0x28] sm:$0xf]
        %v296 = vld [vmem:[%s1 + $0x2c] sm:$0xf]
        %v297 = vld [vmem:[%s1 + $0x30] sm:$0xf]
        %v298 = vld [vmem:[%s1 + $0x34] sm:$0xf]
        %v299 = vld [vmem:[%s1 + $0x38] sm:$0xf]
        %v300 = vld [vmem:[%s1 + $0x3c] sm:$0xf]
        %v301 = vld [vmem:[%s1 + $0x40] sm:$0xf]
        %v302 = vld [vmem:[%s1 + $0x44] sm:$0xf]
        %v303 = vld [vmem:[%s1 + $0x48] sm:$0xf]
        %v304 = vld [vmem:[%s1 + $0x4c] sm:$0xf]
        %v305 = vld [vmem:[%s1 + $0x50] sm:$0xf]
        %v306 = vld [vmem:[%s1 + $0x54] sm:$0xf]
        %v307 = vld [vmem:[%s1 + $0x58] sm:$0xf]
        %v308 = vld [vmem:[%s1 + $0x5c] sm:$0xf]
        %v309 = vld [vmem:[%s1 + $0x60] sm:$0xf]
        %v310 = vld [vmem:[%s1 + $0x64] sm:$0xf]
        %v311 = vld [vmem:[%s1 + $0x68] sm:$0xf]
        %v312 = vld [vmem:[%s1 + $0x6c] sm:$0xf]
        %v313 = vld [vmem:[%s1 + $0x70] sm:$0xf]
        %v314 = vld [vmem:[%s1 + $0x74] sm:$0xf]
        %v315 = vld [vmem:[%s1 + $0x78] sm:$0xf]
        %v316 = vld [vmem:[%s1 + $0x7c] sm:$0xf]
        %v319 = vunpack.c.l.b16 %v283
        %v320 = vunpack.c.h.b16 %v283
        %v321 = vunpack.c.l.b16 %v284
        %v322 = vunpack.c.h.b16 %v284
        %v323 = vpack.c.b16 %v321, %v319
        %v324 = vpack.c.b16 %v322, %v320
        %v359 = vunpack.c.l.b16 %v285
        %v360 = vunpack.c.l.b16 %v286
        %v361 = vunpack.c.l.b16 %v287
        %v362 = vunpack.c.l.b16 %v288
        %v363 = vunpack.c.l.b16 %v289
        %v364 = vunpack.c.l.b16 %v290
        %v365 = vunpack.c.l.b16 %v291
        %v366 = vunpack.c.l.b16 %v292
        %v367 = vunpack.c.l.b16 %v293
        %v368 = vunpack.c.l.b16 %v294
        %v369 = vunpack.c.l.b16 %v295
        %v370 = vunpack.c.l.b16 %v296
        %v371 = vunpack.c.l.b16 %v297
        %v372 = vunpack.c.l.b16 %v298
        %v373 = vunpack.c.l.b16 %v299
        %v374 = vunpack.c.l.b16 %v300
        %v375 = vunpack.c.l.b16 %v301
        %v376 = vunpack.c.l.b16 %v302
        %v377 = vunpack.c.l.b16 %v303
        %v378 = vunpack.c.l.b16 %v304
        %v379 = vunpack.c.l.b16 %v305
        %v380 = vunpack.c.l.b16 %v306
        %v381 = vunpack.c.l.b16 %v307
        %v382 = vunpack.c.l.b16 %v308
        %v383 = vunpack.c.l.b16 %v309
        %v384 = vunpack.c.l.b16 %v310
        %v385 = vunpack.c.l.b16 %v311
        %v386 = vunpack.c.l.b16 %v312
        %v387 = vunpack.c.l.b16 %v313
        %v388 = vunpack.c.l.b16 %v314
        %v389 = vunpack.c.l.b16 %v315
        %v390 = vunpack.c.l.b16 %v316
        %v391 = vpack.c.b16 %v360, %v359
        %v392 = vpack.c.b16 %v362, %v361
        %v393 = vpack.c.b16 %v364, %v363
        %v394 = vpack.c.b16 %v366, %v365
        %v395 = vpack.c.b16 %v368, %v367
        %v396 = vpack.c.b16 %v370, %v369
        %v397 = vpack.c.b16 %v372, %v371
        %v398 = vpack.c.b16 %v374, %v373
        %v399 = vpack.c.b16 %v376, %v375
        %v400 = vpack.c.b16 %v378, %v377
        %v401 = vpack.c.b16 %v380, %v379
        %v402 = vpack.c.b16 %v382, %v381
        %v403 = vpack.c.b16 %v384, %v383
        %v404 = vpack.c.b16 %v386, %v385
        %v405 = vpack.c.b16 %v388, %v387
        %v406 = vpack.c.b16 %v390, %v389
        %423 = vmatpush.bf16.msra.mxu0 %v398
        %424 = vmatpush.bf16.msra.mxu0 %v397
        %425 = vmatpush.bf16.msra.mxu0 %v396
        %426 = vmatpush.bf16.msra.mxu0 %v395
        %427 = vmatpush.bf16.msra.mxu0 %v394
        %428 = vmatpush.bf16.msra.mxu0 %v393
        %429 = vmatpush.bf16.msra.mxu0 %v392
        %430 = vmatpush.bf16.msra.mxu0 %v391
        %431 = vmatmul.bf16.gmra.mxu0 %v323
        %v432 = vpop.f32.mrf.mxu0
        %v433 = vadd.f32 0.0, %v432
        %v434 = vpop.f32.mrf.mxu0
        %v435 = vadd.f32 0.0, %v434
        %436 = vdwg.mxu0
        %437 = vmatpush.bf16.msra.mxu0 %v406
        %438 = vmatpush.bf16.msra.mxu0 %v405
        %439 = vmatpush.bf16.msra.mxu0 %v404
        %440 = vmatpush.bf16.msra.mxu0 %v403
        %441 = vmatpush.bf16.msra.mxu0 %v402
        %442 = vmatpush.bf16.msra.mxu0 %v401
        %443 = vmatpush.bf16.msra.mxu0 %v400
        %444 = vmatpush.bf16.msra.mxu0 %v399
        %445 = vmatmul.bf16.gmra.mxu0 %v324
        %v446 = vpop.f32.mrf.mxu0
        %v447 = vadd.f32 %v433, %v446
        %v448 = vpop.f32.mrf.mxu0
        %v449 = vadd.f32 %v435, %v448
        %450 = vdwg.mxu0
        %v451 = vld [vmem:[#allocation2] sm:$0x1]
        %v453 = vperm.slane %v451, 0
        %v455 = vmul.f32 %v447, %v453
        %v456 = vmul.f32 %v449, %v453
        %v457 = vld [vmem:[#allocation4] sm:$0x1]
        %v459 = vperm.slane %v457, 0
        %v461 = vadd.f32 %v455, %v459
        %v462 = vadd.f32 %v456, %v459
        %v463 = vld [vmem:[%s275] sm:$0xf]
        %v464 = vld [vmem:[%s275 + $0x4] sm:$0xf]
        %v465 = vunpack.c.l.bf16 %v463
        %v466 = vunpack.c.l.bf16 %v464
        %v467 = vadd.f32 %v461, %v465
        %v468 = vadd.f32 %v462, %v466
        %v469 = vmax.f32 %v467, 0.0
        %v470 = vmax.f32 %v468, 0.0
        %v471 = vpack.c.bf16 %v469, %v469
        %v472 = vpack.c.bf16 %v470, %v470
        %473 = vst [vmem:[%s281] sm:$0xf] %v471
        %474 = vst [vmem:[%s281 + $0x4] sm:$0xf] %v472
        %s475 = smul.u32 2, %s18
        %p476 = scmp.lt.s32.totalorder %s475, 3
        %s477 = scalar_select %p476, %s475, 3
        %s478 = smul.addr %s477, 4
        %s479 = scalar_lea.vmem %s5, %s478
        // Predicated region
        $region49: #{encoder_cnn_forward.30} parent=39 // pred_check
          %p480 = pneg %p151
        $region50: #{encoder_cnn_forward.30} parent=39 // pred_check_branch
          %482 = sbr.rel (%p480) target = $region52
        $region51: #{encoder_cnn_forward.30} parent=39 // pred_region
          %s483 = smul.u32 2, %s18
        $region52: #{encoder_cnn_forward.30} parent=39 // pred_fallthru
          _
      $region40: #{encoder_cnn_forward.30} parent=5 // pred_fallthru
        _
      %p484 = scmp.le.s32.totalorder 2, %s13
      // Predicated region
      $region53: #{encoder_cnn_forward.30} parent=5 // pred_check
        %p485 = pneg %p484
      $region54: #{encoder_cnn_forward.30} parent=5 // pred_check_branch
        %487 = sbr.rel (%p485) target = $region56
      $region55: #{encoder_cnn_forward.30} parent=5 // pred_region
        %s488 = ssub.s32 %s13, 2
        // Predicated region
        $region57: #{encoder_cnn_forward.30} parent=55 // pred_check
          %p489 = pneg %p157
        $region58: #{encoder_cnn_forward.30} parent=55 // pred_check_branch
          %491 = sbr.rel (%p489) target = $region60
        $region59: #{encoder_cnn_forward.30} parent=55 // pred_region
          %s492 = smul.u32 2, %s19
          %p493 = scmp.lt.s32.totalorder %s492, 3
          %s494 = scalar_select %p493, %s492, 3
          %s495 = smul.addr %s494, 4
          %s496 = scalar_lea.vmem %s5, %s495
        $region60: #{encoder_cnn_forward.30} parent=55 // pred_fallthru
          _
      $region56: #{encoder_cnn_forward.30} parent=5 // pred_fallthru
        _
    $region6: #{encoder_cnn_forward.30} parent=1 // loop_footer
      %s17 = sadd.s32 1, %s13
    $region7: #{encoder_cnn_forward.30} parent=1 // loop_footer_branch
      %12 = sbr.rel target = $region3
    $region8: #{encoder_cnn_forward.30} parent=1 // loop_exit
      _
    %497 = vsyncpa [#allocation3], 1
    %s498 = scalar_lea.sflag [#allocation3], 1
    %499 = vsyncpa %s498, 1
    %500 = vsyncpa [#allocation5], 1

// kernel: encoder_cnn_forward.29
$region0: #{encoder_cnn_forward.29}
  #allocation0 [shape = 'u32[]', space=smem, size = 0x4, offset = 0x4, fixed_abs, tag = 'smem constant byte address 0x4 - core index']
  #allocation1 [shape = 'u32[72,128]{1,0:T(1,128)}', space=vmem, size = 0x9000, scoped, tag = 'internal scratch']
  %s0 = inlined_call_operand.vmem [shape: bf16[32,128], index: 0, kind: input, shape index: {}]
  %s1 = inlined_call_operand.vmem [shape: bf16[128,128], index: 1, kind: input, shape index: {}]
  %s2 = inlined_call_operand.hbm [shape: f32[1,128], index: 2, kind: input, shape index: {}]
  %s3 = inlined_call_operand.hbm [shape: f32[1,128], index: 3, kind: input, shape index: {}]
  %s4 = inlined_call_operand.vmem [shape: bf16[32,128], index: 4, kind: output, shape index: {}]
  %s5 = sld [smem:[#allocation0]]
  $region57: #{encoder_cnn_forward.29} parent=0
    _
  %s7 = ssub.s32 1, %s5
  %s8 = scalar_select 0, %s7, %s5
  $region1: #{encoder_cnn_forward.29} parent=0
    #allocation2 [shape = 'u8[512]{0}', space=vmem, size = 0x400, scoped, tag = 'input window, operand 2, single buffered']
    #allocation3 [shape = 's32[2]{0}', space=sflag, size = 0x8, scoped, tag = 'scoped memory for encoder_cnn_forward.29']
    #allocation4 [shape = 'u8[512]{0}', space=vmem, size = 0x400, scoped, tag = 'input window, operand 3, single buffered']
    #allocation5 [shape = 's32[1]{0}', space=sflag, size = 0x4, scoped, tag = 'scoped memory for encoder_cnn_forward.29']
    %9 = vsyncpa [#allocation3], 0
    %10 = vsyncpa [#allocation5], 0
    loop: start=0, step=1, limit=4
    $region2: #{encoder_cnn_forward.29} parent=1 // loop_pre_header
      _
    $region3: #{encoder_cnn_forward.29} parent=1 // loop_header
      %s12 = sphi 0, %s16
      %p13 = scmp.ge.s32.totalorder %s12, 4
      %s22 = sphi 0, %s24
      %s25 = sphi 0, %s22
      %s26 = sphi 0, %s25
      %s42 = sphi 0, %s26
      %s46 = sphi 0, %s46
      %s48 = sphi 0, %s46
      %s49 = sphi 0, %s48
      %s63 = sphi 0, %s49
      %s67 = sphi 0, %s67
      %s69 = sphi 0, %s67
      %s70 = sphi 0, %s69
      %s84 = sphi 0, %s70
      %s88 = sphi 0, %s88
      %s90 = sphi 0, %s88
      %s91 = sphi 0, %s90
      %s105 = sphi 0, %s91
      %s111 = sphi 0, %s113
      %s114 = sphi 0, %s111
      %s115 = sphi 0, %s114
      %s131 = sphi 0, %s115
    $region4: #{encoder_cnn_forward.29} parent=1 // loop_header_branch
      %15 = sbr.rel (%p13) target = $region8
    $region5: #{encoder_cnn_forward.29} parent=1 // loop_body
      %s17 = ssub.s32 %s12, 1
      %s18 = ssub.s32 %s12, 2
      %s19 = sadd.s32 %s12, 1
      %s20 = ssub.s32 %s12, %s19
      %p21 = scmp.eq.s32.totalorder %s20, 0
      %s23 = sadd.s32 %s22, 1
      %s24 = scalar_select %p21, %s22, %s23
      %p27 = pneg %p21
      %p28 = scmp.eq.s32.totalorder %s12, 1
      %p29 = por %p27, %p28
      %p30 = scmp.ne.s32.totalorder %s22, %s25
      %p31 = scmp.eq.s32.totalorder %s12, 0
      %p32 = por %p30, %p31
      %p33 = scmp.ne.s32.totalorder %s22, %s25
      %p34 = scmp.eq.s32.totalorder %s17, 1
      %p35 = por %p33, %p34
      %p36 = scmp.ne.s32.totalorder %s25, %s26
      %p37 = scmp.eq.s32.totalorder %s17, 0
      %p38 = por %p36, %p37
      %p39 = scmp.ne.s32.totalorder %s25, %s26
      %p40 = scmp.eq.s32.totalorder %s18, 1
      %p41 = por %p39, %p40
      %p43 = scmp.ne.s32.totalorder %s26, %s42
      %p44 = scmp.eq.s32.totalorder %s18, 0
      %p45 = por %p43, %p44
      %s47 = sadd.s32 %s46, 1
      %p50 = scmp.eq.s32.totalorder %s12, 1
      %p51 = scmp.ne.s32.totalorder %s46, %s48
      %p52 = scmp.eq.s32.totalorder %s12, 0
      %p53 = por %p51, %p52
      %p54 = scmp.ne.s32.totalorder %s46, %s48
      %p55 = scmp.eq.s32.totalorder %s17, 1
      %p56 = por %p54, %p55
      %p57 = scmp.ne.s32.totalorder %s48, %s49
      %p58 = scmp.eq.s32.totalorder %s17, 0
      %p59 = por %p57, %p58
      %p60 = scmp.ne.s32.totalorder %s48, %s49
      %p61 = scmp.eq.s32.totalorder %s18, 1
      %p62 = por %p60, %p61
      %p64 = scmp.ne.s32.totalorder %s49, %s63
      %p65 = scmp.eq.s32.totalorder %s18, 0
      %p66 = por %p64, %p65
      %s68 = sadd.s32 %s67, 1
      %p71 = scmp.eq.s32.totalorder %s12, 1
      %p72 = scmp.ne.s32.totalorder %s67, %s69
      %p73 = scmp.eq.s32.totalorder %s12, 0
      %p74 = por %p72, %p73
      %p75 = scmp.ne.s32.totalorder %s67, %s69
      %p76 = scmp.eq.s32.totalorder %s17, 1
      %p77 = por %p75, %p76
      %p78 = scmp.ne.s32.totalorder %s69, %s70
      %p79 = scmp.eq.s32.totalorder %s17, 0
      %p80 = por %p78, %p79
      %p81 = scmp.ne.s32.totalorder %s69, %s70
      %p82 = scmp.eq.s32.totalorder %s18, 1
      %p83 = por %p81, %p82
      %p85 = scmp.ne.s32.totalorder %s70, %s84
      %p86 = scmp.eq.s32.totalorder %s18, 0
      %p87 = por %p85, %p86
      %s89 = sadd.s32 %s88, 1
      %p92 = scmp.eq.s32.totalorder %s12, 1
      %p93 = scmp.ne.s32.totalorder %s88, %s90
      %p94 = scmp.eq.s32.totalorder %s12, 0
      %p95 = por %p93, %p94
      %p96 = scmp.ne.s32.totalorder %s88, %s90
      %p97 = scmp.eq.s32.totalorder %s17, 1
      %p98 = por %p96, %p97
      %p99 = scmp.ne.s32.totalorder %s90, %s91
      %p100 = scmp.eq.s32.totalorder %s17, 0
      %p101 = por %p99, %p100
      %p102 = scmp.ne.s32.totalorder %s90, %s91
      %p103 = scmp.eq.s32.totalorder %s18, 1
      %p104 = por %p102, %p103
      %p106 = scmp.ne.s32.totalorder %s91, %s105
      %p107 = scmp.eq.s32.totalorder %s18, 0
      %p108 = por %p106, %p107
      %s109 = ssub.s32 %s12, %s19
      %p110 = scmp.eq.s32.totalorder %s109, 0
      %s112 = sadd.s32 %s111, 1
      %s113 = scalar_select %p110, %s111, %s112
      %p116 = pneg %p110
      %p117 = scmp.eq.s32.totalorder %s12, 1
      %p118 = por %p116, %p117
      %p119 = scmp.ne.s32.totalorder %s111, %s114
      %p120 = scmp.eq.s32.totalorder %s12, 0
      %p121 = por %p119, %p120
      %p122 = scmp.ne.s32.totalorder %s111, %s114
      %p123 = scmp.eq.s32.totalorder %s17, 1
      %p124 = por %p122, %p123
      %p125 = scmp.ne.s32.totalorder %s114, %s115
      %p126 = scmp.eq.s32.totalorder %s17, 0
      %p127 = por %p125, %p126
      %p128 = scmp.ne.s32.totalorder %s114, %s115
      %p129 = scmp.eq.s32.totalorder %s18, 1
      %p130 = por %p128, %p129
      %p132 = scmp.ne.s32.totalorder %s115, %s131
      %p133 = scmp.eq.s32.totalorder %s18, 0
      %p134 = por %p132, %p133
      %p135 = scmp.le.s32.totalorder 1, %s12
      %p136 = scmp.lt.s32.totalorder %s12, 3
      %p137 = pnand %p135, %p136
      %p138 = pneg %p137
      // Predicated region
      $region9: #{encoder_cnn_forward.29} parent=5 // pred_check
        _
      $region10: #{encoder_cnn_forward.29} parent=5 // pred_check_branch
        %140 = sbr.rel (%p137) target = $region12
      $region11: #{encoder_cnn_forward.29} parent=5 // pred_region
        %s141 = ssub.s32 %s12, 1
        // Predicated region
        $region13: #{encoder_cnn_forward.29} parent=11 // pred_check
          %p142 = pneg %p59
        $region14: #{encoder_cnn_forward.29} parent=11 // pred_check_branch
          %144 = sbr.rel (%p142) target = $region16
        $region15: #{encoder_cnn_forward.29} parent=11 // pred_region
          _
        $region16: #{encoder_cnn_forward.29} parent=11 // pred_fallthru
          _
        // Predicated region
        $region17: #{encoder_cnn_forward.29} parent=11 // pred_check
          %p145 = pneg %p80
        $region18: #{encoder_cnn_forward.29} parent=11 // pred_check_branch
          %147 = sbr.rel (%p145) target = $region20
        $region19: #{encoder_cnn_forward.29} parent=11 // pred_region
          %149 = vsyncadd [#allocation3], 0
          %s151 = sshll.u32 %s2, 4
          %s152 = int_to_ptr.hbm [resolvable:$true] %s151
          %s153 = sshll.u32 [#allocation2], 4
          %s154 = int_to_ptr.vmem [resolvable:$true] %s153
          %156 = dma.hbm_to_vmem [thread:$0]  %s152, 16, %s154, [#allocation3]
        $region20: #{encoder_cnn_forward.29} parent=11 // pred_fallthru
          _
        // Predicated region
        $region21: #{encoder_cnn_forward.29} parent=11 // pred_check
          %p157 = pneg %p101
        $region22: #{encoder_cnn_forward.29} parent=11 // pred_check_branch
          %159 = sbr.rel (%p157) target = $region24
        $region23: #{encoder_cnn_forward.29} parent=11 // pred_region
          %161 = vsyncadd [#allocation5], 0
          %s163 = sshll.u32 %s3, 4
          %s164 = int_to_ptr.hbm [resolvable:$true] %s163
          %s165 = sshll.u32 [#allocation4], 4
          %s166 = int_to_ptr.vmem [resolvable:$true] %s165
          %168 = dma.hbm_to_vmem [thread:$0]  %s164, 16, %s166, [#allocation5]
        $region24: #{encoder_cnn_forward.29} parent=11 // pred_fallthru
          _
      $region12: #{encoder_cnn_forward.29} parent=5 // pred_fallthru
        _
      %p169 = scmp.lt.s32.totalorder %s12, 2
      // Predicated region
      $region25: #{encoder_cnn_forward.29} parent=5 // pred_check
        %p170 = pneg %p169
      $region26: #{encoder_cnn_forward.29} parent=5 // pred_check_branch
        %172 = sbr.rel (%p170) target = $region28
      $region27: #{encoder_cnn_forward.29} parent=5 // pred_region
        // Predicated region
        $region29: #{encoder_cnn_forward.29} parent=27 // pred_check
          %p173 = pneg %p32
        $region30: #{encoder_cnn_forward.29} parent=27 // pred_check_branch
          %175 = sbr.rel (%p173) target = $region32
        $region31: #{encoder_cnn_forward.29} parent=27 // pred_region
          %s176 = smul.u32 2, %s12
          %p177 = scmp.lt.s32.totalorder %s176, 3
          %s178 = scalar_select %p177, %s176, 3
          %s179 = smul.addr %s178, 4
          %s180 = scalar_lea.vmem %s0, %s179
          %s181 = smul.u32 2, %s12
        $region32: #{encoder_cnn_forward.29} parent=27 // pred_fallthru
          _
      $region28: #{encoder_cnn_forward.29} parent=5 // pred_fallthru
        _
      %p182 = scmp.le.s32.totalorder 1, %s12
      %p183 = scmp.lt.s32.totalorder %s12, 3
      %p184 = pnand %p182, %p183
      %p185 = pneg %p184
      // Predicated region
      $region33: #{encoder_cnn_forward.29} parent=5 // pred_check
        _
      $region34: #{encoder_cnn_forward.29} parent=5 // pred_check_branch
        %187 = sbr.rel (%p184) target = $region36
      $region35: #{encoder_cnn_forward.29} parent=5 // pred_region
        %s188 = ssub.s32 %s12, 1
        // Predicated region
        $region37: #{encoder_cnn_forward.29} parent=35 // pred_check
          %p189 = pneg %p80
        $region38: #{encoder_cnn_forward.29} parent=35 // pred_check_branch
          %191 = sbr.rel (%p189) target = $region40
        $region39: #{encoder_cnn_forward.29} parent=35 // pred_region
          %193 = dma.done [#allocation3], 16
        $region40: #{encoder_cnn_forward.29} parent=35 // pred_fallthru
          _
        // Predicated region
        $region41: #{encoder_cnn_forward.29} parent=35 // pred_check
          %p194 = pneg %p101
        $region42: #{encoder_cnn_forward.29} parent=35 // pred_check_branch
          %196 = sbr.rel (%p194) target = $region44
        $region43: #{encoder_cnn_forward.29} parent=35 // pred_region
          %198 = dma.done [#allocation5], 16
        $region44: #{encoder_cnn_forward.29} parent=35 // pred_fallthru
          _
        %s199 = smul.u32 2, %s17
        %p200 = scmp.lt.s32.totalorder %s199, 3
        %s201 = scalar_select %p200, %s199, 3
        %s202 = smul.addr %s201, 4
        %s203 = scalar_lea.vmem %s0, %s202
        %p204 = pneg %p38
        %p205 = pneg %p35
        %p206 = pneg %p59
        %p207 = pneg %p56
        %p208 = pneg %p80
        %p209 = pneg %p77
        %p210 = pneg %p101
        %p211 = pneg %p98
        %p212 = pneg %p127
        %p213 = pneg %p124
        %s214 = smul.u32 2, %s17
        %p215 = scmp.lt.s32.totalorder %s214, 3
        %s216 = scalar_select %p215, %s214, 3
        %s217 = smul.addr %s216, 4
        %s218 = scalar_lea.vmem %s4, %s217
        %s219 = smul.u32 2, %s17
        %p220 = scmp.lt.s32.totalorder %s219, 3
        %s221 = scalar_select %p220, %s219, 3
        %s222 = smul.addr %s221, 4
        %s223 = scalar_lea.vmem %s0, %s222
        %s224 = smul.u32 2, %s17
        %s225 = smul.u32 2, %s17
        %p226 = scmp.lt.s32.totalorder %s225, 3
        %s227 = scalar_select %p226, %s225, 3
        %s228 = smul.addr %s227, 4
        %s229 = scalar_lea.vmem %s4, %s228
        %s230 = smul.u32 2, %s17
        %v231 = vld [vmem:[%s223] sm:$0xf]
        %v232 = vld [vmem:[%s223 + $0x4] sm:$0xf]
        %v233 = vld [vmem:[%s1] sm:$0xf]
        %v234 = vld [vmem:[%s1 + $0x4] sm:$0xf]
        %v235 = vld [vmem:[%s1 + $0x8] sm:$0xf]
        %v236 = vld [vmem:[%s1 + $0xc] sm:$0xf]
        %v237 = vld [vmem:[%s1 + $0x10] sm:$0xf]
        %v238 = vld [vmem:[%s1 + $0x14] sm:$0xf]
        %v239 = vld [vmem:[%s1 + $0x18] sm:$0xf]
        %v240 = vld [vmem:[%s1 + $0x1c] sm:$0xf]
        %v241 = vld [vmem:[%s1 + $0x20] sm:$0xf]
        %v242 = vld [vmem:[%s1 + $0x24] sm:$0xf]
        %v243 = vld [vmem:[%s1 + $0x28] sm:$0xf]
        %v244 = vld [vmem:[%s1 + $0x2c] sm:$0xf]
        %v245 = vld [vmem:[%s1 + $0x30] sm:$0xf]
        %v246 = vld [vmem:[%s1 + $0x34] sm:$0xf]
        %v247 = vld [vmem:[%s1 + $0x38] sm:$0xf]
        %v248 = vld [vmem:[%s1 + $0x3c] sm:$0xf]
        %v251 = vunpack.c.l.b16 %v231
        %v252 = vunpack.c.l.b16 %v232
        %v253 = vpack.c.b16 %v252, %v251
        %v271 = vunpack.c.l.b16 %v233
        %v272 = vunpack.c.l.b16 %v234
        %v273 = vunpack.c.l.b16 %v235
        %v274 = vunpack.c.l.b16 %v236
        %v275 = vunpack.c.l.b16 %v237
        %v276 = vunpack.c.l.b16 %v238
        %v277 = vunpack.c.l.b16 %v239
        %v278 = vunpack.c.l.b16 %v240
        %v279 = vunpack.c.l.b16 %v241
        %v280 = vunpack.c.l.b16 %v242
        %v281 = vunpack.c.l.b16 %v243
        %v282 = vunpack.c.l.b16 %v244
        %v283 = vunpack.c.l.b16 %v245
        %v284 = vunpack.c.l.b16 %v246
        %v285 = vunpack.c.l.b16 %v247
        %v286 = vunpack.c.l.b16 %v248
        %v287 = vpack.c.b16 %v272, %v271
        %v288 = vpack.c.b16 %v274, %v273
        %v289 = vpack.c.b16 %v276, %v275
        %v290 = vpack.c.b16 %v278, %v277
        %v291 = vpack.c.b16 %v280, %v279
        %v292 = vpack.c.b16 %v282, %v281
        %v293 = vpack.c.b16 %v284, %v283
        %v294 = vpack.c.b16 %v286, %v285
        %303 = vmatpush.bf16.msra.mxu0 %v294
        %304 = vmatpush.bf16.msra.mxu0 %v293
        %305 = vmatpush.bf16.msra.mxu0 %v292
        %306 = vmatpush.bf16.msra.mxu0 %v291
        %307 = vmatpush.bf16.msra.mxu0 %v290
        %308 = vmatpush.bf16.msra.mxu0 %v289
        %309 = vmatpush.bf16.msra.mxu0 %v288
        %310 = vmatpush.bf16.msra.mxu0 %v287
        %311 = vmatmul.bf16.gmra.mxu0 %v253
        %v312 = vpop.f32.mrf.mxu0
        %v313 = vadd.f32 0.0, %v312
        %v314 = vpop.f32.mrf.mxu0
        %v315 = vadd.f32 0.0, %v314
        %316 = vdwg.mxu0
        %v317 = vld [vmem:[#allocation2] sm:$0x1]
        %v319 = vperm.slane %v317, 0
        %v321 = vmul.f32 %v313, %v319
        %v322 = vmul.f32 %v315, %v319
        %v323 = vld [vmem:[#allocation4] sm:$0x1]
        %v325 = vperm.slane %v323, 0
        %v327 = vadd.f32 %v321, %v325
        %v328 = vadd.f32 %v322, %v325
        %v329 = vpack.c.bf16 %v327, %v327
        %v330 = vpack.c.bf16 %v328, %v328
        %331 = vst [vmem:[%s229] sm:$0xf] %v329
        %332 = vst [vmem:[%s229 + $0x4] sm:$0xf] %v330
        %s333 = smul.u32 2, %s17
        %p334 = scmp.lt.s32.totalorder %s333, 3
        %s335 = scalar_select %p334, %s333, 3
        %s336 = smul.addr %s335, 4
        %s337 = scalar_lea.vmem %s4, %s336
        // Predicated region
        $region45: #{encoder_cnn_forward.29} parent=35 // pred_check
          %p338 = pneg %p124
        $region46: #{encoder_cnn_forward.29} parent=35 // pred_check_branch
          %340 = sbr.rel (%p338) target = $region48
        $region47: #{encoder_cnn_forward.29} parent=35 // pred_region
          %s341 = smul.u32 2, %s17
        $region48: #{encoder_cnn_forward.29} parent=35 // pred_fallthru
          _
      $region36: #{encoder_cnn_forward.29} parent=5 // pred_fallthru
        _
      %p342 = scmp.le.s32.totalorder 2, %s12
      // Predicated region
      $region49: #{encoder_cnn_forward.29} parent=5 // pred_check
        %p343 = pneg %p342
      $region50: #{encoder_cnn_forward.29} parent=5 // pred_check_branch
        %345 = sbr.rel (%p343) target = $region52
      $region51: #{encoder_cnn_forward.29} parent=5 // pred_region
        %s346 = ssub.s32 %s12, 2
        // Predicated region
        $region53: #{encoder_cnn_forward.29} parent=51 // pred_check
          %p347 = pneg %p130
        $region54: #{encoder_cnn_forward.29} parent=51 // pred_check_branch
          %349 = sbr.rel (%p347) target = $region56
        $region55: #{encoder_cnn_forward.29} parent=51 // pred_region
          %s350 = smul.u32 2, %s18
          %p351 = scmp.lt.s32.totalorder %s350, 3
          %s352 = scalar_select %p351, %s350, 3
          %s353 = smul.addr %s352, 4
          %s354 = scalar_lea.vmem %s4, %s353
        $region56: #{encoder_cnn_forward.29} parent=51 // pred_fallthru
          _
      $region52: #{encoder_cnn_forward.29} parent=5 // pred_fallthru
        _
    $region6: #{encoder_cnn_forward.29} parent=1 // loop_footer
      %s16 = sadd.s32 1, %s12
    $region7: #{encoder_cnn_forward.29} parent=1 // loop_footer_branch
      %11 = sbr.rel target = $region3
    $region8: #{encoder_cnn_forward.29} parent=1 // loop_exit
      _
    %355 = vsyncpa [#allocation3], 1
    %s356 = scalar_lea.sflag [#allocation3], 1
    %357 = vsyncpa %s356, 1
    %358 = vsyncpa [#allocation5], 1

// kernel: encoder_cnn_forward.31
$region0: #{encoder_cnn_forward.31}
  #allocation0 [shape = 'u32[]', space=smem, size = 0x4, offset = 0x4, fixed_abs, tag = 'smem constant byte address 0x4 - core index']
  #allocation1 [shape = 'u32[72,128]{1,0:T(1,128)}', space=vmem, size = 0x9000, scoped, tag = 'internal scratch']
  %s0 = inlined_call_operand.vmem [shape: bf16[32,256], index: 0, kind: input, shape index: {}]
  %s1 = inlined_call_operand.vmem [shape: bf16[256,128], index: 1, kind: input, shape index: {}]
  %s2 = inlined_call_operand.vmem [shape: f32[1,128], index: 2, kind: input, shape index: {}]
  %s3 = inlined_call_operand.hbm [shape: f32[1,128], index: 3, kind: input, shape index: {}]
  %s4 = inlined_call_operand.vmem [shape: bf16[32,128], index: 4, kind: output, shape index: {}]
  %s5 = sld [smem:[#allocation0]]
  $region53: #{encoder_cnn_forward.31} parent=0
    _
  %s7 = ssub.s32 1, %s5
  %s8 = scalar_select 0, %s7, %s5
  $region1: #{encoder_cnn_forward.31} parent=0
    #allocation2 [shape = 'u8[512]{0}', space=vmem, size = 0x400, scoped, tag = 'input window, operand 3, single buffered']
    #allocation3 [shape = 's32[2]{0}', space=sflag, size = 0x8, scoped, tag = 'scoped memory for encoder_cnn_forward.31']
    %9 = vsyncpa [#allocation3], 0
    loop: start=0, step=1, limit=4
    $region2: #{encoder_cnn_forward.31} parent=1 // loop_pre_header
      _
    $region3: #{encoder_cnn_forward.31} parent=1 // loop_header
      %s11 = sphi 0, %s15
      %p12 = scmp.ge.s32.totalorder %s11, 4
      %s21 = sphi 0, %s23
      %s24 = sphi 0, %s21
      %s25 = sphi 0, %s24
      %s41 = sphi 0, %s25
      %s45 = sphi 0, %s45
      %s47 = sphi 0, %s45
      %s48 = sphi 0, %s47
      %s62 = sphi 0, %s48
      %s66 = sphi 0, %s66
      %s68 = sphi 0, %s66
      %s69 = sphi 0, %s68
      %s83 = sphi 0, %s69
      %s87 = sphi 0, %s87
      %s89 = sphi 0, %s87
      %s90 = sphi 0, %s89
      %s104 = sphi 0, %s90
      %s110 = sphi 0, %s112
      %s113 = sphi 0, %s110
      %s114 = sphi 0, %s113
      %s130 = sphi 0, %s114
    $region4: #{encoder_cnn_forward.31} parent=1 // loop_header_branch
      %14 = sbr.rel (%p12) target = $region8
    $region5: #{encoder_cnn_forward.31} parent=1 // loop_body
      %s16 = ssub.s32 %s11, 1
      %s17 = ssub.s32 %s11, 2
      %s18 = sadd.s32 %s11, 1
      %s19 = ssub.s32 %s11, %s18
      %p20 = scmp.eq.s32.totalorder %s19, 0
      %s22 = sadd.s32 %s21, 1
      %s23 = scalar_select %p20, %s21, %s22
      %p26 = pneg %p20
      %p27 = scmp.eq.s32.totalorder %s11, 1
      %p28 = por %p26, %p27
      %p29 = scmp.ne.s32.totalorder %s21, %s24
      %p30 = scmp.eq.s32.totalorder %s11, 0
      %p31 = por %p29, %p30
      %p32 = scmp.ne.s32.totalorder %s21, %s24
      %p33 = scmp.eq.s32.totalorder %s16, 1
      %p34 = por %p32, %p33
      %p35 = scmp.ne.s32.totalorder %s24, %s25
      %p36 = scmp.eq.s32.totalorder %s16, 0
      %p37 = por %p35, %p36
      %p38 = scmp.ne.s32.totalorder %s24, %s25
      %p39 = scmp.eq.s32.totalorder %s17, 1
      %p40 = por %p38, %p39
      %p42 = scmp.ne.s32.totalorder %s25, %s41
      %p43 = scmp.eq.s32.totalorder %s17, 0
      %p44 = por %p42, %p43
      %s46 = sadd.s32 %s45, 1
      %p49 = scmp.eq.s32.totalorder %s11, 1
      %p50 = scmp.ne.s32.totalorder %s45, %s47
      %p51 = scmp.eq.s32.totalorder %s11, 0
      %p52 = por %p50, %p51
      %p53 = scmp.ne.s32.totalorder %s45, %s47
      %p54 = scmp.eq.s32.totalorder %s16, 1
      %p55 = por %p53, %p54
      %p56 = scmp.ne.s32.totalorder %s47, %s48
      %p57 = scmp.eq.s32.totalorder %s16, 0
      %p58 = por %p56, %p57
      %p59 = scmp.ne.s32.totalorder %s47, %s48
      %p60 = scmp.eq.s32.totalorder %s17, 1
      %p61 = por %p59, %p60
      %p63 = scmp.ne.s32.totalorder %s48, %s62
      %p64 = scmp.eq.s32.totalorder %s17, 0
      %p65 = por %p63, %p64
      %s67 = sadd.s32 %s66, 1
      %p70 = scmp.eq.s32.totalorder %s11, 1
      %p71 = scmp.ne.s32.totalorder %s66, %s68
      %p72 = scmp.eq.s32.totalorder %s11, 0
      %p73 = por %p71, %p72
      %p74 = scmp.ne.s32.totalorder %s66, %s68
      %p75 = scmp.eq.s32.totalorder %s16, 1
      %p76 = por %p74, %p75
      %p77 = scmp.ne.s32.totalorder %s68, %s69
      %p78 = scmp.eq.s32.totalorder %s16, 0
      %p79 = por %p77, %p78
      %p80 = scmp.ne.s32.totalorder %s68, %s69
      %p81 = scmp.eq.s32.totalorder %s17, 1
      %p82 = por %p80, %p81
      %p84 = scmp.ne.s32.totalorder %s69, %s83
      %p85 = scmp.eq.s32.totalorder %s17, 0
      %p86 = por %p84, %p85
      %s88 = sadd.s32 %s87, 1
      %p91 = scmp.eq.s32.totalorder %s11, 1
      %p92 = scmp.ne.s32.totalorder %s87, %s89
      %p93 = scmp.eq.s32.totalorder %s11, 0
      %p94 = por %p92, %p93
      %p95 = scmp.ne.s32.totalorder %s87, %s89
      %p96 = scmp.eq.s32.totalorder %s16, 1
      %p97 = por %p95, %p96
      %p98 = scmp.ne.s32.totalorder %s89, %s90
      %p99 = scmp.eq.s32.totalorder %s16, 0
      %p100 = por %p98, %p99
      %p101 = scmp.ne.s32.totalorder %s89, %s90
      %p102 = scmp.eq.s32.totalorder %s17, 1
      %p103 = por %p101, %p102
      %p105 = scmp.ne.s32.totalorder %s90, %s104
      %p106 = scmp.eq.s32.totalorder %s17, 0
      %p107 = por %p105, %p106
      %s108 = ssub.s32 %s11, %s18
      %p109 = scmp.eq.s32.totalorder %s108, 0
      %s111 = sadd.s32 %s110, 1
      %s112 = scalar_select %p109, %s110, %s111
      %p115 = pneg %p109
      %p116 = scmp.eq.s32.totalorder %s11, 1
      %p117 = por %p115, %p116
      %p118 = scmp.ne.s32.totalorder %s110, %s113
      %p119 = scmp.eq.s32.totalorder %s11, 0
      %p120 = por %p118, %p119
      %p121 = scmp.ne.s32.totalorder %s110, %s113
      %p122 = scmp.eq.s32.totalorder %s16, 1
      %p123 = por %p121, %p122
      %p124 = scmp.ne.s32.totalorder %s113, %s114
      %p125 = scmp.eq.s32.totalorder %s16, 0
      %p126 = por %p124, %p125
      %p127 = scmp.ne.s32.totalorder %s113, %s114
      %p128 = scmp.eq.s32.totalorder %s17, 1
      %p129 = por %p127, %p128
      %p131 = scmp.ne.s32.totalorder %s114, %s130
      %p132 = scmp.eq.s32.totalorder %s17, 0
      %p133 = por %p131, %p132
      %p134 = scmp.le.s32.totalorder 1, %s11
      %p135 = scmp.lt.s32.totalorder %s11, 3
      %p136 = pnand %p134, %p135
      %p137 = pneg %p136
      // Predicated region
      $region9: #{encoder_cnn_forward.31} parent=5 // pred_check
        _
      $region10: #{encoder_cnn_forward.31} parent=5 // pred_check_branch
        %139 = sbr.rel (%p136) target = $region12
      $region11: #{encoder_cnn_forward.31} parent=5 // pred_region
        %s140 = ssub.s32 %s11, 1
        // Predicated region
        $region13: #{encoder_cnn_forward.31} parent=11 // pred_check
          %p141 = pneg %p58
        $region14: #{encoder_cnn_forward.31} parent=11 // pred_check_branch
          %143 = sbr.rel (%p141) target = $region16
        $region15: #{encoder_cnn_forward.31} parent=11 // pred_region
          _
        $region16: #{encoder_cnn_forward.31} parent=11 // pred_fallthru
          _
        // Predicated region
        $region17: #{encoder_cnn_forward.31} parent=11 // pred_check
          %p144 = pneg %p79
        $region18: #{encoder_cnn_forward.31} parent=11 // pred_check_branch
          %146 = sbr.rel (%p144) target = $region20
        $region19: #{encoder_cnn_forward.31} parent=11 // pred_region
          _
        $region20: #{encoder_cnn_forward.31} parent=11 // pred_fallthru
          _
        // Predicated region
        $region21: #{encoder_cnn_forward.31} parent=11 // pred_check
          %p147 = pneg %p100
        $region22: #{encoder_cnn_forward.31} parent=11 // pred_check_branch
          %149 = sbr.rel (%p147) target = $region24
        $region23: #{encoder_cnn_forward.31} parent=11 // pred_region
          %151 = vsyncadd [#allocation3], 0
          %s153 = sshll.u32 %s3, 4
          %s154 = int_to_ptr.hbm [resolvable:$true] %s153
          %s155 = sshll.u32 [#allocation2], 4
          %s156 = int_to_ptr.vmem [resolvable:$true] %s155
          %158 = dma.hbm_to_vmem [thread:$0]  %s154, 16, %s156, [#allocation3]
        $region24: #{encoder_cnn_forward.31} parent=11 // pred_fallthru
          _
      $region12: #{encoder_cnn_forward.31} parent=5 // pred_fallthru
        _
      %p159 = scmp.lt.s32.totalorder %s11, 2
      // Predicated region
      $region25: #{encoder_cnn_forward.31} parent=5 // pred_check
        %p160 = pneg %p159
      $region26: #{encoder_cnn_forward.31} parent=5 // pred_check_branch
        %162 = sbr.rel (%p160) target = $region28
      $region27: #{encoder_cnn_forward.31} parent=5 // pred_region
        // Predicated region
        $region29: #{encoder_cnn_forward.31} parent=27 // pred_check
          %p163 = pneg %p31
        $region30: #{encoder_cnn_forward.31} parent=27 // pred_check_branch
          %165 = sbr.rel (%p163) target = $region32
        $region31: #{encoder_cnn_forward.31} parent=27 // pred_region
          %s166 = smul.u32 2, %s11
          %p167 = scmp.lt.s32.totalorder %s166, 3
          %s168 = scalar_select %p167, %s166, 3
          %s169 = smul.addr %s168, 2
          %s170 = smul.addr %s169, 4
          %s171 = scalar_lea.vmem %s0, %s170
          %s172 = smul.u32 2, %s11
        $region32: #{encoder_cnn_forward.31} parent=27 // pred_fallthru
          _
      $region28: #{encoder_cnn_forward.31} parent=5 // pred_fallthru
        _
      %p173 = scmp.le.s32.totalorder 1, %s11
      %p174 = scmp.lt.s32.totalorder %s11, 3
      %p175 = pnand %p173, %p174
      %p176 = pneg %p175
      // Predicated region
      $region33: #{encoder_cnn_forward.31} parent=5 // pred_check
        _
      $region34: #{encoder_cnn_forward.31} parent=5 // pred_check_branch
        %178 = sbr.rel (%p175) target = $region36
      $region35: #{encoder_cnn_forward.31} parent=5 // pred_region
        %s179 = ssub.s32 %s11, 1
        // Predicated region
        $region37: #{encoder_cnn_forward.31} parent=35 // pred_check
          %p180 = pneg %p100
        $region38: #{encoder_cnn_forward.31} parent=35 // pred_check_branch
          %182 = sbr.rel (%p180) target = $region40
        $region39: #{encoder_cnn_forward.31} parent=35 // pred_region
          %184 = dma.done [#allocation3], 16
        $region40: #{encoder_cnn_forward.31} parent=35 // pred_fallthru
          _
        %s185 = smul.u32 2, %s16
        %p186 = scmp.lt.s32.totalorder %s185, 3
        %s187 = scalar_select %p186, %s185, 3
        %s188 = smul.addr %s187, 2
        %s189 = smul.addr %s188, 4
        %s190 = scalar_lea.vmem %s0, %s189
        %p191 = pneg %p37
        %p192 = pneg %p34
        %p193 = pneg %p58
        %p194 = pneg %p55
        %p195 = pneg %p79
        %p196 = pneg %p76
        %p197 = pneg %p100
        %p198 = pneg %p97
        %p199 = pneg %p126
        %p200 = pneg %p123
        %s201 = smul.u32 2, %s16
        %p202 = scmp.lt.s32.totalorder %s201, 3
        %s203 = scalar_select %p202, %s201, 3
        %s204 = smul.addr %s203, 4
        %s205 = scalar_lea.vmem %s4, %s204
        %s206 = smul.u32 2, %s16
        %p207 = scmp.lt.s32.totalorder %s206, 3
        %s208 = scalar_select %p207, %s206, 3
        %s209 = smul.addr %s208, 2
        %s210 = smul.addr %s209, 4
        %s211 = scalar_lea.vmem %s0, %s210
        %s212 = smul.u32 2, %s16
        %s213 = smul.u32 2, %s16
        %p214 = scmp.lt.s32.totalorder %s213, 3
        %s215 = scalar_select %p214, %s213, 3
        %s216 = smul.addr %s215, 4
        %s217 = scalar_lea.vmem %s4, %s216
        %s218 = smul.u32 2, %s16
        %v219 = vld [vmem:[%s211] sm:$0xff]
        %v220 = vld [vmem:[%s211 + $0x8] sm:$0xff]
        %v221 = vld [vmem:[%s1] sm:$0xf]
        %v222 = vld [vmem:[%s1 + $0x4] sm:$0xf]
        %v223 = vld [vmem:[%s1 + $0x8] sm:$0xf]
        %v224 = vld [vmem:[%s1 + $0xc] sm:$0xf]
        %v225 = vld [vmem:[%s1 + $0x10] sm:$0xf]
        %v226 = vld [vmem:[%s1 + $0x14] sm:$0xf]
        %v227 = vld [vmem:[%s1 + $0x18] sm:$0xf]
        %v228 = vld [vmem:[%s1 + $0x1c] sm:$0xf]
        %v229 = vld [vmem:[%s1 + $0x20] sm:$0xf]
        %v230 = vld [vmem:[%s1 + $0x24] sm:$0xf]
        %v231 = vld [vmem:[%s1 + $0x28] sm:$0xf]
        %v232 = vld [vmem:[%s1 + $0x2c] sm:$0xf]
        %v233 = vld [vmem:[%s1 + $0x30] sm:$0xf]
        %v234 = vld [vmem:[%s1 + $0x34] sm:$0xf]
        %v235 = vld [vmem:[%s1 + $0x38] sm:$0xf]
        %v236 = vld [vmem:[%s1 + $0x3c] sm:$0xf]
        %v237 = vld [vmem:[%s1 + $0x40] sm:$0xf]
        %v238 = vld [vmem:[%s1 + $0x44] sm:$0xf]
        %v239 = vld [vmem:[%s1 + $0x48] sm:$0xf]
        %v240 = vld [vmem:[%s1 + $0x4c] sm:$0xf]
        %v241 = vld [vmem:[%s1 + $0x50] sm:$0xf]
        %v242 = vld [vmem:[%s1 + $0x54] sm:$0xf]
        %v243 = vld [vmem:[%s1 + $0x58] sm:$0xf]
        %v244 = vld [vmem:[%s1 + $0x5c] sm:$0xf]
        %v245 = vld [vmem:[%s1 + $0x60] sm:$0xf]
        %v246 = vld [vmem:[%s1 + $0x64] sm:$0xf]
        %v247 = vld [vmem:[%s1 + $0x68] sm:$0xf]
        %v248 = vld [vmem:[%s1 + $0x6c] sm:$0xf]
        %v249 = vld [vmem:[%s1 + $0x70] sm:$0xf]
        %v250 = vld [vmem:[%s1 + $0x74] sm:$0xf]
        %v251 = vld [vmem:[%s1 + $0x78] sm:$0xf]
        %v252 = vld [vmem:[%s1 + $0x7c] sm:$0xf]
        %v255 = vunpack.c.l.b16 %v219
        %v256 = vunpack.c.h.b16 %v219
        %v257 = vunpack.c.l.b16 %v220
        %v258 = vunpack.c.h.b16 %v220
        %v259 = vpack.c.b16 %v257, %v255
        %v260 = vpack.c.b16 %v258, %v256
        %v295 = vunpack.c.l.b16 %v221
        %v296 = vunpack.c.l.b16 %v222
        %v297 = vunpack.c.l.b16 %v223
        %v298 = vunpack.c.l.b16 %v224
        %v299 = vunpack.c.l.b16 %v225
        %v300 = vunpack.c.l.b16 %v226
        %v301 = vunpack.c.l.b16 %v227
        %v302 = vunpack.c.l.b16 %v228
        %v303 = vunpack.c.l.b16 %v229
        %v304 = vunpack.c.l.b16 %v230
        %v305 = vunpack.c.l.b16 %v231
        %v306 = vunpack.c.l.b16 %v232
        %v307 = vunpack.c.l.b16 %v233
        %v308 = vunpack.c.l.b16 %v234
        %v309 = vunpack.c.l.b16 %v235
        %v310 = vunpack.c.l.b16 %v236
        %v311 = vunpack.c.l.b16 %v237
        %v312 = vunpack.c.l.b16 %v238
        %v313 = vunpack.c.l.b16 %v239
        %v314 = vunpack.c.l.b16 %v240
        %v315 = vunpack.c.l.b16 %v241
        %v316 = vunpack.c.l.b16 %v242
        %v317 = vunpack.c.l.b16 %v243
        %v318 = vunpack.c.l.b16 %v244
        %v319 = vunpack.c.l.b16 %v245
        %v320 = vunpack.c.l.b16 %v246
        %v321 = vunpack.c.l.b16 %v247
        %v322 = vunpack.c.l.b16 %v248
        %v323 = vunpack.c.l.b16 %v249
        %v324 = vunpack.c.l.b16 %v250
        %v325 = vunpack.c.l.b16 %v251
        %v326 = vunpack.c.l.b16 %v252
        %v327 = vpack.c.b16 %v296, %v295
        %v328 = vpack.c.b16 %v298, %v297
        %v329 = vpack.c.b16 %v300, %v299
        %v330 = vpack.c.b16 %v302, %v301
        %v331 = vpack.c.b16 %v304, %v303
        %v332 = vpack.c.b16 %v306, %v305
        %v333 = vpack.c.b16 %v308, %v307
        %v334 = vpack.c.b16 %v310, %v309
        %v335 = vpack.c.b16 %v312, %v311
        %v336 = vpack.c.b16 %v314, %v313
        %v337 = vpack.c.b16 %v316, %v315
        %v338 = vpack.c.b16 %v318, %v317
        %v339 = vpack.c.b16 %v320, %v319
        %v340 = vpack.c.b16 %v322, %v321
        %v341 = vpack.c.b16 %v324, %v323
        %v342 = vpack.c.b16 %v326, %v325
        %359 = vmatpush.bf16.msra.mxu0 %v334
        %360 = vmatpush.bf16.msra.mxu0 %v333
        %361 = vmatpush.bf16.msra.mxu0 %v332
        %362 = vmatpush.bf16.msra.mxu0 %v331
        %363 = vmatpush.bf16.msra.mxu0 %v330
        %364 = vmatpush.bf16.msra.mxu0 %v329
        %365 = vmatpush.bf16.msra.mxu0 %v328
        %366 = vmatpush.bf16.msra.mxu0 %v327
        %367 = vmatmul.bf16.gmra.mxu0 %v259
        %v368 = vpop.f32.mrf.mxu0
        %v369 = vadd.f32 0.0, %v368
        %v370 = vpop.f32.mrf.mxu0
        %v371 = vadd.f32 0.0, %v370
        %372 = vdwg.mxu0
        %373 = vmatpush.bf16.msra.mxu0 %v342
        %374 = vmatpush.bf16.msra.mxu0 %v341
        %375 = vmatpush.bf16.msra.mxu0 %v340
        %376 = vmatpush.bf16.msra.mxu0 %v339
        %377 = vmatpush.bf16.msra.mxu0 %v338
        %378 = vmatpush.bf16.msra.mxu0 %v337
        %379 = vmatpush.bf16.msra.mxu0 %v336
        %380 = vmatpush.bf16.msra.mxu0 %v335
        %381 = vmatmul.bf16.gmra.mxu0 %v260
        %v382 = vpop.f32.mrf.mxu0
        %v383 = vadd.f32 %v369, %v382
        %v384 = vpop.f32.mrf.mxu0
        %v385 = vadd.f32 %v371, %v384
        %386 = vdwg.mxu0
        %v387 = vld [vmem:[%s2] sm:$0x1]
        %v389 = vperm.slane %v387, 0
        %v391 = vmul.f32 %v383, %v389
        %v392 = vmul.f32 %v385, %v389
        %v393 = vld [vmem:[#allocation2] sm:$0x1]
        %v395 = vperm.slane %v393, 0
        %v397 = vadd.f32 %v391, %v395
        %v398 = vadd.f32 %v392, %v395
        %v399 = vmax.f32 %v397, 0.0
        %v400 = vmax.f32 %v398, 0.0
        %v401 = vpack.c.bf16 %v399, %v399
        %v402 = vpack.c.bf16 %v400, %v400
        %403 = vst [vmem:[%s217] sm:$0xf] %v401
        %404 = vst [vmem:[%s217 + $0x4] sm:$0xf] %v402
        %s405 = smul.u32 2, %s16
        %p406 = scmp.lt.s32.totalorder %s405, 3
        %s407 = scalar_select %p406, %s405, 3
        %s408 = smul.addr %s407, 4
        %s409 = scalar_lea.vmem %s4, %s408
        // Predicated region
        $region41: #{encoder_cnn_forward.31} parent=35 // pred_check
          %p410 = pneg %p123
        $region42: #{encoder_cnn_forward.31} parent=35 // pred_check_branch
          %412 = sbr.rel (%p410) target = $region44
        $region43: #{encoder_cnn_forward.31} parent=35 // pred_region
          %s413 = smul.u32 2, %s16
        $region44: #{encoder_cnn_forward.31} parent=35 // pred_fallthru
          _
      $region36: #{encoder_cnn_forward.31} parent=5 // pred_fallthru
        _
      %p414 = scmp.le.s32.totalorder 2, %s11
      // Predicated region
      $region45: #{encoder_cnn_forward.31} parent=5 // pred_check
        %p415 = pneg %p414
      $region46: #{encoder_cnn_forward.31} parent=5 // pred_check_branch
        %417 = sbr.rel (%p415) target = $region48
      $region47: #{encoder_cnn_forward.31} parent=5 // pred_region
        %s418 = ssub.s32 %s11, 2
        // Predicated region
        $region49: #{encoder_cnn_forward.31} parent=47 // pred_check
          %p419 = pneg %p129
        $region50: #{encoder_cnn_forward.31} parent=47 // pred_check_branch
          %421 = sbr.rel (%p419) target = $region52
        $region51: #{encoder_cnn_forward.31} parent=47 // pred_region
          %s422 = smul.u32 2, %s17
          %p423 = scmp.lt.s32.totalorder %s422, 3
          %s424 = scalar_select %p423, %s422, 3
          %s425 = smul.addr %s424, 4
          %s426 = scalar_lea.vmem %s4, %s425
        $region52: #{encoder_cnn_forward.31} parent=47 // pred_fallthru
          _
      $region48: #{encoder_cnn_forward.31} parent=5 // pred_fallthru
        _
    $region6: #{encoder_cnn_forward.31} parent=1 // loop_footer
      %s15 = sadd.s32 1, %s11
    $region7: #{encoder_cnn_forward.31} parent=1 // loop_footer_branch
      %10 = sbr.rel target = $region3
    $region8: #{encoder_cnn_forward.31} parent=1 // loop_exit
      _
    %427 = vsyncpa [#allocation3], 1
    %s428 = scalar_lea.sflag [#allocation3], 1
    %429 = vsyncpa %s428, 1

// kernel: encoder_cnn_forward.32
$region0: #{encoder_cnn_forward.32}
  #allocation0 [shape = 'u32[]', space=smem, size = 0x4, offset = 0x4, fixed_abs, tag = 'smem constant byte address 0x4 - core index']
  #allocation1 [shape = 'u32[72,128]{1,0:T(1,128)}', space=vmem, size = 0x9000, scoped, tag = 'internal scratch']
  %s0 = inlined_call_operand.vmem [shape: bf16[32,256], index: 0, kind: input, shape index: {}]
  %s1 = inlined_call_operand.vmem [shape: bf16[256,128], index: 1, kind: input, shape index: {}]
  %s2 = inlined_call_operand.vmem [shape: f32[1,128], index: 2, kind: input, shape index: {}]
  %s3 = inlined_call_operand.vmem [shape: f32[1,128], index: 3, kind: input, shape index: {}]
  %s4 = inlined_call_operand.vmem [shape: bf16[32,128], index: 4, kind: input, shape index: {}]
  %s5 = inlined_call_operand.vmem [shape: bf16[32,128], index: 5, kind: output, shape index: {}]
  %s6 = sld [smem:[#allocation0]]
  $region53: #{encoder_cnn_forward.32} parent=0
    _
  %s8 = ssub.s32 1, %s6
  %s9 = scalar_select 0, %s8, %s6
  loop: start=0, step=1, limit=4
  $region2: #{encoder_cnn_forward.32} parent=0 // loop_pre_header
    _
  $region3: #{encoder_cnn_forward.32} parent=0 // loop_header
    %s11 = sphi 0, %s15
    %p12 = scmp.ge.s32.totalorder %s11, 4
    %s21 = sphi 0, %s23
    %s24 = sphi 0, %s21
    %s25 = sphi 0, %s24
    %s41 = sphi 0, %s25
    %s45 = sphi 0, %s45
    %s47 = sphi 0, %s45
    %s48 = sphi 0, %s47
    %s62 = sphi 0, %s48
    %s66 = sphi 0, %s66
    %s68 = sphi 0, %s66
    %s69 = sphi 0, %s68
    %s83 = sphi 0, %s69
    %s87 = sphi 0, %s87
    %s89 = sphi 0, %s87
    %s90 = sphi 0, %s89
    %s104 = sphi 0, %s90
    %s110 = sphi 0, %s112
    %s113 = sphi 0, %s110
    %s114 = sphi 0, %s113
    %s130 = sphi 0, %s114
    %s136 = sphi 0, %s138
    %s139 = sphi 0, %s136
    %s140 = sphi 0, %s139
    %s156 = sphi 0, %s140
  $region4: #{encoder_cnn_forward.32} parent=0 // loop_header_branch
    %14 = sbr.rel (%p12) target = $region8
  $region5: #{encoder_cnn_forward.32} parent=0 // loop_body
    %s16 = ssub.s32 %s11, 1
    %s17 = ssub.s32 %s11, 2
    %s18 = sadd.s32 %s11, 1
    %s19 = ssub.s32 %s11, %s18
    %p20 = scmp.eq.s32.totalorder %s19, 0
    %s22 = sadd.s32 %s21, 1
    %s23 = scalar_select %p20, %s21, %s22
    %p26 = pneg %p20
    %p27 = scmp.eq.s32.totalorder %s11, 1
    %p28 = por %p26, %p27
    %p29 = scmp.ne.s32.totalorder %s21, %s24
    %p30 = scmp.eq.s32.totalorder %s11, 0
    %p31 = por %p29, %p30
    %p32 = scmp.ne.s32.totalorder %s21, %s24
    %p33 = scmp.eq.s32.totalorder %s16, 1
    %p34 = por %p32, %p33
    %p35 = scmp.ne.s32.totalorder %s24, %s25
    %p36 = scmp.eq.s32.totalorder %s16, 0
    %p37 = por %p35, %p36
    %p38 = scmp.ne.s32.totalorder %s24, %s25
    %p39 = scmp.eq.s32.totalorder %s17, 1
    %p40 = por %p38, %p39
    %p42 = scmp.ne.s32.totalorder %s25, %s41
    %p43 = scmp.eq.s32.totalorder %s17, 0
    %p44 = por %p42, %p43
    %s46 = sadd.s32 %s45, 1
    %p49 = scmp.eq.s32.totalorder %s11, 1
    %p50 = scmp.ne.s32.totalorder %s45, %s47
    %p51 = scmp.eq.s32.totalorder %s11, 0
    %p52 = por %p50, %p51
    %p53 = scmp.ne.s32.totalorder %s45, %s47
    %p54 = scmp.eq.s32.totalorder %s16, 1
    %p55 = por %p53, %p54
    %p56 = scmp.ne.s32.totalorder %s47, %s48
    %p57 = scmp.eq.s32.totalorder %s16, 0
    %p58 = por %p56, %p57
    %p59 = scmp.ne.s32.totalorder %s47, %s48
    %p60 = scmp.eq.s32.totalorder %s17, 1
    %p61 = por %p59, %p60
    %p63 = scmp.ne.s32.totalorder %s48, %s62
    %p64 = scmp.eq.s32.totalorder %s17, 0
    %p65 = por %p63, %p64
    %s67 = sadd.s32 %s66, 1
    %p70 = scmp.eq.s32.totalorder %s11, 1
    %p71 = scmp.ne.s32.totalorder %s66, %s68
    %p72 = scmp.eq.s32.totalorder %s11, 0
    %p73 = por %p71, %p72
    %p74 = scmp.ne.s32.totalorder %s66, %s68
    %p75 = scmp.eq.s32.totalorder %s16, 1
    %p76 = por %p74, %p75
    %p77 = scmp.ne.s32.totalorder %s68, %s69
    %p78 = scmp.eq.s32.totalorder %s16, 0
    %p79 = por %p77, %p78
    %p80 = scmp.ne.s32.totalorder %s68, %s69
    %p81 = scmp.eq.s32.totalorder %s17, 1
    %p82 = por %p80, %p81
    %p84 = scmp.ne.s32.totalorder %s69, %s83
    %p85 = scmp.eq.s32.totalorder %s17, 0
    %p86 = por %p84, %p85
    %s88 = sadd.s32 %s87, 1
    %p91 = scmp.eq.s32.totalorder %s11, 1
    %p92 = scmp.ne.s32.totalorder %s87, %s89
    %p93 = scmp.eq.s32.totalorder %s11, 0
    %p94 = por %p92, %p93
    %p95 = scmp.ne.s32.totalorder %s87, %s89
    %p96 = scmp.eq.s32.totalorder %s16, 1
    %p97 = por %p95, %p96
    %p98 = scmp.ne.s32.totalorder %s89, %s90
    %p99 = scmp.eq.s32.totalorder %s16, 0
    %p100 = por %p98, %p99
    %p101 = scmp.ne.s32.totalorder %s89, %s90
    %p102 = scmp.eq.s32.totalorder %s17, 1
    %p103 = por %p101, %p102
    %p105 = scmp.ne.s32.totalorder %s90, %s104
    %p106 = scmp.eq.s32.totalorder %s17, 0
    %p107 = por %p105, %p106
    %s108 = ssub.s32 %s11, %s18
    %p109 = scmp.eq.s32.totalorder %s108, 0
    %s111 = sadd.s32 %s110, 1
    %s112 = scalar_select %p109, %s110, %s111
    %p115 = pneg %p109
    %p116 = scmp.eq.s32.totalorder %s11, 1
    %p117 = por %p115, %p116
    %p118 = scmp.ne.s32.totalorder %s110, %s113
    %p119 = scmp.eq.s32.totalorder %s11, 0
    %p120 = por %p118, %p119
    %p121 = scmp.ne.s32.totalorder %s110, %s113
    %p122 = scmp.eq.s32.totalorder %s16, 1
    %p123 = por %p121, %p122
    %p124 = scmp.ne.s32.totalorder %s113, %s114
    %p125 = scmp.eq.s32.totalorder %s16, 0
    %p126 = por %p124, %p125
    %p127 = scmp.ne.s32.totalorder %s113, %s114
    %p128 = scmp.eq.s32.totalorder %s17, 1
    %p129 = por %p127, %p128
    %p131 = scmp.ne.s32.totalorder %s114, %s130
    %p132 = scmp.eq.s32.totalorder %s17, 0
    %p133 = por %p131, %p132
    %s134 = ssub.s32 %s11, %s18
    %p135 = scmp.eq.s32.totalorder %s134, 0
    %s137 = sadd.s32 %s136, 1
    %s138 = scalar_select %p135, %s136, %s137
    %p141 = pneg %p135
    %p142 = scmp.eq.s32.totalorder %s11, 1
    %p143 = por %p141, %p142
    %p144 = scmp.ne.s32.totalorder %s136, %s139
    %p145 = scmp.eq.s32.totalorder %s11, 0
    %p146 = por %p144, %p145
    %p147 = scmp.ne.s32.totalorder %s136, %s139
    %p148 = scmp.eq.s32.totalorder %s16, 1
    %p149 = por %p147, %p148
    %p150 = scmp.ne.s32.totalorder %s139, %s140
    %p151 = scmp.eq.s32.totalorder %s16, 0
    %p152 = por %p150, %p151
    %p153 = scmp.ne.s32.totalorder %s139, %s140
    %p154 = scmp.eq.s32.totalorder %s17, 1
    %p155 = por %p153, %p154
    %p157 = scmp.ne.s32.totalorder %s140, %s156
    %p158 = scmp.eq.s32.totalorder %s17, 0
    %p159 = por %p157, %p158
    %p160 = scmp.le.s32.totalorder 1, %s11
    %p161 = scmp.lt.s32.totalorder %s11, 3
    %p162 = pnand %p160, %p161
    %p163 = pneg %p162
    // Predicated region
    $region9: #{encoder_cnn_forward.32} parent=5 // pred_check
      _
    $region10: #{encoder_cnn_forward.32} parent=5 // pred_check_branch
      %165 = sbr.rel (%p162) target = $region12
    $region11: #{encoder_cnn_forward.32} parent=5 // pred_region
      %s166 = ssub.s32 %s11, 1
      // Predicated region
      $region13: #{encoder_cnn_forward.32} parent=11 // pred_check
        %p167 = pneg %p58
      $region14: #{encoder_cnn_forward.32} parent=11 // pred_check_branch
        %169 = sbr.rel (%p167) target = $region16
      $region15: #{encoder_cnn_forward.32} parent=11 // pred_region
        _
      $region16: #{encoder_cnn_forward.32} parent=11 // pred_fallthru
        _
      // Predicated region
      $region17: #{encoder_cnn_forward.32} parent=11 // pred_check
        %p170 = pneg %p79
      $region18: #{encoder_cnn_forward.32} parent=11 // pred_check_branch
        %172 = sbr.rel (%p170) target = $region20
      $region19: #{encoder_cnn_forward.32} parent=11 // pred_region
        _
      $region20: #{encoder_cnn_forward.32} parent=11 // pred_fallthru
        _
      // Predicated region
      $region21: #{encoder_cnn_forward.32} parent=11 // pred_check
        %p173 = pneg %p100
      $region22: #{encoder_cnn_forward.32} parent=11 // pred_check_branch
        %175 = sbr.rel (%p173) target = $region24
      $region23: #{encoder_cnn_forward.32} parent=11 // pred_region
        _
      $region24: #{encoder_cnn_forward.32} parent=11 // pred_fallthru
        _
    $region12: #{encoder_cnn_forward.32} parent=5 // pred_fallthru
      _
    %p176 = scmp.lt.s32.totalorder %s11, 2
    // Predicated region
    $region25: #{encoder_cnn_forward.32} parent=5 // pred_check
      %p177 = pneg %p176
    $region26: #{encoder_cnn_forward.32} parent=5 // pred_check_branch
      %179 = sbr.rel (%p177) target = $region28
    $region27: #{encoder_cnn_forward.32} parent=5 // pred_region
      // Predicated region
      $region29: #{encoder_cnn_forward.32} parent=27 // pred_check
        %p180 = pneg %p31
      $region30: #{encoder_cnn_forward.32} parent=27 // pred_check_branch
        %182 = sbr.rel (%p180) target = $region32
      $region31: #{encoder_cnn_forward.32} parent=27 // pred_region
        %s183 = smul.u32 2, %s11
        %p184 = scmp.lt.s32.totalorder %s183, 3
        %s185 = scalar_select %p184, %s183, 3
        %s186 = smul.addr %s185, 2
        %s187 = smul.addr %s186, 4
        %s188 = scalar_lea.vmem %s0, %s187
        %s189 = smul.u32 2, %s11
      $region32: #{encoder_cnn_forward.32} parent=27 // pred_fallthru
        _
      // Predicated region
      $region33: #{encoder_cnn_forward.32} parent=27 // pred_check
        %p190 = pneg %p120
      $region34: #{encoder_cnn_forward.32} parent=27 // pred_check_branch
        %192 = sbr.rel (%p190) target = $region36
      $region35: #{encoder_cnn_forward.32} parent=27 // pred_region
        %s193 = smul.u32 2, %s11
        %p194 = scmp.lt.s32.totalorder %s193, 3
        %s195 = scalar_select %p194, %s193, 3
        %s196 = smul.addr %s195, 4
        %s197 = scalar_lea.vmem %s4, %s196
        %s198 = smul.u32 2, %s11
      $region36: #{encoder_cnn_forward.32} parent=27 // pred_fallthru
        _
    $region28: #{encoder_cnn_forward.32} parent=5 // pred_fallthru
      _
    %p199 = scmp.le.s32.totalorder 1, %s11
    %p200 = scmp.lt.s32.totalorder %s11, 3
    %p201 = pnand %p199, %p200
    %p202 = pneg %p201
    // Predicated region
    $region37: #{encoder_cnn_forward.32} parent=5 // pred_check
      _
    $region38: #{encoder_cnn_forward.32} parent=5 // pred_check_branch
      %204 = sbr.rel (%p201) target = $region40
    $region39: #{encoder_cnn_forward.32} parent=5 // pred_region
      %s205 = ssub.s32 %s11, 1
      %s206 = smul.u32 2, %s16
      %p207 = scmp.lt.s32.totalorder %s206, 3
      %s208 = scalar_select %p207, %s206, 3
      %s209 = smul.addr %s208, 2
      %s210 = smul.addr %s209, 4
      %s211 = scalar_lea.vmem %s0, %s210
      %p212 = pneg %p37
      %p213 = pneg %p34
      %p214 = pneg %p58
      %p215 = pneg %p55
      %p216 = pneg %p79
      %p217 = pneg %p76
      %p218 = pneg %p100
      %p219 = pneg %p97
      %s220 = smul.u32 2, %s16
      %p221 = scmp.lt.s32.totalorder %s220, 3
      %s222 = scalar_select %p221, %s220, 3
      %s223 = smul.addr %s222, 4
      %s224 = scalar_lea.vmem %s4, %s223
      %p225 = pneg %p126
      %p226 = pneg %p123
      %p227 = pneg %p152
      %p228 = pneg %p149
      %s229 = smul.u32 2, %s16
      %p230 = scmp.lt.s32.totalorder %s229, 3
      %s231 = scalar_select %p230, %s229, 3
      %s232 = smul.addr %s231, 4
      %s233 = scalar_lea.vmem %s5, %s232
      %s234 = smul.u32 2, %s16
      %p235 = scmp.lt.s32.totalorder %s234, 3
      %s236 = scalar_select %p235, %s234, 3
      %s237 = smul.addr %s236, 2
      %s238 = smul.addr %s237, 4
      %s239 = scalar_lea.vmem %s0, %s238
      %s240 = smul.u32 2, %s16
      %s241 = smul.u32 2, %s16
      %p242 = scmp.lt.s32.totalorder %s241, 3
      %s243 = scalar_select %p242, %s241, 3
      %s244 = smul.addr %s243, 4
      %s245 = scalar_lea.vmem %s4, %s244
      %s246 = smul.u32 2, %s16
      %s247 = smul.u32 2, %s16
      %p248 = scmp.lt.s32.totalorder %s247, 3
      %s249 = scalar_select %p248, %s247, 3
      %s250 = smul.addr %s249, 4
      %s251 = scalar_lea.vmem %s5, %s250
      %s252 = smul.u32 2, %s16
      %v253 = vld [vmem:[%s239] sm:$0xff]
      %v254 = vld [vmem:[%s239 + $0x8] sm:$0xff]
      %v255 = vld [vmem:[%s1] sm:$0xf]
      %v256 = vld [vmem:[%s1 + $0x4] sm:$0xf]
      %v257 = vld [vmem:[%s1 + $0x8] sm:$0xf]
      %v258 = vld [vmem:[%s1 + $0xc] sm:$0xf]
      %v259 = vld [vmem:[%s1 + $0x10] sm:$0xf]
      %v260 = vld [vmem:[%s1 + $0x14] sm:$0xf]
      %v261 = vld [vmem:[%s1 + $0x18] sm:$0xf]
      %v262 = vld [vmem:[%s1 + $0x1c] sm:$0xf]
      %v263 = vld [vmem:[%s1 + $0x20] sm:$0xf]
      %v264 = vld [vmem:[%s1 + $0x24] sm:$0xf]
      %v265 = vld [vmem:[%s1 + $0x28] sm:$0xf]
      %v266 = vld [vmem:[%s1 + $0x2c] sm:$0xf]
      %v267 = vld [vmem:[%s1 + $0x30] sm:$0xf]
      %v268 = vld [vmem:[%s1 + $0x34] sm:$0xf]
      %v269 = vld [vmem:[%s1 + $0x38] sm:$0xf]
      %v270 = vld [vmem:[%s1 + $0x3c] sm:$0xf]
      %v271 = vld [vmem:[%s1 + $0x40] sm:$0xf]
      %v272 = vld [vmem:[%s1 + $0x44] sm:$0xf]
      %v273 = vld [vmem:[%s1 + $0x48] sm:$0xf]
      %v274 = vld [vmem:[%s1 + $0x4c] sm:$0xf]
      %v275 = vld [vmem:[%s1 + $0x50] sm:$0xf]
      %v276 = vld [vmem:[%s1 + $0x54] sm:$0xf]
      %v277 = vld [vmem:[%s1 + $0x58] sm:$0xf]
      %v278 = vld [vmem:[%s1 + $0x5c] sm:$0xf]
      %v279 = vld [vmem:[%s1 + $0x60] sm:$0xf]
      %v280 = vld [vmem:[%s1 + $0x64] sm:$0xf]
      %v281 = vld [vmem:[%s1 + $0x68] sm:$0xf]
      %v282 = vld [vmem:[%s1 + $0x6c] sm:$0xf]
      %v283 = vld [vmem:[%s1 + $0x70] sm:$0xf]
      %v284 = vld [vmem:[%s1 + $0x74] sm:$0xf]
      %v285 = vld [vmem:[%s1 + $0x78] sm:$0xf]
      %v286 = vld [vmem:[%s1 + $0x7c] sm:$0xf]
      %v289 = vunpack.c.l.b16 %v253
      %v290 = vunpack.c.h.b16 %v253
      %v291 = vunpack.c.l.b16 %v254
      %v292 = vunpack.c.h.b16 %v254
      %v293 = vpack.c.b16 %v291, %v289
      %v294 = vpack.c.b16 %v292, %v290
      %v329 = vunpack.c.l.b16 %v255
      %v330 = vunpack.c.l.b16 %v256
      %v331 = vunpack.c.l.b16 %v257
      %v332 = vunpack.c.l.b16 %v258
      %v333 = vunpack.c.l.b16 %v259
      %v334 = vunpack.c.l.b16 %v260
      %v335 = vunpack.c.l.b16 %v261
      %v336 = vunpack.c.l.b16 %v262
      %v337 = vunpack.c.l.b16 %v263
      %v338 = vunpack.c.l.b16 %v264
      %v339 = vunpack.c.l.b16 %v265
      %v340 = vunpack.c.l.b16 %v266
      %v341 = vunpack.c.l.b16 %v267
      %v342 = vunpack.c.l.b16 %v268
      %v343 = vunpack.c.l.b16 %v269
      %v344 = vunpack.c.l.b16 %v270
      %v345 = vunpack.c.l.b16 %v271
      %v346 = vunpack.c.l.b16 %v272
      %v347 = vunpack.c.l.b16 %v273
      %v348 = vunpack.c.l.b16 %v274
      %v349 = vunpack.c.l.b16 %v275
      %v350 = vunpack.c.l.b16 %v276
      %v351 = vunpack.c.l.b16 %v277
      %v352 = vunpack.c.l.b16 %v278
      %v353 = vunpack.c.l.b16 %v279
      %v354 = vunpack.c.l.b16 %v280
      %v355 = vunpack.c.l.b16 %v281
      %v356 = vunpack.c.l.b16 %v282
      %v357 = vunpack.c.l.b16 %v283
      %v358 = vunpack.c.l.b16 %v284
      %v359 = vunpack.c.l.b16 %v285
      %v360 = vunpack.c.l.b16 %v286
      %v361 = vpack.c.b16 %v330, %v329
      %v362 = vpack.c.b16 %v332, %v331
      %v363 = vpack.c.b16 %v334, %v333
      %v364 = vpack.c.b16 %v336, %v335
      %v365 = vpack.c.b16 %v338, %v337
      %v366 = vpack.c.b16 %v340, %v339
      %v367 = vpack.c.b16 %v342, %v341
      %v368 = vpack.c.b16 %v344, %v343
      %v369 = vpack.c.b16 %v346, %v345
      %v370 = vpack.c.b16 %v348, %v347
      %v371 = vpack.c.b16 %v350, %v349
      %v372 = vpack.c.b16 %v352, %v351
      %v373 = vpack.c.b16 %v354, %v353
      %v374 = vpack.c.b16 %v356, %v355
      %v375 = vpack.c.b16 %v358, %v357
      %v376 = vpack.c.b16 %v360, %v359
      %393 = vmatpush.bf16.msra.mxu0 %v368
      %394 = vmatpush.bf16.msra.mxu0 %v367
      %395 = vmatpush.bf16.msra.mxu0 %v366
      %396 = vmatpush.bf16.msra.mxu0 %v365
      %397 = vmatpush.bf16.msra.mxu0 %v364
      %398 = vmatpush.bf16.msra.mxu0 %v363
      %399 = vmatpush.bf16.msra.mxu0 %v362
      %400 = vmatpush.bf16.msra.mxu0 %v361
      %401 = vmatmul.bf16.gmra.mxu0 %v293
      %v402 = vpop.f32.mrf.mxu0
      %v403 = vadd.f32 0.0, %v402
      %v404 = vpop.f32.mrf.mxu0
      %v405 = vadd.f32 0.0, %v404
      %406 = vdwg.mxu0
      %407 = vmatpush.bf16.msra.mxu0 %v376
      %408 = vmatpush.bf16.msra.mxu0 %v375
      %409 = vmatpush.bf16.msra.mxu0 %v374
      %410 = vmatpush.bf16.msra.mxu0 %v373
      %411 = vmatpush.bf16.msra.mxu0 %v372
      %412 = vmatpush.bf16.msra.mxu0 %v371
      %413 = vmatpush.bf16.msra.mxu0 %v370
      %414 = vmatpush.bf16.msra.mxu0 %v369
      %415 = vmatmul.bf16.gmra.mxu0 %v294
      %v416 = vpop.f32.mrf.mxu0
      %v417 = vadd.f32 %v403, %v416
      %v418 = vpop.f32.mrf.mxu0
      %v419 = vadd.f32 %v405, %v418
      %420 = vdwg.mxu0
      %v421 = vld [vmem:[%s2] sm:$0x1]
      %v423 = vperm.slane %v421, 0
      %v425 = vmul.f32 %v417, %v423
      %v426 = vmul.f32 %v419, %v423
      %v427 = vld [vmem:[%s3] sm:$0x1]
      %v429 = vperm.slane %v427, 0
      %v431 = vadd.f32 %v425, %v429
      %v432 = vadd.f32 %v426, %v429
      %v433 = vld [vmem:[%s245] sm:$0xf]
      %v434 = vld [vmem:[%s245 + $0x4] sm:$0xf]
      %v435 = vunpack.c.l.bf16 %v433
      %v436 = vunpack.c.l.bf16 %v434
      %v437 = vadd.f32 %v431, %v435
      %v438 = vadd.f32 %v432, %v436
      %v439 = vmax.f32 %v437, 0.0
      %v440 = vmax.f32 %v438, 0.0
      %v441 = vpack.c.bf16 %v439, %v439
      %v442 = vpack.c.bf16 %v440, %v440
      %443 = vst [vmem:[%s251] sm:$0xf] %v441
      %444 = vst [vmem:[%s251 + $0x4] sm:$0xf] %v442
      %s445 = smul.u32 2, %s16
      %p446 = scmp.lt.s32.totalorder %s445, 3
      %s447 = scalar_select %p446, %s445, 3
      %s448 = smul.addr %s447, 4
      %s449 = scalar_lea.vmem %s5, %s448
      // Predicated region
      $region41: #{encoder_cnn_forward.32} parent=39 // pred_check
        %p450 = pneg %p149
      $region42: #{encoder_cnn_forward.32} parent=39 // pred_check_branch
        %452 = sbr.rel (%p450) target = $region44
      $region43: #{encoder_cnn_forward.32} parent=39 // pred_region
        %s453 = smul.u32 2, %s16
      $region44: #{encoder_cnn_forward.32} parent=39 // pred_fallthru
        _
    $region40: #{encoder_cnn_forward.32} parent=5 // pred_fallthru
      _
    %p454 = scmp.le.s32.totalorder 2, %s11
    // Predicated region
    $region45: #{encoder_cnn_forward.32} parent=5 // pred_check
      %p455 = pneg %p454
    $region46: #{encoder_cnn_forward.32} parent=5 // pred_check_branch
      %457 = sbr.rel (%p455) target = $region48
    $region47: #{encoder_cnn_forward.32} parent=5 // pred_region
      %s458 = ssub.s32 %s11, 2
      // Predicated region
      $region49: #{encoder_cnn_forward.32} parent=47 // pred_check
        %p459 = pneg %p155
      $region50: #{encoder_cnn_forward.32} parent=47 // pred_check_branch
        %461 = sbr.rel (%p459) target = $region52
      $region51: #{encoder_cnn_forward.32} parent=47 // pred_region
        %s462 = smul.u32 2, %s17
        %p463 = scmp.lt.s32.totalorder %s462, 3
        %s464 = scalar_select %p463, %s462, 3
        %s465 = smul.addr %s464, 4
        %s466 = scalar_lea.vmem %s5, %s465
      $region52: #{encoder_cnn_forward.32} parent=47 // pred_fallthru
        _
    $region48: #{encoder_cnn_forward.32} parent=5 // pred_fallthru
      _
  $region6: #{encoder_cnn_forward.32} parent=0 // loop_footer
    %s15 = sadd.s32 1, %s11
  $region7: #{encoder_cnn_forward.32} parent=0 // loop_footer_branch
    %10 = sbr.rel target = $region3
  $region8: #{encoder_cnn_forward.32} parent=0 // loop_exit
    _

// kernel: encoder_cnn_forward.33
$region0: #{encoder_cnn_forward.33}
  #allocation0 [shape = 'u32[]', space=smem, size = 0x4, offset = 0x4, fixed_abs, tag = 'smem constant byte address 0x4 - core index']
  #allocation1 [shape = 'u32[72,128]{1,0:T(1,128)}', space=vmem, size = 0x9000, scoped, tag = 'internal scratch']
  %s0 = inlined_call_operand.vmem [shape: bf16[16,256], index: 0, kind: input, shape index: {}]
  %s1 = inlined_call_operand.vmem [shape: bf16[256,128], index: 1, kind: input, shape index: {}]
  %s2 = inlined_call_operand.vmem [shape: f32[1,128], index: 2, kind: input, shape index: {}]
  %s3 = inlined_call_operand.vmem [shape: f32[1,128], index: 3, kind: input, shape index: {}]
  %s4 = inlined_call_operand.vmem [shape: bf16[16,128], index: 4, kind: output, shape index: {}]
  %s5 = sld [smem:[#allocation0]]
  $region26: #{encoder_cnn_forward.33} parent=0
    _
  %s7 = ssub.s32 1, %s5
  %s8 = scalar_select 0, %s7, %s5
  // Predicated region
  $region2: #{encoder_cnn_forward.33} parent=0 // pred_check
    _
  $region3: #{encoder_cnn_forward.33} parent=0 // pred_check_branch
    %10 = sbr.rel (0) target = $region5
  $region4: #{encoder_cnn_forward.33} parent=0 // pred_region
    _
  $region5: #{encoder_cnn_forward.33} parent=0 // pred_fallthru
    _
  // Predicated region
  $region6: #{encoder_cnn_forward.33} parent=0 // pred_check
    _
  $region7: #{encoder_cnn_forward.33} parent=0 // pred_check_branch
    %12 = sbr.rel (0) target = $region9
  $region8: #{encoder_cnn_forward.33} parent=0 // pred_region
    _
  $region9: #{encoder_cnn_forward.33} parent=0 // pred_fallthru
    _
  // Predicated region
  $region10: #{encoder_cnn_forward.33} parent=0 // pred_check
    _
  $region11: #{encoder_cnn_forward.33} parent=0 // pred_check_branch
    %14 = sbr.rel (0) target = $region13
  $region12: #{encoder_cnn_forward.33} parent=0 // pred_region
    _
  $region13: #{encoder_cnn_forward.33} parent=0 // pred_fallthru
    _
  // Predicated region
  $region14: #{encoder_cnn_forward.33} parent=0 // pred_check
    _
  $region15: #{encoder_cnn_forward.33} parent=0 // pred_check_branch
    %16 = sbr.rel (0) target = $region17
  $region16: #{encoder_cnn_forward.33} parent=0 // pred_region
    _
  $region17: #{encoder_cnn_forward.33} parent=0 // pred_fallthru
    _
  %v17 = vld [vmem:[%s0] sm:$0xff]
  %v18 = vld [vmem:[%s0 + $0x8] sm:$0xff]
  %v19 = vld [vmem:[%s1] sm:$0xf]
  %v20 = vld [vmem:[%s1 + $0x4] sm:$0xf]
  %v21 = vld [vmem:[%s1 + $0x8] sm:$0xf]
  %v22 = vld [vmem:[%s1 + $0xc] sm:$0xf]
  %v23 = vld [vmem:[%s1 + $0x10] sm:$0xf]
  %v24 = vld [vmem:[%s1 + $0x14] sm:$0xf]
  %v25 = vld [vmem:[%s1 + $0x18] sm:$0xf]
  %v26 = vld [vmem:[%s1 + $0x1c] sm:$0xf]
  %v27 = vld [vmem:[%s1 + $0x20] sm:$0xf]
  %v28 = vld [vmem:[%s1 + $0x24] sm:$0xf]
  %v29 = vld [vmem:[%s1 + $0x28] sm:$0xf]
  %v30 = vld [vmem:[%s1 + $0x2c] sm:$0xf]
  %v31 = vld [vmem:[%s1 + $0x30] sm:$0xf]
  %v32 = vld [vmem:[%s1 + $0x34] sm:$0xf]
  %v33 = vld [vmem:[%s1 + $0x38] sm:$0xf]
  %v34 = vld [vmem:[%s1 + $0x3c] sm:$0xf]
  %v35 = vld [vmem:[%s1 + $0x40] sm:$0xf]
  %v36 = vld [vmem:[%s1 + $0x44] sm:$0xf]
  %v37 = vld [vmem:[%s1 + $0x48] sm:$0xf]
  %v38 = vld [vmem:[%s1 + $0x4c] sm:$0xf]
  %v39 = vld [vmem:[%s1 + $0x50] sm:$0xf]
  %v40 = vld [vmem:[%s1 + $0x54] sm:$0xf]
  %v41 = vld [vmem:[%s1 + $0x58] sm:$0xf]
  %v42 = vld [vmem:[%s1 + $0x5c] sm:$0xf]
  %v43 = vld [vmem:[%s1 + $0x60] sm:$0xf]
  %v44 = vld [vmem:[%s1 + $0x64] sm:$0xf]
  %v45 = vld [vmem:[%s1 + $0x68] sm:$0xf]
  %v46 = vld [vmem:[%s1 + $0x6c] sm:$0xf]
  %v47 = vld [vmem:[%s1 + $0x70] sm:$0xf]
  %v48 = vld [vmem:[%s1 + $0x74] sm:$0xf]
  %v49 = vld [vmem:[%s1 + $0x78] sm:$0xf]
  %v50 = vld [vmem:[%s1 + $0x7c] sm:$0xf]
  %v53 = vunpack.c.l.b16 %v17
  %v54 = vunpack.c.h.b16 %v17
  %v55 = vunpack.c.l.b16 %v18
  %v56 = vunpack.c.h.b16 %v18
  %v57 = vpack.c.b16 %v55, %v53
  %v58 = vpack.c.b16 %v56, %v54
  %v93 = vunpack.c.l.b16 %v19
  %v94 = vunpack.c.l.b16 %v20
  %v95 = vunpack.c.l.b16 %v21
  %v96 = vunpack.c.l.b16 %v22
  %v97 = vunpack.c.l.b16 %v23
  %v98 = vunpack.c.l.b16 %v24
  %v99 = vunpack.c.l.b16 %v25
  %v100 = vunpack.c.l.b16 %v26
  %v101 = vunpack.c.l.b16 %v27
  %v102 = vunpack.c.l.b16 %v28
  %v103 = vunpack.c.l.b16 %v29
  %v104 = vunpack.c.l.b16 %v30
  %v105 = vunpack.c.l.b16 %v31
  %v106 = vunpack.c.l.b16 %v32
  %v107 = vunpack.c.l.b16 %v33
  %v108 = vunpack.c.l.b16 %v34
  %v109 = vunpack.c.l.b16 %v35
  %v110 = vunpack.c.l.b16 %v36
  %v111 = vunpack.c.l.b16 %v37
  %v112 = vunpack.c.l.b16 %v38
  %v113 = vunpack.c.l.b16 %v39
  %v114 = vunpack.c.l.b16 %v40
  %v115 = vunpack.c.l.b16 %v41
  %v116 = vunpack.c.l.b16 %v42
  %v117 = vunpack.c.l.b16 %v43
  %v118 = vunpack.c.l.b16 %v44
  %v119 = vunpack.c.l.b16 %v45
  %v120 = vunpack.c.l.b16 %v46
  %v121 = vunpack.c.l.b16 %v47
  %v122 = vunpack.c.l.b16 %v48
  %v123 = vunpack.c.l.b16 %v49
  %v124 = vunpack.c.l.b16 %v50
  %v125 = vpack.c.b16 %v94, %v93
  %v126 = vpack.c.b16 %v96, %v95
  %v127 = vpack.c.b16 %v98, %v97
  %v128 = vpack.c.b16 %v100, %v99
  %v129 = vpack.c.b16 %v102, %v101
  %v130 = vpack.c.b16 %v104, %v103
  %v131 = vpack.c.b16 %v106, %v105
  %v132 = vpack.c.b16 %v108, %v107
  %v133 = vpack.c.b16 %v110, %v109
  %v134 = vpack.c.b16 %v112, %v111
  %v135 = vpack.c.b16 %v114, %v113
  %v136 = vpack.c.b16 %v116, %v115
  %v137 = vpack.c.b16 %v118, %v117
  %v138 = vpack.c.b16 %v120, %v119
  %v139 = vpack.c.b16 %v122, %v121
  %v140 = vpack.c.b16 %v124, %v123
  %157 = vmatpush.bf16.msra.mxu0 %v132
  %158 = vmatpush.bf16.msra.mxu0 %v131
  %159 = vmatpush.bf16.msra.mxu0 %v130
  %160 = vmatpush.bf16.msra.mxu0 %v129
  %161 = vmatpush.bf16.msra.mxu0 %v128
  %162 = vmatpush.bf16.msra.mxu0 %v127
  %163 = vmatpush.bf16.msra.mxu0 %v126
  %164 = vmatpush.bf16.msra.mxu0 %v125
  %165 = vmatmul.bf16.gmra.mxu0 %v57
  %v166 = vpop.f32.mrf.mxu0
  %v167 = vadd.f32 0.0, %v166
  %v168 = vpop.f32.mrf.mxu0
  %v169 = vadd.f32 0.0, %v168
  %170 = vdwg.mxu0
  %171 = vmatpush.bf16.msra.mxu0 %v140
  %172 = vmatpush.bf16.msra.mxu0 %v139
  %173 = vmatpush.bf16.msra.mxu0 %v138
  %174 = vmatpush.bf16.msra.mxu0 %v137
  %175 = vmatpush.bf16.msra.mxu0 %v136
  %176 = vmatpush.bf16.msra.mxu0 %v135
  %177 = vmatpush.bf16.msra.mxu0 %v134
  %178 = vmatpush.bf16.msra.mxu0 %v133
  %179 = vmatmul.bf16.gmra.mxu0 %v58
  %v180 = vpop.f32.mrf.mxu0
  %v181 = vadd.f32 %v167, %v180
  %v182 = vpop.f32.mrf.mxu0
  %v183 = vadd.f32 %v169, %v182
  %184 = vdwg.mxu0
  %v185 = vld [vmem:[%s2] sm:$0x1]
  %v187 = vperm.slane %v185, 0
  %v189 = vmul.f32 %v181, %v187
  %v190 = vmul.f32 %v183, %v187
  %v191 = vld [vmem:[%s3] sm:$0x1]
  %v193 = vperm.slane %v191, 0
  %v195 = vadd.f32 %v189, %v193
  %v196 = vadd.f32 %v190, %v193
  %v197 = vmax.f32 %v195, 0.0
  %v198 = vmax.f32 %v196, 0.0
  %v199 = vpack.c.bf16 %v197, %v197
  %v200 = vpack.c.bf16 %v198, %v198
  %201 = vst [vmem:[%s4] sm:$0xf] %v199
  %202 = vst [vmem:[%s4 + $0x4] sm:$0xf] %v200
  // Predicated region
  $region18: #{encoder_cnn_forward.33} parent=0 // pred_check
    _
  $region19: #{encoder_cnn_forward.33} parent=0 // pred_check_branch
    %204 = sbr.rel (0) target = $region21
  $region20: #{encoder_cnn_forward.33} parent=0 // pred_region
    _
  $region21: #{encoder_cnn_forward.33} parent=0 // pred_fallthru
    _
  // Predicated region
  $region22: #{encoder_cnn_forward.33} parent=0 // pred_check
    _
  $region23: #{encoder_cnn_forward.33} parent=0 // pred_check_branch
    %206 = sbr.rel (0) target = $region25
  $region24: #{encoder_cnn_forward.33} parent=0 // pred_region
    _
  $region25: #{encoder_cnn_forward.33} parent=0 // pred_fallthru
    _

// kernel: encoder_cnn_forward.34
$region0: #{encoder_cnn_forward.34}
  #allocation0 [shape = 'u32[]', space=smem, size = 0x4, offset = 0x4, fixed_abs, tag = 'smem constant byte address 0x4 - core index']
  #allocation1 [shape = 'u32[72,128]{1,0:T(1,128)}', space=vmem, size = 0x9000, scoped, tag = 'internal scratch']
  %s0 = inlined_call_operand.vmem [shape: bf16[16,128], index: 0, kind: input, shape index: {}]
  %s1 = inlined_call_operand.vmem [shape: bf16[128,128], index: 1, kind: input, shape index: {}]
  %s2 = inlined_call_operand.vmem [shape: f32[1,128], index: 2, kind: input, shape index: {}]
  %s3 = inlined_call_operand.vmem [shape: f32[1,128], index: 3, kind: input, shape index: {}]
  %s4 = inlined_call_operand.vmem [shape: bf16[16,128], index: 4, kind: output, shape index: {}]
  %s5 = sld [smem:[#allocation0]]
  $region26: #{encoder_cnn_forward.34} parent=0
    _
  %s7 = ssub.s32 1, %s5
  %s8 = scalar_select 0, %s7, %s5
  // Predicated region
  $region2: #{encoder_cnn_forward.34} parent=0 // pred_check
    _
  $region3: #{encoder_cnn_forward.34} parent=0 // pred_check_branch
    %10 = sbr.rel (0) target = $region5
  $region4: #{encoder_cnn_forward.34} parent=0 // pred_region
    _
  $region5: #{encoder_cnn_forward.34} parent=0 // pred_fallthru
    _
  // Predicated region
  $region6: #{encoder_cnn_forward.34} parent=0 // pred_check
    _
  $region7: #{encoder_cnn_forward.34} parent=0 // pred_check_branch
    %12 = sbr.rel (0) target = $region9
  $region8: #{encoder_cnn_forward.34} parent=0 // pred_region
    _
  $region9: #{encoder_cnn_forward.34} parent=0 // pred_fallthru
    _
  // Predicated region
  $region10: #{encoder_cnn_forward.34} parent=0 // pred_check
    _
  $region11: #{encoder_cnn_forward.34} parent=0 // pred_check_branch
    %14 = sbr.rel (0) target = $region13
  $region12: #{encoder_cnn_forward.34} parent=0 // pred_region
    _
  $region13: #{encoder_cnn_forward.34} parent=0 // pred_fallthru
    _
  // Predicated region
  $region14: #{encoder_cnn_forward.34} parent=0 // pred_check
    _
  $region15: #{encoder_cnn_forward.34} parent=0 // pred_check_branch
    %16 = sbr.rel (0) target = $region17
  $region16: #{encoder_cnn_forward.34} parent=0 // pred_region
    _
  $region17: #{encoder_cnn_forward.34} parent=0 // pred_fallthru
    _
  %v17 = vld [vmem:[%s0] sm:$0xf]
  %v18 = vld [vmem:[%s0 + $0x4] sm:$0xf]
  %v19 = vld [vmem:[%s1] sm:$0xf]
  %v20 = vld [vmem:[%s1 + $0x4] sm:$0xf]
  %v21 = vld [vmem:[%s1 + $0x8] sm:$0xf]
  %v22 = vld [vmem:[%s1 + $0xc] sm:$0xf]
  %v23 = vld [vmem:[%s1 + $0x10] sm:$0xf]
  %v24 = vld [vmem:[%s1 + $0x14] sm:$0xf]
  %v25 = vld [vmem:[%s1 + $0x18] sm:$0xf]
  %v26 = vld [vmem:[%s1 + $0x1c] sm:$0xf]
  %v27 = vld [vmem:[%s1 + $0x20] sm:$0xf]
  %v28 = vld [vmem:[%s1 + $0x24] sm:$0xf]
  %v29 = vld [vmem:[%s1 + $0x28] sm:$0xf]
  %v30 = vld [vmem:[%s1 + $0x2c] sm:$0xf]
  %v31 = vld [vmem:[%s1 + $0x30] sm:$0xf]
  %v32 = vld [vmem:[%s1 + $0x34] sm:$0xf]
  %v33 = vld [vmem:[%s1 + $0x38] sm:$0xf]
  %v34 = vld [vmem:[%s1 + $0x3c] sm:$0xf]
  %v37 = vunpack.c.l.b16 %v17
  %v38 = vunpack.c.l.b16 %v18
  %v39 = vpack.c.b16 %v38, %v37
  %v57 = vunpack.c.l.b16 %v19
  %v58 = vunpack.c.l.b16 %v20
  %v59 = vunpack.c.l.b16 %v21
  %v60 = vunpack.c.l.b16 %v22
  %v61 = vunpack.c.l.b16 %v23
  %v62 = vunpack.c.l.b16 %v24
  %v63 = vunpack.c.l.b16 %v25
  %v64 = vunpack.c.l.b16 %v26
  %v65 = vunpack.c.l.b16 %v27
  %v66 = vunpack.c.l.b16 %v28
  %v67 = vunpack.c.l.b16 %v29
  %v68 = vunpack.c.l.b16 %v30
  %v69 = vunpack.c.l.b16 %v31
  %v70 = vunpack.c.l.b16 %v32
  %v71 = vunpack.c.l.b16 %v33
  %v72 = vunpack.c.l.b16 %v34
  %v73 = vpack.c.b16 %v58, %v57
  %v74 = vpack.c.b16 %v60, %v59
  %v75 = vpack.c.b16 %v62, %v61
  %v76 = vpack.c.b16 %v64, %v63
  %v77 = vpack.c.b16 %v66, %v65
  %v78 = vpack.c.b16 %v68, %v67
  %v79 = vpack.c.b16 %v70, %v69
  %v80 = vpack.c.b16 %v72, %v71
  %89 = vmatpush.bf16.msra.mxu0 %v80
  %90 = vmatpush.bf16.msra.mxu0 %v79
  %91 = vmatpush.bf16.msra.mxu0 %v78
  %92 = vmatpush.bf16.msra.mxu0 %v77
  %93 = vmatpush.bf16.msra.mxu0 %v76
  %94 = vmatpush.bf16.msra.mxu0 %v75
  %95 = vmatpush.bf16.msra.mxu0 %v74
  %96 = vmatpush.bf16.msra.mxu0 %v73
  %97 = vmatmul.bf16.gmra.mxu0 %v39
  %v98 = vpop.f32.mrf.mxu0
  %v99 = vadd.f32 0.0, %v98
  %v100 = vpop.f32.mrf.mxu0
  %v101 = vadd.f32 0.0, %v100
  %102 = vdwg.mxu0
  %v103 = vld [vmem:[%s2] sm:$0x1]
  %v105 = vperm.slane %v103, 0
  %v107 = vmul.f32 %v99, %v105
  %v108 = vmul.f32 %v101, %v105
  %v109 = vld [vmem:[%s3] sm:$0x1]
  %v111 = vperm.slane %v109, 0
  %v113 = vadd.f32 %v107, %v111
  %v114 = vadd.f32 %v108, %v111
  %v115 = vpack.c.bf16 %v113, %v113
  %v116 = vpack.c.bf16 %v114, %v114
  %117 = vst [vmem:[%s4] sm:$0xf] %v115
  %118 = vst [vmem:[%s4 + $0x4] sm:$0xf] %v116
  // Predicated region
  $region18: #{encoder_cnn_forward.34} parent=0 // pred_check
    _
  $region19: #{encoder_cnn_forward.34} parent=0 // pred_check_branch
    %120 = sbr.rel (0) target = $region21
  $region20: #{encoder_cnn_forward.34} parent=0 // pred_region
    _
  $region21: #{encoder_cnn_forward.34} parent=0 // pred_fallthru
    _
  // Predicated region
  $region22: #{encoder_cnn_forward.34} parent=0 // pred_check
    _
  $region23: #{encoder_cnn_forward.34} parent=0 // pred_check_branch
    %122 = sbr.rel (0) target = $region25
  $region24: #{encoder_cnn_forward.34} parent=0 // pred_region
    _
  $region25: #{encoder_cnn_forward.34} parent=0 // pred_fallthru
    _

// kernel: encoder_cnn_forward.35
$region0: #{encoder_cnn_forward.35}
  #allocation0 [shape = 'u32[]', space=smem, size = 0x4, offset = 0x4, fixed_abs, tag = 'smem constant byte address 0x4 - core index']
  #allocation1 [shape = 'u32[72,128]{1,0:T(1,128)}', space=vmem, size = 0x9000, scoped, tag = 'internal scratch']
  %s0 = inlined_call_operand.vmem [shape: bf16[16,384], index: 0, kind: input, shape index: {}]
  %s1 = inlined_call_operand.vmem [shape: bf16[384,128], index: 1, kind: input, shape index: {}]
  %s2 = inlined_call_operand.vmem [shape: f32[1,128], index: 2, kind: input, shape index: {}]
  %s3 = inlined_call_operand.vmem [shape: f32[1,128], index: 3, kind: input, shape index: {}]
  %s4 = inlined_call_operand.vmem [shape: bf16[16,128], index: 4, kind: input, shape index: {}]
  %s5 = inlined_call_operand.vmem [shape: bf16[16,128], index: 5, kind: output, shape index: {}]
  %s6 = sld [smem:[#allocation0]]
  $region30: #{encoder_cnn_forward.35} parent=0
    _
  %s8 = ssub.s32 1, %s6
  %s9 = scalar_select 0, %s8, %s6
  // Predicated region
  $region2: #{encoder_cnn_forward.35} parent=0 // pred_check
    _
  $region3: #{encoder_cnn_forward.35} parent=0 // pred_check_branch
    %11 = sbr.rel (0) target = $region5
  $region4: #{encoder_cnn_forward.35} parent=0 // pred_region
    _
  $region5: #{encoder_cnn_forward.35} parent=0 // pred_fallthru
    _
  // Predicated region
  $region6: #{encoder_cnn_forward.35} parent=0 // pred_check
    _
  $region7: #{encoder_cnn_forward.35} parent=0 // pred_check_branch
    %13 = sbr.rel (0) target = $region9
  $region8: #{encoder_cnn_forward.35} parent=0 // pred_region
    _
  $region9: #{encoder_cnn_forward.35} parent=0 // pred_fallthru
    _
  // Predicated region
  $region10: #{encoder_cnn_forward.35} parent=0 // pred_check
    _
  $region11: #{encoder_cnn_forward.35} parent=0 // pred_check_branch
    %15 = sbr.rel (0) target = $region13
  $region12: #{encoder_cnn_forward.35} parent=0 // pred_region
    _
  $region13: #{encoder_cnn_forward.35} parent=0 // pred_fallthru
    _
  // Predicated region
  $region14: #{encoder_cnn_forward.35} parent=0 // pred_check
    _
  $region15: #{encoder_cnn_forward.35} parent=0 // pred_check_branch
    %17 = sbr.rel (0) target = $region17
  $region16: #{encoder_cnn_forward.35} parent=0 // pred_region
    _
  $region17: #{encoder_cnn_forward.35} parent=0 // pred_fallthru
    _
  // Predicated region
  $region18: #{encoder_cnn_forward.35} parent=0 // pred_check
    _
  $region19: #{encoder_cnn_forward.35} parent=0 // pred_check_branch
    %19 = sbr.rel (0) target = $region21
  $region20: #{encoder_cnn_forward.35} parent=0 // pred_region
    _
  $region21: #{encoder_cnn_forward.35} parent=0 // pred_fallthru
    _
  %v20 = vld [vmem:[%s0] sm:$0xff]
  %v21 = vld [vmem:[%s0 + $0x8] sm:$0xf]
  %v22 = vld [vmem:[%s0 + $0xc] sm:$0xff]
  %v23 = vld [vmem:[%s0 + $0x14] sm:$0xf]
  %v24 = vld [vmem:[%s1] sm:$0xf]
  %v25 = vld [vmem:[%s1 + $0x4] sm:$0xf]
  %v26 = vld [vmem:[%s1 + $0x8] sm:$0xf]
  %v27 = vld [vmem:[%s1 + $0xc] sm:$0xf]
  %v28 = vld [vmem:[%s1 + $0x10] sm:$0xf]
  %v29 = vld [vmem:[%s1 + $0x14] sm:$0xf]
  %v30 = vld [vmem:[%s1 + $0x18] sm:$0xf]
  %v31 = vld [vmem:[%s1 + $0x1c] sm:$0xf]
  %v32 = vld [vmem:[%s1 + $0x20] sm:$0xf]
  %v33 = vld [vmem:[%s1 + $0x24] sm:$0xf]
  %v34 = vld [vmem:[%s1 + $0x28] sm:$0xf]
  %v35 = vld [vmem:[%s1 + $0x2c] sm:$0xf]
  %v36 = vld [vmem:[%s1 + $0x30] sm:$0xf]
  %v37 = vld [vmem:[%s1 + $0x34] sm:$0xf]
  %v38 = vld [vmem:[%s1 + $0x38] sm:$0xf]
  %v39 = vld [vmem:[%s1 + $0x3c] sm:$0xf]
  %v40 = vld [vmem:[%s1 + $0x40] sm:$0xf]
  %v41 = vld [vmem:[%s1 + $0x44] sm:$0xf]
  %v42 = vld [vmem:[%s1 + $0x48] sm:$0xf]
  %v43 = vld [vmem:[%s1 + $0x4c] sm:$0xf]
  %v44 = vld [vmem:[%s1 + $0x50] sm:$0xf]
  %v45 = vld [vmem:[%s1 + $0x54] sm:$0xf]
  %v46 = vld [vmem:[%s1 + $0x58] sm:$0xf]
  %v47 = vld [vmem:[%s1 + $0x5c] sm:$0xf]
  %v48 = vld [vmem:[%s1 + $0x60] sm:$0xf]
  %v49 = vld [vmem:[%s1 + $0x64] sm:$0xf]
  %v50 = vld [vmem:[%s1 + $0x68] sm:$0xf]
  %v51 = vld [vmem:[%s1 + $0x6c] sm:$0xf]
  %v52 = vld [vmem:[%s1 + $0x70] sm:$0xf]
  %v53 = vld [vmem:[%s1 + $0x74] sm:$0xf]
  %v54 = vld [vmem:[%s1 + $0x78] sm:$0xf]
  %v55 = vld [vmem:[%s1 + $0x7c] sm:$0xf]
  %v56 = vld [vmem:[%s1 + $0x80] sm:$0xf]
  %v57 = vld [vmem:[%s1 + $0x84] sm:$0xf]
  %v58 = vld [vmem:[%s1 + $0x88] sm:$0xf]
  %v59 = vld [vmem:[%s1 + $0x8c] sm:$0xf]
  %v60 = vld [vmem:[%s1 + $0x90] sm:$0xf]
  %v61 = vld [vmem:[%s1 + $0x94] sm:$0xf]
  %v62 = vld [vmem:[%s1 + $0x98] sm:$0xf]
  %v63 = vld [vmem:[%s1 + $0x9c] sm:$0xf]
  %v64 = vld [vmem:[%s1 + $0xa0] sm:$0xf]
  %v65 = vld [vmem:[%s1 + $0xa4] sm:$0xf]
  %v66 = vld [vmem:[%s1 + $0xa8] sm:$0xf]
  %v67 = vld [vmem:[%s1 + $0xac] sm:$0xf]
  %v68 = vld [vmem:[%s1 + $0xb0] sm:$0xf]
  %v69 = vld [vmem:[%s1 + $0xb4] sm:$0xf]
  %v70 = vld [vmem:[%s1 + $0xb8] sm:$0xf]
  %v71 = vld [vmem:[%s1 + $0xbc] sm:$0xf]
  %v76 = vunpack.c.l.b16 %v20
  %v77 = vunpack.c.h.b16 %v20
  %v78 = vunpack.c.l.b16 %v21
  %v79 = vunpack.c.l.b16 %v22
  %v80 = vunpack.c.h.b16 %v22
  %v81 = vunpack.c.l.b16 %v23
  %v82 = vpack.c.b16 %v79, %v76
  %v83 = vpack.c.b16 %v80, %v77
  %v84 = vpack.c.b16 %v81, %v78
  %v136 = vunpack.c.l.b16 %v24
  %v137 = vunpack.c.l.b16 %v25
  %v138 = vunpack.c.l.b16 %v26
  %v139 = vunpack.c.l.b16 %v27
  %v140 = vunpack.c.l.b16 %v28
  %v141 = vunpack.c.l.b16 %v29
  %v142 = vunpack.c.l.b16 %v30
  %v143 = vunpack.c.l.b16 %v31
  %v144 = vunpack.c.l.b16 %v32
  %v145 = vunpack.c.l.b16 %v33
  %v146 = vunpack.c.l.b16 %v34
  %v147 = vunpack.c.l.b16 %v35
  %v148 = vunpack.c.l.b16 %v36
  %v149 = vunpack.c.l.b16 %v37
  %v150 = vunpack.c.l.b16 %v38
  %v151 = vunpack.c.l.b16 %v39
  %v152 = vunpack.c.l.b16 %v40
  %v153 = vunpack.c.l.b16 %v41
  %v154 = vunpack.c.l.b16 %v42
  %v155 = vunpack.c.l.b16 %v43
  %v156 = vunpack.c.l.b16 %v44
  %v157 = vunpack.c.l.b16 %v45
  %v158 = vunpack.c.l.b16 %v46
  %v159 = vunpack.c.l.b16 %v47
  %v160 = vunpack.c.l.b16 %v48
  %v161 = vunpack.c.l.b16 %v49
  %v162 = vunpack.c.l.b16 %v50
  %v163 = vunpack.c.l.b16 %v51
  %v164 = vunpack.c.l.b16 %v52
  %v165 = vunpack.c.l.b16 %v53
  %v166 = vunpack.c.l.b16 %v54
  %v167 = vunpack.c.l.b16 %v55
  %v168 = vunpack.c.l.b16 %v56
  %v169 = vunpack.c.l.b16 %v57
  %v170 = vunpack.c.l.b16 %v58
  %v171 = vunpack.c.l.b16 %v59
  %v172 = vunpack.c.l.b16 %v60
  %v173 = vunpack.c.l.b16 %v61
  %v174 = vunpack.c.l.b16 %v62
  %v175 = vunpack.c.l.b16 %v63
  %v176 = vunpack.c.l.b16 %v64
  %v177 = vunpack.c.l.b16 %v65
  %v178 = vunpack.c.l.b16 %v66
  %v179 = vunpack.c.l.b16 %v67
  %v180 = vunpack.c.l.b16 %v68
  %v181 = vunpack.c.l.b16 %v69
  %v182 = vunpack.c.l.b16 %v70
  %v183 = vunpack.c.l.b16 %v71
  %v184 = vpack.c.b16 %v137, %v136
  %v185 = vpack.c.b16 %v139, %v138
  %v186 = vpack.c.b16 %v141, %v140
  %v187 = vpack.c.b16 %v143, %v142
  %v188 = vpack.c.b16 %v145, %v144
  %v189 = vpack.c.b16 %v147, %v146
  %v190 = vpack.c.b16 %v149, %v148
  %v191 = vpack.c.b16 %v151, %v150
  %v192 = vpack.c.b16 %v153, %v152
  %v193 = vpack.c.b16 %v155, %v154
  %v194 = vpack.c.b16 %v157, %v156
  %v195 = vpack.c.b16 %v159, %v158
  %v196 = vpack.c.b16 %v161, %v160
  %v197 = vpack.c.b16 %v163, %v162
  %v198 = vpack.c.b16 %v165, %v164
  %v199 = vpack.c.b16 %v167, %v166
  %v200 = vpack.c.b16 %v169, %v168
  %v201 = vpack.c.b16 %v171, %v170
  %v202 = vpack.c.b16 %v173, %v172
  %v203 = vpack.c.b16 %v175, %v174
  %v204 = vpack.c.b16 %v177, %v176
  %v205 = vpack.c.b16 %v179, %v178
  %v206 = vpack.c.b16 %v181, %v180
  %v207 = vpack.c.b16 %v183, %v182
  %232 = vmatpush.bf16.msra.mxu0 %v191
  %233 = vmatpush.bf16.msra.mxu0 %v190
  %234 = vmatpush.bf16.msra.mxu0 %v189
  %235 = vmatpush.bf16.msra.mxu0 %v188
  %236 = vmatpush.bf16.msra.mxu0 %v187
  %237 = vmatpush.bf16.msra.mxu0 %v186
  %238 = vmatpush.bf16.msra.mxu0 %v185
  %239 = vmatpush.bf16.msra.mxu0 %v184
  %240 = vmatmul.bf16.gmra.mxu0 %v82
  %v241 = vpop.f32.mrf.mxu0
  %v242 = vadd.f32 0.0, %v241
  %v243 = vpop.f32.mrf.mxu0
  %v244 = vadd.f32 0.0, %v243
  %245 = vdwg.mxu0
  %246 = vmatpush.bf16.msra.mxu0 %v199
  %247 = vmatpush.bf16.msra.mxu0 %v198
  %248 = vmatpush.bf16.msra.mxu0 %v197
  %249 = vmatpush.bf16.msra.mxu0 %v196
  %250 = vmatpush.bf16.msra.mxu0 %v195
  %251 = vmatpush.bf16.msra.mxu0 %v194
  %252 = vmatpush.bf16.msra.mxu0 %v193
  %253 = vmatpush.bf16.msra.mxu0 %v192
  %254 = vmatmul.bf16.gmra.mxu0 %v83
  %v255 = vpop.f32.mrf.mxu0
  %v256 = vadd.f32 %v242, %v255
  %v257 = vpop.f32.mrf.mxu0
  %v258 = vadd.f32 %v244, %v257
  %259 = vdwg.mxu0
  %260 = vmatpush.bf16.msra.mxu0 %v207
  %261 = vmatpush.bf16.msra.mxu0 %v206
  %262 = vmatpush.bf16.msra.mxu0 %v205
  %263 = vmatpush.bf16.msra.mxu0 %v204
  %264 = vmatpush.bf16.msra.mxu0 %v203
  %265 = vmatpush.bf16.msra.mxu0 %v202
  %266 = vmatpush.bf16.msra.mxu0 %v201
  %267 = vmatpush.bf16.msra.mxu0 %v200
  %268 = vmatmul.bf16.gmra.mxu0 %v84
  %v269 = vpop.f32.mrf.mxu0
  %v270 = vadd.f32 %v256, %v269
  %v271 = vpop.f32.mrf.mxu0
  %v272 = vadd.f32 %v258, %v271
  %273 = vdwg.mxu0
  %v274 = vld [vmem:[%s2] sm:$0x1]
  %v276 = vperm.slane %v274, 0
  %v278 = vmul.f32 %v270, %v276
  %v279 = vmul.f32 %v272, %v276
  %v280 = vld [vmem:[%s3] sm:$0x1]
  %v282 = vperm.slane %v280, 0
  %v284 = vadd.f32 %v278, %v282
  %v285 = vadd.f32 %v279, %v282
  %v286 = vld [vmem:[%s4] sm:$0xf]
  %v287 = vld [vmem:[%s4 + $0x4] sm:$0xf]
  %v288 = vunpack.c.l.bf16 %v286
  %v289 = vunpack.c.l.bf16 %v287
  %v290 = vadd.f32 %v284, %v288
  %v291 = vadd.f32 %v285, %v289
  %v292 = vmax.f32 %v290, 0.0
  %v293 = vmax.f32 %v291, 0.0
  %v294 = vpack.c.bf16 %v292, %v292
  %v295 = vpack.c.bf16 %v293, %v293
  %296 = vst [vmem:[%s5] sm:$0xf] %v294
  %297 = vst [vmem:[%s5 + $0x4] sm:$0xf] %v295
  // Predicated region
  $region22: #{encoder_cnn_forward.35} parent=0 // pred_check
    _
  $region23: #{encoder_cnn_forward.35} parent=0 // pred_check_branch
    %299 = sbr.rel (0) target = $region25
  $region24: #{encoder_cnn_forward.35} parent=0 // pred_region
    _
  $region25: #{encoder_cnn_forward.35} parent=0 // pred_fallthru
    _
  // Predicated region
  $region26: #{encoder_cnn_forward.35} parent=0 // pred_check
    _
  $region27: #{encoder_cnn_forward.35} parent=0 // pred_check_branch
    %301 = sbr.rel (0) target = $region29
  $region28: #{encoder_cnn_forward.35} parent=0 // pred_region
    _
  $region29: #{encoder_cnn_forward.35} parent=0 // pred_fallthru
    _

// kernel: encoder_cnn_forward.36
$region0: #{encoder_cnn_forward.36}
  #allocation0 [shape = 'u32[]', space=smem, size = 0x4, offset = 0x4, fixed_abs, tag = 'smem constant byte address 0x4 - core index']
  #allocation1 [shape = 'u32[72,128]{1,0:T(1,128)}', space=vmem, size = 0x9000, scoped, tag = 'internal scratch']
  %s0 = inlined_call_operand.vmem [shape: bf16[16,384], index: 0, kind: input, shape index: {}]
  %s1 = inlined_call_operand.vmem [shape: bf16[384,128], index: 1, kind: input, shape index: {}]
  %s2 = inlined_call_operand.vmem [shape: f32[1,128], index: 2, kind: input, shape index: {}]
  %s3 = inlined_call_operand.vmem [shape: f32[1,128], index: 3, kind: input, shape index: {}]
  %s4 = inlined_call_operand.vmem [shape: bf16[16,128], index: 4, kind: output, shape index: {}]
  %s5 = sld [smem:[#allocation0]]
  $region26: #{encoder_cnn_forward.36} parent=0
    _
  %s7 = ssub.s32 1, %s5
  %s8 = scalar_select 0, %s7, %s5
  // Predicated region
  $region2: #{encoder_cnn_forward.36} parent=0 // pred_check
    _
  $region3: #{encoder_cnn_forward.36} parent=0 // pred_check_branch
    %10 = sbr.rel (0) target = $region5
  $region4: #{encoder_cnn_forward.36} parent=0 // pred_region
    _
  $region5: #{encoder_cnn_forward.36} parent=0 // pred_fallthru
    _
  // Predicated region
  $region6: #{encoder_cnn_forward.36} parent=0 // pred_check
    _
  $region7: #{encoder_cnn_forward.36} parent=0 // pred_check_branch
    %12 = sbr.rel (0) target = $region9
  $region8: #{encoder_cnn_forward.36} parent=0 // pred_region
    _
  $region9: #{encoder_cnn_forward.36} parent=0 // pred_fallthru
    _
  // Predicated region
  $region10: #{encoder_cnn_forward.36} parent=0 // pred_check
    _
  $region11: #{encoder_cnn_forward.36} parent=0 // pred_check_branch
    %14 = sbr.rel (0) target = $region13
  $region12: #{encoder_cnn_forward.36} parent=0 // pred_region
    _
  $region13: #{encoder_cnn_forward.36} parent=0 // pred_fallthru
    _
  // Predicated region
  $region14: #{encoder_cnn_forward.36} parent=0 // pred_check
    _
  $region15: #{encoder_cnn_forward.36} parent=0 // pred_check_branch
    %16 = sbr.rel (0) target = $region17
  $region16: #{encoder_cnn_forward.36} parent=0 // pred_region
    _
  $region17: #{encoder_cnn_forward.36} parent=0 // pred_fallthru
    _
  %v17 = vld [vmem:[%s0] sm:$0xff]
  %v18 = vld [vmem:[%s0 + $0x8] sm:$0xf]
  %v19 = vld [vmem:[%s0 + $0xc] sm:$0xff]
  %v20 = vld [vmem:[%s0 + $0x14] sm:$0xf]
  %v21 = vld [vmem:[%s1] sm:$0xf]
  %v22 = vld [vmem:[%s1 + $0x4] sm:$0xf]
  %v23 = vld [vmem:[%s1 + $0x8] sm:$0xf]
  %v24 = vld [vmem:[%s1 + $0xc] sm:$0xf]
  %v25 = vld [vmem:[%s1 + $0x10] sm:$0xf]
  %v26 = vld [vmem:[%s1 + $0x14] sm:$0xf]
  %v27 = vld [vmem:[%s1 + $0x18] sm:$0xf]
  %v28 = vld [vmem:[%s1 + $0x1c] sm:$0xf]
  %v29 = vld [vmem:[%s1 + $0x20] sm:$0xf]
  %v30 = vld [vmem:[%s1 + $0x24] sm:$0xf]
  %v31 = vld [vmem:[%s1 + $0x28] sm:$0xf]
  %v32 = vld [vmem:[%s1 + $0x2c] sm:$0xf]
  %v33 = vld [vmem:[%s1 + $0x30] sm:$0xf]
  %v34 = vld [vmem:[%s1 + $0x34] sm:$0xf]
  %v35 = vld [vmem:[%s1 + $0x38] sm:$0xf]
  %v36 = vld [vmem:[%s1 + $0x3c] sm:$0xf]
  %v37 = vld [vmem:[%s1 + $0x40] sm:$0xf]
  %v38 = vld [vmem:[%s1 + $0x44] sm:$0xf]
  %v39 = vld [vmem:[%s1 + $0x48] sm:$0xf]
  %v40 = vld [vmem:[%s1 + $0x4c] sm:$0xf]
  %v41 = vld [vmem:[%s1 + $0x50] sm:$0xf]
  %v42 = vld [vmem:[%s1 + $0x54] sm:$0xf]
  %v43 = vld [vmem:[%s1 + $0x58] sm:$0xf]
  %v44 = vld [vmem:[%s1 + $0x5c] sm:$0xf]
  %v45 = vld [vmem:[%s1 + $0x60] sm:$0xf]
  %v46 = vld [vmem:[%s1 + $0x64] sm:$0xf]
  %v47 = vld [vmem:[%s1 + $0x68] sm:$0xf]
  %v48 = vld [vmem:[%s1 + $0x6c] sm:$0xf]
  %v49 = vld [vmem:[%s1 + $0x70] sm:$0xf]
  %v50 = vld [vmem:[%s1 + $0x74] sm:$0xf]
  %v51 = vld [vmem:[%s1 + $0x78] sm:$0xf]
  %v52 = vld [vmem:[%s1 + $0x7c] sm:$0xf]
  %v53 = vld [vmem:[%s1 + $0x80] sm:$0xf]
  %v54 = vld [vmem:[%s1 + $0x84] sm:$0xf]
  %v55 = vld [vmem:[%s1 + $0x88] sm:$0xf]
  %v56 = vld [vmem:[%s1 + $0x8c] sm:$0xf]
  %v57 = vld [vmem:[%s1 + $0x90] sm:$0xf]
  %v58 = vld [vmem:[%s1 + $0x94] sm:$0xf]
  %v59 = vld [vmem:[%s1 + $0x98] sm:$0xf]
  %v60 = vld [vmem:[%s1 + $0x9c] sm:$0xf]
  %v61 = vld [vmem:[%s1 + $0xa0] sm:$0xf]
  %v62 = vld [vmem:[%s1 + $0xa4] sm:$0xf]
  %v63 = vld [vmem:[%s1 + $0xa8] sm:$0xf]
  %v64 = vld [vmem:[%s1 + $0xac] sm:$0xf]
  %v65 = vld [vmem:[%s1 + $0xb0] sm:$0xf]
  %v66 = vld [vmem:[%s1 + $0xb4] sm:$0xf]
  %v67 = vld [vmem:[%s1 + $0xb8] sm:$0xf]
  %v68 = vld [vmem:[%s1 + $0xbc] sm:$0xf]
  %v73 = vunpack.c.l.b16 %v17
  %v74 = vunpack.c.h.b16 %v17
  %v75 = vunpack.c.l.b16 %v18
  %v76 = vunpack.c.l.b16 %v19
  %v77 = vunpack.c.h.b16 %v19
  %v78 = vunpack.c.l.b16 %v20
  %v79 = vpack.c.b16 %v76, %v73
  %v80 = vpack.c.b16 %v77, %v74
  %v81 = vpack.c.b16 %v78, %v75
  %v133 = vunpack.c.l.b16 %v21
  %v134 = vunpack.c.l.b16 %v22
  %v135 = vunpack.c.l.b16 %v23
  %v136 = vunpack.c.l.b16 %v24
  %v137 = vunpack.c.l.b16 %v25
  %v138 = vunpack.c.l.b16 %v26
  %v139 = vunpack.c.l.b16 %v27
  %v140 = vunpack.c.l.b16 %v28
  %v141 = vunpack.c.l.b16 %v29
  %v142 = vunpack.c.l.b16 %v30
  %v143 = vunpack.c.l.b16 %v31
  %v144 = vunpack.c.l.b16 %v32
  %v145 = vunpack.c.l.b16 %v33
  %v146 = vunpack.c.l.b16 %v34
  %v147 = vunpack.c.l.b16 %v35
  %v148 = vunpack.c.l.b16 %v36
  %v149 = vunpack.c.l.b16 %v37
  %v150 = vunpack.c.l.b16 %v38
  %v151 = vunpack.c.l.b16 %v39
  %v152 = vunpack.c.l.b16 %v40
  %v153 = vunpack.c.l.b16 %v41
  %v154 = vunpack.c.l.b16 %v42
  %v155 = vunpack.c.l.b16 %v43
  %v156 = vunpack.c.l.b16 %v44
  %v157 = vunpack.c.l.b16 %v45
  %v158 = vunpack.c.l.b16 %v46
  %v159 = vunpack.c.l.b16 %v47
  %v160 = vunpack.c.l.b16 %v48
  %v161 = vunpack.c.l.b16 %v49
  %v162 = vunpack.c.l.b16 %v50
  %v163 = vunpack.c.l.b16 %v51
  %v164 = vunpack.c.l.b16 %v52
  %v165 = vunpack.c.l.b16 %v53
  %v166 = vunpack.c.l.b16 %v54
  %v167 = vunpack.c.l.b16 %v55
  %v168 = vunpack.c.l.b16 %v56
  %v169 = vunpack.c.l.b16 %v57
  %v170 = vunpack.c.l.b16 %v58
  %v171 = vunpack.c.l.b16 %v59
  %v172 = vunpack.c.l.b16 %v60
  %v173 = vunpack.c.l.b16 %v61
  %v174 = vunpack.c.l.b16 %v62
  %v175 = vunpack.c.l.b16 %v63
  %v176 = vunpack.c.l.b16 %v64
  %v177 = vunpack.c.l.b16 %v65
  %v178 = vunpack.c.l.b16 %v66
  %v179 = vunpack.c.l.b16 %v67
  %v180 = vunpack.c.l.b16 %v68
  %v181 = vpack.c.b16 %v134, %v133
  %v182 = vpack.c.b16 %v136, %v135
  %v183 = vpack.c.b16 %v138, %v137
  %v184 = vpack.c.b16 %v140, %v139
  %v185 = vpack.c.b16 %v142, %v141
  %v186 = vpack.c.b16 %v144, %v143
  %v187 = vpack.c.b16 %v146, %v145
  %v188 = vpack.c.b16 %v148, %v147
  %v189 = vpack.c.b16 %v150, %v149
  %v190 = vpack.c.b16 %v152, %v151
  %v191 = vpack.c.b16 %v154, %v153
  %v192 = vpack.c.b16 %v156, %v155
  %v193 = vpack.c.b16 %v158, %v157
  %v194 = vpack.c.b16 %v160, %v159
  %v195 = vpack.c.b16 %v162, %v161
  %v196 = vpack.c.b16 %v164, %v163
  %v197 = vpack.c.b16 %v166, %v165
  %v198 = vpack.c.b16 %v168, %v167
  %v199 = vpack.c.b16 %v170, %v169
  %v200 = vpack.c.b16 %v172, %v171
  %v201 = vpack.c.b16 %v174, %v173
  %v202 = vpack.c.b16 %v176, %v175
  %v203 = vpack.c.b16 %v178, %v177
  %v204 = vpack.c.b16 %v180, %v179
  %229 = vmatpush.bf16.msra.mxu0 %v188
  %230 = vmatpush.bf16.msra.mxu0 %v187
  %231 = vmatpush.bf16.msra.mxu0 %v186
  %232 = vmatpush.bf16.msra.mxu0 %v185
  %233 = vmatpush.bf16.msra.mxu0 %v184
  %234 = vmatpush.bf16.msra.mxu0 %v183
  %235 = vmatpush.bf16.msra.mxu0 %v182
  %236 = vmatpush.bf16.msra.mxu0 %v181
  %237 = vmatmul.bf16.gmra.mxu0 %v79
  %v238 = vpop.f32.mrf.mxu0
  %v239 = vadd.f32 0.0, %v238
  %v240 = vpop.f32.mrf.mxu0
  %v241 = vadd.f32 0.0, %v240
  %242 = vdwg.mxu0
  %243 = vmatpush.bf16.msra.mxu0 %v196
  %244 = vmatpush.bf16.msra.mxu0 %v195
  %245 = vmatpush.bf16.msra.mxu0 %v194
  %246 = vmatpush.bf16.msra.mxu0 %v193
  %247 = vmatpush.bf16.msra.mxu0 %v192
  %248 = vmatpush.bf16.msra.mxu0 %v191
  %249 = vmatpush.bf16.msra.mxu0 %v190
  %250 = vmatpush.bf16.msra.mxu0 %v189
  %251 = vmatmul.bf16.gmra.mxu0 %v80
  %v252 = vpop.f32.mrf.mxu0
  %v253 = vadd.f32 %v239, %v252
  %v254 = vpop.f32.mrf.mxu0
  %v255 = vadd.f32 %v241, %v254
  %256 = vdwg.mxu0
  %257 = vmatpush.bf16.msra.mxu0 %v204
  %258 = vmatpush.bf16.msra.mxu0 %v203
  %259 = vmatpush.bf16.msra.mxu0 %v202
  %260 = vmatpush.bf16.msra.mxu0 %v201
  %261 = vmatpush.bf16.msra.mxu0 %v200
  %262 = vmatpush.bf16.msra.mxu0 %v199
  %263 = vmatpush.bf16.msra.mxu0 %v198
  %264 = vmatpush.bf16.msra.mxu0 %v197
  %265 = vmatmul.bf16.gmra.mxu0 %v81
  %v266 = vpop.f32.mrf.mxu0
  %v267 = vadd.f32 %v253, %v266
  %v268 = vpop.f32.mrf.mxu0
  %v269 = vadd.f32 %v255, %v268
  %270 = vdwg.mxu0
  %v271 = vld [vmem:[%s2] sm:$0x1]
  %v273 = vperm.slane %v271, 0
  %v275 = vmul.f32 %v267, %v273
  %v276 = vmul.f32 %v269, %v273
  %v277 = vld [vmem:[%s3] sm:$0x1]
  %v279 = vperm.slane %v277, 0
  %v281 = vadd.f32 %v275, %v279
  %v282 = vadd.f32 %v276, %v279
  %v283 = vmax.f32 %v281, 0.0
  %v284 = vmax.f32 %v282, 0.0
  %v285 = vpack.c.bf16 %v283, %v283
  %v286 = vpack.c.bf16 %v284, %v284
  %287 = vst [vmem:[%s4] sm:$0xf] %v285
  %288 = vst [vmem:[%s4 + $0x4] sm:$0xf] %v286
  // Predicated region
  $region18: #{encoder_cnn_forward.36} parent=0 // pred_check
    _
  $region19: #{encoder_cnn_forward.36} parent=0 // pred_check_branch
    %290 = sbr.rel (0) target = $region21
  $region20: #{encoder_cnn_forward.36} parent=0 // pred_region
    _
  $region21: #{encoder_cnn_forward.36} parent=0 // pred_fallthru
    _
  // Predicated region
  $region22: #{encoder_cnn_forward.36} parent=0 // pred_check
    _
  $region23: #{encoder_cnn_forward.36} parent=0 // pred_check_branch
    %292 = sbr.rel (0) target = $region25
  $region24: #{encoder_cnn_forward.36} parent=0 // pred_region
    _
  $region25: #{encoder_cnn_forward.36} parent=0 // pred_fallthru
    _

// kernel: encoder_cnn_forward.43
$region0: #{encoder_cnn_forward.43}
  #allocation0 [shape = 'u32[]', space=smem, size = 0x4, offset = 0x4, fixed_abs, tag = 'smem constant byte address 0x4 - core index']
  #allocation1 [shape = 'u32[72,128]{1,0:T(1,128)}', space=vmem, size = 0x9000, scoped, tag = 'internal scratch']
  %s0 = inlined_call_operand.vmem [shape: bf16[2,1,128], index: 0, kind: input, shape index: {}]
  %s1 = inlined_call_operand.hbm [shape: f32[2,128], index: 1, kind: output, shape index: {}]
  %s2 = sld [smem:[#allocation0]]
  $region14: #{encoder_cnn_forward.43} parent=0
    _
  %s4 = ssub.s32 1, %s2
  %s5 = scalar_select 0, %s4, %s2
  $region1: #{encoder_cnn_forward.43} parent=0
    #allocation2 [shape = 'u8[1024]{0}', space=vmem, size = 0x400, scoped, tag = 'output window, operand 0, single buffered']
    #allocation3 [shape = 's32[1]{0}', space=sflag, size = 0x4, scoped, tag = 'scoped memory for encoder_cnn_forward.43']
    %6 = vsyncpa [#allocation3], 0
    // Predicated region
    $region2: #{encoder_cnn_forward.43} parent=1 // pred_check
      _
    $region3: #{encoder_cnn_forward.43} parent=1 // pred_check_branch
      %8 = sbr.rel (0) target = $region5
    $region4: #{encoder_cnn_forward.43} parent=1 // pred_region
      _
    $region5: #{encoder_cnn_forward.43} parent=1 // pred_fallthru
      _
    %v9 = vld [vmem:[%s0] sm:$0x1]
    %v10 = vld [vmem:[%s0 + $0x1] sm:$0x1]
    %v11 = vunpack.c.l.bf16 %v9
    %v12 = vunpack.c.l.bf16 %v10
    %v13 = vadd.f32 %v11, 0.0
    %v14 = vadd.f32 %v12, 0.0
    %v17 = vperm.slane %v13, 0
    %v18 = vperm.slane %v14, 0
    %vm19 = vcmask 1041409
    %v20 = vsel %vm19, %v18, %v17
    %22 = vst [vmem:[#allocation2] sm:$0x3] %v20
    // Predicated region
    $region6: #{encoder_cnn_forward.43} parent=1 // pred_check
      _
    $region7: #{encoder_cnn_forward.43} parent=1 // pred_check_branch
      %24 = sbr.rel (0) target = $region9
    $region8: #{encoder_cnn_forward.43} parent=1 // pred_region
      %26 = vsyncadd [#allocation3], 0
      %s28 = sshll.u32 [#allocation2], 4
      %s29 = int_to_ptr.vmem [resolvable:$true] %s28
      %s30 = sshll.u32 %s1, 4
      %s31 = int_to_ptr.hbm [resolvable:$true] %s30
      %33 = dma.vmem_to_hbm [thread:$0]  %s29, 32, %s31, [#allocation3]
    $region9: #{encoder_cnn_forward.43} parent=1 // pred_fallthru
      _
    // Predicated region
    $region10: #{encoder_cnn_forward.43} parent=1 // pred_check
      _
    $region11: #{encoder_cnn_forward.43} parent=1 // pred_check_branch
      %35 = sbr.rel (0) target = $region13
    $region12: #{encoder_cnn_forward.43} parent=1 // pred_region
      %37 = dma.done [#allocation3], 32
    $region13: #{encoder_cnn_forward.43} parent=1 // pred_fallthru
      _
    %38 = vsyncpa [#allocation3], 1

// kernel: encoder_cnn_forward.40
$region0: #{encoder_cnn_forward.40}
  #allocation0 [shape = 'u32[]', space=smem, size = 0x4, offset = 0x4, fixed_abs, tag = 'smem constant byte address 0x4 - core index']
  #allocation1 [shape = 'u32[72,128]{1,0:T(1,128)}', space=vmem, size = 0x9000, scoped, tag = 'internal scratch']
  %s0 = inlined_call_operand.vmem [shape: bf16[16,640], index: 0, kind: input, shape index: {}]
  %s1 = inlined_call_operand.vmem [shape: bf16[640,128], index: 1, kind: input, shape index: {}]
  %s2 = inlined_call_operand.vmem [shape: f32[1,128], index: 2, kind: input, shape index: {}]
  %s3 = inlined_call_operand.vmem [shape: f32[1,128], index: 3, kind: input, shape index: {}]
  %s4 = inlined_call_operand.vmem [shape: bf16[16,128], index: 4, kind: input, shape index: {}]
  %s5 = inlined_call_operand.vmem [shape: bf16[16,128], index: 5, kind: output, shape index: {}]
  %s6 = sld [smem:[#allocation0]]
  $region30: #{encoder_cnn_forward.40} parent=0
    _
  %s8 = ssub.s32 1, %s6
  %s9 = scalar_select 0, %s8, %s6
  // Predicated region
  $region2: #{encoder_cnn_forward.40} parent=0 // pred_check
    _
  $region3: #{encoder_cnn_forward.40} parent=0 // pred_check_branch
    %11 = sbr.rel (0) target = $region5
  $region4: #{encoder_cnn_forward.40} parent=0 // pred_region
    _
  $region5: #{encoder_cnn_forward.40} parent=0 // pred_fallthru
    _
  // Predicated region
  $region6: #{encoder_cnn_forward.40} parent=0 // pred_check
    _
  $region7: #{encoder_cnn_forward.40} parent=0 // pred_check_branch
    %13 = sbr.rel (0) target = $region9
  $region8: #{encoder_cnn_forward.40} parent=0 // pred_region
    _
  $region9: #{encoder_cnn_forward.40} parent=0 // pred_fallthru
    _
  // Predicated region
  $region10: #{encoder_cnn_forward.40} parent=0 // pred_check
    _
  $region11: #{encoder_cnn_forward.40} parent=0 // pred_check_branch
    %15 = sbr.rel (0) target = $region13
  $region12: #{encoder_cnn_forward.40} parent=0 // pred_region
    _
  $region13: #{encoder_cnn_forward.40} parent=0 // pred_fallthru
    _
  // Predicated region
  $region14: #{encoder_cnn_forward.40} parent=0 // pred_check
    _
  $region15: #{encoder_cnn_forward.40} parent=0 // pred_check_branch
    %17 = sbr.rel (0) target = $region17
  $region16: #{encoder_cnn_forward.40} parent=0 // pred_region
    _
  $region17: #{encoder_cnn_forward.40} parent=0 // pred_fallthru
    _
  // Predicated region
  $region18: #{encoder_cnn_forward.40} parent=0 // pred_check
    _
  $region19: #{encoder_cnn_forward.40} parent=0 // pred_check_branch
    %19 = sbr.rel (0) target = $region21
  $region20: #{encoder_cnn_forward.40} parent=0 // pred_region
    _
  $region21: #{encoder_cnn_forward.40} parent=0 // pred_fallthru
    _
  %v20 = vld [vmem:[%s0] sm:$0xff]
  %v21 = vld [vmem:[%s0 + $0x8] sm:$0xff]
  %v22 = vld [vmem:[%s0 + $0x10] sm:$0xf]
  %v23 = vld [vmem:[%s0 + $0x14] sm:$0xff]
  %v24 = vld [vmem:[%s0 + $0x1c] sm:$0xff]
  %v25 = vld [vmem:[%s0 + $0x24] sm:$0xf]
  %v26 = vld [vmem:[%s1] sm:$0xf]
  %v27 = vld [vmem:[%s1 + $0x4] sm:$0xf]
  %v28 = vld [vmem:[%s1 + $0x8] sm:$0xf]
  %v29 = vld [vmem:[%s1 + $0xc] sm:$0xf]
  %v30 = vld [vmem:[%s1 + $0x10] sm:$0xf]
  %v31 = vld [vmem:[%s1 + $0x14] sm:$0xf]
  %v32 = vld [vmem:[%s1 + $0x18] sm:$0xf]
  %v33 = vld [vmem:[%s1 + $0x1c] sm:$0xf]
  %v34 = vld [vmem:[%s1 + $0x20] sm:$0xf]
  %v35 = vld [vmem:[%s1 + $0x24] sm:$0xf]
  %v36 = vld [vmem:[%s1 + $0x28] sm:$0xf]
  %v37 = vld [vmem:[%s1 + $0x2c] sm:$0xf]
  %v38 = vld [vmem:[%s1 + $0x30] sm:$0xf]
  %v39 = vld [vmem:[%s1 + $0x34] sm:$0xf]
  %v40 = vld [vmem:[%s1 + $0x38] sm:$0xf]
  %v41 = vld [vmem:[%s1 + $0x3c] sm:$0xf]
  %v42 = vld [vmem:[%s1 + $0x40] sm:$0xf]
  %v43 = vld [vmem:[%s1 + $0x44] sm:$0xf]
  %v44 = vld [vmem:[%s1 + $0x48] sm:$0xf]
  %v45 = vld [vmem:[%s1 + $0x4c] sm:$0xf]
  %v46 = vld [vmem:[%s1 + $0x50] sm:$0xf]
  %v47 = vld [vmem:[%s1 + $0x54] sm:$0xf]
  %v48 = vld [vmem:[%s1 + $0x58] sm:$0xf]
  %v49 = vld [vmem:[%s1 + $0x5c] sm:$0xf]
  %v50 = vld [vmem:[%s1 + $0x60] sm:$0xf]
  %v51 = vld [vmem:[%s1 + $0x64] sm:$0xf]
  %v52 = vld [vmem:[%s1 + $0x68] sm:$0xf]
  %v53 = vld [vmem:[%s1 + $0x6c] sm:$0xf]
  %v54 = vld [vmem:[%s1 + $0x70] sm:$0xf]
  %v55 = vld [vmem:[%s1 + $0x74] sm:$0xf]
  %v56 = vld [vmem:[%s1 + $0x78] sm:$0xf]
  %v57 = vld [vmem:[%s1 + $0x7c] sm:$0xf]
  %v58 = vld [vmem:[%s1 + $0x80] sm:$0xf]
  %v59 = vld [vmem:[%s1 + $0x84] sm:$0xf]
  %v60 = vld [vmem:[%s1 + $0x88] sm:$0xf]
  %v61 = vld [vmem:[%s1 + $0x8c] sm:$0xf]
  %v62 = vld [vmem:[%s1 + $0x90] sm:$0xf]
  %v63 = vld [vmem:[%s1 + $0x94] sm:$0xf]
  %v64 = vld [vmem:[%s1 + $0x98] sm:$0xf]
  %v65 = vld [vmem:[%s1 + $0x9c] sm:$0xf]
  %v66 = vld [vmem:[%s1 + $0xa0] sm:$0xf]
  %v67 = vld [vmem:[%s1 + $0xa4] sm:$0xf]
  %v68 = vld [vmem:[%s1 + $0xa8] sm:$0xf]
  %v69 = vld [vmem:[%s1 + $0xac] sm:$0xf]
  %v70 = vld [vmem:[%s1 + $0xb0] sm:$0xf]
  %v71 = vld [vmem:[%s1 + $0xb4] sm:$0xf]
  %v72 = vld [vmem:[%s1 + $0xb8] sm:$0xf]
  %v73 = vld [vmem:[%s1 + $0xbc] sm:$0xf]
  %v74 = vld [vmem:[%s1 + $0xc0] sm:$0xf]
  %v75 = vld [vmem:[%s1 + $0xc4] sm:$0xf]
  %v76 = vld [vmem:[%s1 + $0xc8] sm:$0xf]
  %v77 = vld [vmem:[%s1 + $0xcc] sm:$0xf]
  %v78 = vld [vmem:[%s1 + $0xd0] sm:$0xf]
  %v79 = vld [vmem:[%s1 + $0xd4] sm:$0xf]
  %v80 = vld [vmem:[%s1 + $0xd8] sm:$0xf]
  %v81 = vld [vmem:[%s1 + $0xdc] sm:$0xf]
  %v82 = vld [vmem:[%s1 + $0xe0] sm:$0xf]
  %v83 = vld [vmem:[%s1 + $0xe4] sm:$0xf]
  %v84 = vld [vmem:[%s1 + $0xe8] sm:$0xf]
  %v85 = vld [vmem:[%s1 + $0xec] sm:$0xf]
  %v86 = vld [vmem:[%s1 + $0xf0] sm:$0xf]
  %v87 = vld [vmem:[%s1 + $0xf4] sm:$0xf]
  %v88 = vld [vmem:[%s1 + $0xf8] sm:$0xf]
  %v89 = vld [vmem:[%s1 + $0xfc] sm:$0xf]
  %v90 = vld [vmem:[%s1 + $0x100] sm:$0xf]
  %v91 = vld [vmem:[%s1 + $0x104] sm:$0xf]
  %v92 = vld [vmem:[%s1 + $0x108] sm:$0xf]
  %v93 = vld [vmem:[%s1 + $0x10c] sm:$0xf]
  %v94 = vld [vmem:[%s1 + $0x110] sm:$0xf]
  %v95 = vld [vmem:[%s1 + $0x114] sm:$0xf]
  %v96 = vld [vmem:[%s1 + $0x118] sm:$0xf]
  %v97 = vld [vmem:[%s1 + $0x11c] sm:$0xf]
  %v98 = vld [vmem:[%s1 + $0x120] sm:$0xf]
  %v99 = vld [vmem:[%s1 + $0x124] sm:$0xf]
  %v100 = vld [vmem:[%s1 + $0x128] sm:$0xf]
  %v101 = vld [vmem:[%s1 + $0x12c] sm:$0xf]
  %v102 = vld [vmem:[%s1 + $0x130] sm:$0xf]
  %v103 = vld [vmem:[%s1 + $0x134] sm:$0xf]
  %v104 = vld [vmem:[%s1 + $0x138] sm:$0xf]
  %v105 = vld [vmem:[%s1 + $0x13c] sm:$0xf]
  %v112 = vunpack.c.l.b16 %v20
  %v113 = vunpack.c.h.b16 %v20
  %v114 = vunpack.c.l.b16 %v21
  %v115 = vunpack.c.h.b16 %v21
  %v116 = vunpack.c.l.b16 %v22
  %v117 = vunpack.c.l.b16 %v23
  %v118 = vunpack.c.h.b16 %v23
  %v119 = vunpack.c.l.b16 %v24
  %v120 = vunpack.c.h.b16 %v24
  %v121 = vunpack.c.l.b16 %v25
  %v122 = vpack.c.b16 %v117, %v112
  %v123 = vpack.c.b16 %v118, %v113
  %v124 = vpack.c.b16 %v119, %v114
  %v125 = vpack.c.b16 %v120, %v115
  %v126 = vpack.c.b16 %v121, %v116
  %v212 = vunpack.c.l.b16 %v26
  %v213 = vunpack.c.l.b16 %v27
  %v214 = vunpack.c.l.b16 %v28
  %v215 = vunpack.c.l.b16 %v29
  %v216 = vunpack.c.l.b16 %v30
  %v217 = vunpack.c.l.b16 %v31
  %v218 = vunpack.c.l.b16 %v32
  %v219 = vunpack.c.l.b16 %v33
  %v220 = vunpack.c.l.b16 %v34
  %v221 = vunpack.c.l.b16 %v35
  %v222 = vunpack.c.l.b16 %v36
  %v223 = vunpack.c.l.b16 %v37
  %v224 = vunpack.c.l.b16 %v38
  %v225 = vunpack.c.l.b16 %v39
  %v226 = vunpack.c.l.b16 %v40
  %v227 = vunpack.c.l.b16 %v41
  %v228 = vunpack.c.l.b16 %v42
  %v229 = vunpack.c.l.b16 %v43
  %v230 = vunpack.c.l.b16 %v44
  %v231 = vunpack.c.l.b16 %v45
  %v232 = vunpack.c.l.b16 %v46
  %v233 = vunpack.c.l.b16 %v47
  %v234 = vunpack.c.l.b16 %v48
  %v235 = vunpack.c.l.b16 %v49
  %v236 = vunpack.c.l.b16 %v50
  %v237 = vunpack.c.l.b16 %v51
  %v238 = vunpack.c.l.b16 %v52
  %v239 = vunpack.c.l.b16 %v53
  %v240 = vunpack.c.l.b16 %v54
  %v241 = vunpack.c.l.b16 %v55
  %v242 = vunpack.c.l.b16 %v56
  %v243 = vunpack.c.l.b16 %v57
  %v244 = vunpack.c.l.b16 %v58
  %v245 = vunpack.c.l.b16 %v59
  %v246 = vunpack.c.l.b16 %v60
  %v247 = vunpack.c.l.b16 %v61
  %v248 = vunpack.c.l.b16 %v62
  %v249 = vunpack.c.l.b16 %v63
  %v250 = vunpack.c.l.b16 %v64
  %v251 = vunpack.c.l.b16 %v65
  %v252 = vunpack.c.l.b16 %v66
  %v253 = vunpack.c.l.b16 %v67
  %v254 = vunpack.c.l.b16 %v68
  %v255 = vunpack.c.l.b16 %v69
  %v256 = vunpack.c.l.b16 %v70
  %v257 = vunpack.c.l.b16 %v71
  %v258 = vunpack.c.l.b16 %v72
  %v259 = vunpack.c.l.b16 %v73
  %v260 = vunpack.c.l.b16 %v74
  %v261 = vunpack.c.l.b16 %v75
  %v262 = vunpack.c.l.b16 %v76
  %v263 = vunpack.c.l.b16 %v77
  %v264 = vunpack.c.l.b16 %v78
  %v265 = vunpack.c.l.b16 %v79
  %v266 = vunpack.c.l.b16 %v80
  %v267 = vunpack.c.l.b16 %v81
  %v268 = vunpack.c.l.b16 %v82
  %v269 = vunpack.c.l.b16 %v83
  %v270 = vunpack.c.l.b16 %v84
  %v271 = vunpack.c.l.b16 %v85
  %v272 = vunpack.c.l.b16 %v86
  %v273 = vunpack.c.l.b16 %v87
  %v274 = vunpack.c.l.b16 %v88
  %v275 = vunpack.c.l.b16 %v89
  %v276 = vunpack.c.l.b16 %v90
  %v277 = vunpack.c.l.b16 %v91
  %v278 = vunpack.c.l.b16 %v92
  %v279 = vunpack.c.l.b16 %v93
  %v280 = vunpack.c.l.b16 %v94
  %v281 = vunpack.c.l.b16 %v95
  %v282 = vunpack.c.l.b16 %v96
  %v283 = vunpack.c.l.b16 %v97
  %v284 = vunpack.c.l.b16 %v98
  %v285 = vunpack.c.l.b16 %v99
  %v286 = vunpack.c.l.b16 %v100
  %v287 = vunpack.c.l.b16 %v101
  %v288 = vunpack.c.l.b16 %v102
  %v289 = vunpack.c.l.b16 %v103
  %v290 = vunpack.c.l.b16 %v104
  %v291 = vunpack.c.l.b16 %v105
  %v292 = vpack.c.b16 %v213, %v212
  %v293 = vpack.c.b16 %v215, %v214
  %v294 = vpack.c.b16 %v217, %v216
  %v295 = vpack.c.b16 %v219, %v218
  %v296 = vpack.c.b16 %v221, %v220
  %v297 = vpack.c.b16 %v223, %v222
  %v298 = vpack.c.b16 %v225, %v224
  %v299 = vpack.c.b16 %v227, %v226
  %v300 = vpack.c.b16 %v229, %v228
  %v301 = vpack.c.b16 %v231, %v230
  %v302 = vpack.c.b16 %v233, %v232
  %v303 = vpack.c.b16 %v235, %v234
  %v304 = vpack.c.b16 %v237, %v236
  %v305 = vpack.c.b16 %v239, %v238
  %v306 = vpack.c.b16 %v241, %v240
  %v307 = vpack.c.b16 %v243, %v242
  %v308 = vpack.c.b16 %v245, %v244
  %v309 = vpack.c.b16 %v247, %v246
  %v310 = vpack.c.b16 %v249, %v248
  %v311 = vpack.c.b16 %v251, %v250
  %v312 = vpack.c.b16 %v253, %v252
  %v313 = vpack.c.b16 %v255, %v254
  %v314 = vpack.c.b16 %v257, %v256
  %v315 = vpack.c.b16 %v259, %v258
  %v316 = vpack.c.b16 %v261, %v260
  %v317 = vpack.c.b16 %v263, %v262
  %v318 = vpack.c.b16 %v265, %v264
  %v319 = vpack.c.b16 %v267, %v266
  %v320 = vpack.c.b16 %v269, %v268
  %v321 = vpack.c.b16 %v271, %v270
  %v322 = vpack.c.b16 %v273, %v272
  %v323 = vpack.c.b16 %v275, %v274
  %v324 = vpack.c.b16 %v277, %v276
  %v325 = vpack.c.b16 %v279, %v278
  %v326 = vpack.c.b16 %v281, %v280
  %v327 = vpack.c.b16 %v283, %v282
  %v328 = vpack.c.b16 %v285, %v284
  %v329 = vpack.c.b16 %v287, %v286
  %v330 = vpack.c.b16 %v289, %v288
  %v331 = vpack.c.b16 %v291, %v290
  %372 = vmatpush.bf16.msra.mxu0 %v299
  %373 = vmatpush.bf16.msra.mxu0 %v298
  %374 = vmatpush.bf16.msra.mxu0 %v297
  %375 = vmatpush.bf16.msra.mxu0 %v296
  %376 = vmatpush.bf16.msra.mxu0 %v295
  %377 = vmatpush.bf16.msra.mxu0 %v294
  %378 = vmatpush.bf16.msra.mxu0 %v293
  %379 = vmatpush.bf16.msra.mxu0 %v292
  %380 = vmatmul.bf16.gmra.mxu0 %v122
  %v381 = vpop.f32.mrf.mxu0
  %v382 = vadd.f32 0.0, %v381
  %v383 = vpop.f32.mrf.mxu0
  %v384 = vadd.f32 0.0, %v383
  %385 = vdwg.mxu0
  %386 = vmatpush.bf16.msra.mxu0 %v307
  %387 = vmatpush.bf16.msra.mxu0 %v306
  %388 = vmatpush.bf16.msra.mxu0 %v305
  %389 = vmatpush.bf16.msra.mxu0 %v304
  %390 = vmatpush.bf16.msra.mxu0 %v303
  %391 = vmatpush.bf16.msra.mxu0 %v302
  %392 = vmatpush.bf16.msra.mxu0 %v301
  %393 = vmatpush.bf16.msra.mxu0 %v300
  %394 = vmatmul.bf16.gmra.mxu0 %v123
  %v395 = vpop.f32.mrf.mxu0
  %v396 = vadd.f32 %v382, %v395
  %v397 = vpop.f32.mrf.mxu0
  %v398 = vadd.f32 %v384, %v397
  %399 = vdwg.mxu0
  %400 = vmatpush.bf16.msra.mxu0 %v315
  %401 = vmatpush.bf16.msra.mxu0 %v314
  %402 = vmatpush.bf16.msra.mxu0 %v313
  %403 = vmatpush.bf16.msra.mxu0 %v312
  %404 = vmatpush.bf16.msra.mxu0 %v311
  %405 = vmatpush.bf16.msra.mxu0 %v310
  %406 = vmatpush.bf16.msra.mxu0 %v309
  %407 = vmatpush.bf16.msra.mxu0 %v308
  %408 = vmatmul.bf16.gmra.mxu0 %v124
  %v409 = vpop.f32.mrf.mxu0
  %v410 = vadd.f32 %v396, %v409
  %v411 = vpop.f32.mrf.mxu0
  %v412 = vadd.f32 %v398, %v411
  %413 = vdwg.mxu0
  %414 = vmatpush.bf16.msra.mxu0 %v323
  %415 = vmatpush.bf16.msra.mxu0 %v322
  %416 = vmatpush.bf16.msra.mxu0 %v321
  %417 = vmatpush.bf16.msra.mxu0 %v320
  %418 = vmatpush.bf16.msra.mxu0 %v319
  %419 = vmatpush.bf16.msra.mxu0 %v318
  %420 = vmatpush.bf16.msra.mxu0 %v317
  %421 = vmatpush.bf16.msra.mxu0 %v316
  %422 = vmatmul.bf16.gmra.mxu0 %v125
  %v423 = vpop.f32.mrf.mxu0
  %v424 = vadd.f32 %v410, %v423
  %v425 = vpop.f32.mrf.mxu0
  %v426 = vadd.f32 %v412, %v425
  %427 = vdwg.mxu0
  %428 = vmatpush.bf16.msra.mxu0 %v331
  %429 = vmatpush.bf16.msra.mxu0 %v330
  %430 = vmatpush.bf16.msra.mxu0 %v329
  %431 = vmatpush.bf16.msra.mxu0 %v328
  %432 = vmatpush.bf16.msra.mxu0 %v327
  %433 = vmatpush.bf16.msra.mxu0 %v326
  %434 = vmatpush.bf16.msra.mxu0 %v325
  %435 = vmatpush.bf16.msra.mxu0 %v324
  %436 = vmatmul.bf16.gmra.mxu0 %v126
  %v437 = vpop.f32.mrf.mxu0
  %v438 = vadd.f32 %v424, %v437
  %v439 = vpop.f32.mrf.mxu0
  %v440 = vadd.f32 %v426, %v439
  %441 = vdwg.mxu0
  %v442 = vld [vmem:[%s2] sm:$0x1]
  %v444 = vperm.slane %v442, 0
  %v446 = vmul.f32 %v438, %v444
  %v447 = vmul.f32 %v440, %v444
  %v448 = vld [vmem:[%s3] sm:$0x1]
  %v450 = vperm.slane %v448, 0
  %v452 = vadd.f32 %v446, %v450
  %v453 = vadd.f32 %v447, %v450
  %v454 = vld [vmem:[%s4] sm:$0xf]
  %v455 = vld [vmem:[%s4 + $0x4] sm:$0xf]
  %v456 = vunpack.c.l.bf16 %v454
  %v457 = vunpack.c.l.bf16 %v455
  %v458 = vadd.f32 %v452, %v456
  %v459 = vadd.f32 %v453, %v457
  %v460 = vmax.f32 %v458, 0.0
  %v461 = vmax.f32 %v459, 0.0
  %v462 = vpack.c.bf16 %v460, %v460
  %v463 = vpack.c.bf16 %v461, %v461
  %464 = vst [vmem:[%s5] sm:$0xf] %v462
  %465 = vst [vmem:[%s5 + $0x4] sm:$0xf] %v463
  // Predicated region
  $region22: #{encoder_cnn_forward.40} parent=0 // pred_check
    _
  $region23: #{encoder_cnn_forward.40} parent=0 // pred_check_branch
    %467 = sbr.rel (0) target = $region25
  $region24: #{encoder_cnn_forward.40} parent=0 // pred_region
    _
  $region25: #{encoder_cnn_forward.40} parent=0 // pred_fallthru
    _
  // Predicated region
  $region26: #{encoder_cnn_forward.40} parent=0 // pred_check
    _
  $region27: #{encoder_cnn_forward.40} parent=0 // pred_check_branch
    %469 = sbr.rel (0) target = $region29
  $region28: #{encoder_cnn_forward.40} parent=0 // pred_region
    _
  $region29: #{encoder_cnn_forward.40} parent=0 // pred_fallthru
    _

// kernel: encoder_cnn_forward.41
$region0: #{encoder_cnn_forward.41}
  #allocation0 [shape = 'u32[]', space=smem, size = 0x4, offset = 0x4, fixed_abs, tag = 'smem constant byte address 0x4 - core index']
  #allocation1 [shape = 'u32[72,128]{1,0:T(1,128)}', space=vmem, size = 0x9000, scoped, tag = 'internal scratch']
  %s0 = inlined_call_operand.vmem [shape: bf16[16,640], index: 0, kind: input, shape index: {}]
  %s1 = inlined_call_operand.vmem [shape: bf16[640,128], index: 1, kind: input, shape index: {}]
  %s2 = inlined_call_operand.vmem [shape: f32[1,128], index: 2, kind: input, shape index: {}]
  %s3 = inlined_call_operand.vmem [shape: f32[1,128], index: 3, kind: input, shape index: {}]
  %s4 = inlined_call_operand.vmem [shape: bf16[16,128], index: 4, kind: output, shape index: {}]
  %s5 = sld [smem:[#allocation0]]
  $region26: #{encoder_cnn_forward.41} parent=0
    _
  %s7 = ssub.s32 1, %s5
  %s8 = scalar_select 0, %s7, %s5
  // Predicated region
  $region2: #{encoder_cnn_forward.41} parent=0 // pred_check
    _
  $region3: #{encoder_cnn_forward.41} parent=0 // pred_check_branch
    %10 = sbr.rel (0) target = $region5
  $region4: #{encoder_cnn_forward.41} parent=0 // pred_region
    _
  $region5: #{encoder_cnn_forward.41} parent=0 // pred_fallthru
    _
  // Predicated region
  $region6: #{encoder_cnn_forward.41} parent=0 // pred_check
    _
  $region7: #{encoder_cnn_forward.41} parent=0 // pred_check_branch
    %12 = sbr.rel (0) target = $region9
  $region8: #{encoder_cnn_forward.41} parent=0 // pred_region
    _
  $region9: #{encoder_cnn_forward.41} parent=0 // pred_fallthru
    _
  // Predicated region
  $region10: #{encoder_cnn_forward.41} parent=0 // pred_check
    _
  $region11: #{encoder_cnn_forward.41} parent=0 // pred_check_branch
    %14 = sbr.rel (0) target = $region13
  $region12: #{encoder_cnn_forward.41} parent=0 // pred_region
    _
  $region13: #{encoder_cnn_forward.41} parent=0 // pred_fallthru
    _
  // Predicated region
  $region14: #{encoder_cnn_forward.41} parent=0 // pred_check
    _
  $region15: #{encoder_cnn_forward.41} parent=0 // pred_check_branch
    %16 = sbr.rel (0) target = $region17
  $region16: #{encoder_cnn_forward.41} parent=0 // pred_region
    _
  $region17: #{encoder_cnn_forward.41} parent=0 // pred_fallthru
    _
  %v17 = vld [vmem:[%s0] sm:$0xff]
  %v18 = vld [vmem:[%s0 + $0x8] sm:$0xff]
  %v19 = vld [vmem:[%s0 + $0x10] sm:$0xf]
  %v20 = vld [vmem:[%s0 + $0x14] sm:$0xff]
  %v21 = vld [vmem:[%s0 + $0x1c] sm:$0xff]
  %v22 = vld [vmem:[%s0 + $0x24] sm:$0xf]
  %v23 = vld [vmem:[%s1] sm:$0xf]
  %v24 = vld [vmem:[%s1 + $0x4] sm:$0xf]
  %v25 = vld [vmem:[%s1 + $0x8] sm:$0xf]
  %v26 = vld [vmem:[%s1 + $0xc] sm:$0xf]
  %v27 = vld [vmem:[%s1 + $0x10] sm:$0xf]
  %v28 = vld [vmem:[%s1 + $0x14] sm:$0xf]
  %v29 = vld [vmem:[%s1 + $0x18] sm:$0xf]
  %v30 = vld [vmem:[%s1 + $0x1c] sm:$0xf]
  %v31 = vld [vmem:[%s1 + $0x20] sm:$0xf]
  %v32 = vld [vmem:[%s1 + $0x24] sm:$0xf]
  %v33 = vld [vmem:[%s1 + $0x28] sm:$0xf]
  %v34 = vld [vmem:[%s1 + $0x2c] sm:$0xf]
  %v35 = vld [vmem:[%s1 + $0x30] sm:$0xf]
  %v36 = vld [vmem:[%s1 + $0x34] sm:$0xf]
  %v37 = vld [vmem:[%s1 + $0x38] sm:$0xf]
  %v38 = vld [vmem:[%s1 + $0x3c] sm:$0xf]
  %v39 = vld [vmem:[%s1 + $0x40] sm:$0xf]
  %v40 = vld [vmem:[%s1 + $0x44] sm:$0xf]
  %v41 = vld [vmem:[%s1 + $0x48] sm:$0xf]
  %v42 = vld [vmem:[%s1 + $0x4c] sm:$0xf]
  %v43 = vld [vmem:[%s1 + $0x50] sm:$0xf]
  %v44 = vld [vmem:[%s1 + $0x54] sm:$0xf]
  %v45 = vld [vmem:[%s1 + $0x58] sm:$0xf]
  %v46 = vld [vmem:[%s1 + $0x5c] sm:$0xf]
  %v47 = vld [vmem:[%s1 + $0x60] sm:$0xf]
  %v48 = vld [vmem:[%s1 + $0x64] sm:$0xf]
  %v49 = vld [vmem:[%s1 + $0x68] sm:$0xf]
  %v50 = vld [vmem:[%s1 + $0x6c] sm:$0xf]
  %v51 = vld [vmem:[%s1 + $0x70] sm:$0xf]
  %v52 = vld [vmem:[%s1 + $0x74] sm:$0xf]
  %v53 = vld [vmem:[%s1 + $0x78] sm:$0xf]
  %v54 = vld [vmem:[%s1 + $0x7c] sm:$0xf]
  %v55 = vld [vmem:[%s1 + $0x80] sm:$0xf]
  %v56 = vld [vmem:[%s1 + $0x84] sm:$0xf]
  %v57 = vld [vmem:[%s1 + $0x88] sm:$0xf]
  %v58 = vld [vmem:[%s1 + $0x8c] sm:$0xf]
  %v59 = vld [vmem:[%s1 + $0x90] sm:$0xf]
  %v60 = vld [vmem:[%s1 + $0x94] sm:$0xf]
  %v61 = vld [vmem:[%s1 + $0x98] sm:$0xf]
  %v62 = vld [vmem:[%s1 + $0x9c] sm:$0xf]
  %v63 = vld [vmem:[%s1 + $0xa0] sm:$0xf]
  %v64 = vld [vmem:[%s1 + $0xa4] sm:$0xf]
  %v65 = vld [vmem:[%s1 + $0xa8] sm:$0xf]
  %v66 = vld [vmem:[%s1 + $0xac] sm:$0xf]
  %v67 = vld [vmem:[%s1 + $0xb0] sm:$0xf]
  %v68 = vld [vmem:[%s1 + $0xb4] sm:$0xf]
  %v69 = vld [vmem:[%s1 + $0xb8] sm:$0xf]
  %v70 = vld [vmem:[%s1 + $0xbc] sm:$0xf]
  %v71 = vld [vmem:[%s1 + $0xc0] sm:$0xf]
  %v72 = vld [vmem:[%s1 + $0xc4] sm:$0xf]
  %v73 = vld [vmem:[%s1 + $0xc8] sm:$0xf]
  %v74 = vld [vmem:[%s1 + $0xcc] sm:$0xf]
  %v75 = vld [vmem:[%s1 + $0xd0] sm:$0xf]
  %v76 = vld [vmem:[%s1 + $0xd4] sm:$0xf]
  %v77 = vld [vmem:[%s1 + $0xd8] sm:$0xf]
  %v78 = vld [vmem:[%s1 + $0xdc] sm:$0xf]
  %v79 = vld [vmem:[%s1 + $0xe0] sm:$0xf]
  %v80 = vld [vmem:[%s1 + $0xe4] sm:$0xf]
  %v81 = vld [vmem:[%s1 + $0xe8] sm:$0xf]
  %v82 = vld [vmem:[%s1 + $0xec] sm:$0xf]
  %v83 = vld [vmem:[%s1 + $0xf0] sm:$0xf]
  %v84 = vld [vmem:[%s1 + $0xf4] sm:$0xf]
  %v85 = vld [vmem:[%s1 + $0xf8] sm:$0xf]
  %v86 = vld [vmem:[%s1 + $0xfc] sm:$0xf]
  %v87 = vld [vmem:[%s1 + $0x100] sm:$0xf]
  %v88 = vld [vmem:[%s1 + $0x104] sm:$0xf]
  %v89 = vld [vmem:[%s1 + $0x108] sm:$0xf]
  %v90 = vld [vmem:[%s1 + $0x10c] sm:$0xf]
  %v91 = vld [vmem:[%s1 + $0x110] sm:$0xf]
  %v92 = vld [vmem:[%s1 + $0x114] sm:$0xf]
  %v93 = vld [vmem:[%s1 + $0x118] sm:$0xf]
  %v94 = vld [vmem:[%s1 + $0x11c] sm:$0xf]
  %v95 = vld [vmem:[%s1 + $0x120] sm:$0xf]
  %v96 = vld [vmem:[%s1 + $0x124] sm:$0xf]
  %v97 = vld [vmem:[%s1 + $0x128] sm:$0xf]
  %v98 = vld [vmem:[%s1 + $0x12c] sm:$0xf]
  %v99 = vld [vmem:[%s1 + $0x130] sm:$0xf]
  %v100 = vld [vmem:[%s1 + $0x134] sm:$0xf]
  %v101 = vld [vmem:[%s1 + $0x138] sm:$0xf]
  %v102 = vld [vmem:[%s1 + $0x13c] sm:$0xf]
  %v109 = vunpack.c.l.b16 %v17
  %v110 = vunpack.c.h.b16 %v17
  %v111 = vunpack.c.l.b16 %v18
  %v112 = vunpack.c.h.b16 %v18
  %v113 = vunpack.c.l.b16 %v19
  %v114 = vunpack.c.l.b16 %v20
  %v115 = vunpack.c.h.b16 %v20
  %v116 = vunpack.c.l.b16 %v21
  %v117 = vunpack.c.h.b16 %v21
  %v118 = vunpack.c.l.b16 %v22
  %v119 = vpack.c.b16 %v114, %v109
  %v120 = vpack.c.b16 %v115, %v110
  %v121 = vpack.c.b16 %v116, %v111
  %v122 = vpack.c.b16 %v117, %v112
  %v123 = vpack.c.b16 %v118, %v113
  %v209 = vunpack.c.l.b16 %v23
  %v210 = vunpack.c.l.b16 %v24
  %v211 = vunpack.c.l.b16 %v25
  %v212 = vunpack.c.l.b16 %v26
  %v213 = vunpack.c.l.b16 %v27
  %v214 = vunpack.c.l.b16 %v28
  %v215 = vunpack.c.l.b16 %v29
  %v216 = vunpack.c.l.b16 %v30
  %v217 = vunpack.c.l.b16 %v31
  %v218 = vunpack.c.l.b16 %v32
  %v219 = vunpack.c.l.b16 %v33
  %v220 = vunpack.c.l.b16 %v34
  %v221 = vunpack.c.l.b16 %v35
  %v222 = vunpack.c.l.b16 %v36
  %v223 = vunpack.c.l.b16 %v37
  %v224 = vunpack.c.l.b16 %v38
  %v225 = vunpack.c.l.b16 %v39
  %v226 = vunpack.c.l.b16 %v40
  %v227 = vunpack.c.l.b16 %v41
  %v228 = vunpack.c.l.b16 %v42
  %v229 = vunpack.c.l.b16 %v43
  %v230 = vunpack.c.l.b16 %v44
  %v231 = vunpack.c.l.b16 %v45
  %v232 = vunpack.c.l.b16 %v46
  %v233 = vunpack.c.l.b16 %v47
  %v234 = vunpack.c.l.b16 %v48
  %v235 = vunpack.c.l.b16 %v49
  %v236 = vunpack.c.l.b16 %v50
  %v237 = vunpack.c.l.b16 %v51
  %v238 = vunpack.c.l.b16 %v52
  %v239 = vunpack.c.l.b16 %v53
  %v240 = vunpack.c.l.b16 %v54
  %v241 = vunpack.c.l.b16 %v55
  %v242 = vunpack.c.l.b16 %v56
  %v243 = vunpack.c.l.b16 %v57
  %v244 = vunpack.c.l.b16 %v58
  %v245 = vunpack.c.l.b16 %v59
  %v246 = vunpack.c.l.b16 %v60
  %v247 = vunpack.c.l.b16 %v61
  %v248 = vunpack.c.l.b16 %v62
  %v249 = vunpack.c.l.b16 %v63
  %v250 = vunpack.c.l.b16 %v64
  %v251 = vunpack.c.l.b16 %v65
  %v252 = vunpack.c.l.b16 %v66
  %v253 = vunpack.c.l.b16 %v67
  %v254 = vunpack.c.l.b16 %v68
  %v255 = vunpack.c.l.b16 %v69
  %v256 = vunpack.c.l.b16 %v70
  %v257 = vunpack.c.l.b16 %v71
  %v258 = vunpack.c.l.b16 %v72
  %v259 = vunpack.c.l.b16 %v73
  %v260 = vunpack.c.l.b16 %v74
  %v261 = vunpack.c.l.b16 %v75
  %v262 = vunpack.c.l.b16 %v76
  %v263 = vunpack.c.l.b16 %v77
  %v264 = vunpack.c.l.b16 %v78
  %v265 = vunpack.c.l.b16 %v79
  %v266 = vunpack.c.l.b16 %v80
  %v267 = vunpack.c.l.b16 %v81
  %v268 = vunpack.c.l.b16 %v82
  %v269 = vunpack.c.l.b16 %v83
  %v270 = vunpack.c.l.b16 %v84
  %v271 = vunpack.c.l.b16 %v85
  %v272 = vunpack.c.l.b16 %v86
  %v273 = vunpack.c.l.b16 %v87
  %v274 = vunpack.c.l.b16 %v88
  %v275 = vunpack.c.l.b16 %v89
  %v276 = vunpack.c.l.b16 %v90
  %v277 = vunpack.c.l.b16 %v91
  %v278 = vunpack.c.l.b16 %v92
  %v279 = vunpack.c.l.b16 %v93
  %v280 = vunpack.c.l.b16 %v94
  %v281 = vunpack.c.l.b16 %v95
  %v282 = vunpack.c.l.b16 %v96
  %v283 = vunpack.c.l.b16 %v97
  %v284 = vunpack.c.l.b16 %v98
  %v285 = vunpack.c.l.b16 %v99
  %v286 = vunpack.c.l.b16 %v100
  %v287 = vunpack.c.l.b16 %v101
  %v288 = vunpack.c.l.b16 %v102
  %v289 = vpack.c.b16 %v210, %v209
  %v290 = vpack.c.b16 %v212, %v211
  %v291 = vpack.c.b16 %v214, %v213
  %v292 = vpack.c.b16 %v216, %v215
  %v293 = vpack.c.b16 %v218, %v217
  %v294 = vpack.c.b16 %v220, %v219
  %v295 = vpack.c.b16 %v222, %v221
  %v296 = vpack.c.b16 %v224, %v223
  %v297 = vpack.c.b16 %v226, %v225
  %v298 = vpack.c.b16 %v228, %v227
  %v299 = vpack.c.b16 %v230, %v229
  %v300 = vpack.c.b16 %v232, %v231
  %v301 = vpack.c.b16 %v234, %v233
  %v302 = vpack.c.b16 %v236, %v235
  %v303 = vpack.c.b16 %v238, %v237
  %v304 = vpack.c.b16 %v240, %v239
  %v305 = vpack.c.b16 %v242, %v241
  %v306 = vpack.c.b16 %v244, %v243
  %v307 = vpack.c.b16 %v246, %v245
  %v308 = vpack.c.b16 %v248, %v247
  %v309 = vpack.c.b16 %v250, %v249
  %v310 = vpack.c.b16 %v252, %v251
  %v311 = vpack.c.b16 %v254, %v253
  %v312 = vpack.c.b16 %v256, %v255
  %v313 = vpack.c.b16 %v258, %v257
  %v314 = vpack.c.b16 %v260, %v259
  %v315 = vpack.c.b16 %v262, %v261
  %v316 = vpack.c.b16 %v264, %v263
  %v317 = vpack.c.b16 %v266, %v265
  %v318 = vpack.c.b16 %v268, %v267
  %v319 = vpack.c.b16 %v270, %v269
  %v320 = vpack.c.b16 %v272, %v271
  %v321 = vpack.c.b16 %v274, %v273
  %v322 = vpack.c.b16 %v276, %v275
  %v323 = vpack.c.b16 %v278, %v277
  %v324 = vpack.c.b16 %v280, %v279
  %v325 = vpack.c.b16 %v282, %v281
  %v326 = vpack.c.b16 %v284, %v283
  %v327 = vpack.c.b16 %v286, %v285
  %v328 = vpack.c.b16 %v288, %v287
  %369 = vmatpush.bf16.msra.mxu0 %v296
  %370 = vmatpush.bf16.msra.mxu0 %v295
  %371 = vmatpush.bf16.msra.mxu0 %v294
  %372 = vmatpush.bf16.msra.mxu0 %v293
  %373 = vmatpush.bf16.msra.mxu0 %v292
  %374 = vmatpush.bf16.msra.mxu0 %v291
  %375 = vmatpush.bf16.msra.mxu0 %v290
  %376 = vmatpush.bf16.msra.mxu0 %v289
  %377 = vmatmul.bf16.gmra.mxu0 %v119
  %v378 = vpop.f32.mrf.mxu0
  %v379 = vadd.f32 0.0, %v378
  %v380 = vpop.f32.mrf.mxu0
  %v381 = vadd.f32 0.0, %v380
  %382 = vdwg.mxu0
  %383 = vmatpush.bf16.msra.mxu0 %v304
  %384 = vmatpush.bf16.msra.mxu0 %v303
  %385 = vmatpush.bf16.msra.mxu0 %v302
  %386 = vmatpush.bf16.msra.mxu0 %v301
  %387 = vmatpush.bf16.msra.mxu0 %v300
  %388 = vmatpush.bf16.msra.mxu0 %v299
  %389 = vmatpush.bf16.msra.mxu0 %v298
  %390 = vmatpush.bf16.msra.mxu0 %v297
  %391 = vmatmul.bf16.gmra.mxu0 %v120
  %v392 = vpop.f32.mrf.mxu0
  %v393 = vadd.f32 %v379, %v392
  %v394 = vpop.f32.mrf.mxu0
  %v395 = vadd.f32 %v381, %v394
  %396 = vdwg.mxu0
  %397 = vmatpush.bf16.msra.mxu0 %v312
  %398 = vmatpush.bf16.msra.mxu0 %v311
  %399 = vmatpush.bf16.msra.mxu0 %v310
  %400 = vmatpush.bf16.msra.mxu0 %v309
  %401 = vmatpush.bf16.msra.mxu0 %v308
  %402 = vmatpush.bf16.msra.mxu0 %v307
  %403 = vmatpush.bf16.msra.mxu0 %v306
  %404 = vmatpush.bf16.msra.mxu0 %v305
  %405 = vmatmul.bf16.gmra.mxu0 %v121
  %v406 = vpop.f32.mrf.mxu0
  %v407 = vadd.f32 %v393, %v406
  %v408 = vpop.f32.mrf.mxu0
  %v409 = vadd.f32 %v395, %v408
  %410 = vdwg.mxu0
  %411 = vmatpush.bf16.msra.mxu0 %v320
  %412 = vmatpush.bf16.msra.mxu0 %v319
  %413 = vmatpush.bf16.msra.mxu0 %v318
  %414 = vmatpush.bf16.msra.mxu0 %v317
  %415 = vmatpush.bf16.msra.mxu0 %v316
  %416 = vmatpush.bf16.msra.mxu0 %v315
  %417 = vmatpush.bf16.msra.mxu0 %v314
  %418 = vmatpush.bf16.msra.mxu0 %v313
  %419 = vmatmul.bf16.gmra.mxu0 %v122
  %v420 = vpop.f32.mrf.mxu0
  %v421 = vadd.f32 %v407, %v420
  %v422 = vpop.f32.mrf.mxu0
  %v423 = vadd.f32 %v409, %v422
  %424 = vdwg.mxu0
  %425 = vmatpush.bf16.msra.mxu0 %v328
  %426 = vmatpush.bf16.msra.mxu0 %v327
  %427 = vmatpush.bf16.msra.mxu0 %v326
  %428 = vmatpush.bf16.msra.mxu0 %v325
  %429 = vmatpush.bf16.msra.mxu0 %v324
  %430 = vmatpush.bf16.msra.mxu0 %v323
  %431 = vmatpush.bf16.msra.mxu0 %v322
  %432 = vmatpush.bf16.msra.mxu0 %v321
  %433 = vmatmul.bf16.gmra.mxu0 %v123
  %v434 = vpop.f32.mrf.mxu0
  %v435 = vadd.f32 %v421, %v434
  %v436 = vpop.f32.mrf.mxu0
  %v437 = vadd.f32 %v423, %v436
  %438 = vdwg.mxu0
  %v439 = vld [vmem:[%s2] sm:$0x1]
  %v441 = vperm.slane %v439, 0
  %v443 = vmul.f32 %v435, %v441
  %v444 = vmul.f32 %v437, %v441
  %v445 = vld [vmem:[%s3] sm:$0x1]
  %v447 = vperm.slane %v445, 0
  %v449 = vadd.f32 %v443, %v447
  %v450 = vadd.f32 %v444, %v447
  %v451 = vmax.f32 %v449, 0.0
  %v452 = vmax.f32 %v450, 0.0
  %v453 = vpack.c.bf16 %v451, %v451
  %v454 = vpack.c.bf16 %v452, %v452
  %455 = vst [vmem:[%s4] sm:$0xf] %v453
  %456 = vst [vmem:[%s4 + $0x4] sm:$0xf] %v454
  // Predicated region
  $region18: #{encoder_cnn_forward.41} parent=0 // pred_check
    _
  $region19: #{encoder_cnn_forward.41} parent=0 // pred_check_branch
    %458 = sbr.rel (0) target = $region21
  $region20: #{encoder_cnn_forward.41} parent=0 // pred_region
    _
  $region21: #{encoder_cnn_forward.41} parent=0 // pred_fallthru
    _
  // Predicated region
  $region22: #{encoder_cnn_forward.41} parent=0 // pred_check
    _
  $region23: #{encoder_cnn_forward.41} parent=0 // pred_check_branch
    %460 = sbr.rel (0) target = $region25
  $region24: #{encoder_cnn_forward.41} parent=0 // pred_region
    _
  $region25: #{encoder_cnn_forward.41} parent=0 // pred_fallthru
    _

</llo_original>
